<compile_context>
chip_gen: v7x
topology: tpu7x:2x2x1
jax: 0.10.0
libtpu: 0.0.40
codegen_flags: <defaults>
</compile_context>

<pallas_src>
import functools

import numpy as np

import jax
import jax.numpy as jnp
from jax.experimental import pallas as pl
from jax.experimental.pallas import tpu as pltpu


def _pixel_norm(x):
    # PixelNorm over the channel axis (dim=1 in NCHW == last axis here).
    return x * jax.lax.rsqrt(jnp.mean(x * x, axis=-1, keepdims=True) + 1e-8)


def _leaky_relu(x):
    return jnp.where(x > 0, x, 0.2 * x)


def _generator_kernel(x_col_ref, w1_ref, b1_ref, w2_ref, b2_ref, w3_ref, b3_ref,
                      gmat_ref, o_ref, h1p_ref, h2p_ref, *, H, W):
    """Full Generator forward for one batch element, entirely in VMEM.

    x_col_ref: (1, H*W, 32)    bf16  conv1 im2col (3x3x3 taps, zero-padded to 32)
    w1_ref:    (32, 64)        bf16
    w2_ref:    (9, 64, 128)    bf16  conv2 per-tap weights (tap = kh*3+kw)
    w3_ref:    (9, 128, 48)    bf16  upsample-folded conv3 per-tap phase weights
    gmat_ref:  (48, 48)        bf16  block-diag group-mean matrix (final PixelNorm)
    b*_ref:    (1, C)          f32
    o_ref:     (1, H*W, 48)    f32   phase-packed output, channel order (py, px, c)
    h1p_ref:   (H+2, W+2, 64)  f32   conv2 input + zero halo
    h2p_ref:   (H+2, W+2, 128) f32   conv3 input + zero halo
    """
    f32 = jnp.float32
    bf16 = jnp.bfloat16
    HW = H * W
    C1, C2, P = 64, 128, 48

    # ---------------- Block 1: conv(3->64) as one im2col matmul ----------------
    z1 = jnp.dot(x_col_ref[0], w1_ref[...], preferred_element_type=f32)
    z1 = _leaky_relu(_pixel_norm(z1 + b1_ref[...]))               # (HW, 64) f32

    # Zero halo lives in VMEM.  The padded buffers are tiny now (~250 KiB
    # total), so a full zero-fill is cheaper/simpler than masked halo-only
    # column stores.
    h1p_ref[...] = jnp.zeros_like(h1p_ref)
    h1p_ref[1:H + 1, 1:W + 1, :] = z1.reshape(H, W, C1)

    # ---------------- Block 2: conv(64->128), 9-tap bf16 MXU accumulation ------
    # TODO(synk): a single K=576 im2col matmul (+ bf16 halo scratch) would cut
    # MXU pushes ~3x more, but needs 64-lane-offset stores / packed-sublane
    # slicing whose Mosaic lowering is not exercised by the proven patterns
    # used here.
    acc2 = jnp.broadcast_to(b2_ref[...], (HW, C2))                # bias-initialised
    for t in range(9):
        kh, kw = t // 3, t % 3
        win = h1p_ref[kh:kh + H, kw:kw + W, :].astype(bf16).reshape(HW, C1)
        acc2 = acc2 + jnp.dot(win, w2_ref[t], preferred_element_type=f32)
    z2 = _leaky_relu(_pixel_norm(acc2))                           # (HW, 128) f32

    h2p_ref[...] = jnp.zeros_like(h2p_ref)
    h2p_ref[1:H + 1, 1:W + 1, :] = z2.reshape(H, W, C2)

    # -------- Block 3 + 4x nearest upsample, folded into per-phase weights -----
    # 9 per-tap (128 -> 48) matmuls on the LOW-RES grid replace the old
    # full-resolution conv over the upsampled image (lane-dense N=48 output,
    # ~16x fewer MXU pushes, no upsample / im2col strip scratch).
    acc3 = jnp.broadcast_to(b3_ref[...], (HW, P))                 # bias-initialised
    for t in range(9):
        kh, kw = t // 3, t % 3
        win = h2p_ref[kh:kh + H, kw:kw + W, :].astype(bf16).reshape(HW, C2)
        acc3 = acc3 + jnp.dot(win, w3_ref[t], preferred_element_type=f32)

    # Final PixelNorm is over the 3 real channels inside each phase triple:
    # grouped mean of squares via a block-diagonal (48,48) matmul (avoids any
    # lane-axis reshape inside the kernel).
    msq = jnp.dot((acc3 * acc3).astype(bf16), gmat_ref[...],
                  preferred_element_type=f32)
    y = acc3 * jax.lax.rsqrt(msq + 1e-8)
    o_ref[0] = jnp.tanh(y).astype(o_ref.dtype)


def _generator_pallas(x_col, packed, *, H, W):
    N, HW, K1 = x_col.shape
    kernel = functools.partial(_generator_kernel, H=H, W=W)

    grid_spec = pltpu.PrefetchScalarGridSpec(
        num_scalar_prefetch=0,
        grid=(N,),
        in_specs=[
            pl.BlockSpec((1, HW, K1), lambda n: (n, 0, 0)),
            pl.BlockSpec((K1, 64), lambda n: (0, 0)),
            pl.BlockSpec((1, 64), lambda n: (0, 0)),
            pl.BlockSpec((9, 64, 128), lambda n: (0, 0, 0)),
            pl.BlockSpec((1, 128), lambda n: (0, 0)),
            pl.BlockSpec((9, 128, 48), lambda n: (0, 0, 0)),
            pl.BlockSpec((1, 48), lambda n: (0, 0)),
            pl.BlockSpec((48, 48), lambda n: (0, 0)),
        ],
        out_specs=pl.BlockSpec((1, HW, 48), lambda n: (n, 0, 0)),
        scratch_shapes=[
            pltpu.VMEM((H + 2, W + 2, 64), jnp.float32),    # padded h1
            pltpu.VMEM((H + 2, W + 2, 128), jnp.float32),   # padded h2
        ],
    )
    return pl.pallas_call(
        kernel,
        out_shape=jax.ShapeDtypeStruct((N, HW, 48), jnp.float32),
        grid_spec=grid_spec,
        compiler_params=pltpu.CompilerParams(
            dimension_semantics=("parallel",),   # v7x: one image per TensorCore
            vmem_limit_bytes=32 * 1024 * 1024,   # << 64 MiB physical on v7x
        ),
    )(x_col, packed["w1"], packed["b1"], packed["w2"], packed["b2"],
      packed["w3"], packed["b3"], packed["gmat"])


def init_params(key):
    """Deterministic parameter init; PyTorch layout (Cout, Cin, KH, KW)."""
    def conv(key, cin, cout, k=3):
        kw_, kb_ = jax.random.split(key)
        w = 0.05 * jax.random.normal(kw_, (cout, cin, k, k), jnp.float32)
        b = 0.01 * jax.random.normal(kb_, (cout,), jnp.float32)
        return w, b

    k1, k2, k3 = jax.random.split(key, 3)
    return {"conv1": conv(k1, 3, 64),
            "conv2": conv(k2, 64, 128),
            "final_conv": conv(k3, 128, 3)}


def pack_params(params):
    """One-time repack of PyTorch-layout weights into MXU-friendly layouts."""
    def hwio(w_oihw):
        return jnp.transpose(w_oihw, (2, 3, 1, 0))   # -> (KH, KW, Cin, Cout)

    w1, b1 = params["conv1"]
    w2, b2 = params["conv2"]
    w3, b3 = params["final_conv"]

    w1m = jnp.pad(hwio(w1).reshape(27, 64), ((0, 5), (0, 0)))      # K: 27 -> 32

    # Fold the 4x nearest upsample into conv3: output phase (py, px) tap
    # (dy, dx) of the upsampled conv reads low-res pixel
    # (i + floor((py+dy-1)/4), j + floor((px+dx-1)/4)), so accumulate the
    # original 3x3 weights into a low-res 3x3 tap grid per phase.  Zero-halo
    # indexing of h2 reproduces the upsampled conv's zero padding exactly.
    w3_hwio = np.asarray(hwio(w3), dtype=np.float32)               # (3,3,128,3)
    w3_eff = np.zeros((3, 3, 128, 4, 4, 3), dtype=np.float32)      # (ri,rj,cin,py,px,c)
    for py in range(4):
        for dy in range(3):
            ri = (py + dy - 1) // 4 + 1
            for px in range(4):
                for dx in range(3):
                    rj = (px + dx - 1) // 4 + 1
                    w3_eff[ri, rj, :, py, px, :] += w3_hwio[dy, dx]
    w3_eff = w3_eff.reshape(9, 128, 48)

    # Block-diagonal (48,48) group-mean matrix: mean of squares over the 3
    # channels of each of the 16 output phases (for the final PixelNorm).
    gmat = np.kron(np.eye(16, dtype=np.float32),
                   np.full((3, 3), 1.0 / 3.0, dtype=np.float32))

    return {
        "w1": w1m.astype(jnp.bfloat16),
        "b1": b1.reshape(1, 64).astype(jnp.float32),
        "w2": hwio(w2).reshape(9, 64, 128).astype(jnp.bfloat16),
        "b2": b2.reshape(1, 128).astype(jnp.float32),
        "w3": jnp.asarray(w3_eff, dtype=jnp.bfloat16),
        "b3": jnp.tile(b3, 16).reshape(1, 48).astype(jnp.float32),
        "gmat": jnp.asarray(gmat, dtype=jnp.bfloat16),
    }


def generator_forward(packed, x_nchw):
    """Full Generator forward. Input/output are NCHW like the PyTorch module."""
    x = jnp.transpose(x_nchw, (0, 2, 3, 1)).astype(jnp.float32)    # NHWC
    N, H, W, Cin = x.shape
    # conv1's im2col is left to XLA: the input is only H*W*3 values and Cin=3
    # would waste MXU depth / lane width if fed to the kernel raw.
    xp = jnp.pad(x, ((0, 0), (1, 1), (1, 1), (0, 0)))
    cols = [xp[:, kh:kh + H, kw:kw + W, :] for kh in range(3) for kw in range(3)]
    x_col = jnp.concatenate(cols, axis=-1).reshape(N, H * W, 9 * Cin)
    x_col = jnp.pad(x_col, ((0, 0), (0, 0), (0, 32 - 9 * Cin)))    # K: 27 -> 32
    x_col = x_col.astype(jnp.bfloat16)

    # Kernel returns the lane-dense phase-packed result (N, H*W, 16*3);
    # depth-to-space + layout transpose are cheap XLA ops (~49 KB / image).
    out_pp = _generator_pallas(x_col, packed, H=H, W=W)            # (N, H*W, 48)
    out = out_pp.reshape(N, H, W, 4, 4, 3)
    out = jnp.transpose(out, (0, 1, 3, 2, 4, 5)).reshape(N, 4 * H, 4 * W, 3)
    return jnp.transpose(out, (0, 3, 1, 2))                        # -> NCHW


def reference_forward(params, x_nchw):
    """Plain-XLA reference implementing the PyTorch module."""
    def block(x, w_oihw, b, act):
        w = jnp.transpose(w_oihw, (2, 3, 1, 0))                    # HWIO
        y = jax.lax.conv_general_dilated(
            x, w, window_strides=(1, 1), padding=((1, 1), (1, 1)),
            dimension_numbers=("NHWC", "HWIO", "NHWC"))
        y = y + b[None, None, None, :]
        y = y * jax.lax.rsqrt(jnp.mean(y * y, axis=-1, keepdims=True) + 1e-8)
        return jnp.where(y > 0, y, 0.2 * y) if act == "lrelu" else jnp.tanh(y)

    x = jnp.transpose(x_nchw, (0, 2, 3, 1))
    x = block(x, *params["conv1"], "lrelu")
    x = block(x, *params["conv2"], "lrelu")
    x = jnp.repeat(jnp.repeat(x, 4, axis=1), 4, axis=2)
    x = block(x, *params["final_conv"], "tanh")
    return jnp.transpose(x, (0, 3, 1, 2))


if __name__ == "__main__":
    key = jax.random.PRNGKey(0)
    k_params, k_x = jax.random.split(key)

    params = init_params(k_params)
    packed = pack_params(params)
    x = jax.random.normal(k_x, (2, 3, 16, 16), dtype=jnp.float32)   # NCHW

    out = jax.jit(generator_forward)(packed, x)
    out = jax.block_until_ready(out)

    assert out.shape == (2, 3, 64, 64), out.shape
    assert bool(jnp.all(jnp.isfinite(out)))

    # Loose functional check vs. XLA reference (kernel uses bf16 MXU operands).
    ref = reference_forward(params, x)
    mean_err = float(jnp.mean(jnp.abs(out - ref)))
    assert mean_err < 3e-2, mean_err

    print("KERNEL_OK")
</pallas_src>

<mosaic_0001>
module attributes {stable_mosaic.version = 11 : i64} {
  func.func @_generator_kernel(%arg0: i32, %arg1: memref<1x256x32xbf16, #tpu.memory_space<vmem>>, %arg2: memref<32x64xbf16, #tpu.memory_space<vmem>>, %arg3: memref<1x64xf32, #tpu.memory_space<vmem>>, %arg4: memref<9x64x128xbf16, #tpu.memory_space<vmem>>, %arg5: memref<1x128xf32, #tpu.memory_space<vmem>>, %arg6: memref<9x128x48xbf16, #tpu.memory_space<vmem>>, %arg7: memref<1x48xf32, #tpu.memory_space<vmem>>, %arg8: memref<48x48xbf16, #tpu.memory_space<vmem>>, %arg9: memref<1x256x48xf32, #tpu.memory_space<vmem>>, %arg10: memref<18x18x64xf32, #tpu.memory_space<vmem>>, %arg11: memref<18x18x128xf32, #tpu.memory_space<vmem>>) attributes {dimension_semantics = [#tpu.dimension_semantics<parallel>], iteration_bounds = array<i64: 2>, scalar_prefetch = 0 : i64, scratch_operands = 2 : i64, tpu.core_type = #tpu.core_type<tc>, window_params = [{transform_indices = @transform_0, window_bounds = array<i64: 1, 256, 32>}, {pipeline_mode = #tpu.pipeline_mode<synchronous>, transform_indices = @transform_1, window_bounds = array<i64: 32, 64>}, {pipeline_mode = #tpu.pipeline_mode<synchronous>, transform_indices = @transform_2, window_bounds = array<i64: 1, 64>}, {pipeline_mode = #tpu.pipeline_mode<synchronous>, transform_indices = @transform_3, window_bounds = array<i64: 9, 64, 128>}, {pipeline_mode = #tpu.pipeline_mode<synchronous>, transform_indices = @transform_4, window_bounds = array<i64: 1, 128>}, {pipeline_mode = #tpu.pipeline_mode<synchronous>, transform_indices = @transform_5, window_bounds = array<i64: 9, 128, 48>}, {pipeline_mode = #tpu.pipeline_mode<synchronous>, transform_indices = @transform_6, window_bounds = array<i64: 1, 48>}, {pipeline_mode = #tpu.pipeline_mode<synchronous>, transform_indices = @transform_7, window_bounds = array<i64: 48, 48>}, {transform_indices = @transform_8, window_bounds = array<i64: 1, 256, 48>}]} {
    %c0 = arith.constant 0 : index
    %c0_0 = arith.constant 0 : index
    %c0_1 = arith.constant 0 : index
    %0 = vector.load %arg1[%c0, %c0_0, %c0_1] : memref<1x256x32xbf16, #tpu.memory_space<vmem>>, vector<1x256x32xbf16>
    %1 = vector.shape_cast %0 : vector<1x256x32xbf16> to vector<256x32xbf16>
    %c0_2 = arith.constant 0 : index
    %c0_3 = arith.constant 0 : index
    %2 = vector.load %arg2[%c0_2, %c0_3] : memref<32x64xbf16, #tpu.memory_space<vmem>>, vector<32x64xbf16>
    %cst = arith.constant dense<0.000000e+00> : vector<256x64xf32>
    %3 = tpu.matmul %1, %2, %cst {dimension_numbers = #tpu.dot_dimension_numbers<[1], [0], [0], [1], [0, 0, 1, 1], [], []>} : vector<256x32xbf16>, vector<32x64xbf16>, vector<256x64xf32> -> vector<256x64xf32>
    %c0_4 = arith.constant 0 : index
    %c0_5 = arith.constant 0 : index
    %4 = vector.load %arg3[%c0_4, %c0_5] : memref<1x64xf32, #tpu.memory_space<vmem>>, vector<1x64xf32>
    %5 = vector.broadcast %4 : vector<1x64xf32> to vector<256x64xf32>
    %6 = arith.addf %3, %5 : vector<256x64xf32>
    %7 = arith.mulf %6, %6 : vector<256x64xf32>
    %cst_6 = arith.constant dense<0.000000e+00> : vector<256xf32>
    %8 = vector.multi_reduction <add>, %7, %cst_6 [1] : vector<256x64xf32> to vector<256xf32>
    %9 = vector.shape_cast %8 : vector<256xf32> to vector<256x1xf32>
    %cst_7 = arith.constant 6.400000e+01 : f32
    %10 = vector.broadcast %cst_7 : f32 to vector<256x1xf32>
    %11 = arith.divf %9, %10 : vector<256x1xf32>
    %cst_8 = arith.constant 9.99999993E-9 : f32
    %12 = vector.broadcast %cst_8 : f32 to vector<256x1xf32>
    %13 = arith.addf %11, %12 : vector<256x1xf32>
    %14 = math.rsqrt %13 : vector<256x1xf32>
    %15 = vector.broadcast %14 : vector<256x1xf32> to vector<256x64xf32>
    %16 = arith.mulf %6, %15 : vector<256x64xf32>
    %cst_9 = arith.constant 0.000000e+00 : f32
    %17 = vector.broadcast %cst_9 : f32 to vector<256x64xf32>
    %18 = arith.cmpf ogt, %16, %17 : vector<256x64xf32>
    %cst_10 = arith.constant 2.000000e-01 : f32
    %19 = vector.broadcast %cst_10 : f32 to vector<256x64xf32>
    %20 = arith.mulf %19, %16 : vector<256x64xf32>
    %21 = arith.select %18, %16, %20 : vector<256x64xi1>, vector<256x64xf32>
    %cst_11 = arith.constant 0.000000e+00 : f32
    %22 = vector.broadcast %cst_11 : f32 to vector<18x18x64xf32>
    %c0_12 = arith.constant 0 : index
    %c0_13 = arith.constant 0 : index
    %c0_14 = arith.constant 0 : index
    %23 = vector.load %arg10[%c0_12, %c0_13, %c0_14] : memref<18x18x64xf32, #tpu.memory_space<vmem>>, vector<18x18x64xf32>
    tpu.vector_store %arg10[%c0_12, %c0_13, %c0_14], %22 {strides = array<i32>} : memref<18x18x64xf32, #tpu.memory_space<vmem>>, vector<18x18x64xf32>,
    %24 = vector.shape_cast %21 : vector<256x64xf32> to vector<16x16x64xf32>
    %c1 = arith.constant 1 : index
    %c1_15 = arith.constant 1 : index
    %c0_16 = arith.constant 0 : index
    %25 = vector.load %arg10[%c1, %c1_15, %c0_16] : memref<18x18x64xf32, #tpu.memory_space<vmem>>, vector<16x16x64xf32>
    tpu.vector_store %arg10[%c1, %c1_15, %c0_16], %24 {strides = array<i32>} : memref<18x18x64xf32, #tpu.memory_space<vmem>>, vector<16x16x64xf32>,
    %c0_17 = arith.constant 0 : index
    %c0_18 = arith.constant 0 : index
    %26 = vector.load %arg5[%c0_17, %c0_18] : memref<1x128xf32, #tpu.memory_space<vmem>>, vector<1x128xf32>
    %27 = vector.shape_cast %26 : vector<1x128xf32> to vector<1x128xf32>
    %28 = vector.broadcast %27 : vector<1x128xf32> to vector<256x128xf32>
    %c0_19 = arith.constant 0 : index
    %c0_20 = arith.constant 0 : index
    %c0_21 = arith.constant 0 : index
    %29 = vector.load %arg10[%c0_19, %c0_20, %c0_21] : memref<18x18x64xf32, #tpu.memory_space<vmem>>, vector<16x16x64xf32>
    %30 = arith.truncf %29 : vector<16x16x64xf32> to vector<16x16x64xbf16>
    %31 = vector.shape_cast %30 : vector<16x16x64xbf16> to vector<256x64xbf16>
    %c0_22 = arith.constant 0 : index
    %c0_23 = arith.constant 0 : index
    %c0_24 = arith.constant 0 : index
    %32 = vector.load %arg4[%c0_22, %c0_23, %c0_24] : memref<9x64x128xbf16, #tpu.memory_space<vmem>>, vector<1x64x128xbf16>
    %33 = vector.shape_cast %32 : vector<1x64x128xbf16> to vector<64x128xbf16>
    %cst_25 = arith.constant dense<0.000000e+00> : vector<256x128xf32>
    %34 = tpu.matmul %31, %33, %cst_25 {dimension_numbers = #tpu.dot_dimension_numbers<[1], [0], [0], [1], [0, 0, 1, 1], [], []>} : vector<256x64xbf16>, vector<64x128xbf16>, vector<256x128xf32> -> vector<256x128xf32>
    %35 = arith.addf %28, %34 : vector<256x128xf32>
    %c0_26 = arith.constant 0 : index
    %c1_27 = arith.constant 1 : index
    %c0_28 = arith.constant 0 : index
    %36 = vector.load %arg10[%c0_26, %c1_27, %c0_28] : memref<18x18x64xf32, #tpu.memory_space<vmem>>, vector<16x16x64xf32>
    %37 = arith.truncf %36 : vector<16x16x64xf32> to vector<16x16x64xbf16>
    %38 = vector.shape_cast %37 : vector<16x16x64xbf16> to vector<256x64xbf16>
    %c1_29 = arith.constant 1 : index
    %c0_30 = arith.constant 0 : index
    %c0_31 = arith.constant 0 : index
    %39 = vector.load %arg4[%c1_29, %c0_30, %c0_31] : memref<9x64x128xbf16, #tpu.memory_space<vmem>>, vector<1x64x128xbf16>
    %40 = vector.shape_cast %39 : vector<1x64x128xbf16> to vector<64x128xbf16>
    %cst_32 = arith.constant dense<0.000000e+00> : vector<256x128xf32>
    %41 = tpu.matmul %38, %40, %cst_32 {dimension_numbers = #tpu.dot_dimension_numbers<[1], [0], [0], [1], [0, 0, 1, 1], [], []>} : vector<256x64xbf16>, vector<64x128xbf16>, vector<256x128xf32> -> vector<256x128xf32>
    %42 = arith.addf %35, %41 : vector<256x128xf32>
    %c0_33 = arith.constant 0 : index
    %c2 = arith.constant 2 : index
    %c0_34 = arith.constant 0 : index
    %43 = vector.load %arg10[%c0_33, %c2, %c0_34] : memref<18x18x64xf32, #tpu.memory_space<vmem>>, vector<16x16x64xf32>
    %44 = arith.truncf %43 : vector<16x16x64xf32> to vector<16x16x64xbf16>
    %45 = vector.shape_cast %44 : vector<16x16x64xbf16> to vector<256x64xbf16>
    %c2_35 = arith.constant 2 : index
    %c0_36 = arith.constant 0 : index
    %c0_37 = arith.constant 0 : index
    %46 = vector.load %arg4[%c2_35, %c0_36, %c0_37] : memref<9x64x128xbf16, #tpu.memory_space<vmem>>, vector<1x64x128xbf16>
    %47 = vector.shape_cast %46 : vector<1x64x128xbf16> to vector<64x128xbf16>
    %cst_38 = arith.constant dense<0.000000e+00> : vector<256x128xf32>
    %48 = tpu.matmul %45, %47, %cst_38 {dimension_numbers = #tpu.dot_dimension_numbers<[1], [0], [0], [1], [0, 0, 1, 1], [], []>} : vector<256x64xbf16>, vector<64x128xbf16>, vector<256x128xf32> -> vector<256x128xf32>
    %49 = arith.addf %42, %48 : vector<256x128xf32>
    %c1_39 = arith.constant 1 : index
    %c0_40 = arith.constant 0 : index
    %c0_41 = arith.constant 0 : index
    %50 = vector.load %arg10[%c1_39, %c0_40, %c0_41] : memref<18x18x64xf32, #tpu.memory_space<vmem>>, vector<16x16x64xf32>
    %51 = arith.truncf %50 : vector<16x16x64xf32> to vector<16x16x64xbf16>
    %52 = vector.shape_cast %51 : vector<16x16x64xbf16> to vector<256x64xbf16>
    %c3 = arith.constant 3 : index
    %c0_42 = arith.constant 0 : index
    %c0_43 = arith.constant 0 : index
    %53 = vector.load %arg4[%c3, %c0_42, %c0_43] : memref<9x64x128xbf16, #tpu.memory_space<vmem>>, vector<1x64x128xbf16>
    %54 = vector.shape_cast %53 : vector<1x64x128xbf16> to vector<64x128xbf16>
    %cst_44 = arith.constant dense<0.000000e+00> : vector<256x128xf32>
    %55 = tpu.matmul %52, %54, %cst_44 {dimension_numbers = #tpu.dot_dimension_numbers<[1], [0], [0], [1], [0, 0, 1, 1], [], []>} : vector<256x64xbf16>, vector<64x128xbf16>, vector<256x128xf32> -> vector<256x128xf32>
    %56 = arith.addf %49, %55 : vector<256x128xf32>
    %c1_45 = arith.constant 1 : index
    %c1_46 = arith.constant 1 : index
    %c0_47 = arith.constant 0 : index
    %57 = vector.load %arg10[%c1_45, %c1_46, %c0_47] : memref<18x18x64xf32, #tpu.memory_space<vmem>>, vector<16x16x64xf32>
    %58 = arith.truncf %57 : vector<16x16x64xf32> to vector<16x16x64xbf16>
    %59 = vector.shape_cast %58 : vector<16x16x64xbf16> to vector<256x64xbf16>
    %c4 = arith.constant 4 : index
    %c0_48 = arith.constant 0 : index
    %c0_49 = arith.constant 0 : index
    %60 = vector.load %arg4[%c4, %c0_48, %c0_49] : memref<9x64x128xbf16, #tpu.memory_space<vmem>>, vector<1x64x128xbf16>
    %61 = vector.shape_cast %60 : vector<1x64x128xbf16> to vector<64x128xbf16>
    %cst_50 = arith.constant dense<0.000000e+00> : vector<256x128xf32>
    %62 = tpu.matmul %59, %61, %cst_50 {dimension_numbers = #tpu.dot_dimension_numbers<[1], [0], [0], [1], [0, 0, 1, 1], [], []>} : vector<256x64xbf16>, vector<64x128xbf16>, vector<256x128xf32> -> vector<256x128xf32>
    %63 = arith.addf %56, %62 : vector<256x128xf32>
    %c1_51 = arith.constant 1 : index
    %c2_52 = arith.constant 2 : index
    %c0_53 = arith.constant 0 : index
    %64 = vector.load %arg10[%c1_51, %c2_52, %c0_53] : memref<18x18x64xf32, #tpu.memory_space<vmem>>, vector<16x16x64xf32>
    %65 = arith.truncf %64 : vector<16x16x64xf32> to vector<16x16x64xbf16>
    %66 = vector.shape_cast %65 : vector<16x16x64xbf16> to vector<256x64xbf16>
    %c5 = arith.constant 5 : index
    %c0_54 = arith.constant 0 : index
    %c0_55 = arith.constant 0 : index
    %67 = vector.load %arg4[%c5, %c0_54, %c0_55] : memref<9x64x128xbf16, #tpu.memory_space<vmem>>, vector<1x64x128xbf16>
    %68 = vector.shape_cast %67 : vector<1x64x128xbf16> to vector<64x128xbf16>
    %cst_56 = arith.constant dense<0.000000e+00> : vector<256x128xf32>
    %69 = tpu.matmul %66, %68, %cst_56 {dimension_numbers = #tpu.dot_dimension_numbers<[1], [0], [0], [1], [0, 0, 1, 1], [], []>} : vector<256x64xbf16>, vector<64x128xbf16>, vector<256x128xf32> -> vector<256x128xf32>
    %70 = arith.addf %63, %69 : vector<256x128xf32>
    %c2_57 = arith.constant 2 : index
    %c0_58 = arith.constant 0 : index
    %c0_59 = arith.constant 0 : index
    %71 = vector.load %arg10[%c2_57, %c0_58, %c0_59] : memref<18x18x64xf32, #tpu.memory_space<vmem>>, vector<16x16x64xf32>
    %72 = arith.truncf %71 : vector<16x16x64xf32> to vector<16x16x64xbf16>
    %73 = vector.shape_cast %72 : vector<16x16x64xbf16> to vector<256x64xbf16>
    %c6 = arith.constant 6 : index
    %c0_60 = arith.constant 0 : index
    %c0_61 = arith.constant 0 : index
    %74 = vector.load %arg4[%c6, %c0_60, %c0_61] : memref<9x64x128xbf16, #tpu.memory_space<vmem>>, vector<1x64x128xbf16>
    %75 = vector.shape_cast %74 : vector<1x64x128xbf16> to vector<64x128xbf16>
    %cst_62 = arith.constant dense<0.000000e+00> : vector<256x128xf32>
    %76 = tpu.matmul %73, %75, %cst_62 {dimension_numbers = #tpu.dot_dimension_numbers<[1], [0], [0], [1], [0, 0, 1, 1], [], []>} : vector<256x64xbf16>, vector<64x128xbf16>, vector<256x128xf32> -> vector<256x128xf32>
    %77 = arith.addf %70, %76 : vector<256x128xf32>
    %c2_63 = arith.constant 2 : index
    %c1_64 = arith.constant 1 : index
    %c0_65 = arith.constant 0 : index
    %78 = vector.load %arg10[%c2_63, %c1_64, %c0_65] : memref<18x18x64xf32, #tpu.memory_space<vmem>>, vector<16x16x64xf32>
    %79 = arith.truncf %78 : vector<16x16x64xf32> to vector<16x16x64xbf16>
    %80 = vector.shape_cast %79 : vector<16x16x64xbf16> to vector<256x64xbf16>
    %c7 = arith.constant 7 : index
    %c0_66 = arith.constant 0 : index
    %c0_67 = arith.constant 0 : index
    %81 = vector.load %arg4[%c7, %c0_66, %c0_67] : memref<9x64x128xbf16, #tpu.memory_space<vmem>>, vector<1x64x128xbf16>
    %82 = vector.shape_cast %81 : vector<1x64x128xbf16> to vector<64x128xbf16>
    %cst_68 = arith.constant dense<0.000000e+00> : vector<256x128xf32>
    %83 = tpu.matmul %80, %82, %cst_68 {dimension_numbers = #tpu.dot_dimension_numbers<[1], [0], [0], [1], [0, 0, 1, 1], [], []>} : vector<256x64xbf16>, vector<64x128xbf16>, vector<256x128xf32> -> vector<256x128xf32>
    %84 = arith.addf %77, %83 : vector<256x128xf32>
    %c2_69 = arith.constant 2 : index
    %c2_70 = arith.constant 2 : index
    %c0_71 = arith.constant 0 : index
    %85 = vector.load %arg10[%c2_69, %c2_70, %c0_71] : memref<18x18x64xf32, #tpu.memory_space<vmem>>, vector<16x16x64xf32>
    %86 = arith.truncf %85 : vector<16x16x64xf32> to vector<16x16x64xbf16>
    %87 = vector.shape_cast %86 : vector<16x16x64xbf16> to vector<256x64xbf16>
    %c8 = arith.constant 8 : index
    %c0_72 = arith.constant 0 : index
    %c0_73 = arith.constant 0 : index
    %88 = vector.load %arg4[%c8, %c0_72, %c0_73] : memref<9x64x128xbf16, #tpu.memory_space<vmem>>, vector<1x64x128xbf16>
    %89 = vector.shape_cast %88 : vector<1x64x128xbf16> to vector<64x128xbf16>
    %cst_74 = arith.constant dense<0.000000e+00> : vector<256x128xf32>
    %90 = tpu.matmul %87, %89, %cst_74 {dimension_numbers = #tpu.dot_dimension_numbers<[1], [0], [0], [1], [0, 0, 1, 1], [], []>} : vector<256x64xbf16>, vector<64x128xbf16>, vector<256x128xf32> -> vector<256x128xf32>
    %91 = arith.addf %84, %90 : vector<256x128xf32>
    %92 = arith.mulf %91, %91 : vector<256x128xf32>
    %cst_75 = arith.constant dense<0.000000e+00> : vector<256xf32>
    %93 = vector.multi_reduction <add>, %92, %cst_75 [1] : vector<256x128xf32> to vector<256xf32>
    %94 = vector.shape_cast %93 : vector<256xf32> to vector<256x1xf32>
    %cst_76 = arith.constant 1.280000e+02 : f32
    %95 = vector.broadcast %cst_76 : f32 to vector<256x1xf32>
    %96 = arith.divf %94, %95 : vector<256x1xf32>
    %cst_77 = arith.constant 9.99999993E-9 : f32
    %97 = vector.broadcast %cst_77 : f32 to vector<256x1xf32>
    %98 = arith.addf %96, %97 : vector<256x1xf32>
    %99 = math.rsqrt %98 : vector<256x1xf32>
    %100 = vector.broadcast %99 : vector<256x1xf32> to vector<256x128xf32>
    %101 = arith.mulf %91, %100 : vector<256x128xf32>
    %cst_78 = arith.constant 0.000000e+00 : f32
    %102 = vector.broadcast %cst_78 : f32 to vector<256x128xf32>
    %103 = arith.cmpf ogt, %101, %102 : vector<256x128xf32>
    %cst_79 = arith.constant 2.000000e-01 : f32
    %104 = vector.broadcast %cst_79 : f32 to vector<256x128xf32>
    %105 = arith.mulf %104, %101 : vector<256x128xf32>
    %106 = arith.select %103, %101, %105 : vector<256x128xi1>, vector<256x128xf32>
    %cst_80 = arith.constant 0.000000e+00 : f32
    %107 = vector.broadcast %cst_80 : f32 to vector<18x18x128xf32>
    %c0_81 = arith.constant 0 : index
    %c0_82 = arith.constant 0 : index
    %c0_83 = arith.constant 0 : index
    %108 = vector.load %arg11[%c0_81, %c0_82, %c0_83] : memref<18x18x128xf32, #tpu.memory_space<vmem>>, vector<18x18x128xf32>
    tpu.vector_store %arg11[%c0_81, %c0_82, %c0_83], %107 {strides = array<i32>} : memref<18x18x128xf32, #tpu.memory_space<vmem>>, vector<18x18x128xf32>,
    %109 = vector.shape_cast %106 : vector<256x128xf32> to vector<16x16x128xf32>
    %c1_84 = arith.constant 1 : index
    %c1_85 = arith.constant 1 : index
    %c0_86 = arith.constant 0 : index
    %110 = vector.load %arg11[%c1_84, %c1_85, %c0_86] : memref<18x18x128xf32, #tpu.memory_space<vmem>>, vector<16x16x128xf32>
    tpu.vector_store %arg11[%c1_84, %c1_85, %c0_86], %109 {strides = array<i32>} : memref<18x18x128xf32, #tpu.memory_space<vmem>>, vector<16x16x128xf32>,
    %c0_87 = arith.constant 0 : index
    %c0_88 = arith.constant 0 : index
    %111 = vector.load %arg7[%c0_87, %c0_88] : memref<1x48xf32, #tpu.memory_space<vmem>>, vector<1x48xf32>
    %112 = vector.shape_cast %111 : vector<1x48xf32> to vector<1x48xf32>
    %113 = vector.broadcast %112 : vector<1x48xf32> to vector<256x48xf32>
    %c0_89 = arith.constant 0 : index
    %c0_90 = arith.constant 0 : index
    %c0_91 = arith.constant 0 : index
    %114 = vector.load %arg11[%c0_89, %c0_90, %c0_91] : memref<18x18x128xf32, #tpu.memory_space<vmem>>, vector<16x16x128xf32>
    %115 = arith.truncf %114 : vector<16x16x128xf32> to vector<16x16x128xbf16>
    %116 = vector.shape_cast %115 : vector<16x16x128xbf16> to vector<256x128xbf16>
    %c0_92 = arith.constant 0 : index
    %c0_93 = arith.constant 0 : index
    %c0_94 = arith.constant 0 : index
    %117 = vector.load %arg6[%c0_92, %c0_93, %c0_94] : memref<9x128x48xbf16, #tpu.memory_space<vmem>>, vector<1x128x48xbf16>
    %118 = vector.shape_cast %117 : vector<1x128x48xbf16> to vector<128x48xbf16>
    %cst_95 = arith.constant dense<0.000000e+00> : vector<256x48xf32>
    %119 = tpu.matmul %116, %118, %cst_95 {dimension_numbers = #tpu.dot_dimension_numbers<[1], [0], [0], [1], [0, 0, 1, 1], [], []>} : vector<256x128xbf16>, vector<128x48xbf16>, vector<256x48xf32> -> vector<256x48xf32>
    %120 = arith.addf %113, %119 : vector<256x48xf32>
    %c0_96 = arith.constant 0 : index
    %c1_97 = arith.constant 1 : index
    %c0_98 = arith.constant 0 : index
    %121 = vector.load %arg11[%c0_96, %c1_97, %c0_98] : memref<18x18x128xf32, #tpu.memory_space<vmem>>, vector<16x16x128xf32>
    %122 = arith.truncf %121 : vector<16x16x128xf32> to vector<16x16x128xbf16>
    %123 = vector.shape_cast %122 : vector<16x16x128xbf16> to vector<256x128xbf16>
    %c1_99 = arith.constant 1 : index
    %c0_100 = arith.constant 0 : index
    %c0_101 = arith.constant 0 : index
    %124 = vector.load %arg6[%c1_99, %c0_100, %c0_101] : memref<9x128x48xbf16, #tpu.memory_space<vmem>>, vector<1x128x48xbf16>
    %125 = vector.shape_cast %124 : vector<1x128x48xbf16> to vector<128x48xbf16>
    %cst_102 = arith.constant dense<0.000000e+00> : vector<256x48xf32>
    %126 = tpu.matmul %123, %125, %cst_102 {dimension_numbers = #tpu.dot_dimension_numbers<[1], [0], [0], [1], [0, 0, 1, 1], [], []>} : vector<256x128xbf16>, vector<128x48xbf16>, vector<256x48xf32> -> vector<256x48xf32>
    %127 = arith.addf %120, %126 : vector<256x48xf32>
    %c0_103 = arith.constant 0 : index
    %c2_104 = arith.constant 2 : index
    %c0_105 = arith.constant 0 : index
    %128 = vector.load %arg11[%c0_103, %c2_104, %c0_105] : memref<18x18x128xf32, #tpu.memory_space<vmem>>, vector<16x16x128xf32>
    %129 = arith.truncf %128 : vector<16x16x128xf32> to vector<16x16x128xbf16>
    %130 = vector.shape_cast %129 : vector<16x16x128xbf16> to vector<256x128xbf16>
    %c2_106 = arith.constant 2 : index
    %c0_107 = arith.constant 0 : index
    %c0_108 = arith.constant 0 : index
    %131 = vector.load %arg6[%c2_106, %c0_107, %c0_108] : memref<9x128x48xbf16, #tpu.memory_space<vmem>>, vector<1x128x48xbf16>
    %132 = vector.shape_cast %131 : vector<1x128x48xbf16> to vector<128x48xbf16>
    %cst_109 = arith.constant dense<0.000000e+00> : vector<256x48xf32>
    %133 = tpu.matmul %130, %132, %cst_109 {dimension_numbers = #tpu.dot_dimension_numbers<[1], [0], [0], [1], [0, 0, 1, 1], [], []>} : vector<256x128xbf16>, vector<128x48xbf16>, vector<256x48xf32> -> vector<256x48xf32>
    %134 = arith.addf %127, %133 : vector<256x48xf32>
    %c1_110 = arith.constant 1 : index
    %c0_111 = arith.constant 0 : index
    %c0_112 = arith.constant 0 : index
    %135 = vector.load %arg11[%c1_110, %c0_111, %c0_112] : memref<18x18x128xf32, #tpu.memory_space<vmem>>, vector<16x16x128xf32>
    %136 = arith.truncf %135 : vector<16x16x128xf32> to vector<16x16x128xbf16>
    %137 = vector.shape_cast %136 : vector<16x16x128xbf16> to vector<256x128xbf16>
    %c3_113 = arith.constant 3 : index
    %c0_114 = arith.constant 0 : index
    %c0_115 = arith.constant 0 : index
    %138 = vector.load %arg6[%c3_113, %c0_114, %c0_115] : memref<9x128x48xbf16, #tpu.memory_space<vmem>>, vector<1x128x48xbf16>
    %139 = vector.shape_cast %138 : vector<1x128x48xbf16> to vector<128x48xbf16>
    %cst_116 = arith.constant dense<0.000000e+00> : vector<256x48xf32>
    %140 = tpu.matmul %137, %139, %cst_116 {dimension_numbers = #tpu.dot_dimension_numbers<[1], [0], [0], [1], [0, 0, 1, 1], [], []>} : vector<256x128xbf16>, vector<128x48xbf16>, vector<256x48xf32> -> vector<256x48xf32>
    %141 = arith.addf %134, %140 : vector<256x48xf32>
    %c1_117 = arith.constant 1 : index
    %c1_118 = arith.constant 1 : index
    %c0_119 = arith.constant 0 : index
    %142 = vector.load %arg11[%c1_117, %c1_118, %c0_119] : memref<18x18x128xf32, #tpu.memory_space<vmem>>, vector<16x16x128xf32>
    %143 = arith.truncf %142 : vector<16x16x128xf32> to vector<16x16x128xbf16>
    %144 = vector.shape_cast %143 : vector<16x16x128xbf16> to vector<256x128xbf16>
    %c4_120 = arith.constant 4 : index
    %c0_121 = arith.constant 0 : index
    %c0_122 = arith.constant 0 : index
    %145 = vector.load %arg6[%c4_120, %c0_121, %c0_122] : memref<9x128x48xbf16, #tpu.memory_space<vmem>>, vector<1x128x48xbf16>
    %146 = vector.shape_cast %145 : vector<1x128x48xbf16> to vector<128x48xbf16>
    %cst_123 = arith.constant dense<0.000000e+00> : vector<256x48xf32>
    %147 = tpu.matmul %144, %146, %cst_123 {dimension_numbers = #tpu.dot_dimension_numbers<[1], [0], [0], [1], [0, 0, 1, 1], [], []>} : vector<256x128xbf16>, vector<128x48xbf16>, vector<256x48xf32> -> vector<256x48xf32>
    %148 = arith.addf %141, %147 : vector<256x48xf32>
    %c1_124 = arith.constant 1 : index
    %c2_125 = arith.constant 2 : index
    %c0_126 = arith.constant 0 : index
    %149 = vector.load %arg11[%c1_124, %c2_125, %c0_126] : memref<18x18x128xf32, #tpu.memory_space<vmem>>, vector<16x16x128xf32>
    %150 = arith.truncf %149 : vector<16x16x128xf32> to vector<16x16x128xbf16>
    %151 = vector.shape_cast %150 : vector<16x16x128xbf16> to vector<256x128xbf16>
    %c5_127 = arith.constant 5 : index
    %c0_128 = arith.constant 0 : index
    %c0_129 = arith.constant 0 : index
    %152 = vector.load %arg6[%c5_127, %c0_128, %c0_129] : memref<9x128x48xbf16, #tpu.memory_space<vmem>>, vector<1x128x48xbf16>
    %153 = vector.shape_cast %152 : vector<1x128x48xbf16> to vector<128x48xbf16>
    %cst_130 = arith.constant dense<0.000000e+00> : vector<256x48xf32>
    %154 = tpu.matmul %151, %153, %cst_130 {dimension_numbers = #tpu.dot_dimension_numbers<[1], [0], [0], [1], [0, 0, 1, 1], [], []>} : vector<256x128xbf16>, vector<128x48xbf16>, vector<256x48xf32> -> vector<256x48xf32>
    %155 = arith.addf %148, %154 : vector<256x48xf32>
    %c2_131 = arith.constant 2 : index
    %c0_132 = arith.constant 0 : index
    %c0_133 = arith.constant 0 : index
    %156 = vector.load %arg11[%c2_131, %c0_132, %c0_133] : memref<18x18x128xf32, #tpu.memory_space<vmem>>, vector<16x16x128xf32>
    %157 = arith.truncf %156 : vector<16x16x128xf32> to vector<16x16x128xbf16>
    %158 = vector.shape_cast %157 : vector<16x16x128xbf16> to vector<256x128xbf16>
    %c6_134 = arith.constant 6 : index
    %c0_135 = arith.constant 0 : index
    %c0_136 = arith.constant 0 : index
    %159 = vector.load %arg6[%c6_134, %c0_135, %c0_136] : memref<9x128x48xbf16, #tpu.memory_space<vmem>>, vector<1x128x48xbf16>
    %160 = vector.shape_cast %159 : vector<1x128x48xbf16> to vector<128x48xbf16>
    %cst_137 = arith.constant dense<0.000000e+00> : vector<256x48xf32>
    %161 = tpu.matmul %158, %160, %cst_137 {dimension_numbers = #tpu.dot_dimension_numbers<[1], [0], [0], [1], [0, 0, 1, 1], [], []>} : vector<256x128xbf16>, vector<128x48xbf16>, vector<256x48xf32> -> vector<256x48xf32>
    %162 = arith.addf %155, %161 : vector<256x48xf32>
    %c2_138 = arith.constant 2 : index
    %c1_139 = arith.constant 1 : index
    %c0_140 = arith.constant 0 : index
    %163 = vector.load %arg11[%c2_138, %c1_139, %c0_140] : memref<18x18x128xf32, #tpu.memory_space<vmem>>, vector<16x16x128xf32>
    %164 = arith.truncf %163 : vector<16x16x128xf32> to vector<16x16x128xbf16>
    %165 = vector.shape_cast %164 : vector<16x16x128xbf16> to vector<256x128xbf16>
    %c7_141 = arith.constant 7 : index
    %c0_142 = arith.constant 0 : index
    %c0_143 = arith.constant 0 : index
    %166 = vector.load %arg6[%c7_141, %c0_142, %c0_143] : memref<9x128x48xbf16, #tpu.memory_space<vmem>>, vector<1x128x48xbf16>
    %167 = vector.shape_cast %166 : vector<1x128x48xbf16> to vector<128x48xbf16>
    %cst_144 = arith.constant dense<0.000000e+00> : vector<256x48xf32>
    %168 = tpu.matmul %165, %167, %cst_144 {dimension_numbers = #tpu.dot_dimension_numbers<[1], [0], [0], [1], [0, 0, 1, 1], [], []>} : vector<256x128xbf16>, vector<128x48xbf16>, vector<256x48xf32> -> vector<256x48xf32>
    %169 = arith.addf %162, %168 : vector<256x48xf32>
    %c2_145 = arith.constant 2 : index
    %c2_146 = arith.constant 2 : index
    %c0_147 = arith.constant 0 : index
    %170 = vector.load %arg11[%c2_145, %c2_146, %c0_147] : memref<18x18x128xf32, #tpu.memory_space<vmem>>, vector<16x16x128xf32>
    %171 = arith.truncf %170 : vector<16x16x128xf32> to vector<16x16x128xbf16>
    %172 = vector.shape_cast %171 : vector<16x16x128xbf16> to vector<256x128xbf16>
    %c8_148 = arith.constant 8 : index
    %c0_149 = arith.constant 0 : index
    %c0_150 = arith.constant 0 : index
    %173 = vector.load %arg6[%c8_148, %c0_149, %c0_150] : memref<9x128x48xbf16, #tpu.memory_space<vmem>>, vector<1x128x48xbf16>
    %174 = vector.shape_cast %173 : vector<1x128x48xbf16> to vector<128x48xbf16>
    %cst_151 = arith.constant dense<0.000000e+00> : vector<256x48xf32>
    %175 = tpu.matmul %172, %174, %cst_151 {dimension_numbers = #tpu.dot_dimension_numbers<[1], [0], [0], [1], [0, 0, 1, 1], [], []>} : vector<256x128xbf16>, vector<128x48xbf16>, vector<256x48xf32> -> vector<256x48xf32>
    %176 = arith.addf %169, %175 : vector<256x48xf32>
    %177 = arith.mulf %176, %176 : vector<256x48xf32>
    %178 = arith.truncf %177 : vector<256x48xf32> to vector<256x48xbf16>
    %c0_152 = arith.constant 0 : index
    %c0_153 = arith.constant 0 : index
    %179 = vector.load %arg8[%c0_152, %c0_153] : memref<48x48xbf16, #tpu.memory_space<vmem>>, vector<48x48xbf16>
    %cst_154 = arith.constant dense<0.000000e+00> : vector<256x48xf32>
    %180 = tpu.matmul %178, %179, %cst_154 {dimension_numbers = #tpu.dot_dimension_numbers<[1], [0], [0], [1], [0, 0, 1, 1], [], []>} : vector<256x48xbf16>, vector<48x48xbf16>, vector<256x48xf32> -> vector<256x48xf32>
    %cst_155 = arith.constant 9.99999993E-9 : f32
    %181 = vector.broadcast %cst_155 : f32 to vector<256x48xf32>
    %182 = arith.addf %180, %181 : vector<256x48xf32>
    %183 = math.rsqrt %182 : vector<256x48xf32>
    %184 = arith.mulf %176, %183 : vector<256x48xf32>
    %185 = math.tanh %184 : vector<256x48xf32>
    %c0_156 = arith.constant 0 : index
    %c0_157 = arith.constant 0 : index
    %c0_158 = arith.constant 0 : index
    %186 = vector.load %arg9[%c0_156, %c0_157, %c0_158] : memref<1x256x48xf32, #tpu.memory_space<vmem>>, vector<1x256x48xf32>
    %187 = vector.shape_cast %186 : vector<1x256x48xf32> to vector<256x48xf32>
    %188 = vector.shape_cast %185 : vector<256x48xf32> to vector<1x256x48xf32>
    tpu.vector_store %arg9[%c0_156, %c0_157, %c0_158], %188 {strides = array<i32>} : memref<1x256x48xf32, #tpu.memory_space<vmem>>, vector<1x256x48xf32>,
    return
  }
  func.func @transform_0(%arg0: i32) -> (i32, i32, i32) {
    %c0_i32 = arith.constant 0 : i32
    %c0_i32_0 = arith.constant 0 : i32
    %c0_i32_1 = arith.constant 0 : i32
    return %arg0, %c0_i32, %c0_i32_0 : i32, i32, i32
  }
  func.func @transform_1(%arg0: i32) -> (i32, i32) {
    %c0_i32 = arith.constant 0 : i32
    %c0_i32_0 = arith.constant 0 : i32
    %c0_i32_1 = arith.constant 0 : i32
    return %c0_i32, %c0_i32_0 : i32, i32
  }
  func.func @transform_2(%arg0: i32) -> (i32, i32) {
    %c0_i32 = arith.constant 0 : i32
    %c0_i32_0 = arith.constant 0 : i32
    %c0_i32_1 = arith.constant 0 : i32
    return %c0_i32, %c0_i32_0 : i32, i32
  }
  func.func @transform_3(%arg0: i32) -> (i32, i32, i32) {
    %c0_i32 = arith.constant 0 : i32
    %c0_i32_0 = arith.constant 0 : i32
    %c0_i32_1 = arith.constant 0 : i32
    %c0_i32_2 = arith.constant 0 : i32
    return %c0_i32, %c0_i32_0, %c0_i32_1 : i32, i32, i32
  }
  func.func @transform_4(%arg0: i32) -> (i32, i32) {
    %c0_i32 = arith.constant 0 : i32
    %c0_i32_0 = arith.constant 0 : i32
    %c0_i32_1 = arith.constant 0 : i32
    return %c0_i32, %c0_i32_0 : i32, i32
  }
  func.func @transform_5(%arg0: i32) -> (i32, i32, i32) {
    %c0_i32 = arith.constant 0 : i32
    %c0_i32_0 = arith.constant 0 : i32
    %c0_i32_1 = arith.constant 0 : i32
    %c0_i32_2 = arith.constant 0 : i32
    return %c0_i32, %c0_i32_0, %c0_i32_1 : i32, i32, i32
  }
  func.func @transform_6(%arg0: i32) -> (i32, i32) {
    %c0_i32 = arith.constant 0 : i32
    %c0_i32_0 = arith.constant 0 : i32
    %c0_i32_1 = arith.constant 0 : i32
    return %c0_i32, %c0_i32_0 : i32, i32
  }
  func.func @transform_7(%arg0: i32) -> (i32, i32) {
    %c0_i32 = arith.constant 0 : i32
    %c0_i32_0 = arith.constant 0 : i32
    %c0_i32_1 = arith.constant 0 : i32
    return %c0_i32, %c0_i32_0 : i32, i32
  }
  func.func @transform_8(%arg0: i32) -> (i32, i32, i32) {
    %c0_i32 = arith.constant 0 : i32
    %c0_i32_0 = arith.constant 0 : i32
    %c0_i32_1 = arith.constant 0 : i32
    return %arg0, %c0_i32, %c0_i32_0 : i32, i32, i32
  }
}

</mosaic_0001>

<llo_original>
// kernel: generator_forward.1
$region0: #{generator_forward.1}
  #allocation0 [shape = 'u32[]', space=smem, size = 0x4, offset = 0x4, fixed_abs, tag = 'smem constant byte address 0x4 - core index']
  #allocation1 [shape = 'u32[144,128]{1,0:T(1,128)}', space=vmem, size = 0x12000, scoped, tag = 'internal scratch']
  #allocation2 [shape = 'f32[18,18,64]{2,1,0:T(8,128)}', space=vmem, size = 0x36000, scoped, tag = 'scratch operand']
  #allocation3 [shape = 'f32[18,18,128]{2,1,0:T(8,128)}', space=vmem, size = 0x36000, scoped, tag = 'scratch operand']
  %s0 = inlined_call_operand.vmem [shape: bf16[2,256,32], index: 0, kind: input, shape index: {}]
  %s1 = inlined_call_operand.hbm [shape: bf16[32,64], index: 1, kind: input, shape index: {}]
  %s2 = inlined_call_operand.hbm [shape: f32[1,64], index: 2, kind: input, shape index: {}]
  %s3 = inlined_call_operand.hbm [shape: bf16[9,64,128], index: 3, kind: input, shape index: {}]
  %s4 = inlined_call_operand.hbm [shape: f32[1,128], index: 4, kind: input, shape index: {}]
  %s5 = inlined_call_operand.vmem [shape: bf16[9,128,48], index: 5, kind: input, shape index: {}]
  %s6 = inlined_call_operand.hbm [shape: f32[1,48], index: 6, kind: input, shape index: {}]
  %s7 = inlined_call_operand.hbm [shape: bf16[48,48], index: 7, kind: input, shape index: {}]
  %s8 = inlined_call_operand.vmem [shape: f32[2,256,48], index: 8, kind: output, shape index: {}]
  %s9 = sld [smem:[#allocation0]]
  $region89: #{generator_forward.1} parent=0
    _
  %s11 = ssub.s32 1, %s9
  %s12 = scalar_select 0, %s11, %s9
  $region1: #{generator_forward.1} parent=0
    #allocation4 [shape = 'u8[8192]{0}', space=vmem, size = 0x2000, scoped, tag = 'input window, operand 1, single buffered']
    #allocation5 [shape = 's32[2]{0}', space=sflag, size = 0x8, scoped, tag = 'scoped memory for generator_forward.1']
    #allocation6 [shape = 'u8[512]{0}', space=vmem, size = 0x400, scoped, tag = 'input window, operand 2, single buffered']
    #allocation7 [shape = 's32[1]{0}', space=sflag, size = 0x4, scoped, tag = 'scoped memory for generator_forward.1']
    #allocation8 [shape = 'u8[147456]{0}', space=vmem, size = 0x24000, scoped, tag = 'input window, operand 3, single buffered']
    #allocation9 [shape = 'u8[512]{0}', space=vmem, size = 0x400, scoped, tag = 'input window, operand 4, single buffered']
    #allocation10 [shape = 's32[1]{0}', space=sflag, size = 0x4, scoped, tag = 'scoped memory for generator_forward.1']
    #allocation11 [shape = 'u8[512]{0}', space=vmem, size = 0x400, scoped, tag = 'input window, operand 6, single buffered']
    #allocation12 [shape = 'u8[12288]{0}', space=vmem, size = 0x3000, scoped, tag = 'input window, operand 7, single buffered']
    #allocation13 [shape = 's32[1]{0}', space=sflag, size = 0x4, scoped, tag = 'scoped memory for generator_forward.1']
    %13 = vsyncpa [#allocation5], 0
    %14 = vsyncpa [#allocation7], 0
    %15 = vsyncpa [#allocation10], 0
    %16 = vsyncpa [#allocation13], 0
    loop: start=0, step=1, limit=4
    $region2: #{generator_forward.1} parent=1 // loop_pre_header
      _
    $region3: #{generator_forward.1} parent=1 // loop_header
      %s18 = sphi 0, %s22
      %p19 = scmp.ge.s32.totalorder %s18, 4
      %s28 = sphi 0, %s30
      %s31 = sphi 0, %s28
      %s32 = sphi 0, %s31
      %s48 = sphi 0, %s32
      %s52 = sphi 0, %s52
      %s54 = sphi 0, %s52
      %s55 = sphi 0, %s54
      %s69 = sphi 0, %s55
      %s73 = sphi 0, %s73
      %s75 = sphi 0, %s73
      %s76 = sphi 0, %s75
      %s90 = sphi 0, %s76
      %s94 = sphi 0, %s94
      %s96 = sphi 0, %s94
      %s97 = sphi 0, %s96
      %s111 = sphi 0, %s97
      %s115 = sphi 0, %s115
      %s117 = sphi 0, %s115
      %s118 = sphi 0, %s117
      %s132 = sphi 0, %s118
      %s136 = sphi 0, %s136
      %s138 = sphi 0, %s136
      %s139 = sphi 0, %s138
      %s153 = sphi 0, %s139
      %s157 = sphi 0, %s157
      %s159 = sphi 0, %s157
      %s160 = sphi 0, %s159
      %s174 = sphi 0, %s160
      %s178 = sphi 0, %s178
      %s180 = sphi 0, %s178
      %s181 = sphi 0, %s180
      %s195 = sphi 0, %s181
      %s201 = sphi 0, %s203
      %s204 = sphi 0, %s201
      %s205 = sphi 0, %s204
      %s221 = sphi 0, %s205
    $region4: #{generator_forward.1} parent=1 // loop_header_branch
      %21 = sbr.rel (%p19) target = $region8
    $region5: #{generator_forward.1} parent=1 // loop_body
      %s23 = ssub.s32 %s18, 1
      %s24 = ssub.s32 %s18, 2
      %s25 = sadd.s32 %s18, 1
      %s26 = ssub.s32 %s18, %s25
      %p27 = scmp.eq.s32.totalorder %s26, 0
      %s29 = sadd.s32 %s28, 1
      %s30 = scalar_select %p27, %s28, %s29
      %p33 = pneg %p27
      %p34 = scmp.eq.s32.totalorder %s18, 1
      %p35 = por %p33, %p34
      %p36 = scmp.ne.s32.totalorder %s28, %s31
      %p37 = scmp.eq.s32.totalorder %s18, 0
      %p38 = por %p36, %p37
      %p39 = scmp.ne.s32.totalorder %s28, %s31
      %p40 = scmp.eq.s32.totalorder %s23, 1
      %p41 = por %p39, %p40
      %p42 = scmp.ne.s32.totalorder %s31, %s32
      %p43 = scmp.eq.s32.totalorder %s23, 0
      %p44 = por %p42, %p43
      %p45 = scmp.ne.s32.totalorder %s31, %s32
      %p46 = scmp.eq.s32.totalorder %s24, 1
      %p47 = por %p45, %p46
      %p49 = scmp.ne.s32.totalorder %s32, %s48
      %p50 = scmp.eq.s32.totalorder %s24, 0
      %p51 = por %p49, %p50
      %s53 = sadd.s32 %s52, 1
      %p56 = scmp.eq.s32.totalorder %s18, 1
      %p57 = scmp.ne.s32.totalorder %s52, %s54
      %p58 = scmp.eq.s32.totalorder %s18, 0
      %p59 = por %p57, %p58
      %p60 = scmp.ne.s32.totalorder %s52, %s54
      %p61 = scmp.eq.s32.totalorder %s23, 1
      %p62 = por %p60, %p61
      %p63 = scmp.ne.s32.totalorder %s54, %s55
      %p64 = scmp.eq.s32.totalorder %s23, 0
      %p65 = por %p63, %p64
      %p66 = scmp.ne.s32.totalorder %s54, %s55
      %p67 = scmp.eq.s32.totalorder %s24, 1
      %p68 = por %p66, %p67
      %p70 = scmp.ne.s32.totalorder %s55, %s69
      %p71 = scmp.eq.s32.totalorder %s24, 0
      %p72 = por %p70, %p71
      %s74 = sadd.s32 %s73, 1
      %p77 = scmp.eq.s32.totalorder %s18, 1
      %p78 = scmp.ne.s32.totalorder %s73, %s75
      %p79 = scmp.eq.s32.totalorder %s18, 0
      %p80 = por %p78, %p79
      %p81 = scmp.ne.s32.totalorder %s73, %s75
      %p82 = scmp.eq.s32.totalorder %s23, 1
      %p83 = por %p81, %p82
      %p84 = scmp.ne.s32.totalorder %s75, %s76
      %p85 = scmp.eq.s32.totalorder %s23, 0
      %p86 = por %p84, %p85
      %p87 = scmp.ne.s32.totalorder %s75, %s76
      %p88 = scmp.eq.s32.totalorder %s24, 1
      %p89 = por %p87, %p88
      %p91 = scmp.ne.s32.totalorder %s76, %s90
      %p92 = scmp.eq.s32.totalorder %s24, 0
      %p93 = por %p91, %p92
      %s95 = sadd.s32 %s94, 1
      %p98 = scmp.eq.s32.totalorder %s18, 1
      %p99 = scmp.ne.s32.totalorder %s94, %s96
      %p100 = scmp.eq.s32.totalorder %s18, 0
      %p101 = por %p99, %p100
      %p102 = scmp.ne.s32.totalorder %s94, %s96
      %p103 = scmp.eq.s32.totalorder %s23, 1
      %p104 = por %p102, %p103
      %p105 = scmp.ne.s32.totalorder %s96, %s97
      %p106 = scmp.eq.s32.totalorder %s23, 0
      %p107 = por %p105, %p106
      %p108 = scmp.ne.s32.totalorder %s96, %s97
      %p109 = scmp.eq.s32.totalorder %s24, 1
      %p110 = por %p108, %p109
      %p112 = scmp.ne.s32.totalorder %s97, %s111
      %p113 = scmp.eq.s32.totalorder %s24, 0
      %p114 = por %p112, %p113
      %s116 = sadd.s32 %s115, 1
      %p119 = scmp.eq.s32.totalorder %s18, 1
      %p120 = scmp.ne.s32.totalorder %s115, %s117
      %p121 = scmp.eq.s32.totalorder %s18, 0
      %p122 = por %p120, %p121
      %p123 = scmp.ne.s32.totalorder %s115, %s117
      %p124 = scmp.eq.s32.totalorder %s23, 1
      %p125 = por %p123, %p124
      %p126 = scmp.ne.s32.totalorder %s117, %s118
      %p127 = scmp.eq.s32.totalorder %s23, 0
      %p128 = por %p126, %p127
      %p129 = scmp.ne.s32.totalorder %s117, %s118
      %p130 = scmp.eq.s32.totalorder %s24, 1
      %p131 = por %p129, %p130
      %p133 = scmp.ne.s32.totalorder %s118, %s132
      %p134 = scmp.eq.s32.totalorder %s24, 0
      %p135 = por %p133, %p134
      %s137 = sadd.s32 %s136, 1
      %p140 = scmp.eq.s32.totalorder %s18, 1
      %p141 = scmp.ne.s32.totalorder %s136, %s138
      %p142 = scmp.eq.s32.totalorder %s18, 0
      %p143 = por %p141, %p142
      %p144 = scmp.ne.s32.totalorder %s136, %s138
      %p145 = scmp.eq.s32.totalorder %s23, 1
      %p146 = por %p144, %p145
      %p147 = scmp.ne.s32.totalorder %s138, %s139
      %p148 = scmp.eq.s32.totalorder %s23, 0
      %p149 = por %p147, %p148
      %p150 = scmp.ne.s32.totalorder %s138, %s139
      %p151 = scmp.eq.s32.totalorder %s24, 1
      %p152 = por %p150, %p151
      %p154 = scmp.ne.s32.totalorder %s139, %s153
      %p155 = scmp.eq.s32.totalorder %s24, 0
      %p156 = por %p154, %p155
      %s158 = sadd.s32 %s157, 1
      %p161 = scmp.eq.s32.totalorder %s18, 1
      %p162 = scmp.ne.s32.totalorder %s157, %s159
      %p163 = scmp.eq.s32.totalorder %s18, 0
      %p164 = por %p162, %p163
      %p165 = scmp.ne.s32.totalorder %s157, %s159
      %p166 = scmp.eq.s32.totalorder %s23, 1
      %p167 = por %p165, %p166
      %p168 = scmp.ne.s32.totalorder %s159, %s160
      %p169 = scmp.eq.s32.totalorder %s23, 0
      %p170 = por %p168, %p169
      %p171 = scmp.ne.s32.totalorder %s159, %s160
      %p172 = scmp.eq.s32.totalorder %s24, 1
      %p173 = por %p171, %p172
      %p175 = scmp.ne.s32.totalorder %s160, %s174
      %p176 = scmp.eq.s32.totalorder %s24, 0
      %p177 = por %p175, %p176
      %s179 = sadd.s32 %s178, 1
      %p182 = scmp.eq.s32.totalorder %s18, 1
      %p183 = scmp.ne.s32.totalorder %s178, %s180
      %p184 = scmp.eq.s32.totalorder %s18, 0
      %p185 = por %p183, %p184
      %p186 = scmp.ne.s32.totalorder %s178, %s180
      %p187 = scmp.eq.s32.totalorder %s23, 1
      %p188 = por %p186, %p187
      %p189 = scmp.ne.s32.totalorder %s180, %s181
      %p190 = scmp.eq.s32.totalorder %s23, 0
      %p191 = por %p189, %p190
      %p192 = scmp.ne.s32.totalorder %s180, %s181
      %p193 = scmp.eq.s32.totalorder %s24, 1
      %p194 = por %p192, %p193
      %p196 = scmp.ne.s32.totalorder %s181, %s195
      %p197 = scmp.eq.s32.totalorder %s24, 0
      %p198 = por %p196, %p197
      %s199 = ssub.s32 %s18, %s25
      %p200 = scmp.eq.s32.totalorder %s199, 0
      %s202 = sadd.s32 %s201, 1
      %s203 = scalar_select %p200, %s201, %s202
      %p206 = pneg %p200
      %p207 = scmp.eq.s32.totalorder %s18, 1
      %p208 = por %p206, %p207
      %p209 = scmp.ne.s32.totalorder %s201, %s204
      %p210 = scmp.eq.s32.totalorder %s18, 0
      %p211 = por %p209, %p210
      %p212 = scmp.ne.s32.totalorder %s201, %s204
      %p213 = scmp.eq.s32.totalorder %s23, 1
      %p214 = por %p212, %p213
      %p215 = scmp.ne.s32.totalorder %s204, %s205
      %p216 = scmp.eq.s32.totalorder %s23, 0
      %p217 = por %p215, %p216
      %p218 = scmp.ne.s32.totalorder %s204, %s205
      %p219 = scmp.eq.s32.totalorder %s24, 1
      %p220 = por %p218, %p219
      %p222 = scmp.ne.s32.totalorder %s205, %s221
      %p223 = scmp.eq.s32.totalorder %s24, 0
      %p224 = por %p222, %p223
      %p225 = scmp.le.s32.totalorder 1, %s18
      %p226 = scmp.lt.s32.totalorder %s18, 3
      %p227 = pnand %p225, %p226
      %p228 = pneg %p227
      // Predicated region
      $region9: #{generator_forward.1} parent=5 // pred_check
        _
      $region10: #{generator_forward.1} parent=5 // pred_check_branch
        %230 = sbr.rel (%p227) target = $region12
      $region11: #{generator_forward.1} parent=5 // pred_region
        %s231 = ssub.s32 %s18, 1
        // Predicated region
        $region13: #{generator_forward.1} parent=11 // pred_check
          %p232 = pneg %p65
        $region14: #{generator_forward.1} parent=11 // pred_check_branch
          %234 = sbr.rel (%p232) target = $region16
        $region15: #{generator_forward.1} parent=11 // pred_region
          %s236 = ssub.s32 256, 256
          %237 = vsyncadd [#allocation5], %s236
          %s238 = sshll.u32 [#allocation4], 4
          %s239 = int_to_ptr.vmem [resolvable:$true] %s238
          %244 = dma.hbm_to_vmem [thread:$0]  %s1, 256, %s239, [#allocation5], 64, 64, 4
        $region16: #{generator_forward.1} parent=11 // pred_fallthru
          _
        // Predicated region
        $region17: #{generator_forward.1} parent=11 // pred_check
          %p245 = pneg %p86
        $region18: #{generator_forward.1} parent=11 // pred_check_branch
          %247 = sbr.rel (%p245) target = $region20
        $region19: #{generator_forward.1} parent=11 // pred_region
          %s249 = ssub.s32 16, 16
          %250 = vsyncadd [#allocation7], %s249
          %s252 = sshll.u32 [#allocation6], 4
          %s253 = int_to_ptr.vmem [resolvable:$true] %s252
          %255 = dma.hbm_to_vmem [thread:$0]  %s2, 16, %s253, [#allocation7]
        $region20: #{generator_forward.1} parent=11 // pred_fallthru
          _
        // Predicated region
        $region21: #{generator_forward.1} parent=11 // pred_check
          %p256 = pneg %p107
        $region22: #{generator_forward.1} parent=11 // pred_check_branch
          %258 = sbr.rel (%p256) target = $region24
        $region23: #{generator_forward.1} parent=11 // pred_region
          %s260 = ssub.s32 4608, 4608
          %261 = vsyncadd [#allocation7], %s260
          %s262 = sshll.u32 [#allocation8], 4
          %s263 = int_to_ptr.vmem [resolvable:$true] %s262
          %268 = dma.hbm_to_vmem [thread:$0]  %s3, 4608, %s263, [#allocation7], 64, 64, 4
        $region24: #{generator_forward.1} parent=11 // pred_fallthru
          _
        // Predicated region
        $region25: #{generator_forward.1} parent=11 // pred_check
          %p269 = pneg %p128
        $region26: #{generator_forward.1} parent=11 // pred_check_branch
          %271 = sbr.rel (%p269) target = $region28
        $region27: #{generator_forward.1} parent=11 // pred_region
          %s273 = ssub.s32 16, 16
          %274 = vsyncadd [#allocation10], %s273
          %s276 = sshll.u32 [#allocation9], 4
          %s277 = int_to_ptr.vmem [resolvable:$true] %s276
          %279 = dma.hbm_to_vmem [thread:$0]  %s4, 16, %s277, [#allocation10]
        $region28: #{generator_forward.1} parent=11 // pred_fallthru
          _
        // Predicated region
        $region29: #{generator_forward.1} parent=11 // pred_check
          %p280 = pneg %p149
        $region30: #{generator_forward.1} parent=11 // pred_check_branch
          %282 = sbr.rel (%p280) target = $region32
        $region31: #{generator_forward.1} parent=11 // pred_region
          _
        $region32: #{generator_forward.1} parent=11 // pred_fallthru
          _
        // Predicated region
        $region33: #{generator_forward.1} parent=11 // pred_check
          %p283 = pneg %p170
        $region34: #{generator_forward.1} parent=11 // pred_check_branch
          %285 = sbr.rel (%p283) target = $region36
        $region35: #{generator_forward.1} parent=11 // pred_region
          %s287 = ssub.s32 16, 16
          %288 = vsyncadd [#allocation10], %s287
          %s290 = sshll.u32 [#allocation11], 4
          %s291 = int_to_ptr.vmem [resolvable:$true] %s290
          %293 = dma.hbm_to_vmem [thread:$0]  %s6, 16, %s291, [#allocation10]
        $region36: #{generator_forward.1} parent=11 // pred_fallthru
          _
        // Predicated region
        $region37: #{generator_forward.1} parent=11 // pred_check
          %p294 = pneg %p191
        $region38: #{generator_forward.1} parent=11 // pred_check_branch
          %296 = sbr.rel (%p294) target = $region40
        $region39: #{generator_forward.1} parent=11 // pred_region
          %s298 = ssub.s32 384, 384
          %299 = vsyncadd [#allocation13], %s298
          %s300 = sshll.u32 [#allocation12], 4
          %s301 = int_to_ptr.vmem [resolvable:$true] %s300
          %306 = dma.hbm_to_vmem [thread:$0]  %s7, 384, %s301, [#allocation13], 64, 64, 4
        $region40: #{generator_forward.1} parent=11 // pred_fallthru
          _
      $region12: #{generator_forward.1} parent=5 // pred_fallthru
        _
      %p307 = scmp.lt.s32.totalorder %s18, 2
      // Predicated region
      $region41: #{generator_forward.1} parent=5 // pred_check
        %p308 = pneg %p307
      $region42: #{generator_forward.1} parent=5 // pred_check_branch
        %310 = sbr.rel (%p308) target = $region44
      $region43: #{generator_forward.1} parent=5 // pred_region
        // Predicated region
        $region45: #{generator_forward.1} parent=43 // pred_check
          %p311 = pneg %p38
        $region46: #{generator_forward.1} parent=43 // pred_check_branch
          %313 = sbr.rel (%p311) target = $region48
        $region47: #{generator_forward.1} parent=43 // pred_region
          %p314 = scmp.lt.s32.totalorder %s18, 1
          %s315 = scalar_select %p314, %s18, 1
          %s316 = smul.addr %s315, 32
          %s317 = smul.addr %s316, 4
          %s318 = scalar_lea.vmem %s0, %s317
        $region48: #{generator_forward.1} parent=43 // pred_fallthru
          _
      $region44: #{generator_forward.1} parent=5 // pred_fallthru
        _
      %p319 = scmp.le.s32.totalorder 1, %s18
      %p320 = scmp.lt.s32.totalorder %s18, 3
      %p321 = pnand %p319, %p320
      %p322 = pneg %p321
      // Predicated region
      $region49: #{generator_forward.1} parent=5 // pred_check
        _
      $region50: #{generator_forward.1} parent=5 // pred_check_branch
        %324 = sbr.rel (%p321) target = $region52
      $region51: #{generator_forward.1} parent=5 // pred_region
        %s325 = ssub.s32 %s18, 1
        // Predicated region
        $region53: #{generator_forward.1} parent=51 // pred_check
          %p326 = pneg %p65
        $region54: #{generator_forward.1} parent=51 // pred_check_branch
          %328 = sbr.rel (%p326) target = $region56
        $region55: #{generator_forward.1} parent=51 // pred_region
          %329 = dma.done [#allocation5], 256
        $region56: #{generator_forward.1} parent=51 // pred_fallthru
          _
        // Predicated region
        $region57: #{generator_forward.1} parent=51 // pred_check
          %p330 = pneg %p86
        $region58: #{generator_forward.1} parent=51 // pred_check_branch
          %332 = sbr.rel (%p330) target = $region60
        $region59: #{generator_forward.1} parent=51 // pred_region
          %333 = dma.done [#allocation7], 16
        $region60: #{generator_forward.1} parent=51 // pred_fallthru
          _
        // Predicated region
        $region61: #{generator_forward.1} parent=51 // pred_check
          %p334 = pneg %p107
        $region62: #{generator_forward.1} parent=51 // pred_check_branch
          %336 = sbr.rel (%p334) target = $region64
        $region63: #{generator_forward.1} parent=51 // pred_region
          %337 = dma.done [#allocation7], 4608
        $region64: #{generator_forward.1} parent=51 // pred_fallthru
          _
        // Predicated region
        $region65: #{generator_forward.1} parent=51 // pred_check
          %p338 = pneg %p128
        $region66: #{generator_forward.1} parent=51 // pred_check_branch
          %340 = sbr.rel (%p338) target = $region68
        $region67: #{generator_forward.1} parent=51 // pred_region
          %341 = dma.done [#allocation10], 16
        $region68: #{generator_forward.1} parent=51 // pred_fallthru
          _
        // Predicated region
        $region69: #{generator_forward.1} parent=51 // pred_check
          %p342 = pneg %p170
        $region70: #{generator_forward.1} parent=51 // pred_check_branch
          %344 = sbr.rel (%p342) target = $region72
        $region71: #{generator_forward.1} parent=51 // pred_region
          %345 = dma.done [#allocation10], 16
        $region72: #{generator_forward.1} parent=51 // pred_fallthru
          _
        // Predicated region
        $region73: #{generator_forward.1} parent=51 // pred_check
          %p346 = pneg %p191
        $region74: #{generator_forward.1} parent=51 // pred_check_branch
          %348 = sbr.rel (%p346) target = $region76
        $region75: #{generator_forward.1} parent=51 // pred_region
          %349 = dma.done [#allocation13], 384
        $region76: #{generator_forward.1} parent=51 // pred_fallthru
          _
        %p350 = scmp.lt.s32.totalorder %s23, 1
        %s351 = scalar_select %p350, %s23, 1
        %s352 = smul.addr %s351, 32
        %s353 = smul.addr %s352, 4
        %s354 = scalar_lea.vmem %s0, %s353
        %p355 = pneg %p44
        %p356 = pneg %p41
        %p357 = pneg %p65
        %p358 = pneg %p62
        %p359 = pneg %p86
        %p360 = pneg %p83
        %p361 = pneg %p107
        %p362 = pneg %p104
        %p363 = pneg %p128
        %p364 = pneg %p125
        %p365 = pneg %p149
        %p366 = pneg %p146
        %p367 = pneg %p170
        %p368 = pneg %p167
        %p369 = pneg %p191
        %p370 = pneg %p188
        %p371 = pneg %p217
        %p372 = pneg %p214
        %p373 = scmp.lt.s32.totalorder %s23, 1
        %s374 = scalar_select %p373, %s23, 1
        %s375 = smul.addr %s374, 32
        %s376 = smul.addr %s375, 8
        %s377 = scalar_lea.vmem %s8, %s376
        %p378 = scmp.lt.s32.totalorder %s23, 1
        %s379 = scalar_select %p378, %s23, 1
        %s380 = smul.addr %s379, 32
        %s381 = smul.addr %s380, 4
        %s382 = scalar_lea.vmem %s0, %s381
        %p383 = scmp.lt.s32.totalorder %s23, 1
        %s384 = scalar_select %p383, %s23, 1
        %s385 = smul.addr %s384, 32
        %s386 = smul.addr %s385, 8
        %s387 = scalar_lea.vmem %s8, %s386
        %v389 = vld [vmem:[%s382] sm:$0xf]
        %v390 = vld [vmem:[%s382 + $0x4] sm:$0xf]
        %v391 = vld [vmem:[%s382 + $0x8] sm:$0xf]
        %v392 = vld [vmem:[%s382 + $0xc] sm:$0xf]
        %v393 = vld [vmem:[%s382 + $0x10] sm:$0xf]
        %v394 = vld [vmem:[%s382 + $0x14] sm:$0xf]
        %v395 = vld [vmem:[%s382 + $0x18] sm:$0xf]
        %v396 = vld [vmem:[%s382 + $0x1c] sm:$0xf]
        %v397 = vld [vmem:[%s382 + $0x20] sm:$0xf]
        %v398 = vld [vmem:[%s382 + $0x24] sm:$0xf]
        %v399 = vld [vmem:[%s382 + $0x28] sm:$0xf]
        %v400 = vld [vmem:[%s382 + $0x2c] sm:$0xf]
        %v401 = vld [vmem:[%s382 + $0x30] sm:$0xf]
        %v402 = vld [vmem:[%s382 + $0x34] sm:$0xf]
        %v403 = vld [vmem:[%s382 + $0x38] sm:$0xf]
        %v404 = vld [vmem:[%s382 + $0x3c] sm:$0xf]
        %v405 = vld [vmem:[%s382 + $0x40] sm:$0xf]
        %v406 = vld [vmem:[%s382 + $0x44] sm:$0xf]
        %v407 = vld [vmem:[%s382 + $0x48] sm:$0xf]
        %v408 = vld [vmem:[%s382 + $0x4c] sm:$0xf]
        %v409 = vld [vmem:[%s382 + $0x50] sm:$0xf]
        %v410 = vld [vmem:[%s382 + $0x54] sm:$0xf]
        %v411 = vld [vmem:[%s382 + $0x58] sm:$0xf]
        %v412 = vld [vmem:[%s382 + $0x5c] sm:$0xf]
        %v413 = vld [vmem:[%s382 + $0x60] sm:$0xf]
        %v414 = vld [vmem:[%s382 + $0x64] sm:$0xf]
        %v415 = vld [vmem:[%s382 + $0x68] sm:$0xf]
        %v416 = vld [vmem:[%s382 + $0x6c] sm:$0xf]
        %v417 = vld [vmem:[%s382 + $0x70] sm:$0xf]
        %v418 = vld [vmem:[%s382 + $0x74] sm:$0xf]
        %v419 = vld [vmem:[%s382 + $0x78] sm:$0xf]
        %v420 = vld [vmem:[%s382 + $0x7c] sm:$0xf]
        %v421 = vld [vmem:[#allocation4] sm:$0xf]
        %v422 = vld [vmem:[#allocation4 + $0x4] sm:$0xf]
        %v423 = vld [vmem:[#allocation4 + $0x8] sm:$0xf]
        %v424 = vld [vmem:[#allocation4 + $0xc] sm:$0xf]
        %v425 = vld [vmem:[#allocation6] sm:$0x1]
        %v427 = vlaneseq
        %v428 = vshrl.u32 %v427, 7
        %v429 = vsub.s32 0, %v428
        %v430 = vrot.slane %v425, %v429
        %v464 = vunpack.c.l.b16 %v389
        %v465 = vunpack.c.l.b16 %v390
        %v466 = vunpack.c.l.b16 %v391
        %v467 = vunpack.c.l.b16 %v392
        %v468 = vunpack.c.l.b16 %v393
        %v469 = vunpack.c.l.b16 %v394
        %v470 = vunpack.c.l.b16 %v395
        %v471 = vunpack.c.l.b16 %v396
        %v472 = vunpack.c.l.b16 %v397
        %v473 = vunpack.c.l.b16 %v398
        %v474 = vunpack.c.l.b16 %v399
        %v475 = vunpack.c.l.b16 %v400
        %v476 = vunpack.c.l.b16 %v401
        %v477 = vunpack.c.l.b16 %v402
        %v478 = vunpack.c.l.b16 %v403
        %v479 = vunpack.c.l.b16 %v404
        %v480 = vunpack.c.l.b16 %v405
        %v481 = vunpack.c.l.b16 %v406
        %v482 = vunpack.c.l.b16 %v407
        %v483 = vunpack.c.l.b16 %v408
        %v484 = vunpack.c.l.b16 %v409
        %v485 = vunpack.c.l.b16 %v410
        %v486 = vunpack.c.l.b16 %v411
        %v487 = vunpack.c.l.b16 %v412
        %v488 = vunpack.c.l.b16 %v413
        %v489 = vunpack.c.l.b16 %v414
        %v490 = vunpack.c.l.b16 %v415
        %v491 = vunpack.c.l.b16 %v416
        %v492 = vunpack.c.l.b16 %v417
        %v493 = vunpack.c.l.b16 %v418
        %v494 = vunpack.c.l.b16 %v419
        %v495 = vunpack.c.l.b16 %v420
        %v496 = vpack.c.b16 %v465, %v464
        %v497 = vpack.c.b16 %v467, %v466
        %v498 = vpack.c.b16 %v469, %v468
        %v499 = vpack.c.b16 %v471, %v470
        %v500 = vpack.c.b16 %v473, %v472
        %v501 = vpack.c.b16 %v475, %v474
        %v502 = vpack.c.b16 %v477, %v476
        %v503 = vpack.c.b16 %v479, %v478
        %v504 = vpack.c.b16 %v481, %v480
        %v505 = vpack.c.b16 %v483, %v482
        %v506 = vpack.c.b16 %v485, %v484
        %v507 = vpack.c.b16 %v487, %v486
        %v508 = vpack.c.b16 %v489, %v488
        %v509 = vpack.c.b16 %v491, %v490
        %v510 = vpack.c.b16 %v493, %v492
        %v511 = vpack.c.b16 %v495, %v494
        %v516 = vunpack.c.l.b16 %v421
        %v517 = vunpack.c.l.b16 %v422
        %v518 = vunpack.c.l.b16 %v423
        %v519 = vunpack.c.l.b16 %v424
        %v520 = vpack.c.b16 %v517, %v516
        %v521 = vpack.c.b16 %v519, %v518
        %vm524 = vcmask 261120
        %v526 = vsel %vm524, %v496, 0
        %v529 = vsel %vm524, %v497, 0
        %v532 = vsel %vm524, %v498, 0
        %v535 = vsel %vm524, %v499, 0
        %v538 = vsel %vm524, %v500, 0
        %v541 = vsel %vm524, %v501, 0
        %v544 = vsel %vm524, %v502, 0
        %v547 = vsel %vm524, %v503, 0
        %v550 = vsel %vm524, %v504, 0
        %v553 = vsel %vm524, %v505, 0
        %v556 = vsel %vm524, %v506, 0
        %v559 = vsel %vm524, %v507, 0
        %v562 = vsel %vm524, %v508, 0
        %v565 = vsel %vm524, %v509, 0
        %v568 = vsel %vm524, %v510, 0
        %v571 = vsel %vm524, %v511, 0
        %573 = vmatprep.subr.bf16.mxu0 0
        %574 = vmatpush1.bf16.msra.mxu0 %v520
        %575 = vmatprep.subr.bf16.mxu0 0
        %576 = vmatpush1.bf16.msra.mxu0 %v521
        %577 = vmatprep.subr.bf16.mxu0 0
        %578 = vmatpush1.bf16.msra.mxu0 0
        %579 = vmatprep.subr.bf16.mxu0 0
        %580 = vmatpush1.bf16.msra.mxu0 0
        %581 = vmatprep.subr.bf16.mxu0 0
        %582 = vmatpush1.bf16.msra.mxu0 0
        %583 = vmatprep.subr.bf16.mxu0 0
        %584 = vmatpush1.bf16.msra.mxu0 0
        %585 = vmatprep.subr.bf16.mxu0 0
        %586 = vmatpush1.bf16.msra.mxu0 0
        %587 = vmatprep.subr.bf16.mxu0 0
        %588 = vmatpush1.bf16.msra.mxu0 0
        %589 = vmatprep.subr.bf16.mxu0 0
        %590 = vmatpush1.bf16.msra.mxu0 0
        %591 = vmatprep.subr.bf16.mxu0 0
        %592 = vmatpush1.bf16.msra.mxu0 0
        %593 = vmatprep.subr.bf16.mxu0 0
        %594 = vmatpush1.bf16.msra.mxu0 0
        %595 = vmatprep.subr.bf16.mxu0 0
        %596 = vmatpush1.bf16.msra.mxu0 0
        %597 = vmatprep.subr.bf16.mxu0 0
        %598 = vmatpush1.bf16.msra.mxu0 0
        %599 = vmatprep.subr.bf16.mxu0 0
        %600 = vmatpush1.bf16.msra.mxu0 0
        %601 = vmatprep.subr.bf16.mxu0 0
        %602 = vmatpush1.bf16.msra.mxu0 0
        %603 = vmatprep.subr.bf16.mxu0 0
        %604 = vmatpush1.bf16.msra.mxu0 0
        %605 = vmatprep.mubr.bf16.mxu0 0
        %606 = vmatmul.mubr.bf16.gmra.mrb[0].mxu0 %v526
        %v607 = vpop.f32.mrb[0].mxu0
        %v608 = vadd.f32 %v430, %v607
        %v609 = vpop.f32.mrb[0].mxu0
        %v610 = vpop.f32.mrb[0].mxu0
        %v611 = vadd.f32 %v430, %v610
        %v612 = vpop.f32.mrb[0].mxu0
        %613 = vmatprep.mubr.bf16.mxu0 0
        %614 = vmatmul.mubr.bf16.gmra.mrb[0].mxu0 %v529
        %v615 = vpop.f32.mrb[0].mxu0
        %v616 = vadd.f32 %v430, %v615
        %v617 = vpop.f32.mrb[0].mxu0
        %v618 = vpop.f32.mrb[0].mxu0
        %v619 = vadd.f32 %v430, %v618
        %v620 = vpop.f32.mrb[0].mxu0
        %621 = vmatprep.mubr.bf16.mxu0 0
        %622 = vmatmul.mubr.bf16.gmra.mrb[0].mxu0 %v532
        %v623 = vpop.f32.mrb[0].mxu0
        %v624 = vadd.f32 %v430, %v623
        %v625 = vpop.f32.mrb[0].mxu0
        %v626 = vpop.f32.mrb[0].mxu0
        %v627 = vadd.f32 %v430, %v626
        %v628 = vpop.f32.mrb[0].mxu0
        %629 = vmatprep.mubr.bf16.mxu0 0
        %630 = vmatmul.mubr.bf16.gmra.mrb[0].mxu0 %v535
        %v631 = vpop.f32.mrb[0].mxu0
        %v632 = vadd.f32 %v430, %v631
        %v633 = vpop.f32.mrb[0].mxu0
        %v634 = vpop.f32.mrb[0].mxu0
        %v635 = vadd.f32 %v430, %v634
        %v636 = vpop.f32.mrb[0].mxu0
        %637 = vmatprep.mubr.bf16.mxu0 0
        %638 = vmatmul.mubr.bf16.gmra.mrb[0].mxu0 %v538
        %v639 = vpop.f32.mrb[0].mxu0
        %v640 = vadd.f32 %v430, %v639
        %v641 = vpop.f32.mrb[0].mxu0
        %v642 = vpop.f32.mrb[0].mxu0
        %v643 = vadd.f32 %v430, %v642
        %v644 = vpop.f32.mrb[0].mxu0
        %645 = vmatprep.mubr.bf16.mxu0 0
        %646 = vmatmul.mubr.bf16.gmra.mrb[0].mxu0 %v541
        %v647 = vpop.f32.mrb[0].mxu0
        %v648 = vadd.f32 %v430, %v647
        %v649 = vpop.f32.mrb[0].mxu0
        %v650 = vpop.f32.mrb[0].mxu0
        %v651 = vadd.f32 %v430, %v650
        %v652 = vpop.f32.mrb[0].mxu0
        %653 = vmatprep.mubr.bf16.mxu0 0
        %654 = vmatmul.mubr.bf16.gmra.mrb[0].mxu0 %v544
        %v655 = vpop.f32.mrb[0].mxu0
        %v656 = vadd.f32 %v430, %v655
        %v657 = vpop.f32.mrb[0].mxu0
        %v658 = vpop.f32.mrb[0].mxu0
        %v659 = vadd.f32 %v430, %v658
        %v660 = vpop.f32.mrb[0].mxu0
        %661 = vmatprep.mubr.bf16.mxu0 0
        %662 = vmatmul.mubr.bf16.gmra.mrb[0].mxu0 %v547
        %v663 = vpop.f32.mrb[0].mxu0
        %v664 = vadd.f32 %v430, %v663
        %v665 = vpop.f32.mrb[0].mxu0
        %v666 = vpop.f32.mrb[0].mxu0
        %v667 = vadd.f32 %v430, %v666
        %v668 = vpop.f32.mrb[0].mxu0
        %669 = vmatprep.mubr.bf16.mxu0 0
        %670 = vmatmul.mubr.bf16.gmra.mrb[0].mxu0 %v550
        %v671 = vpop.f32.mrb[0].mxu0
        %v672 = vadd.f32 %v430, %v671
        %v673 = vpop.f32.mrb[0].mxu0
        %v674 = vpop.f32.mrb[0].mxu0
        %v675 = vadd.f32 %v430, %v674
        %v676 = vpop.f32.mrb[0].mxu0
        %677 = vmatprep.mubr.bf16.mxu0 0
        %678 = vmatmul.mubr.bf16.gmra.mrb[0].mxu0 %v553
        %v679 = vpop.f32.mrb[0].mxu0
        %v680 = vadd.f32 %v430, %v679
        %v681 = vpop.f32.mrb[0].mxu0
        %v682 = vpop.f32.mrb[0].mxu0
        %v683 = vadd.f32 %v430, %v682
        %v684 = vpop.f32.mrb[0].mxu0
        %685 = vmatprep.mubr.bf16.mxu0 0
        %686 = vmatmul.mubr.bf16.gmra.mrb[0].mxu0 %v556
        %v687 = vpop.f32.mrb[0].mxu0
        %v688 = vadd.f32 %v430, %v687
        %v689 = vpop.f32.mrb[0].mxu0
        %v690 = vpop.f32.mrb[0].mxu0
        %v691 = vadd.f32 %v430, %v690
        %v692 = vpop.f32.mrb[0].mxu0
        %693 = vmatprep.mubr.bf16.mxu0 0
        %694 = vmatmul.mubr.bf16.gmra.mrb[0].mxu0 %v559
        %v695 = vpop.f32.mrb[0].mxu0
        %v696 = vadd.f32 %v430, %v695
        %v697 = vpop.f32.mrb[0].mxu0
        %v698 = vpop.f32.mrb[0].mxu0
        %v699 = vadd.f32 %v430, %v698
        %v700 = vpop.f32.mrb[0].mxu0
        %701 = vmatprep.mubr.bf16.mxu0 0
        %702 = vmatmul.mubr.bf16.gmra.mrb[0].mxu0 %v562
        %v703 = vpop.f32.mrb[0].mxu0
        %v704 = vadd.f32 %v430, %v703
        %v705 = vpop.f32.mrb[0].mxu0
        %v706 = vpop.f32.mrb[0].mxu0
        %v707 = vadd.f32 %v430, %v706
        %v708 = vpop.f32.mrb[0].mxu0
        %709 = vmatprep.mubr.bf16.mxu0 0
        %710 = vmatmul.mubr.bf16.gmra.mrb[0].mxu0 %v565
        %v711 = vpop.f32.mrb[0].mxu0
        %v712 = vadd.f32 %v430, %v711
        %v713 = vpop.f32.mrb[0].mxu0
        %v714 = vpop.f32.mrb[0].mxu0
        %v715 = vadd.f32 %v430, %v714
        %v716 = vpop.f32.mrb[0].mxu0
        %717 = vmatprep.mubr.bf16.mxu0 0
        %718 = vmatmul.mubr.bf16.gmra.mrb[0].mxu0 %v568
        %v719 = vpop.f32.mrb[0].mxu0
        %v720 = vadd.f32 %v430, %v719
        %v721 = vpop.f32.mrb[0].mxu0
        %v722 = vpop.f32.mrb[0].mxu0
        %v723 = vadd.f32 %v430, %v722
        %v724 = vpop.f32.mrb[0].mxu0
        %725 = vmatprep.mubr.bf16.mxu0 0
        %726 = vmatmul.mubr.bf16.gmra.mrb[0].mxu0 %v571
        %v727 = vpop.f32.mrb[0].mxu0
        %v728 = vadd.f32 %v430, %v727
        %v729 = vpop.f32.mrb[0].mxu0
        %v730 = vpop.f32.mrb[0].mxu0
        %v731 = vadd.f32 %v430, %v730
        %v732 = vpop.f32.mrb[0].mxu0
        %733 = vdwg.mxu0
        %v734 = vmul.f32 %v608, %v608
        %v735 = vmul.f32 %v611, %v611
        %v736 = vmul.f32 %v616, %v616
        %v737 = vmul.f32 %v619, %v619
        %v738 = vmul.f32 %v624, %v624
        %v739 = vmul.f32 %v627, %v627
        %v740 = vmul.f32 %v632, %v632
        %v741 = vmul.f32 %v635, %v635
        %v742 = vmul.f32 %v640, %v640
        %v743 = vmul.f32 %v643, %v643
        %v744 = vmul.f32 %v648, %v648
        %v745 = vmul.f32 %v651, %v651
        %v746 = vmul.f32 %v656, %v656
        %v747 = vmul.f32 %v659, %v659
        %v748 = vmul.f32 %v664, %v664
        %v749 = vmul.f32 %v667, %v667
        %v750 = vmul.f32 %v672, %v672
        %v751 = vmul.f32 %v675, %v675
        %v752 = vmul.f32 %v680, %v680
        %v753 = vmul.f32 %v683, %v683
        %v754 = vmul.f32 %v688, %v688
        %v755 = vmul.f32 %v691, %v691
        %v756 = vmul.f32 %v696, %v696
        %v757 = vmul.f32 %v699, %v699
        %v758 = vmul.f32 %v704, %v704
        %v759 = vmul.f32 %v707, %v707
        %v760 = vmul.f32 %v712, %v712
        %v761 = vmul.f32 %v715, %v715
        %v762 = vmul.f32 %v720, %v720
        %v763 = vmul.f32 %v723, %v723
        %v764 = vmul.f32 %v728, %v728
        %v765 = vmul.f32 %v731, %v731
        %vm766 = vcmask 523264
        %v767 = vsel %vm766, %v734, 0.0
        %768 = vadd.xlane.f32.xlu0 %v767
        %v769 = vpop.xlane.xlu0 %768
        %v770 = vsel %vm766, %v735, 0.0
        %771 = vadd.xlane.f32.xlu0 %v770
        %v772 = vpop.xlane.xlu0 %771
        %v773 = vsel %vm766, %v736, 0.0
        %774 = vadd.xlane.f32.xlu0 %v773
        %v775 = vpop.xlane.xlu0 %774
        %v776 = vsel %vm766, %v737, 0.0
        %777 = vadd.xlane.f32.xlu0 %v776
        %v778 = vpop.xlane.xlu0 %777
        %v779 = vsel %vm766, %v738, 0.0
        %780 = vadd.xlane.f32.xlu0 %v779
        %v781 = vpop.xlane.xlu0 %780
        %v782 = vsel %vm766, %v739, 0.0
        %783 = vadd.xlane.f32.xlu0 %v782
        %v784 = vpop.xlane.xlu0 %783
        %v785 = vsel %vm766, %v740, 0.0
        %786 = vadd.xlane.f32.xlu0 %v785
        %v787 = vpop.xlane.xlu0 %786
        %v788 = vsel %vm766, %v741, 0.0
        %789 = vadd.xlane.f32.xlu0 %v788
        %v790 = vpop.xlane.xlu0 %789
        %v791 = vsel %vm766, %v742, 0.0
        %792 = vadd.xlane.f32.xlu0 %v791
        %v793 = vpop.xlane.xlu0 %792
        %v794 = vsel %vm766, %v743, 0.0
        %795 = vadd.xlane.f32.xlu0 %v794
        %v796 = vpop.xlane.xlu0 %795
        %v797 = vsel %vm766, %v744, 0.0
        %798 = vadd.xlane.f32.xlu0 %v797
        %v799 = vpop.xlane.xlu0 %798
        %v800 = vsel %vm766, %v745, 0.0
        %801 = vadd.xlane.f32.xlu0 %v800
        %v802 = vpop.xlane.xlu0 %801
        %v803 = vsel %vm766, %v746, 0.0
        %804 = vadd.xlane.f32.xlu0 %v803
        %v805 = vpop.xlane.xlu0 %804
        %v806 = vsel %vm766, %v747, 0.0
        %807 = vadd.xlane.f32.xlu0 %v806
        %v808 = vpop.xlane.xlu0 %807
        %v809 = vsel %vm766, %v748, 0.0
        %810 = vadd.xlane.f32.xlu0 %v809
        %v811 = vpop.xlane.xlu0 %810
        %v812 = vsel %vm766, %v749, 0.0
        %813 = vadd.xlane.f32.xlu0 %v812
        %v814 = vpop.xlane.xlu0 %813
        %v815 = vsel %vm766, %v750, 0.0
        %816 = vadd.xlane.f32.xlu0 %v815
        %v817 = vpop.xlane.xlu0 %816
        %v818 = vsel %vm766, %v751, 0.0
        %819 = vadd.xlane.f32.xlu0 %v818
        %v820 = vpop.xlane.xlu0 %819
        %v821 = vsel %vm766, %v752, 0.0
        %822 = vadd.xlane.f32.xlu0 %v821
        %v823 = vpop.xlane.xlu0 %822
        %v824 = vsel %vm766, %v753, 0.0
        %825 = vadd.xlane.f32.xlu0 %v824
        %v826 = vpop.xlane.xlu0 %825
        %v827 = vsel %vm766, %v754, 0.0
        %828 = vadd.xlane.f32.xlu0 %v827
        %v829 = vpop.xlane.xlu0 %828
        %v830 = vsel %vm766, %v755, 0.0
        %831 = vadd.xlane.f32.xlu0 %v830
        %v832 = vpop.xlane.xlu0 %831
        %v833 = vsel %vm766, %v756, 0.0
        %834 = vadd.xlane.f32.xlu0 %v833
        %v835 = vpop.xlane.xlu0 %834
        %v836 = vsel %vm766, %v757, 0.0
        %837 = vadd.xlane.f32.xlu0 %v836
        %v838 = vpop.xlane.xlu0 %837
        %v839 = vsel %vm766, %v758, 0.0
        %840 = vadd.xlane.f32.xlu0 %v839
        %v841 = vpop.xlane.xlu0 %840
        %v842 = vsel %vm766, %v759, 0.0
        %843 = vadd.xlane.f32.xlu0 %v842
        %v844 = vpop.xlane.xlu0 %843
        %v845 = vsel %vm766, %v760, 0.0
        %846 = vadd.xlane.f32.xlu0 %v845
        %v847 = vpop.xlane.xlu0 %846
        %v848 = vsel %vm766, %v761, 0.0
        %849 = vadd.xlane.f32.xlu0 %v848
        %v850 = vpop.xlane.xlu0 %849
        %v851 = vsel %vm766, %v762, 0.0
        %852 = vadd.xlane.f32.xlu0 %v851
        %v853 = vpop.xlane.xlu0 %852
        %v854 = vsel %vm766, %v763, 0.0
        %855 = vadd.xlane.f32.xlu0 %v854
        %v856 = vpop.xlane.xlu0 %855
        %v857 = vsel %vm766, %v764, 0.0
        %858 = vadd.xlane.f32.xlu0 %v857
        %v859 = vpop.xlane.xlu0 %858
        %v860 = vsel %vm766, %v765, 0.0
        %861 = vadd.xlane.f32.xlu0 %v860
        %v862 = vpop.xlane.xlu0 %861
        %v863 = vrcp.pop 64.0
        %v864 = vmul.f32 %v769, %v863
        %v865 = vmul.f32 %v772, %v863
        %v866 = vmul.f32 %v775, %v863
        %v867 = vmul.f32 %v778, %v863
        %v868 = vmul.f32 %v781, %v863
        %v869 = vmul.f32 %v784, %v863
        %v870 = vmul.f32 %v787, %v863
        %v871 = vmul.f32 %v790, %v863
        %v872 = vmul.f32 %v793, %v863
        %v873 = vmul.f32 %v796, %v863
        %v874 = vmul.f32 %v799, %v863
        %v875 = vmul.f32 %v802, %v863
        %v876 = vmul.f32 %v805, %v863
        %v877 = vmul.f32 %v808, %v863
        %v878 = vmul.f32 %v811, %v863
        %v879 = vmul.f32 %v814, %v863
        %v880 = vmul.f32 %v817, %v863
        %v881 = vmul.f32 %v820, %v863
        %v882 = vmul.f32 %v823, %v863
        %v883 = vmul.f32 %v826, %v863
        %v884 = vmul.f32 %v829, %v863
        %v885 = vmul.f32 %v832, %v863
        %v886 = vmul.f32 %v835, %v863
        %v887 = vmul.f32 %v838, %v863
        %v888 = vmul.f32 %v841, %v863
        %v889 = vmul.f32 %v844, %v863
        %v890 = vmul.f32 %v847, %v863
        %v891 = vmul.f32 %v850, %v863
        %v892 = vmul.f32 %v853, %v863
        %v893 = vmul.f32 %v856, %v863
        %v894 = vmul.f32 %v859, %v863
        %v895 = vmul.f32 %v862, %v863
        %v896 = vadd.f32 %v864, 1e-08
        %v897 = vadd.f32 %v865, 1e-08
        %v898 = vadd.f32 %v866, 1e-08
        %v899 = vadd.f32 %v867, 1e-08
        %v900 = vadd.f32 %v868, 1e-08
        %v901 = vadd.f32 %v869, 1e-08
        %v902 = vadd.f32 %v870, 1e-08
        %v903 = vadd.f32 %v871, 1e-08
        %v904 = vadd.f32 %v872, 1e-08
        %v905 = vadd.f32 %v873, 1e-08
        %v906 = vadd.f32 %v874, 1e-08
        %v907 = vadd.f32 %v875, 1e-08
        %v908 = vadd.f32 %v876, 1e-08
        %v909 = vadd.f32 %v877, 1e-08
        %v910 = vadd.f32 %v878, 1e-08
        %v911 = vadd.f32 %v879, 1e-08
        %v912 = vadd.f32 %v880, 1e-08
        %v913 = vadd.f32 %v881, 1e-08
        %v914 = vadd.f32 %v882, 1e-08
        %v915 = vadd.f32 %v883, 1e-08
        %v916 = vadd.f32 %v884, 1e-08
        %v917 = vadd.f32 %v885, 1e-08
        %v918 = vadd.f32 %v886, 1e-08
        %v919 = vadd.f32 %v887, 1e-08
        %v920 = vadd.f32 %v888, 1e-08
        %v921 = vadd.f32 %v889, 1e-08
        %v922 = vadd.f32 %v890, 1e-08
        %v923 = vadd.f32 %v891, 1e-08
        %v924 = vadd.f32 %v892, 1e-08
        %v925 = vadd.f32 %v893, 1e-08
        %v926 = vadd.f32 %v894, 1e-08
        %v927 = vadd.f32 %v895, 1e-08
        %v928 = vrsqrt.pop %v896
        %v929 = vrsqrt.pop %v897
        %v930 = vrsqrt.pop %v898
        %v931 = vrsqrt.pop %v899
        %v932 = vrsqrt.pop %v900
        %v933 = vrsqrt.pop %v901
        %v934 = vrsqrt.pop %v902
        %v935 = vrsqrt.pop %v903
        %v936 = vrsqrt.pop %v904
        %v937 = vrsqrt.pop %v905
        %v938 = vrsqrt.pop %v906
        %v939 = vrsqrt.pop %v907
        %v940 = vrsqrt.pop %v908
        %v941 = vrsqrt.pop %v909
        %v942 = vrsqrt.pop %v910
        %v943 = vrsqrt.pop %v911
        %v944 = vrsqrt.pop %v912
        %v945 = vrsqrt.pop %v913
        %v946 = vrsqrt.pop %v914
        %v947 = vrsqrt.pop %v915
        %v948 = vrsqrt.pop %v916
        %v949 = vrsqrt.pop %v917
        %v950 = vrsqrt.pop %v918
        %v951 = vrsqrt.pop %v919
        %v952 = vrsqrt.pop %v920
        %v953 = vrsqrt.pop %v921
        %v954 = vrsqrt.pop %v922
        %v955 = vrsqrt.pop %v923
        %v956 = vrsqrt.pop %v924
        %v957 = vrsqrt.pop %v925
        %v958 = vrsqrt.pop %v926
        %v959 = vrsqrt.pop %v927
        %v960 = vmul.f32 %v608, %v928
        %v961 = vmul.f32 %v611, %v929
        %v962 = vmul.f32 %v616, %v930
        %v963 = vmul.f32 %v619, %v931
        %v964 = vmul.f32 %v624, %v932
        %v965 = vmul.f32 %v627, %v933
        %v966 = vmul.f32 %v632, %v934
        %v967 = vmul.f32 %v635, %v935
        %v968 = vmul.f32 %v640, %v936
        %v969 = vmul.f32 %v643, %v937
        %v970 = vmul.f32 %v648, %v938
        %v971 = vmul.f32 %v651, %v939
        %v972 = vmul.f32 %v656, %v940
        %v973 = vmul.f32 %v659, %v941
        %v974 = vmul.f32 %v664, %v942
        %v975 = vmul.f32 %v667, %v943
        %v976 = vmul.f32 %v672, %v944
        %v977 = vmul.f32 %v675, %v945
        %v978 = vmul.f32 %v680, %v946
        %v979 = vmul.f32 %v683, %v947
        %v980 = vmul.f32 %v688, %v948
        %v981 = vmul.f32 %v691, %v949
        %v982 = vmul.f32 %v696, %v950
        %v983 = vmul.f32 %v699, %v951
        %v984 = vmul.f32 %v704, %v952
        %v985 = vmul.f32 %v707, %v953
        %v986 = vmul.f32 %v712, %v954
        %v987 = vmul.f32 %v715, %v955
        %v988 = vmul.f32 %v720, %v956
        %v989 = vmul.f32 %v723, %v957
        %v990 = vmul.f32 %v728, %v958
        %v991 = vmul.f32 %v731, %v959
        %vm992 = vcmp.gt.f32.partialorder %v960, 0.0
        %vm993 = vcmp.gt.f32.partialorder %v961, 0.0
        %vm994 = vcmp.gt.f32.partialorder %v962, 0.0
        %vm995 = vcmp.gt.f32.partialorder %v963, 0.0
        %vm996 = vcmp.gt.f32.partialorder %v964, 0.0
        %vm997 = vcmp.gt.f32.partialorder %v965, 0.0
        %vm998 = vcmp.gt.f32.partialorder %v966, 0.0
        %vm999 = vcmp.gt.f32.partialorder %v967, 0.0
        %vm1000 = vcmp.gt.f32.partialorder %v968, 0.0
        %vm1001 = vcmp.gt.f32.partialorder %v969, 0.0
        %vm1002 = vcmp.gt.f32.partialorder %v970, 0.0
        %vm1003 = vcmp.gt.f32.partialorder %v971, 0.0
        %vm1004 = vcmp.gt.f32.partialorder %v972, 0.0
        %vm1005 = vcmp.gt.f32.partialorder %v973, 0.0
        %vm1006 = vcmp.gt.f32.partialorder %v974, 0.0
        %vm1007 = vcmp.gt.f32.partialorder %v975, 0.0
        %vm1008 = vcmp.gt.f32.partialorder %v976, 0.0
        %vm1009 = vcmp.gt.f32.partialorder %v977, 0.0
        %vm1010 = vcmp.gt.f32.partialorder %v978, 0.0
        %vm1011 = vcmp.gt.f32.partialorder %v979, 0.0
        %vm1012 = vcmp.gt.f32.partialorder %v980, 0.0
        %vm1013 = vcmp.gt.f32.partialorder %v981, 0.0
        %vm1014 = vcmp.gt.f32.partialorder %v982, 0.0
        %vm1015 = vcmp.gt.f32.partialorder %v983, 0.0
        %vm1016 = vcmp.gt.f32.partialorder %v984, 0.0
        %vm1017 = vcmp.gt.f32.partialorder %v985, 0.0
        %vm1018 = vcmp.gt.f32.partialorder %v986, 0.0
        %vm1019 = vcmp.gt.f32.partialorder %v987, 0.0
        %vm1020 = vcmp.gt.f32.partialorder %v988, 0.0
        %vm1021 = vcmp.gt.f32.partialorder %v989, 0.0
        %vm1022 = vcmp.gt.f32.partialorder %v990, 0.0
        %vm1023 = vcmp.gt.f32.partialorder %v991, 0.0
        %v1024 = vmul.f32 %v960, 0.2
        %v1025 = vmul.f32 %v961, 0.2
        %v1026 = vmul.f32 %v962, 0.2
        %v1027 = vmul.f32 %v963, 0.2
        %v1028 = vmul.f32 %v964, 0.2
        %v1029 = vmul.f32 %v965, 0.2
        %v1030 = vmul.f32 %v966, 0.2
        %v1031 = vmul.f32 %v967, 0.2
        %v1032 = vmul.f32 %v968, 0.2
        %v1033 = vmul.f32 %v969, 0.2
        %v1034 = vmul.f32 %v970, 0.2
        %v1035 = vmul.f32 %v971, 0.2
        %v1036 = vmul.f32 %v972, 0.2
        %v1037 = vmul.f32 %v973, 0.2
        %v1038 = vmul.f32 %v974, 0.2
        %v1039 = vmul.f32 %v975, 0.2
        %v1040 = vmul.f32 %v976, 0.2
        %v1041 = vmul.f32 %v977, 0.2
        %v1042 = vmul.f32 %v978, 0.2
        %v1043 = vmul.f32 %v979, 0.2
        %v1044 = vmul.f32 %v980, 0.2
        %v1045 = vmul.f32 %v981, 0.2
        %v1046 = vmul.f32 %v982, 0.2
        %v1047 = vmul.f32 %v983, 0.2
        %v1048 = vmul.f32 %v984, 0.2
        %v1049 = vmul.f32 %v985, 0.2
        %v1050 = vmul.f32 %v986, 0.2
        %v1051 = vmul.f32 %v987, 0.2
        %v1052 = vmul.f32 %v988, 0.2
        %v1053 = vmul.f32 %v989, 0.2
        %v1054 = vmul.f32 %v990, 0.2
        %v1055 = vmul.f32 %v991, 0.2
        %v1056 = vsel %vm992, %v960, %v1024
        %v1057 = vsel %vm993, %v961, %v1025
        %v1058 = vsel %vm994, %v962, %v1026
        %v1059 = vsel %vm995, %v963, %v1027
        %v1060 = vsel %vm996, %v964, %v1028
        %v1061 = vsel %vm997, %v965, %v1029
        %v1062 = vsel %vm998, %v966, %v1030
        %v1063 = vsel %vm999, %v967, %v1031
        %v1064 = vsel %vm1000, %v968, %v1032
        %v1065 = vsel %vm1001, %v969, %v1033
        %v1066 = vsel %vm1002, %v970, %v1034
        %v1067 = vsel %vm1003, %v971, %v1035
        %v1068 = vsel %vm1004, %v972, %v1036
        %v1069 = vsel %vm1005, %v973, %v1037
        %v1070 = vsel %vm1006, %v974, %v1038
        %v1071 = vsel %vm1007, %v975, %v1039
        %v1072 = vsel %vm1008, %v976, %v1040
        %v1073 = vsel %vm1009, %v977, %v1041
        %v1074 = vsel %vm1010, %v978, %v1042
        %v1075 = vsel %vm1011, %v979, %v1043
        %v1076 = vsel %vm1012, %v980, %v1044
        %v1077 = vsel %vm1013, %v981, %v1045
        %v1078 = vsel %vm1014, %v982, %v1046
        %v1079 = vsel %vm1015, %v983, %v1047
        %v1080 = vsel %vm1016, %v984, %v1048
        %v1081 = vsel %vm1017, %v985, %v1049
        %v1082 = vsel %vm1018, %v986, %v1050
        %v1083 = vsel %vm1019, %v987, %v1051
        %v1084 = vsel %vm1020, %v988, %v1052
        %v1085 = vsel %vm1021, %v989, %v1053
        %v1086 = vsel %vm1022, %v990, %v1054
        %v1087 = vsel %vm1023, %v991, %v1055
        %1088 = vst.msk [vmem:[#allocation2] sm:$0xff] %vm766, 0.0
        %1089 = vst.msk [vmem:[#allocation2 + $0x8] sm:$0xff] %vm766, 0.0
        %vm1090 = vcmask 517120
        %1091 = vst.msk [vmem:[#allocation2 + $0x10] sm:$0x3] %vm1090, 0.0
        %1092 = vst.msk [vmem:[#allocation2 + $0x18] sm:$0xff] %vm766, 0.0
        %1093 = vst.msk [vmem:[#allocation2 + $0x20] sm:$0xff] %vm766, 0.0
        %1094 = vst.msk [vmem:[#allocation2 + $0x28] sm:$0x3] %vm1090, 0.0
        %1095 = vst.msk [vmem:[#allocation2 + $0x30] sm:$0xff] %vm766, 0.0
        %1096 = vst.msk [vmem:[#allocation2 + $0x38] sm:$0xff] %vm766, 0.0
        %1097 = vst.msk [vmem:[#allocation2 + $0x40] sm:$0x3] %vm1090, 0.0
        %1098 = vst.msk [vmem:[#allocation2 + $0x48] sm:$0xff] %vm766, 0.0
        %1099 = vst.msk [vmem:[#allocation2 + $0x50] sm:$0xff] %vm766, 0.0
        %1100 = vst.msk [vmem:[#allocation2 + $0x58] sm:$0x3] %vm1090, 0.0
        %1101 = vst.msk [vmem:[#allocation2 + $0x60] sm:$0xff] %vm766, 0.0
        %1102 = vst.msk [vmem:[#allocation2 + $0x68] sm:$0xff] %vm766, 0.0
        %1103 = vst.msk [vmem:[#allocation2 + $0x70] sm:$0x3] %vm1090, 0.0
        %1104 = vst.msk [vmem:[#allocation2 + $0x78] sm:$0xff] %vm766, 0.0
        %1105 = vst.msk [vmem:[#allocation2 + $0x80] sm:$0xff] %vm766, 0.0
        %1106 = vst.msk [vmem:[#allocation2 + $0x88] sm:$0x3] %vm1090, 0.0
        %1107 = vst.msk [vmem:[#allocation2 + $0x90] sm:$0xff] %vm766, 0.0
        %1108 = vst.msk [vmem:[#allocation2 + $0x98] sm:$0xff] %vm766, 0.0
        %1109 = vst.msk [vmem:[#allocation2 + $0xa0] sm:$0x3] %vm1090, 0.0
        %1110 = vst.msk [vmem:[#allocation2 + $0xa8] sm:$0xff] %vm766, 0.0
        %1111 = vst.msk [vmem:[#allocation2 + $0xb0] sm:$0xff] %vm766, 0.0
        %1112 = vst.msk [vmem:[#allocation2 + $0xb8] sm:$0x3] %vm1090, 0.0
        %1113 = vst.msk [vmem:[#allocation2 + $0xc0] sm:$0xff] %vm766, 0.0
        %1114 = vst.msk [vmem:[#allocation2 + $0xc8] sm:$0xff] %vm766, 0.0
        %1115 = vst.msk [vmem:[#allocation2 + $0xd0] sm:$0x3] %vm1090, 0.0
        %1116 = vst.msk [vmem:[#allocation2 + $0xd8] sm:$0xff] %vm766, 0.0
        %1117 = vst.msk [vmem:[#allocation2 + $0xe0] sm:$0xff] %vm766, 0.0
        %1118 = vst.msk [vmem:[#allocation2 + $0xe8] sm:$0x3] %vm1090, 0.0
        %1119 = vst.msk [vmem:[#allocation2 + $0xf0] sm:$0xff] %vm766, 0.0
        %1120 = vst.msk [vmem:[#allocation2 + $0xf8] sm:$0xff] %vm766, 0.0
        %1121 = vst.msk [vmem:[#allocation2 + $0x100] sm:$0x3] %vm1090, 0.0
        %1122 = vst.msk [vmem:[#allocation2 + $0x108] sm:$0xff] %vm766, 0.0
        %1123 = vst.msk [vmem:[#allocation2 + $0x110] sm:$0xff] %vm766, 0.0
        %1124 = vst.msk [vmem:[#allocation2 + $0x118] sm:$0x3] %vm1090, 0.0
        %1125 = vst.msk [vmem:[#allocation2 + $0x120] sm:$0xff] %vm766, 0.0
        %1126 = vst.msk [vmem:[#allocation2 + $0x128] sm:$0xff] %vm766, 0.0
        %1127 = vst.msk [vmem:[#allocation2 + $0x130] sm:$0x3] %vm1090, 0.0
        %1128 = vst.msk [vmem:[#allocation2 + $0x138] sm:$0xff] %vm766, 0.0
        %1129 = vst.msk [vmem:[#allocation2 + $0x140] sm:$0xff] %vm766, 0.0
        %1130 = vst.msk [vmem:[#allocation2 + $0x148] sm:$0x3] %vm1090, 0.0
        %1131 = vst.msk [vmem:[#allocation2 + $0x150] sm:$0xff] %vm766, 0.0
        %1132 = vst.msk [vmem:[#allocation2 + $0x158] sm:$0xff] %vm766, 0.0
        %1133 = vst.msk [vmem:[#allocation2 + $0x160] sm:$0x3] %vm1090, 0.0
        %1134 = vst.msk [vmem:[#allocation2 + $0x168] sm:$0xff] %vm766, 0.0
        %1135 = vst.msk [vmem:[#allocation2 + $0x170] sm:$0xff] %vm766, 0.0
        %1136 = vst.msk [vmem:[#allocation2 + $0x178] sm:$0x3] %vm1090, 0.0
        %1137 = vst.msk [vmem:[#allocation2 + $0x180] sm:$0xff] %vm766, 0.0
        %1138 = vst.msk [vmem:[#allocation2 + $0x188] sm:$0xff] %vm766, 0.0
        %1139 = vst.msk [vmem:[#allocation2 + $0x190] sm:$0x3] %vm1090, 0.0
        %1140 = vst.msk [vmem:[#allocation2 + $0x198] sm:$0xff] %vm766, 0.0
        %1141 = vst.msk [vmem:[#allocation2 + $0x1a0] sm:$0xff] %vm766, 0.0
        %1142 = vst.msk [vmem:[#allocation2 + $0x1a8] sm:$0x3] %vm1090, 0.0
        %s1143 = scalar_lea.vmem [#allocation2], 24
        %1144 = vst.msk [vmem:[%s1143 + $0x1] sm:$0xff] %vm766, %v1056
        %1145 = vst.msk [vmem:[%s1143 + $0x9] sm:$0xff] %vm766, %v1057
        %1146 = vst.msk [vmem:[%s1143 + $0x19] sm:$0xff] %vm766, %v1058
        %1147 = vst.msk [vmem:[%s1143 + $0x21] sm:$0xff] %vm766, %v1059
        %1148 = vst.msk [vmem:[%s1143 + $0x31] sm:$0xff] %vm766, %v1060
        %1149 = vst.msk [vmem:[%s1143 + $0x39] sm:$0xff] %vm766, %v1061
        %1150 = vst.msk [vmem:[%s1143 + $0x49] sm:$0xff] %vm766, %v1062
        %1151 = vst.msk [vmem:[%s1143 + $0x51] sm:$0xff] %vm766, %v1063
        %1152 = vst.msk [vmem:[%s1143 + $0x61] sm:$0xff] %vm766, %v1064
        %1153 = vst.msk [vmem:[%s1143 + $0x69] sm:$0xff] %vm766, %v1065
        %1154 = vst.msk [vmem:[%s1143 + $0x79] sm:$0xff] %vm766, %v1066
        %1155 = vst.msk [vmem:[%s1143 + $0x81] sm:$0xff] %vm766, %v1067
        %1156 = vst.msk [vmem:[%s1143 + $0x91] sm:$0xff] %vm766, %v1068
        %1157 = vst.msk [vmem:[%s1143 + $0x99] sm:$0xff] %vm766, %v1069
        %1158 = vst.msk [vmem:[%s1143 + $0xa9] sm:$0xff] %vm766, %v1070
        %1159 = vst.msk [vmem:[%s1143 + $0xb1] sm:$0xff] %vm766, %v1071
        %1160 = vst.msk [vmem:[%s1143 + $0xc1] sm:$0xff] %vm766, %v1072
        %1161 = vst.msk [vmem:[%s1143 + $0xc9] sm:$0xff] %vm766, %v1073
        %1162 = vst.msk [vmem:[%s1143 + $0xd9] sm:$0xff] %vm766, %v1074
        %1163 = vst.msk [vmem:[%s1143 + $0xe1] sm:$0xff] %vm766, %v1075
        %1164 = vst.msk [vmem:[%s1143 + $0xf1] sm:$0xff] %vm766, %v1076
        %1165 = vst.msk [vmem:[%s1143 + $0xf9] sm:$0xff] %vm766, %v1077
        %1166 = vst.msk [vmem:[%s1143 + $0x109] sm:$0xff] %vm766, %v1078
        %1167 = vst.msk [vmem:[%s1143 + $0x111] sm:$0xff] %vm766, %v1079
        %1168 = vst.msk [vmem:[%s1143 + $0x121] sm:$0xff] %vm766, %v1080
        %1169 = vst.msk [vmem:[%s1143 + $0x129] sm:$0xff] %vm766, %v1081
        %1170 = vst.msk [vmem:[%s1143 + $0x139] sm:$0xff] %vm766, %v1082
        %1171 = vst.msk [vmem:[%s1143 + $0x141] sm:$0xff] %vm766, %v1083
        %1172 = vst.msk [vmem:[%s1143 + $0x151] sm:$0xff] %vm766, %v1084
        %1173 = vst.msk [vmem:[%s1143 + $0x159] sm:$0xff] %vm766, %v1085
        %1174 = vst.msk [vmem:[%s1143 + $0x169] sm:$0xff] %vm766, %v1086
        %1175 = vst.msk [vmem:[%s1143 + $0x171] sm:$0xff] %vm766, %v1087
        %v1176 = vld [vmem:[#allocation9] sm:$0x1]
        %v1178 = vlaneseq
        %v1179 = vshrl.u32 %v1178, 7
        %v1180 = vsub.s32 0, %v1179
        %v1181 = vrot.slane %v1176, %v1180
        %v1183 = vld [vmem:[#allocation2] sm:$0xff]
        %v1184 = vld [vmem:[#allocation2 + $0x8] sm:$0xff]
        %v1185 = vld [vmem:[#allocation2 + $0x18] sm:$0xff]
        %v1186 = vld [vmem:[#allocation2 + $0x20] sm:$0xff]
        %v1187 = vld [vmem:[#allocation2 + $0x30] sm:$0xff]
        %v1188 = vld [vmem:[#allocation2 + $0x38] sm:$0xff]
        %v1189 = vld [vmem:[#allocation2 + $0x48] sm:$0xff]
        %v1190 = vld [vmem:[#allocation2 + $0x50] sm:$0xff]
        %v1191 = vld [vmem:[#allocation2 + $0x60] sm:$0xff]
        %v1192 = vld [vmem:[#allocation2 + $0x68] sm:$0xff]
        %v1193 = vld [vmem:[#allocation2 + $0x78] sm:$0xff]
        %v1194 = vld [vmem:[#allocation2 + $0x80] sm:$0xff]
        %v1195 = vld [vmem:[#allocation2 + $0x90] sm:$0xff]
        %v1196 = vld [vmem:[#allocation2 + $0x98] sm:$0xff]
        %v1197 = vld [vmem:[#allocation2 + $0xa8] sm:$0xff]
        %v1198 = vld [vmem:[#allocation2 + $0xb0] sm:$0xff]
        %v1199 = vld [vmem:[#allocation2 + $0xc0] sm:$0xff]
        %v1200 = vld [vmem:[#allocation2 + $0xc8] sm:$0xff]
        %v1201 = vld [vmem:[#allocation2 + $0xd8] sm:$0xff]
        %v1202 = vld [vmem:[#allocation2 + $0xe0] sm:$0xff]
        %v1203 = vld [vmem:[#allocation2 + $0xf0] sm:$0xff]
        %v1204 = vld [vmem:[#allocation2 + $0xf8] sm:$0xff]
        %v1205 = vld [vmem:[#allocation2 + $0x108] sm:$0xff]
        %v1206 = vld [vmem:[#allocation2 + $0x110] sm:$0xff]
        %v1207 = vld [vmem:[#allocation2 + $0x120] sm:$0xff]
        %v1208 = vld [vmem:[#allocation2 + $0x128] sm:$0xff]
        %v1209 = vld [vmem:[#allocation2 + $0x138] sm:$0xff]
        %v1210 = vld [vmem:[#allocation2 + $0x140] sm:$0xff]
        %v1211 = vld [vmem:[#allocation2 + $0x150] sm:$0xff]
        %v1212 = vld [vmem:[#allocation2 + $0x158] sm:$0xff]
        %v1213 = vld [vmem:[#allocation2 + $0x168] sm:$0xff]
        %v1214 = vld [vmem:[#allocation2 + $0x170] sm:$0xff]
        %v1215 = vpack.c.bf16 %v1184, %v1183
        %v1216 = vpack.c.bf16 %v1186, %v1185
        %v1217 = vpack.c.bf16 %v1188, %v1187
        %v1218 = vpack.c.bf16 %v1190, %v1189
        %v1219 = vpack.c.bf16 %v1192, %v1191
        %v1220 = vpack.c.bf16 %v1194, %v1193
        %v1221 = vpack.c.bf16 %v1196, %v1195
        %v1222 = vpack.c.bf16 %v1198, %v1197
        %v1223 = vpack.c.bf16 %v1200, %v1199
        %v1224 = vpack.c.bf16 %v1202, %v1201
        %v1225 = vpack.c.bf16 %v1204, %v1203
        %v1226 = vpack.c.bf16 %v1206, %v1205
        %v1227 = vpack.c.bf16 %v1208, %v1207
        %v1228 = vpack.c.bf16 %v1210, %v1209
        %v1229 = vpack.c.bf16 %v1212, %v1211
        %v1230 = vpack.c.bf16 %v1214, %v1213
        %v1231 = vld [vmem:[#allocation8] sm:$0xf]
        %v1232 = vld [vmem:[#allocation8 + $0x4] sm:$0xf]
        %v1233 = vld [vmem:[#allocation8 + $0x8] sm:$0xf]
        %v1234 = vld [vmem:[#allocation8 + $0xc] sm:$0xf]
        %v1235 = vld [vmem:[#allocation8 + $0x10] sm:$0xf]
        %v1236 = vld [vmem:[#allocation8 + $0x14] sm:$0xf]
        %v1237 = vld [vmem:[#allocation8 + $0x18] sm:$0xf]
        %v1238 = vld [vmem:[#allocation8 + $0x1c] sm:$0xf]
        %v1247 = vunpack.c.l.b16 %v1231
        %v1248 = vunpack.c.l.b16 %v1232
        %v1249 = vunpack.c.l.b16 %v1233
        %v1250 = vunpack.c.l.b16 %v1234
        %v1251 = vunpack.c.l.b16 %v1235
        %v1252 = vunpack.c.l.b16 %v1236
        %v1253 = vunpack.c.l.b16 %v1237
        %v1254 = vunpack.c.l.b16 %v1238
        %v1255 = vpack.c.b16 %v1248, %v1247
        %v1256 = vpack.c.b16 %v1250, %v1249
        %v1257 = vpack.c.b16 %v1252, %v1251
        %v1258 = vpack.c.b16 %v1254, %v1253
        %v1264 = vsel %vm766, %v1215, 0
        %v1267 = vsel %vm766, %v1216, 0
        %v1270 = vsel %vm766, %v1217, 0
        %v1273 = vsel %vm766, %v1218, 0
        %v1276 = vsel %vm766, %v1219, 0
        %v1279 = vsel %vm766, %v1220, 0
        %v1282 = vsel %vm766, %v1221, 0
        %v1285 = vsel %vm766, %v1222, 0
        %v1288 = vsel %vm766, %v1223, 0
        %v1291 = vsel %vm766, %v1224, 0
        %v1294 = vsel %vm766, %v1225, 0
        %v1297 = vsel %vm766, %v1226, 0
        %v1300 = vsel %vm766, %v1227, 0
        %v1303 = vsel %vm766, %v1228, 0
        %v1306 = vsel %vm766, %v1229, 0
        %v1309 = vsel %vm766, %v1230, 0
        %1311 = vmatprep.subr.bf16.mxu0 0
        %1312 = vmatpush1.bf16.msra.mxu0 %v1255
        %1313 = vmatprep.subr.bf16.mxu0 0
        %1314 = vmatpush1.bf16.msra.mxu0 %v1256
        %1315 = vmatprep.subr.bf16.mxu0 0
        %1316 = vmatpush1.bf16.msra.mxu0 %v1257
        %1317 = vmatprep.subr.bf16.mxu0 0
        %1318 = vmatpush1.bf16.msra.mxu0 %v1258
        %1319 = vmatprep.subr.bf16.mxu0 0
        %1320 = vmatpush1.bf16.msra.mxu0 0
        %1321 = vmatprep.subr.bf16.mxu0 0
        %1322 = vmatpush1.bf16.msra.mxu0 0
        %1323 = vmatprep.subr.bf16.mxu0 0
        %1324 = vmatpush1.bf16.msra.mxu0 0
        %1325 = vmatprep.subr.bf16.mxu0 0
        %1326 = vmatpush1.bf16.msra.mxu0 0
        %1327 = vmatprep.subr.bf16.mxu0 0
        %1328 = vmatpush1.bf16.msra.mxu0 0
        %1329 = vmatprep.subr.bf16.mxu0 0
        %1330 = vmatpush1.bf16.msra.mxu0 0
        %1331 = vmatprep.subr.bf16.mxu0 0
        %1332 = vmatpush1.bf16.msra.mxu0 0
        %1333 = vmatprep.subr.bf16.mxu0 0
        %1334 = vmatpush1.bf16.msra.mxu0 0
        %1335 = vmatprep.subr.bf16.mxu0 0
        %1336 = vmatpush1.bf16.msra.mxu0 0
        %1337 = vmatprep.subr.bf16.mxu0 0
        %1338 = vmatpush1.bf16.msra.mxu0 0
        %1339 = vmatprep.subr.bf16.mxu0 0
        %1340 = vmatpush1.bf16.msra.mxu0 0
        %1341 = vmatprep.subr.bf16.mxu0 0
        %1342 = vmatpush1.bf16.msra.mxu0 0
        %1343 = vmatprep.mubr.bf16.mxu0 0
        %1344 = vmatmul.mubr.bf16.gmra.mrb[0].mxu0 %v1264
        %v1345 = vpop.f32.mrb[0].mxu0
        %v1346 = vadd.f32 0.0, %v1345
        %v1347 = vpop.f32.mrb[0].mxu0
        %v1348 = vpop.f32.mrb[0].mxu0
        %v1349 = vadd.f32 0.0, %v1348
        %v1350 = vpop.f32.mrb[0].mxu0
        %1351 = vmatprep.mubr.bf16.mxu0 0
        %1352 = vmatmul.mubr.bf16.gmra.mrb[0].mxu0 %v1267
        %v1353 = vpop.f32.mrb[0].mxu0
        %v1354 = vadd.f32 0.0, %v1353
        %v1355 = vpop.f32.mrb[0].mxu0
        %v1356 = vpop.f32.mrb[0].mxu0
        %v1357 = vadd.f32 0.0, %v1356
        %v1358 = vpop.f32.mrb[0].mxu0
        %1359 = vmatprep.mubr.bf16.mxu0 0
        %1360 = vmatmul.mubr.bf16.gmra.mrb[0].mxu0 %v1270
        %v1361 = vpop.f32.mrb[0].mxu0
        %v1362 = vadd.f32 0.0, %v1361
        %v1363 = vpop.f32.mrb[0].mxu0
        %v1364 = vpop.f32.mrb[0].mxu0
        %v1365 = vadd.f32 0.0, %v1364
        %v1366 = vpop.f32.mrb[0].mxu0
        %1367 = vmatprep.mubr.bf16.mxu0 0
        %1368 = vmatmul.mubr.bf16.gmra.mrb[0].mxu0 %v1273
        %v1369 = vpop.f32.mrb[0].mxu0
        %v1370 = vadd.f32 0.0, %v1369
        %v1371 = vpop.f32.mrb[0].mxu0
        %v1372 = vpop.f32.mrb[0].mxu0
        %v1373 = vadd.f32 0.0, %v1372
        %v1374 = vpop.f32.mrb[0].mxu0
        %1375 = vmatprep.mubr.bf16.mxu0 0
        %1376 = vmatmul.mubr.bf16.gmra.mrb[0].mxu0 %v1276
        %v1377 = vpop.f32.mrb[0].mxu0
        %v1378 = vadd.f32 0.0, %v1377
        %v1379 = vpop.f32.mrb[0].mxu0
        %v1380 = vpop.f32.mrb[0].mxu0
        %v1381 = vadd.f32 0.0, %v1380
        %v1382 = vpop.f32.mrb[0].mxu0
        %1383 = vmatprep.mubr.bf16.mxu0 0
        %1384 = vmatmul.mubr.bf16.gmra.mrb[0].mxu0 %v1279
        %v1385 = vpop.f32.mrb[0].mxu0
        %v1386 = vadd.f32 0.0, %v1385
        %v1387 = vpop.f32.mrb[0].mxu0
        %v1388 = vpop.f32.mrb[0].mxu0
        %v1389 = vadd.f32 0.0, %v1388
        %v1390 = vpop.f32.mrb[0].mxu0
        %1391 = vmatprep.mubr.bf16.mxu0 0
        %1392 = vmatmul.mubr.bf16.gmra.mrb[0].mxu0 %v1282
        %v1393 = vpop.f32.mrb[0].mxu0
        %v1394 = vadd.f32 0.0, %v1393
        %v1395 = vpop.f32.mrb[0].mxu0
        %v1396 = vpop.f32.mrb[0].mxu0
        %v1397 = vadd.f32 0.0, %v1396
        %v1398 = vpop.f32.mrb[0].mxu0
        %1399 = vmatprep.mubr.bf16.mxu0 0
        %1400 = vmatmul.mubr.bf16.gmra.mrb[0].mxu0 %v1285
        %v1401 = vpop.f32.mrb[0].mxu0
        %v1402 = vadd.f32 0.0, %v1401
        %v1403 = vpop.f32.mrb[0].mxu0
        %v1404 = vpop.f32.mrb[0].mxu0
        %v1405 = vadd.f32 0.0, %v1404
        %v1406 = vpop.f32.mrb[0].mxu0
        %1407 = vmatprep.mubr.bf16.mxu0 0
        %1408 = vmatmul.mubr.bf16.gmra.mrb[0].mxu0 %v1288
        %v1409 = vpop.f32.mrb[0].mxu0
        %v1410 = vadd.f32 0.0, %v1409
        %v1411 = vpop.f32.mrb[0].mxu0
        %v1412 = vpop.f32.mrb[0].mxu0
        %v1413 = vadd.f32 0.0, %v1412
        %v1414 = vpop.f32.mrb[0].mxu0
        %1415 = vmatprep.mubr.bf16.mxu0 0
        %1416 = vmatmul.mubr.bf16.gmra.mrb[0].mxu0 %v1291
        %v1417 = vpop.f32.mrb[0].mxu0
        %v1418 = vadd.f32 0.0, %v1417
        %v1419 = vpop.f32.mrb[0].mxu0
        %v1420 = vpop.f32.mrb[0].mxu0
        %v1421 = vadd.f32 0.0, %v1420
        %v1422 = vpop.f32.mrb[0].mxu0
        %1423 = vmatprep.mubr.bf16.mxu0 0
        %1424 = vmatmul.mubr.bf16.gmra.mrb[0].mxu0 %v1294
        %v1425 = vpop.f32.mrb[0].mxu0
        %v1426 = vadd.f32 0.0, %v1425
        %v1427 = vpop.f32.mrb[0].mxu0
        %v1428 = vpop.f32.mrb[0].mxu0
        %v1429 = vadd.f32 0.0, %v1428
        %v1430 = vpop.f32.mrb[0].mxu0
        %1431 = vmatprep.mubr.bf16.mxu0 0
        %1432 = vmatmul.mubr.bf16.gmra.mrb[0].mxu0 %v1297
        %v1433 = vpop.f32.mrb[0].mxu0
        %v1434 = vadd.f32 0.0, %v1433
        %v1435 = vpop.f32.mrb[0].mxu0
        %v1436 = vpop.f32.mrb[0].mxu0
        %v1437 = vadd.f32 0.0, %v1436
        %v1438 = vpop.f32.mrb[0].mxu0
        %1439 = vmatprep.mubr.bf16.mxu0 0
        %1440 = vmatmul.mubr.bf16.gmra.mrb[0].mxu0 %v1300
        %v1441 = vpop.f32.mrb[0].mxu0
        %v1442 = vadd.f32 0.0, %v1441
        %v1443 = vpop.f32.mrb[0].mxu0
        %v1444 = vpop.f32.mrb[0].mxu0
        %v1445 = vadd.f32 0.0, %v1444
        %v1446 = vpop.f32.mrb[0].mxu0
        %1447 = vmatprep.mubr.bf16.mxu0 0
        %1448 = vmatmul.mubr.bf16.gmra.mrb[0].mxu0 %v1303
        %v1449 = vpop.f32.mrb[0].mxu0
        %v1450 = vadd.f32 0.0, %v1449
        %v1451 = vpop.f32.mrb[0].mxu0
        %v1452 = vpop.f32.mrb[0].mxu0
        %v1453 = vadd.f32 0.0, %v1452
        %v1454 = vpop.f32.mrb[0].mxu0
        %1455 = vmatprep.mubr.bf16.mxu0 0
        %1456 = vmatmul.mubr.bf16.gmra.mrb[0].mxu0 %v1306
        %v1457 = vpop.f32.mrb[0].mxu0
        %v1458 = vadd.f32 0.0, %v1457
        %v1459 = vpop.f32.mrb[0].mxu0
        %v1460 = vpop.f32.mrb[0].mxu0
        %v1461 = vadd.f32 0.0, %v1460
        %v1462 = vpop.f32.mrb[0].mxu0
        %1463 = vmatprep.mubr.bf16.mxu0 0
        %1464 = vmatmul.mubr.bf16.gmra.mrb[0].mxu0 %v1309
        %v1465 = vpop.f32.mrb[0].mxu0
        %v1466 = vadd.f32 0.0, %v1465
        %v1467 = vpop.f32.mrb[0].mxu0
        %v1468 = vpop.f32.mrb[0].mxu0
        %v1469 = vadd.f32 0.0, %v1468
        %v1470 = vpop.f32.mrb[0].mxu0
        %1471 = vdwg.mxu0
        %v1472 = vadd.f32 %v1181, %v1346
        %v1473 = vadd.f32 %v1181, %v1349
        %v1474 = vadd.f32 %v1181, %v1354
        %v1475 = vadd.f32 %v1181, %v1357
        %v1476 = vadd.f32 %v1181, %v1362
        %v1477 = vadd.f32 %v1181, %v1365
        %v1478 = vadd.f32 %v1181, %v1370
        %v1479 = vadd.f32 %v1181, %v1373
        %v1480 = vadd.f32 %v1181, %v1378
        %v1481 = vadd.f32 %v1181, %v1381
        %v1482 = vadd.f32 %v1181, %v1386
        %v1483 = vadd.f32 %v1181, %v1389
        %v1484 = vadd.f32 %v1181, %v1394
        %v1485 = vadd.f32 %v1181, %v1397
        %v1486 = vadd.f32 %v1181, %v1402
        %v1487 = vadd.f32 %v1181, %v1405
        %v1488 = vadd.f32 %v1181, %v1410
        %v1489 = vadd.f32 %v1181, %v1413
        %v1490 = vadd.f32 %v1181, %v1418
        %v1491 = vadd.f32 %v1181, %v1421
        %v1492 = vadd.f32 %v1181, %v1426
        %v1493 = vadd.f32 %v1181, %v1429
        %v1494 = vadd.f32 %v1181, %v1434
        %v1495 = vadd.f32 %v1181, %v1437
        %v1496 = vadd.f32 %v1181, %v1442
        %v1497 = vadd.f32 %v1181, %v1445
        %v1498 = vadd.f32 %v1181, %v1450
        %v1499 = vadd.f32 %v1181, %v1453
        %v1500 = vadd.f32 %v1181, %v1458
        %v1501 = vadd.f32 %v1181, %v1461
        %v1502 = vadd.f32 %v1181, %v1466
        %v1503 = vadd.f32 %v1181, %v1469
        %v1504 = vld [vmem:[#allocation2 + $0x1] sm:$0xff]
        %v1505 = vld [vmem:[#allocation2 + $0x9] sm:$0xff]
        %v1506 = vld [vmem:[#allocation2 + $0x19] sm:$0xff]
        %v1507 = vld [vmem:[#allocation2 + $0x21] sm:$0xff]
        %v1508 = vld [vmem:[#allocation2 + $0x31] sm:$0xff]
        %v1509 = vld [vmem:[#allocation2 + $0x39] sm:$0xff]
        %v1510 = vld [vmem:[#allocation2 + $0x49] sm:$0xff]
        %v1511 = vld [vmem:[#allocation2 + $0x51] sm:$0xff]
        %v1512 = vld [vmem:[#allocation2 + $0x61] sm:$0xff]
        %v1513 = vld [vmem:[#allocation2 + $0x69] sm:$0xff]
        %v1514 = vld [vmem:[#allocation2 + $0x79] sm:$0xff]
        %v1515 = vld [vmem:[#allocation2 + $0x81] sm:$0xff]
        %v1516 = vld [vmem:[#allocation2 + $0x91] sm:$0xff]
        %v1517 = vld [vmem:[#allocation2 + $0x99] sm:$0xff]
        %v1518 = vld [vmem:[#allocation2 + $0xa9] sm:$0xff]
        %v1519 = vld [vmem:[#allocation2 + $0xb1] sm:$0xff]
        %v1520 = vld [vmem:[#allocation2 + $0xc1] sm:$0xff]
        %v1521 = vld [vmem:[#allocation2 + $0xc9] sm:$0xff]
        %v1522 = vld [vmem:[#allocation2 + $0xd9] sm:$0xff]
        %v1523 = vld [vmem:[#allocation2 + $0xe1] sm:$0xff]
        %v1524 = vld [vmem:[#allocation2 + $0xf1] sm:$0xff]
        %v1525 = vld [vmem:[#allocation2 + $0xf9] sm:$0xff]
        %v1526 = vld [vmem:[#allocation2 + $0x109] sm:$0xff]
        %v1527 = vld [vmem:[#allocation2 + $0x111] sm:$0xff]
        %v1528 = vld [vmem:[#allocation2 + $0x121] sm:$0xff]
        %v1529 = vld [vmem:[#allocation2 + $0x129] sm:$0xff]
        %v1530 = vld [vmem:[#allocation2 + $0x139] sm:$0xff]
        %v1531 = vld [vmem:[#allocation2 + $0x141] sm:$0xff]
        %v1532 = vld [vmem:[#allocation2 + $0x151] sm:$0xff]
        %v1533 = vld [vmem:[#allocation2 + $0x159] sm:$0xff]
        %v1534 = vld [vmem:[#allocation2 + $0x169] sm:$0xff]
        %v1535 = vld [vmem:[#allocation2 + $0x171] sm:$0xff]
        %v1536 = vpack.c.bf16 %v1505, %v1504
        %v1537 = vpack.c.bf16 %v1507, %v1506
        %v1538 = vpack.c.bf16 %v1509, %v1508
        %v1539 = vpack.c.bf16 %v1511, %v1510
        %v1540 = vpack.c.bf16 %v1513, %v1512
        %v1541 = vpack.c.bf16 %v1515, %v1514
        %v1542 = vpack.c.bf16 %v1517, %v1516
        %v1543 = vpack.c.bf16 %v1519, %v1518
        %v1544 = vpack.c.bf16 %v1521, %v1520
        %v1545 = vpack.c.bf16 %v1523, %v1522
        %v1546 = vpack.c.bf16 %v1525, %v1524
        %v1547 = vpack.c.bf16 %v1527, %v1526
        %v1548 = vpack.c.bf16 %v1529, %v1528
        %v1549 = vpack.c.bf16 %v1531, %v1530
        %v1550 = vpack.c.bf16 %v1533, %v1532
        %v1551 = vpack.c.bf16 %v1535, %v1534
        %s1552 = scalar_lea.vmem [#allocation8], 32
        %v1553 = vld [vmem:[%s1552] sm:$0xf]
        %v1554 = vld [vmem:[%s1552 + $0x4] sm:$0xf]
        %v1555 = vld [vmem:[%s1552 + $0x8] sm:$0xf]
        %v1556 = vld [vmem:[%s1552 + $0xc] sm:$0xf]
        %v1557 = vld [vmem:[%s1552 + $0x10] sm:$0xf]
        %v1558 = vld [vmem:[%s1552 + $0x14] sm:$0xf]
        %v1559 = vld [vmem:[%s1552 + $0x18] sm:$0xf]
        %v1560 = vld [vmem:[%s1552 + $0x1c] sm:$0xf]
        %v1569 = vunpack.c.l.b16 %v1553
        %v1570 = vunpack.c.l.b16 %v1554
        %v1571 = vunpack.c.l.b16 %v1555
        %v1572 = vunpack.c.l.b16 %v1556
        %v1573 = vunpack.c.l.b16 %v1557
        %v1574 = vunpack.c.l.b16 %v1558
        %v1575 = vunpack.c.l.b16 %v1559
        %v1576 = vunpack.c.l.b16 %v1560
        %v1577 = vpack.c.b16 %v1570, %v1569
        %v1578 = vpack.c.b16 %v1572, %v1571
        %v1579 = vpack.c.b16 %v1574, %v1573
        %v1580 = vpack.c.b16 %v1576, %v1575
        %v1586 = vsel %vm766, %v1536, 0
        %v1589 = vsel %vm766, %v1537, 0
        %v1592 = vsel %vm766, %v1538, 0
        %v1595 = vsel %vm766, %v1539, 0
        %v1598 = vsel %vm766, %v1540, 0
        %v1601 = vsel %vm766, %v1541, 0
        %v1604 = vsel %vm766, %v1542, 0
        %v1607 = vsel %vm766, %v1543, 0
        %v1610 = vsel %vm766, %v1544, 0
        %v1613 = vsel %vm766, %v1545, 0
        %v1616 = vsel %vm766, %v1546, 0
        %v1619 = vsel %vm766, %v1547, 0
        %v1622 = vsel %vm766, %v1548, 0
        %v1625 = vsel %vm766, %v1549, 0
        %v1628 = vsel %vm766, %v1550, 0
        %v1631 = vsel %vm766, %v1551, 0
        %1633 = vmatprep.subr.bf16.mxu0 0
        %1634 = vmatpush1.bf16.msra.mxu0 %v1577
        %1635 = vmatprep.subr.bf16.mxu0 0
        %1636 = vmatpush1.bf16.msra.mxu0 %v1578
        %1637 = vmatprep.subr.bf16.mxu0 0
        %1638 = vmatpush1.bf16.msra.mxu0 %v1579
        %1639 = vmatprep.subr.bf16.mxu0 0
        %1640 = vmatpush1.bf16.msra.mxu0 %v1580
        %1641 = vmatprep.subr.bf16.mxu0 0
        %1642 = vmatpush1.bf16.msra.mxu0 0
        %1643 = vmatprep.subr.bf16.mxu0 0
        %1644 = vmatpush1.bf16.msra.mxu0 0
        %1645 = vmatprep.subr.bf16.mxu0 0
        %1646 = vmatpush1.bf16.msra.mxu0 0
        %1647 = vmatprep.subr.bf16.mxu0 0
        %1648 = vmatpush1.bf16.msra.mxu0 0
        %1649 = vmatprep.subr.bf16.mxu0 0
        %1650 = vmatpush1.bf16.msra.mxu0 0
        %1651 = vmatprep.subr.bf16.mxu0 0
        %1652 = vmatpush1.bf16.msra.mxu0 0
        %1653 = vmatprep.subr.bf16.mxu0 0
        %1654 = vmatpush1.bf16.msra.mxu0 0
        %1655 = vmatprep.subr.bf16.mxu0 0
        %1656 = vmatpush1.bf16.msra.mxu0 0
        %1657 = vmatprep.subr.bf16.mxu0 0
        %1658 = vmatpush1.bf16.msra.mxu0 0
        %1659 = vmatprep.subr.bf16.mxu0 0
        %1660 = vmatpush1.bf16.msra.mxu0 0
        %1661 = vmatprep.subr.bf16.mxu0 0
        %1662 = vmatpush1.bf16.msra.mxu0 0
        %1663 = vmatprep.subr.bf16.mxu0 0
        %1664 = vmatpush1.bf16.msra.mxu0 0
        %1665 = vmatprep.mubr.bf16.mxu0 0
        %1666 = vmatmul.mubr.bf16.gmra.mrb[0].mxu0 %v1586
        %v1667 = vpop.f32.mrb[0].mxu0
        %v1668 = vadd.f32 0.0, %v1667
        %v1669 = vpop.f32.mrb[0].mxu0
        %v1670 = vpop.f32.mrb[0].mxu0
        %v1671 = vadd.f32 0.0, %v1670
        %v1672 = vpop.f32.mrb[0].mxu0
        %1673 = vmatprep.mubr.bf16.mxu0 0
        %1674 = vmatmul.mubr.bf16.gmra.mrb[0].mxu0 %v1589
        %v1675 = vpop.f32.mrb[0].mxu0
        %v1676 = vadd.f32 0.0, %v1675
        %v1677 = vpop.f32.mrb[0].mxu0
        %v1678 = vpop.f32.mrb[0].mxu0
        %v1679 = vadd.f32 0.0, %v1678
        %v1680 = vpop.f32.mrb[0].mxu0
        %1681 = vmatprep.mubr.bf16.mxu0 0
        %1682 = vmatmul.mubr.bf16.gmra.mrb[0].mxu0 %v1592
        %v1683 = vpop.f32.mrb[0].mxu0
        %v1684 = vadd.f32 0.0, %v1683
        %v1685 = vpop.f32.mrb[0].mxu0
        %v1686 = vpop.f32.mrb[0].mxu0
        %v1687 = vadd.f32 0.0, %v1686
        %v1688 = vpop.f32.mrb[0].mxu0
        %1689 = vmatprep.mubr.bf16.mxu0 0
        %1690 = vmatmul.mubr.bf16.gmra.mrb[0].mxu0 %v1595
        %v1691 = vpop.f32.mrb[0].mxu0
        %v1692 = vadd.f32 0.0, %v1691
        %v1693 = vpop.f32.mrb[0].mxu0
        %v1694 = vpop.f32.mrb[0].mxu0
        %v1695 = vadd.f32 0.0, %v1694
        %v1696 = vpop.f32.mrb[0].mxu0
        %1697 = vmatprep.mubr.bf16.mxu0 0
        %1698 = vmatmul.mubr.bf16.gmra.mrb[0].mxu0 %v1598
        %v1699 = vpop.f32.mrb[0].mxu0
        %v1700 = vadd.f32 0.0, %v1699
        %v1701 = vpop.f32.mrb[0].mxu0
        %v1702 = vpop.f32.mrb[0].mxu0
        %v1703 = vadd.f32 0.0, %v1702
        %v1704 = vpop.f32.mrb[0].mxu0
        %1705 = vmatprep.mubr.bf16.mxu0 0
        %1706 = vmatmul.mubr.bf16.gmra.mrb[0].mxu0 %v1601
        %v1707 = vpop.f32.mrb[0].mxu0
        %v1708 = vadd.f32 0.0, %v1707
        %v1709 = vpop.f32.mrb[0].mxu0
        %v1710 = vpop.f32.mrb[0].mxu0
        %v1711 = vadd.f32 0.0, %v1710
        %v1712 = vpop.f32.mrb[0].mxu0
        %1713 = vmatprep.mubr.bf16.mxu0 0
        %1714 = vmatmul.mubr.bf16.gmra.mrb[0].mxu0 %v1604
        %v1715 = vpop.f32.mrb[0].mxu0
        %v1716 = vadd.f32 0.0, %v1715
        %v1717 = vpop.f32.mrb[0].mxu0
        %v1718 = vpop.f32.mrb[0].mxu0
        %v1719 = vadd.f32 0.0, %v1718
        %v1720 = vpop.f32.mrb[0].mxu0
        %1721 = vmatprep.mubr.bf16.mxu0 0
        %1722 = vmatmul.mubr.bf16.gmra.mrb[0].mxu0 %v1607
        %v1723 = vpop.f32.mrb[0].mxu0
        %v1724 = vadd.f32 0.0, %v1723
        %v1725 = vpop.f32.mrb[0].mxu0
        %v1726 = vpop.f32.mrb[0].mxu0
        %v1727 = vadd.f32 0.0, %v1726
        %v1728 = vpop.f32.mrb[0].mxu0
        %1729 = vmatprep.mubr.bf16.mxu0 0
        %1730 = vmatmul.mubr.bf16.gmra.mrb[0].mxu0 %v1610
        %v1731 = vpop.f32.mrb[0].mxu0
        %v1732 = vadd.f32 0.0, %v1731
        %v1733 = vpop.f32.mrb[0].mxu0
        %v1734 = vpop.f32.mrb[0].mxu0
        %v1735 = vadd.f32 0.0, %v1734
        %v1736 = vpop.f32.mrb[0].mxu0
        %1737 = vmatprep.mubr.bf16.mxu0 0
        %1738 = vmatmul.mubr.bf16.gmra.mrb[0].mxu0 %v1613
        %v1739 = vpop.f32.mrb[0].mxu0
        %v1740 = vadd.f32 0.0, %v1739
        %v1741 = vpop.f32.mrb[0].mxu0
        %v1742 = vpop.f32.mrb[0].mxu0
        %v1743 = vadd.f32 0.0, %v1742
        %v1744 = vpop.f32.mrb[0].mxu0
        %1745 = vmatprep.mubr.bf16.mxu0 0
        %1746 = vmatmul.mubr.bf16.gmra.mrb[0].mxu0 %v1616
        %v1747 = vpop.f32.mrb[0].mxu0
        %v1748 = vadd.f32 0.0, %v1747
        %v1749 = vpop.f32.mrb[0].mxu0
        %v1750 = vpop.f32.mrb[0].mxu0
        %v1751 = vadd.f32 0.0, %v1750
        %v1752 = vpop.f32.mrb[0].mxu0
        %1753 = vmatprep.mubr.bf16.mxu0 0
        %1754 = vmatmul.mubr.bf16.gmra.mrb[0].mxu0 %v1619
        %v1755 = vpop.f32.mrb[0].mxu0
        %v1756 = vadd.f32 0.0, %v1755
        %v1757 = vpop.f32.mrb[0].mxu0
        %v1758 = vpop.f32.mrb[0].mxu0
        %v1759 = vadd.f32 0.0, %v1758
        %v1760 = vpop.f32.mrb[0].mxu0
        %1761 = vmatprep.mubr.bf16.mxu0 0
        %1762 = vmatmul.mubr.bf16.gmra.mrb[0].mxu0 %v1622
        %v1763 = vpop.f32.mrb[0].mxu0
        %v1764 = vadd.f32 0.0, %v1763
        %v1765 = vpop.f32.mrb[0].mxu0
        %v1766 = vpop.f32.mrb[0].mxu0
        %v1767 = vadd.f32 0.0, %v1766
        %v1768 = vpop.f32.mrb[0].mxu0
        %1769 = vmatprep.mubr.bf16.mxu0 0
        %1770 = vmatmul.mubr.bf16.gmra.mrb[0].mxu0 %v1625
        %v1771 = vpop.f32.mrb[0].mxu0
        %v1772 = vadd.f32 0.0, %v1771
        %v1773 = vpop.f32.mrb[0].mxu0
        %v1774 = vpop.f32.mrb[0].mxu0
        %v1775 = vadd.f32 0.0, %v1774
        %v1776 = vpop.f32.mrb[0].mxu0
        %1777 = vmatprep.mubr.bf16.mxu0 0
        %1778 = vmatmul.mubr.bf16.gmra.mrb[0].mxu0 %v1628
        %v1779 = vpop.f32.mrb[0].mxu0
        %v1780 = vadd.f32 0.0, %v1779
        %v1781 = vpop.f32.mrb[0].mxu0
        %v1782 = vpop.f32.mrb[0].mxu0
        %v1783 = vadd.f32 0.0, %v1782
        %v1784 = vpop.f32.mrb[0].mxu0
        %1785 = vmatprep.mubr.bf16.mxu0 0
        %1786 = vmatmul.mubr.bf16.gmra.mrb[0].mxu0 %v1631
        %v1787 = vpop.f32.mrb[0].mxu0
        %v1788 = vadd.f32 0.0, %v1787
        %v1789 = vpop.f32.mrb[0].mxu0
        %v1790 = vpop.f32.mrb[0].mxu0
        %v1791 = vadd.f32 0.0, %v1790
        %v1792 = vpop.f32.mrb[0].mxu0
        %1793 = vdwg.mxu0
        %v1794 = vadd.f32 %v1472, %v1668
        %v1795 = vadd.f32 %v1473, %v1671
        %v1796 = vadd.f32 %v1474, %v1676
        %v1797 = vadd.f32 %v1475, %v1679
        %v1798 = vadd.f32 %v1476, %v1684
        %v1799 = vadd.f32 %v1477, %v1687
        %v1800 = vadd.f32 %v1478, %v1692
        %v1801 = vadd.f32 %v1479, %v1695
        %v1802 = vadd.f32 %v1480, %v1700
        %v1803 = vadd.f32 %v1481, %v1703
        %v1804 = vadd.f32 %v1482, %v1708
        %v1805 = vadd.f32 %v1483, %v1711
        %v1806 = vadd.f32 %v1484, %v1716
        %v1807 = vadd.f32 %v1485, %v1719
        %v1808 = vadd.f32 %v1486, %v1724
        %v1809 = vadd.f32 %v1487, %v1727
        %v1810 = vadd.f32 %v1488, %v1732
        %v1811 = vadd.f32 %v1489, %v1735
        %v1812 = vadd.f32 %v1490, %v1740
        %v1813 = vadd.f32 %v1491, %v1743
        %v1814 = vadd.f32 %v1492, %v1748
        %v1815 = vadd.f32 %v1493, %v1751
        %v1816 = vadd.f32 %v1494, %v1756
        %v1817 = vadd.f32 %v1495, %v1759
        %v1818 = vadd.f32 %v1496, %v1764
        %v1819 = vadd.f32 %v1497, %v1767
        %v1820 = vadd.f32 %v1498, %v1772
        %v1821 = vadd.f32 %v1499, %v1775
        %v1822 = vadd.f32 %v1500, %v1780
        %v1823 = vadd.f32 %v1501, %v1783
        %v1824 = vadd.f32 %v1502, %v1788
        %v1825 = vadd.f32 %v1503, %v1791
        %v1826 = vld [vmem:[#allocation2 + $0x2] sm:$0xff]
        %v1827 = vld [vmem:[#allocation2 + $0xa] sm:$0xff]
        %v1828 = vld [vmem:[#allocation2 + $0x1a] sm:$0xff]
        %v1829 = vld [vmem:[#allocation2 + $0x22] sm:$0xff]
        %v1830 = vld [vmem:[#allocation2 + $0x32] sm:$0xff]
        %v1831 = vld [vmem:[#allocation2 + $0x3a] sm:$0xff]
        %v1832 = vld [vmem:[#allocation2 + $0x4a] sm:$0xff]
        %v1833 = vld [vmem:[#allocation2 + $0x52] sm:$0xff]
        %v1834 = vld [vmem:[#allocation2 + $0x62] sm:$0xff]
        %v1835 = vld [vmem:[#allocation2 + $0x6a] sm:$0xff]
        %v1836 = vld [vmem:[#allocation2 + $0x7a] sm:$0xff]
        %v1837 = vld [vmem:[#allocation2 + $0x82] sm:$0xff]
        %v1838 = vld [vmem:[#allocation2 + $0x92] sm:$0xff]
        %v1839 = vld [vmem:[#allocation2 + $0x9a] sm:$0xff]
        %v1840 = vld [vmem:[#allocation2 + $0xaa] sm:$0xff]
        %v1841 = vld [vmem:[#allocation2 + $0xb2] sm:$0xff]
        %v1842 = vld [vmem:[#allocation2 + $0xc2] sm:$0xff]
        %v1843 = vld [vmem:[#allocation2 + $0xca] sm:$0xff]
        %v1844 = vld [vmem:[#allocation2 + $0xda] sm:$0xff]
        %v1845 = vld [vmem:[#allocation2 + $0xe2] sm:$0xff]
        %v1846 = vld [vmem:[#allocation2 + $0xf2] sm:$0xff]
        %v1847 = vld [vmem:[#allocation2 + $0xfa] sm:$0xff]
        %v1848 = vld [vmem:[#allocation2 + $0x10a] sm:$0xff]
        %v1849 = vld [vmem:[#allocation2 + $0x112] sm:$0xff]
        %v1850 = vld [vmem:[#allocation2 + $0x122] sm:$0xff]
        %v1851 = vld [vmem:[#allocation2 + $0x12a] sm:$0xff]
        %v1852 = vld [vmem:[#allocation2 + $0x13a] sm:$0xff]
        %v1853 = vld [vmem:[#allocation2 + $0x142] sm:$0xff]
        %v1854 = vld [vmem:[#allocation2 + $0x152] sm:$0xff]
        %v1855 = vld [vmem:[#allocation2 + $0x15a] sm:$0xff]
        %v1856 = vld [vmem:[#allocation2 + $0x16a] sm:$0xff]
        %v1857 = vld [vmem:[#allocation2 + $0x172] sm:$0xff]
        %v1858 = vpack.c.bf16 %v1827, %v1826
        %v1859 = vpack.c.bf16 %v1829, %v1828
        %v1860 = vpack.c.bf16 %v1831, %v1830
        %v1861 = vpack.c.bf16 %v1833, %v1832
        %v1862 = vpack.c.bf16 %v1835, %v1834
        %v1863 = vpack.c.bf16 %v1837, %v1836
        %v1864 = vpack.c.bf16 %v1839, %v1838
        %v1865 = vpack.c.bf16 %v1841, %v1840
        %v1866 = vpack.c.bf16 %v1843, %v1842
        %v1867 = vpack.c.bf16 %v1845, %v1844
        %v1868 = vpack.c.bf16 %v1847, %v1846
        %v1869 = vpack.c.bf16 %v1849, %v1848
        %v1870 = vpack.c.bf16 %v1851, %v1850
        %v1871 = vpack.c.bf16 %v1853, %v1852
        %v1872 = vpack.c.bf16 %v1855, %v1854
        %v1873 = vpack.c.bf16 %v1857, %v1856
        %s1874 = scalar_lea.vmem [#allocation8], 64
        %v1875 = vld [vmem:[%s1874] sm:$0xf]
        %v1876 = vld [vmem:[%s1874 + $0x4] sm:$0xf]
        %v1877 = vld [vmem:[%s1874 + $0x8] sm:$0xf]
        %v1878 = vld [vmem:[%s1874 + $0xc] sm:$0xf]
        %v1879 = vld [vmem:[%s1874 + $0x10] sm:$0xf]
        %v1880 = vld [vmem:[%s1874 + $0x14] sm:$0xf]
        %v1881 = vld [vmem:[%s1874 + $0x18] sm:$0xf]
        %v1882 = vld [vmem:[%s1874 + $0x1c] sm:$0xf]
        %v1891 = vunpack.c.l.b16 %v1875
        %v1892 = vunpack.c.l.b16 %v1876
        %v1893 = vunpack.c.l.b16 %v1877
        %v1894 = vunpack.c.l.b16 %v1878
        %v1895 = vunpack.c.l.b16 %v1879
        %v1896 = vunpack.c.l.b16 %v1880
        %v1897 = vunpack.c.l.b16 %v1881
        %v1898 = vunpack.c.l.b16 %v1882
        %v1899 = vpack.c.b16 %v1892, %v1891
        %v1900 = vpack.c.b16 %v1894, %v1893
        %v1901 = vpack.c.b16 %v1896, %v1895
        %v1902 = vpack.c.b16 %v1898, %v1897
        %v1908 = vsel %vm766, %v1858, 0
        %v1911 = vsel %vm766, %v1859, 0
        %v1914 = vsel %vm766, %v1860, 0
        %v1917 = vsel %vm766, %v1861, 0
        %v1920 = vsel %vm766, %v1862, 0
        %v1923 = vsel %vm766, %v1863, 0
        %v1926 = vsel %vm766, %v1864, 0
        %v1929 = vsel %vm766, %v1865, 0
        %v1932 = vsel %vm766, %v1866, 0
        %v1935 = vsel %vm766, %v1867, 0
        %v1938 = vsel %vm766, %v1868, 0
        %v1941 = vsel %vm766, %v1869, 0
        %v1944 = vsel %vm766, %v1870, 0
        %v1947 = vsel %vm766, %v1871, 0
        %v1950 = vsel %vm766, %v1872, 0
        %v1953 = vsel %vm766, %v1873, 0
        %1955 = vmatprep.subr.bf16.mxu0 0
        %1956 = vmatpush1.bf16.msra.mxu0 %v1899
        %1957 = vmatprep.subr.bf16.mxu0 0
        %1958 = vmatpush1.bf16.msra.mxu0 %v1900
        %1959 = vmatprep.subr.bf16.mxu0 0
        %1960 = vmatpush1.bf16.msra.mxu0 %v1901
        %1961 = vmatprep.subr.bf16.mxu0 0
        %1962 = vmatpush1.bf16.msra.mxu0 %v1902
        %1963 = vmatprep.subr.bf16.mxu0 0
        %1964 = vmatpush1.bf16.msra.mxu0 0
        %1965 = vmatprep.subr.bf16.mxu0 0
        %1966 = vmatpush1.bf16.msra.mxu0 0
        %1967 = vmatprep.subr.bf16.mxu0 0
        %1968 = vmatpush1.bf16.msra.mxu0 0
        %1969 = vmatprep.subr.bf16.mxu0 0
        %1970 = vmatpush1.bf16.msra.mxu0 0
        %1971 = vmatprep.subr.bf16.mxu0 0
        %1972 = vmatpush1.bf16.msra.mxu0 0
        %1973 = vmatprep.subr.bf16.mxu0 0
        %1974 = vmatpush1.bf16.msra.mxu0 0
        %1975 = vmatprep.subr.bf16.mxu0 0
        %1976 = vmatpush1.bf16.msra.mxu0 0
        %1977 = vmatprep.subr.bf16.mxu0 0
        %1978 = vmatpush1.bf16.msra.mxu0 0
        %1979 = vmatprep.subr.bf16.mxu0 0
        %1980 = vmatpush1.bf16.msra.mxu0 0
        %1981 = vmatprep.subr.bf16.mxu0 0
        %1982 = vmatpush1.bf16.msra.mxu0 0
        %1983 = vmatprep.subr.bf16.mxu0 0
        %1984 = vmatpush1.bf16.msra.mxu0 0
        %1985 = vmatprep.subr.bf16.mxu0 0
        %1986 = vmatpush1.bf16.msra.mxu0 0
        %1987 = vmatprep.mubr.bf16.mxu0 0
        %1988 = vmatmul.mubr.bf16.gmra.mrb[0].mxu0 %v1908
        %v1989 = vpop.f32.mrb[0].mxu0
        %v1990 = vadd.f32 0.0, %v1989
        %v1991 = vpop.f32.mrb[0].mxu0
        %v1992 = vpop.f32.mrb[0].mxu0
        %v1993 = vadd.f32 0.0, %v1992
        %v1994 = vpop.f32.mrb[0].mxu0
        %1995 = vmatprep.mubr.bf16.mxu0 0
        %1996 = vmatmul.mubr.bf16.gmra.mrb[0].mxu0 %v1911
        %v1997 = vpop.f32.mrb[0].mxu0
        %v1998 = vadd.f32 0.0, %v1997
        %v1999 = vpop.f32.mrb[0].mxu0
        %v2000 = vpop.f32.mrb[0].mxu0
        %v2001 = vadd.f32 0.0, %v2000
        %v2002 = vpop.f32.mrb[0].mxu0
        %2003 = vmatprep.mubr.bf16.mxu0 0
        %2004 = vmatmul.mubr.bf16.gmra.mrb[0].mxu0 %v1914
        %v2005 = vpop.f32.mrb[0].mxu0
        %v2006 = vadd.f32 0.0, %v2005
        %v2007 = vpop.f32.mrb[0].mxu0
        %v2008 = vpop.f32.mrb[0].mxu0
        %v2009 = vadd.f32 0.0, %v2008
        %v2010 = vpop.f32.mrb[0].mxu0
        %2011 = vmatprep.mubr.bf16.mxu0 0
        %2012 = vmatmul.mubr.bf16.gmra.mrb[0].mxu0 %v1917
        %v2013 = vpop.f32.mrb[0].mxu0
        %v2014 = vadd.f32 0.0, %v2013
        %v2015 = vpop.f32.mrb[0].mxu0
        %v2016 = vpop.f32.mrb[0].mxu0
        %v2017 = vadd.f32 0.0, %v2016
        %v2018 = vpop.f32.mrb[0].mxu0
        %2019 = vmatprep.mubr.bf16.mxu0 0
        %2020 = vmatmul.mubr.bf16.gmra.mrb[0].mxu0 %v1920
        %v2021 = vpop.f32.mrb[0].mxu0
        %v2022 = vadd.f32 0.0, %v2021
        %v2023 = vpop.f32.mrb[0].mxu0
        %v2024 = vpop.f32.mrb[0].mxu0
        %v2025 = vadd.f32 0.0, %v2024
        %v2026 = vpop.f32.mrb[0].mxu0
        %2027 = vmatprep.mubr.bf16.mxu0 0
        %2028 = vmatmul.mubr.bf16.gmra.mrb[0].mxu0 %v1923
        %v2029 = vpop.f32.mrb[0].mxu0
        %v2030 = vadd.f32 0.0, %v2029
        %v2031 = vpop.f32.mrb[0].mxu0
        %v2032 = vpop.f32.mrb[0].mxu0
        %v2033 = vadd.f32 0.0, %v2032
        %v2034 = vpop.f32.mrb[0].mxu0
        %2035 = vmatprep.mubr.bf16.mxu0 0
        %2036 = vmatmul.mubr.bf16.gmra.mrb[0].mxu0 %v1926
        %v2037 = vpop.f32.mrb[0].mxu0
        %v2038 = vadd.f32 0.0, %v2037
        %v2039 = vpop.f32.mrb[0].mxu0
        %v2040 = vpop.f32.mrb[0].mxu0
        %v2041 = vadd.f32 0.0, %v2040
        %v2042 = vpop.f32.mrb[0].mxu0
        %2043 = vmatprep.mubr.bf16.mxu0 0
        %2044 = vmatmul.mubr.bf16.gmra.mrb[0].mxu0 %v1929
        %v2045 = vpop.f32.mrb[0].mxu0
        %v2046 = vadd.f32 0.0, %v2045
        %v2047 = vpop.f32.mrb[0].mxu0
        %v2048 = vpop.f32.mrb[0].mxu0
        %v2049 = vadd.f32 0.0, %v2048
        %v2050 = vpop.f32.mrb[0].mxu0
        %2051 = vmatprep.mubr.bf16.mxu0 0
        %2052 = vmatmul.mubr.bf16.gmra.mrb[0].mxu0 %v1932
        %v2053 = vpop.f32.mrb[0].mxu0
        %v2054 = vadd.f32 0.0, %v2053
        %v2055 = vpop.f32.mrb[0].mxu0
        %v2056 = vpop.f32.mrb[0].mxu0
        %v2057 = vadd.f32 0.0, %v2056
        %v2058 = vpop.f32.mrb[0].mxu0
        %2059 = vmatprep.mubr.bf16.mxu0 0
        %2060 = vmatmul.mubr.bf16.gmra.mrb[0].mxu0 %v1935
        %v2061 = vpop.f32.mrb[0].mxu0
        %v2062 = vadd.f32 0.0, %v2061
        %v2063 = vpop.f32.mrb[0].mxu0
        %v2064 = vpop.f32.mrb[0].mxu0
        %v2065 = vadd.f32 0.0, %v2064
        %v2066 = vpop.f32.mrb[0].mxu0
        %2067 = vmatprep.mubr.bf16.mxu0 0
        %2068 = vmatmul.mubr.bf16.gmra.mrb[0].mxu0 %v1938
        %v2069 = vpop.f32.mrb[0].mxu0
        %v2070 = vadd.f32 0.0, %v2069
        %v2071 = vpop.f32.mrb[0].mxu0
        %v2072 = vpop.f32.mrb[0].mxu0
        %v2073 = vadd.f32 0.0, %v2072
        %v2074 = vpop.f32.mrb[0].mxu0
        %2075 = vmatprep.mubr.bf16.mxu0 0
        %2076 = vmatmul.mubr.bf16.gmra.mrb[0].mxu0 %v1941
        %v2077 = vpop.f32.mrb[0].mxu0
        %v2078 = vadd.f32 0.0, %v2077
        %v2079 = vpop.f32.mrb[0].mxu0
        %v2080 = vpop.f32.mrb[0].mxu0
        %v2081 = vadd.f32 0.0, %v2080
        %v2082 = vpop.f32.mrb[0].mxu0
        %2083 = vmatprep.mubr.bf16.mxu0 0
        %2084 = vmatmul.mubr.bf16.gmra.mrb[0].mxu0 %v1944
        %v2085 = vpop.f32.mrb[0].mxu0
        %v2086 = vadd.f32 0.0, %v2085
        %v2087 = vpop.f32.mrb[0].mxu0
        %v2088 = vpop.f32.mrb[0].mxu0
        %v2089 = vadd.f32 0.0, %v2088
        %v2090 = vpop.f32.mrb[0].mxu0
        %2091 = vmatprep.mubr.bf16.mxu0 0
        %2092 = vmatmul.mubr.bf16.gmra.mrb[0].mxu0 %v1947
        %v2093 = vpop.f32.mrb[0].mxu0
        %v2094 = vadd.f32 0.0, %v2093
        %v2095 = vpop.f32.mrb[0].mxu0
        %v2096 = vpop.f32.mrb[0].mxu0
        %v2097 = vadd.f32 0.0, %v2096
        %v2098 = vpop.f32.mrb[0].mxu0
        %2099 = vmatprep.mubr.bf16.mxu0 0
        %2100 = vmatmul.mubr.bf16.gmra.mrb[0].mxu0 %v1950
        %v2101 = vpop.f32.mrb[0].mxu0
        %v2102 = vadd.f32 0.0, %v2101
        %v2103 = vpop.f32.mrb[0].mxu0
        %v2104 = vpop.f32.mrb[0].mxu0
        %v2105 = vadd.f32 0.0, %v2104
        %v2106 = vpop.f32.mrb[0].mxu0
        %2107 = vmatprep.mubr.bf16.mxu0 0
        %2108 = vmatmul.mubr.bf16.gmra.mrb[0].mxu0 %v1953
        %v2109 = vpop.f32.mrb[0].mxu0
        %v2110 = vadd.f32 0.0, %v2109
        %v2111 = vpop.f32.mrb[0].mxu0
        %v2112 = vpop.f32.mrb[0].mxu0
        %v2113 = vadd.f32 0.0, %v2112
        %v2114 = vpop.f32.mrb[0].mxu0
        %2115 = vdwg.mxu0
        %v2116 = vadd.f32 %v1794, %v1990
        %v2117 = vadd.f32 %v1795, %v1993
        %v2118 = vadd.f32 %v1796, %v1998
        %v2119 = vadd.f32 %v1797, %v2001
        %v2120 = vadd.f32 %v1798, %v2006
        %v2121 = vadd.f32 %v1799, %v2009
        %v2122 = vadd.f32 %v1800, %v2014
        %v2123 = vadd.f32 %v1801, %v2017
        %v2124 = vadd.f32 %v1802, %v2022
        %v2125 = vadd.f32 %v1803, %v2025
        %v2126 = vadd.f32 %v1804, %v2030
        %v2127 = vadd.f32 %v1805, %v2033
        %v2128 = vadd.f32 %v1806, %v2038
        %v2129 = vadd.f32 %v1807, %v2041
        %v2130 = vadd.f32 %v1808, %v2046
        %v2131 = vadd.f32 %v1809, %v2049
        %v2132 = vadd.f32 %v1810, %v2054
        %v2133 = vadd.f32 %v1811, %v2057
        %v2134 = vadd.f32 %v1812, %v2062
        %v2135 = vadd.f32 %v1813, %v2065
        %v2136 = vadd.f32 %v1814, %v2070
        %v2137 = vadd.f32 %v1815, %v2073
        %v2138 = vadd.f32 %v1816, %v2078
        %v2139 = vadd.f32 %v1817, %v2081
        %v2140 = vadd.f32 %v1818, %v2086
        %v2141 = vadd.f32 %v1819, %v2089
        %v2142 = vadd.f32 %v1820, %v2094
        %v2143 = vadd.f32 %v1821, %v2097
        %v2144 = vadd.f32 %v1822, %v2102
        %v2145 = vadd.f32 %v1823, %v2105
        %v2146 = vadd.f32 %v1824, %v2110
        %v2147 = vadd.f32 %v1825, %v2113
        %v2148 = vld [vmem:[%s1143] sm:$0xff]
        %v2149 = vld [vmem:[%s1143 + $0x8] sm:$0xff]
        %v2150 = vld [vmem:[%s1143 + $0x18] sm:$0xff]
        %v2151 = vld [vmem:[%s1143 + $0x20] sm:$0xff]
        %v2152 = vld [vmem:[%s1143 + $0x30] sm:$0xff]
        %v2153 = vld [vmem:[%s1143 + $0x38] sm:$0xff]
        %v2154 = vld [vmem:[%s1143 + $0x48] sm:$0xff]
        %v2155 = vld [vmem:[%s1143 + $0x50] sm:$0xff]
        %v2156 = vld [vmem:[%s1143 + $0x60] sm:$0xff]
        %v2157 = vld [vmem:[%s1143 + $0x68] sm:$0xff]
        %v2158 = vld [vmem:[%s1143 + $0x78] sm:$0xff]
        %v2159 = vld [vmem:[%s1143 + $0x80] sm:$0xff]
        %v2160 = vld [vmem:[%s1143 + $0x90] sm:$0xff]
        %v2161 = vld [vmem:[%s1143 + $0x98] sm:$0xff]
        %v2162 = vld [vmem:[%s1143 + $0xa8] sm:$0xff]
        %v2163 = vld [vmem:[%s1143 + $0xb0] sm:$0xff]
        %v2164 = vld [vmem:[%s1143 + $0xc0] sm:$0xff]
        %v2165 = vld [vmem:[%s1143 + $0xc8] sm:$0xff]
        %v2166 = vld [vmem:[%s1143 + $0xd8] sm:$0xff]
        %v2167 = vld [vmem:[%s1143 + $0xe0] sm:$0xff]
        %v2168 = vld [vmem:[%s1143 + $0xf0] sm:$0xff]
        %v2169 = vld [vmem:[%s1143 + $0xf8] sm:$0xff]
        %v2170 = vld [vmem:[%s1143 + $0x108] sm:$0xff]
        %v2171 = vld [vmem:[%s1143 + $0x110] sm:$0xff]
        %v2172 = vld [vmem:[%s1143 + $0x120] sm:$0xff]
        %v2173 = vld [vmem:[%s1143 + $0x128] sm:$0xff]
        %v2174 = vld [vmem:[%s1143 + $0x138] sm:$0xff]
        %v2175 = vld [vmem:[%s1143 + $0x140] sm:$0xff]
        %v2176 = vld [vmem:[%s1143 + $0x150] sm:$0xff]
        %v2177 = vld [vmem:[%s1143 + $0x158] sm:$0xff]
        %v2178 = vld [vmem:[%s1143 + $0x168] sm:$0xff]
        %v2179 = vld [vmem:[%s1143 + $0x170] sm:$0xff]
        %v2180 = vpack.c.bf16 %v2149, %v2148
        %v2181 = vpack.c.bf16 %v2151, %v2150
        %v2182 = vpack.c.bf16 %v2153, %v2152
        %v2183 = vpack.c.bf16 %v2155, %v2154
        %v2184 = vpack.c.bf16 %v2157, %v2156
        %v2185 = vpack.c.bf16 %v2159, %v2158
        %v2186 = vpack.c.bf16 %v2161, %v2160
        %v2187 = vpack.c.bf16 %v2163, %v2162
        %v2188 = vpack.c.bf16 %v2165, %v2164
        %v2189 = vpack.c.bf16 %v2167, %v2166
        %v2190 = vpack.c.bf16 %v2169, %v2168
        %v2191 = vpack.c.bf16 %v2171, %v2170
        %v2192 = vpack.c.bf16 %v2173, %v2172
        %v2193 = vpack.c.bf16 %v2175, %v2174
        %v2194 = vpack.c.bf16 %v2177, %v2176
        %v2195 = vpack.c.bf16 %v2179, %v2178
        %s2196 = scalar_lea.vmem [#allocation8], 96
        %v2197 = vld [vmem:[%s2196] sm:$0xf]
        %v2198 = vld [vmem:[%s2196 + $0x4] sm:$0xf]
        %v2199 = vld [vmem:[%s2196 + $0x8] sm:$0xf]
        %v2200 = vld [vmem:[%s2196 + $0xc] sm:$0xf]
        %v2201 = vld [vmem:[%s2196 + $0x10] sm:$0xf]
        %v2202 = vld [vmem:[%s2196 + $0x14] sm:$0xf]
        %v2203 = vld [vmem:[%s2196 + $0x18] sm:$0xf]
        %v2204 = vld [vmem:[%s2196 + $0x1c] sm:$0xf]
        %v2213 = vunpack.c.l.b16 %v2197
        %v2214 = vunpack.c.l.b16 %v2198
        %v2215 = vunpack.c.l.b16 %v2199
        %v2216 = vunpack.c.l.b16 %v2200
        %v2217 = vunpack.c.l.b16 %v2201
        %v2218 = vunpack.c.l.b16 %v2202
        %v2219 = vunpack.c.l.b16 %v2203
        %v2220 = vunpack.c.l.b16 %v2204
        %v2221 = vpack.c.b16 %v2214, %v2213
        %v2222 = vpack.c.b16 %v2216, %v2215
        %v2223 = vpack.c.b16 %v2218, %v2217
        %v2224 = vpack.c.b16 %v2220, %v2219
        %v2230 = vsel %vm766, %v2180, 0
        %v2233 = vsel %vm766, %v2181, 0
        %v2236 = vsel %vm766, %v2182, 0
        %v2239 = vsel %vm766, %v2183, 0
        %v2242 = vsel %vm766, %v2184, 0
        %v2245 = vsel %vm766, %v2185, 0
        %v2248 = vsel %vm766, %v2186, 0
        %v2251 = vsel %vm766, %v2187, 0
        %v2254 = vsel %vm766, %v2188, 0
        %v2257 = vsel %vm766, %v2189, 0
        %v2260 = vsel %vm766, %v2190, 0
        %v2263 = vsel %vm766, %v2191, 0
        %v2266 = vsel %vm766, %v2192, 0
        %v2269 = vsel %vm766, %v2193, 0
        %v2272 = vsel %vm766, %v2194, 0
        %v2275 = vsel %vm766, %v2195, 0
        %2277 = vmatprep.subr.bf16.mxu0 0
        %2278 = vmatpush1.bf16.msra.mxu0 %v2221
        %2279 = vmatprep.subr.bf16.mxu0 0
        %2280 = vmatpush1.bf16.msra.mxu0 %v2222
        %2281 = vmatprep.subr.bf16.mxu0 0
        %2282 = vmatpush1.bf16.msra.mxu0 %v2223
        %2283 = vmatprep.subr.bf16.mxu0 0
        %2284 = vmatpush1.bf16.msra.mxu0 %v2224
        %2285 = vmatprep.subr.bf16.mxu0 0
        %2286 = vmatpush1.bf16.msra.mxu0 0
        %2287 = vmatprep.subr.bf16.mxu0 0
        %2288 = vmatpush1.bf16.msra.mxu0 0
        %2289 = vmatprep.subr.bf16.mxu0 0
        %2290 = vmatpush1.bf16.msra.mxu0 0
        %2291 = vmatprep.subr.bf16.mxu0 0
        %2292 = vmatpush1.bf16.msra.mxu0 0
        %2293 = vmatprep.subr.bf16.mxu0 0
        %2294 = vmatpush1.bf16.msra.mxu0 0
        %2295 = vmatprep.subr.bf16.mxu0 0
        %2296 = vmatpush1.bf16.msra.mxu0 0
        %2297 = vmatprep.subr.bf16.mxu0 0
        %2298 = vmatpush1.bf16.msra.mxu0 0
        %2299 = vmatprep.subr.bf16.mxu0 0
        %2300 = vmatpush1.bf16.msra.mxu0 0
        %2301 = vmatprep.subr.bf16.mxu0 0
        %2302 = vmatpush1.bf16.msra.mxu0 0
        %2303 = vmatprep.subr.bf16.mxu0 0
        %2304 = vmatpush1.bf16.msra.mxu0 0
        %2305 = vmatprep.subr.bf16.mxu0 0
        %2306 = vmatpush1.bf16.msra.mxu0 0
        %2307 = vmatprep.subr.bf16.mxu0 0
        %2308 = vmatpush1.bf16.msra.mxu0 0
        %2309 = vmatprep.mubr.bf16.mxu0 0
        %2310 = vmatmul.mubr.bf16.gmra.mrb[0].mxu0 %v2230
        %v2311 = vpop.f32.mrb[0].mxu0
        %v2312 = vadd.f32 0.0, %v2311
        %v2313 = vpop.f32.mrb[0].mxu0
        %v2314 = vpop.f32.mrb[0].mxu0
        %v2315 = vadd.f32 0.0, %v2314
        %v2316 = vpop.f32.mrb[0].mxu0
        %2317 = vmatprep.mubr.bf16.mxu0 0
        %2318 = vmatmul.mubr.bf16.gmra.mrb[0].mxu0 %v2233
        %v2319 = vpop.f32.mrb[0].mxu0
        %v2320 = vadd.f32 0.0, %v2319
        %v2321 = vpop.f32.mrb[0].mxu0
        %v2322 = vpop.f32.mrb[0].mxu0
        %v2323 = vadd.f32 0.0, %v2322
        %v2324 = vpop.f32.mrb[0].mxu0
        %2325 = vmatprep.mubr.bf16.mxu0 0
        %2326 = vmatmul.mubr.bf16.gmra.mrb[0].mxu0 %v2236
        %v2327 = vpop.f32.mrb[0].mxu0
        %v2328 = vadd.f32 0.0, %v2327
        %v2329 = vpop.f32.mrb[0].mxu0
        %v2330 = vpop.f32.mrb[0].mxu0
        %v2331 = vadd.f32 0.0, %v2330
        %v2332 = vpop.f32.mrb[0].mxu0
        %2333 = vmatprep.mubr.bf16.mxu0 0
        %2334 = vmatmul.mubr.bf16.gmra.mrb[0].mxu0 %v2239
        %v2335 = vpop.f32.mrb[0].mxu0
        %v2336 = vadd.f32 0.0, %v2335
        %v2337 = vpop.f32.mrb[0].mxu0
        %v2338 = vpop.f32.mrb[0].mxu0
        %v2339 = vadd.f32 0.0, %v2338
        %v2340 = vpop.f32.mrb[0].mxu0
        %2341 = vmatprep.mubr.bf16.mxu0 0
        %2342 = vmatmul.mubr.bf16.gmra.mrb[0].mxu0 %v2242
        %v2343 = vpop.f32.mrb[0].mxu0
        %v2344 = vadd.f32 0.0, %v2343
        %v2345 = vpop.f32.mrb[0].mxu0
        %v2346 = vpop.f32.mrb[0].mxu0
        %v2347 = vadd.f32 0.0, %v2346
        %v2348 = vpop.f32.mrb[0].mxu0
        %2349 = vmatprep.mubr.bf16.mxu0 0
        %2350 = vmatmul.mubr.bf16.gmra.mrb[0].mxu0 %v2245
        %v2351 = vpop.f32.mrb[0].mxu0
        %v2352 = vadd.f32 0.0, %v2351
        %v2353 = vpop.f32.mrb[0].mxu0
        %v2354 = vpop.f32.mrb[0].mxu0
        %v2355 = vadd.f32 0.0, %v2354
        %v2356 = vpop.f32.mrb[0].mxu0
        %2357 = vmatprep.mubr.bf16.mxu0 0
        %2358 = vmatmul.mubr.bf16.gmra.mrb[0].mxu0 %v2248
        %v2359 = vpop.f32.mrb[0].mxu0
        %v2360 = vadd.f32 0.0, %v2359
        %v2361 = vpop.f32.mrb[0].mxu0
        %v2362 = vpop.f32.mrb[0].mxu0
        %v2363 = vadd.f32 0.0, %v2362
        %v2364 = vpop.f32.mrb[0].mxu0
        %2365 = vmatprep.mubr.bf16.mxu0 0
        %2366 = vmatmul.mubr.bf16.gmra.mrb[0].mxu0 %v2251
        %v2367 = vpop.f32.mrb[0].mxu0
        %v2368 = vadd.f32 0.0, %v2367
        %v2369 = vpop.f32.mrb[0].mxu0
        %v2370 = vpop.f32.mrb[0].mxu0
        %v2371 = vadd.f32 0.0, %v2370
        %v2372 = vpop.f32.mrb[0].mxu0
        %2373 = vmatprep.mubr.bf16.mxu0 0
        %2374 = vmatmul.mubr.bf16.gmra.mrb[0].mxu0 %v2254
        %v2375 = vpop.f32.mrb[0].mxu0
        %v2376 = vadd.f32 0.0, %v2375
        %v2377 = vpop.f32.mrb[0].mxu0
        %v2378 = vpop.f32.mrb[0].mxu0
        %v2379 = vadd.f32 0.0, %v2378
        %v2380 = vpop.f32.mrb[0].mxu0
        %2381 = vmatprep.mubr.bf16.mxu0 0
        %2382 = vmatmul.mubr.bf16.gmra.mrb[0].mxu0 %v2257
        %v2383 = vpop.f32.mrb[0].mxu0
        %v2384 = vadd.f32 0.0, %v2383
        %v2385 = vpop.f32.mrb[0].mxu0
        %v2386 = vpop.f32.mrb[0].mxu0
        %v2387 = vadd.f32 0.0, %v2386
        %v2388 = vpop.f32.mrb[0].mxu0
        %2389 = vmatprep.mubr.bf16.mxu0 0
        %2390 = vmatmul.mubr.bf16.gmra.mrb[0].mxu0 %v2260
        %v2391 = vpop.f32.mrb[0].mxu0
        %v2392 = vadd.f32 0.0, %v2391
        %v2393 = vpop.f32.mrb[0].mxu0
        %v2394 = vpop.f32.mrb[0].mxu0
        %v2395 = vadd.f32 0.0, %v2394
        %v2396 = vpop.f32.mrb[0].mxu0
        %2397 = vmatprep.mubr.bf16.mxu0 0
        %2398 = vmatmul.mubr.bf16.gmra.mrb[0].mxu0 %v2263
        %v2399 = vpop.f32.mrb[0].mxu0
        %v2400 = vadd.f32 0.0, %v2399
        %v2401 = vpop.f32.mrb[0].mxu0
        %v2402 = vpop.f32.mrb[0].mxu0
        %v2403 = vadd.f32 0.0, %v2402
        %v2404 = vpop.f32.mrb[0].mxu0
        %2405 = vmatprep.mubr.bf16.mxu0 0
        %2406 = vmatmul.mubr.bf16.gmra.mrb[0].mxu0 %v2266
        %v2407 = vpop.f32.mrb[0].mxu0
        %v2408 = vadd.f32 0.0, %v2407
        %v2409 = vpop.f32.mrb[0].mxu0
        %v2410 = vpop.f32.mrb[0].mxu0
        %v2411 = vadd.f32 0.0, %v2410
        %v2412 = vpop.f32.mrb[0].mxu0
        %2413 = vmatprep.mubr.bf16.mxu0 0
        %2414 = vmatmul.mubr.bf16.gmra.mrb[0].mxu0 %v2269
        %v2415 = vpop.f32.mrb[0].mxu0
        %v2416 = vadd.f32 0.0, %v2415
        %v2417 = vpop.f32.mrb[0].mxu0
        %v2418 = vpop.f32.mrb[0].mxu0
        %v2419 = vadd.f32 0.0, %v2418
        %v2420 = vpop.f32.mrb[0].mxu0
        %2421 = vmatprep.mubr.bf16.mxu0 0
        %2422 = vmatmul.mubr.bf16.gmra.mrb[0].mxu0 %v2272
        %v2423 = vpop.f32.mrb[0].mxu0
        %v2424 = vadd.f32 0.0, %v2423
        %v2425 = vpop.f32.mrb[0].mxu0
        %v2426 = vpop.f32.mrb[0].mxu0
        %v2427 = vadd.f32 0.0, %v2426
        %v2428 = vpop.f32.mrb[0].mxu0
        %2429 = vmatprep.mubr.bf16.mxu0 0
        %2430 = vmatmul.mubr.bf16.gmra.mrb[0].mxu0 %v2275
        %v2431 = vpop.f32.mrb[0].mxu0
        %v2432 = vadd.f32 0.0, %v2431
        %v2433 = vpop.f32.mrb[0].mxu0
        %v2434 = vpop.f32.mrb[0].mxu0
        %v2435 = vadd.f32 0.0, %v2434
        %v2436 = vpop.f32.mrb[0].mxu0
        %2437 = vdwg.mxu0
        %v2438 = vadd.f32 %v2116, %v2312
        %v2439 = vadd.f32 %v2117, %v2315
        %v2440 = vadd.f32 %v2118, %v2320
        %v2441 = vadd.f32 %v2119, %v2323
        %v2442 = vadd.f32 %v2120, %v2328
        %v2443 = vadd.f32 %v2121, %v2331
        %v2444 = vadd.f32 %v2122, %v2336
        %v2445 = vadd.f32 %v2123, %v2339
        %v2446 = vadd.f32 %v2124, %v2344
        %v2447 = vadd.f32 %v2125, %v2347
        %v2448 = vadd.f32 %v2126, %v2352
        %v2449 = vadd.f32 %v2127, %v2355
        %v2450 = vadd.f32 %v2128, %v2360
        %v2451 = vadd.f32 %v2129, %v2363
        %v2452 = vadd.f32 %v2130, %v2368
        %v2453 = vadd.f32 %v2131, %v2371
        %v2454 = vadd.f32 %v2132, %v2376
        %v2455 = vadd.f32 %v2133, %v2379
        %v2456 = vadd.f32 %v2134, %v2384
        %v2457 = vadd.f32 %v2135, %v2387
        %v2458 = vadd.f32 %v2136, %v2392
        %v2459 = vadd.f32 %v2137, %v2395
        %v2460 = vadd.f32 %v2138, %v2400
        %v2461 = vadd.f32 %v2139, %v2403
        %v2462 = vadd.f32 %v2140, %v2408
        %v2463 = vadd.f32 %v2141, %v2411
        %v2464 = vadd.f32 %v2142, %v2416
        %v2465 = vadd.f32 %v2143, %v2419
        %v2466 = vadd.f32 %v2144, %v2424
        %v2467 = vadd.f32 %v2145, %v2427
        %v2468 = vadd.f32 %v2146, %v2432
        %v2469 = vadd.f32 %v2147, %v2435
        %v2470 = vld [vmem:[%s1143 + $0x1] sm:$0xff]
        %v2471 = vld [vmem:[%s1143 + $0x9] sm:$0xff]
        %v2472 = vld [vmem:[%s1143 + $0x19] sm:$0xff]
        %v2473 = vld [vmem:[%s1143 + $0x21] sm:$0xff]
        %v2474 = vld [vmem:[%s1143 + $0x31] sm:$0xff]
        %v2475 = vld [vmem:[%s1143 + $0x39] sm:$0xff]
        %v2476 = vld [vmem:[%s1143 + $0x49] sm:$0xff]
        %v2477 = vld [vmem:[%s1143 + $0x51] sm:$0xff]
        %v2478 = vld [vmem:[%s1143 + $0x61] sm:$0xff]
        %v2479 = vld [vmem:[%s1143 + $0x69] sm:$0xff]
        %v2480 = vld [vmem:[%s1143 + $0x79] sm:$0xff]
        %v2481 = vld [vmem:[%s1143 + $0x81] sm:$0xff]
        %v2482 = vld [vmem:[%s1143 + $0x91] sm:$0xff]
        %v2483 = vld [vmem:[%s1143 + $0x99] sm:$0xff]
        %v2484 = vld [vmem:[%s1143 + $0xa9] sm:$0xff]
        %v2485 = vld [vmem:[%s1143 + $0xb1] sm:$0xff]
        %v2486 = vld [vmem:[%s1143 + $0xc1] sm:$0xff]
        %v2487 = vld [vmem:[%s1143 + $0xc9] sm:$0xff]
        %v2488 = vld [vmem:[%s1143 + $0xd9] sm:$0xff]
        %v2489 = vld [vmem:[%s1143 + $0xe1] sm:$0xff]
        %v2490 = vld [vmem:[%s1143 + $0xf1] sm:$0xff]
        %v2491 = vld [vmem:[%s1143 + $0xf9] sm:$0xff]
        %v2492 = vld [vmem:[%s1143 + $0x109] sm:$0xff]
        %v2493 = vld [vmem:[%s1143 + $0x111] sm:$0xff]
        %v2494 = vld [vmem:[%s1143 + $0x121] sm:$0xff]
        %v2495 = vld [vmem:[%s1143 + $0x129] sm:$0xff]
        %v2496 = vld [vmem:[%s1143 + $0x139] sm:$0xff]
        %v2497 = vld [vmem:[%s1143 + $0x141] sm:$0xff]
        %v2498 = vld [vmem:[%s1143 + $0x151] sm:$0xff]
        %v2499 = vld [vmem:[%s1143 + $0x159] sm:$0xff]
        %v2500 = vld [vmem:[%s1143 + $0x169] sm:$0xff]
        %v2501 = vld [vmem:[%s1143 + $0x171] sm:$0xff]
        %v2502 = vpack.c.bf16 %v2471, %v2470
        %v2503 = vpack.c.bf16 %v2473, %v2472
        %v2504 = vpack.c.bf16 %v2475, %v2474
        %v2505 = vpack.c.bf16 %v2477, %v2476
        %v2506 = vpack.c.bf16 %v2479, %v2478
        %v2507 = vpack.c.bf16 %v2481, %v2480
        %v2508 = vpack.c.bf16 %v2483, %v2482
        %v2509 = vpack.c.bf16 %v2485, %v2484
        %v2510 = vpack.c.bf16 %v2487, %v2486
        %v2511 = vpack.c.bf16 %v2489, %v2488
        %v2512 = vpack.c.bf16 %v2491, %v2490
        %v2513 = vpack.c.bf16 %v2493, %v2492
        %v2514 = vpack.c.bf16 %v2495, %v2494
        %v2515 = vpack.c.bf16 %v2497, %v2496
        %v2516 = vpack.c.bf16 %v2499, %v2498
        %v2517 = vpack.c.bf16 %v2501, %v2500
        %s2518 = scalar_lea.vmem [#allocation8], 128
        %v2519 = vld [vmem:[%s2518] sm:$0xf]
        %v2520 = vld [vmem:[%s2518 + $0x4] sm:$0xf]
        %v2521 = vld [vmem:[%s2518 + $0x8] sm:$0xf]
        %v2522 = vld [vmem:[%s2518 + $0xc] sm:$0xf]
        %v2523 = vld [vmem:[%s2518 + $0x10] sm:$0xf]
        %v2524 = vld [vmem:[%s2518 + $0x14] sm:$0xf]
        %v2525 = vld [vmem:[%s2518 + $0x18] sm:$0xf]
        %v2526 = vld [vmem:[%s2518 + $0x1c] sm:$0xf]
        %v2535 = vunpack.c.l.b16 %v2519
        %v2536 = vunpack.c.l.b16 %v2520
        %v2537 = vunpack.c.l.b16 %v2521
        %v2538 = vunpack.c.l.b16 %v2522
        %v2539 = vunpack.c.l.b16 %v2523
        %v2540 = vunpack.c.l.b16 %v2524
        %v2541 = vunpack.c.l.b16 %v2525
        %v2542 = vunpack.c.l.b16 %v2526
        %v2543 = vpack.c.b16 %v2536, %v2535
        %v2544 = vpack.c.b16 %v2538, %v2537
        %v2545 = vpack.c.b16 %v2540, %v2539
        %v2546 = vpack.c.b16 %v2542, %v2541
        %v2552 = vsel %vm766, %v2502, 0
        %v2555 = vsel %vm766, %v2503, 0
        %v2558 = vsel %vm766, %v2504, 0
        %v2561 = vsel %vm766, %v2505, 0
        %v2564 = vsel %vm766, %v2506, 0
        %v2567 = vsel %vm766, %v2507, 0
        %v2570 = vsel %vm766, %v2508, 0
        %v2573 = vsel %vm766, %v2509, 0
        %v2576 = vsel %vm766, %v2510, 0
        %v2579 = vsel %vm766, %v2511, 0
        %v2582 = vsel %vm766, %v2512, 0
        %v2585 = vsel %vm766, %v2513, 0
        %v2588 = vsel %vm766, %v2514, 0
        %v2591 = vsel %vm766, %v2515, 0
        %v2594 = vsel %vm766, %v2516, 0
        %v2597 = vsel %vm766, %v2517, 0
        %2599 = vmatprep.subr.bf16.mxu0 0
        %2600 = vmatpush1.bf16.msra.mxu0 %v2543
        %2601 = vmatprep.subr.bf16.mxu0 0
        %2602 = vmatpush1.bf16.msra.mxu0 %v2544
        %2603 = vmatprep.subr.bf16.mxu0 0
        %2604 = vmatpush1.bf16.msra.mxu0 %v2545
        %2605 = vmatprep.subr.bf16.mxu0 0
        %2606 = vmatpush1.bf16.msra.mxu0 %v2546
        %2607 = vmatprep.subr.bf16.mxu0 0
        %2608 = vmatpush1.bf16.msra.mxu0 0
        %2609 = vmatprep.subr.bf16.mxu0 0
        %2610 = vmatpush1.bf16.msra.mxu0 0
        %2611 = vmatprep.subr.bf16.mxu0 0
        %2612 = vmatpush1.bf16.msra.mxu0 0
        %2613 = vmatprep.subr.bf16.mxu0 0
        %2614 = vmatpush1.bf16.msra.mxu0 0
        %2615 = vmatprep.subr.bf16.mxu0 0
        %2616 = vmatpush1.bf16.msra.mxu0 0
        %2617 = vmatprep.subr.bf16.mxu0 0
        %2618 = vmatpush1.bf16.msra.mxu0 0
        %2619 = vmatprep.subr.bf16.mxu0 0
        %2620 = vmatpush1.bf16.msra.mxu0 0
        %2621 = vmatprep.subr.bf16.mxu0 0
        %2622 = vmatpush1.bf16.msra.mxu0 0
        %2623 = vmatprep.subr.bf16.mxu0 0
        %2624 = vmatpush1.bf16.msra.mxu0 0
        %2625 = vmatprep.subr.bf16.mxu0 0
        %2626 = vmatpush1.bf16.msra.mxu0 0
        %2627 = vmatprep.subr.bf16.mxu0 0
        %2628 = vmatpush1.bf16.msra.mxu0 0
        %2629 = vmatprep.subr.bf16.mxu0 0
        %2630 = vmatpush1.bf16.msra.mxu0 0
        %2631 = vmatprep.mubr.bf16.mxu0 0
        %2632 = vmatmul.mubr.bf16.gmra.mrb[0].mxu0 %v2552
        %v2633 = vpop.f32.mrb[0].mxu0
        %v2634 = vadd.f32 0.0, %v2633
        %v2635 = vpop.f32.mrb[0].mxu0
        %v2636 = vpop.f32.mrb[0].mxu0
        %v2637 = vadd.f32 0.0, %v2636
        %v2638 = vpop.f32.mrb[0].mxu0
        %2639 = vmatprep.mubr.bf16.mxu0 0
        %2640 = vmatmul.mubr.bf16.gmra.mrb[0].mxu0 %v2555
        %v2641 = vpop.f32.mrb[0].mxu0
        %v2642 = vadd.f32 0.0, %v2641
        %v2643 = vpop.f32.mrb[0].mxu0
        %v2644 = vpop.f32.mrb[0].mxu0
        %v2645 = vadd.f32 0.0, %v2644
        %v2646 = vpop.f32.mrb[0].mxu0
        %2647 = vmatprep.mubr.bf16.mxu0 0
        %2648 = vmatmul.mubr.bf16.gmra.mrb[0].mxu0 %v2558
        %v2649 = vpop.f32.mrb[0].mxu0
        %v2650 = vadd.f32 0.0, %v2649
        %v2651 = vpop.f32.mrb[0].mxu0
        %v2652 = vpop.f32.mrb[0].mxu0
        %v2653 = vadd.f32 0.0, %v2652
        %v2654 = vpop.f32.mrb[0].mxu0
        %2655 = vmatprep.mubr.bf16.mxu0 0
        %2656 = vmatmul.mubr.bf16.gmra.mrb[0].mxu0 %v2561
        %v2657 = vpop.f32.mrb[0].mxu0
        %v2658 = vadd.f32 0.0, %v2657
        %v2659 = vpop.f32.mrb[0].mxu0
        %v2660 = vpop.f32.mrb[0].mxu0
        %v2661 = vadd.f32 0.0, %v2660
        %v2662 = vpop.f32.mrb[0].mxu0
        %2663 = vmatprep.mubr.bf16.mxu0 0
        %2664 = vmatmul.mubr.bf16.gmra.mrb[0].mxu0 %v2564
        %v2665 = vpop.f32.mrb[0].mxu0
        %v2666 = vadd.f32 0.0, %v2665
        %v2667 = vpop.f32.mrb[0].mxu0
        %v2668 = vpop.f32.mrb[0].mxu0
        %v2669 = vadd.f32 0.0, %v2668
        %v2670 = vpop.f32.mrb[0].mxu0
        %2671 = vmatprep.mubr.bf16.mxu0 0
        %2672 = vmatmul.mubr.bf16.gmra.mrb[0].mxu0 %v2567
        %v2673 = vpop.f32.mrb[0].mxu0
        %v2674 = vadd.f32 0.0, %v2673
        %v2675 = vpop.f32.mrb[0].mxu0
        %v2676 = vpop.f32.mrb[0].mxu0
        %v2677 = vadd.f32 0.0, %v2676
        %v2678 = vpop.f32.mrb[0].mxu0
        %2679 = vmatprep.mubr.bf16.mxu0 0
        %2680 = vmatmul.mubr.bf16.gmra.mrb[0].mxu0 %v2570
        %v2681 = vpop.f32.mrb[0].mxu0
        %v2682 = vadd.f32 0.0, %v2681
        %v2683 = vpop.f32.mrb[0].mxu0
        %v2684 = vpop.f32.mrb[0].mxu0
        %v2685 = vadd.f32 0.0, %v2684
        %v2686 = vpop.f32.mrb[0].mxu0
        %2687 = vmatprep.mubr.bf16.mxu0 0
        %2688 = vmatmul.mubr.bf16.gmra.mrb[0].mxu0 %v2573
        %v2689 = vpop.f32.mrb[0].mxu0
        %v2690 = vadd.f32 0.0, %v2689
        %v2691 = vpop.f32.mrb[0].mxu0
        %v2692 = vpop.f32.mrb[0].mxu0
        %v2693 = vadd.f32 0.0, %v2692
        %v2694 = vpop.f32.mrb[0].mxu0
        %2695 = vmatprep.mubr.bf16.mxu0 0
        %2696 = vmatmul.mubr.bf16.gmra.mrb[0].mxu0 %v2576
        %v2697 = vpop.f32.mrb[0].mxu0
        %v2698 = vadd.f32 0.0, %v2697
        %v2699 = vpop.f32.mrb[0].mxu0
        %v2700 = vpop.f32.mrb[0].mxu0
        %v2701 = vadd.f32 0.0, %v2700
        %v2702 = vpop.f32.mrb[0].mxu0
        %2703 = vmatprep.mubr.bf16.mxu0 0
        %2704 = vmatmul.mubr.bf16.gmra.mrb[0].mxu0 %v2579
        %v2705 = vpop.f32.mrb[0].mxu0
        %v2706 = vadd.f32 0.0, %v2705
        %v2707 = vpop.f32.mrb[0].mxu0
        %v2708 = vpop.f32.mrb[0].mxu0
        %v2709 = vadd.f32 0.0, %v2708
        %v2710 = vpop.f32.mrb[0].mxu0
        %2711 = vmatprep.mubr.bf16.mxu0 0
        %2712 = vmatmul.mubr.bf16.gmra.mrb[0].mxu0 %v2582
        %v2713 = vpop.f32.mrb[0].mxu0
        %v2714 = vadd.f32 0.0, %v2713
        %v2715 = vpop.f32.mrb[0].mxu0
        %v2716 = vpop.f32.mrb[0].mxu0
        %v2717 = vadd.f32 0.0, %v2716
        %v2718 = vpop.f32.mrb[0].mxu0
        %2719 = vmatprep.mubr.bf16.mxu0 0
        %2720 = vmatmul.mubr.bf16.gmra.mrb[0].mxu0 %v2585
        %v2721 = vpop.f32.mrb[0].mxu0
        %v2722 = vadd.f32 0.0, %v2721
        %v2723 = vpop.f32.mrb[0].mxu0
        %v2724 = vpop.f32.mrb[0].mxu0
        %v2725 = vadd.f32 0.0, %v2724
        %v2726 = vpop.f32.mrb[0].mxu0
        %2727 = vmatprep.mubr.bf16.mxu0 0
        %2728 = vmatmul.mubr.bf16.gmra.mrb[0].mxu0 %v2588
        %v2729 = vpop.f32.mrb[0].mxu0
        %v2730 = vadd.f32 0.0, %v2729
        %v2731 = vpop.f32.mrb[0].mxu0
        %v2732 = vpop.f32.mrb[0].mxu0
        %v2733 = vadd.f32 0.0, %v2732
        %v2734 = vpop.f32.mrb[0].mxu0
        %2735 = vmatprep.mubr.bf16.mxu0 0
        %2736 = vmatmul.mubr.bf16.gmra.mrb[0].mxu0 %v2591
        %v2737 = vpop.f32.mrb[0].mxu0
        %v2738 = vadd.f32 0.0, %v2737
        %v2739 = vpop.f32.mrb[0].mxu0
        %v2740 = vpop.f32.mrb[0].mxu0
        %v2741 = vadd.f32 0.0, %v2740
        %v2742 = vpop.f32.mrb[0].mxu0
        %2743 = vmatprep.mubr.bf16.mxu0 0
        %2744 = vmatmul.mubr.bf16.gmra.mrb[0].mxu0 %v2594
        %v2745 = vpop.f32.mrb[0].mxu0
        %v2746 = vadd.f32 0.0, %v2745
        %v2747 = vpop.f32.mrb[0].mxu0
        %v2748 = vpop.f32.mrb[0].mxu0
        %v2749 = vadd.f32 0.0, %v2748
        %v2750 = vpop.f32.mrb[0].mxu0
        %2751 = vmatprep.mubr.bf16.mxu0 0
        %2752 = vmatmul.mubr.bf16.gmra.mrb[0].mxu0 %v2597
        %v2753 = vpop.f32.mrb[0].mxu0
        %v2754 = vadd.f32 0.0, %v2753
        %v2755 = vpop.f32.mrb[0].mxu0
        %v2756 = vpop.f32.mrb[0].mxu0
        %v2757 = vadd.f32 0.0, %v2756
        %v2758 = vpop.f32.mrb[0].mxu0
        %2759 = vdwg.mxu0
        %v2760 = vadd.f32 %v2438, %v2634
        %v2761 = vadd.f32 %v2439, %v2637
        %v2762 = vadd.f32 %v2440, %v2642
        %v2763 = vadd.f32 %v2441, %v2645
        %v2764 = vadd.f32 %v2442, %v2650
        %v2765 = vadd.f32 %v2443, %v2653
        %v2766 = vadd.f32 %v2444, %v2658
        %v2767 = vadd.f32 %v2445, %v2661
        %v2768 = vadd.f32 %v2446, %v2666
        %v2769 = vadd.f32 %v2447, %v2669
        %v2770 = vadd.f32 %v2448, %v2674
        %v2771 = vadd.f32 %v2449, %v2677
        %v2772 = vadd.f32 %v2450, %v2682
        %v2773 = vadd.f32 %v2451, %v2685
        %v2774 = vadd.f32 %v2452, %v2690
        %v2775 = vadd.f32 %v2453, %v2693
        %v2776 = vadd.f32 %v2454, %v2698
        %v2777 = vadd.f32 %v2455, %v2701
        %v2778 = vadd.f32 %v2456, %v2706
        %v2779 = vadd.f32 %v2457, %v2709
        %v2780 = vadd.f32 %v2458, %v2714
        %v2781 = vadd.f32 %v2459, %v2717
        %v2782 = vadd.f32 %v2460, %v2722
        %v2783 = vadd.f32 %v2461, %v2725
        %v2784 = vadd.f32 %v2462, %v2730
        %v2785 = vadd.f32 %v2463, %v2733
        %v2786 = vadd.f32 %v2464, %v2738
        %v2787 = vadd.f32 %v2465, %v2741
        %v2788 = vadd.f32 %v2466, %v2746
        %v2789 = vadd.f32 %v2467, %v2749
        %v2790 = vadd.f32 %v2468, %v2754
        %v2791 = vadd.f32 %v2469, %v2757
        %v2792 = vld [vmem:[%s1143 + $0x2] sm:$0xff]
        %v2793 = vld [vmem:[%s1143 + $0xa] sm:$0xff]
        %v2794 = vld [vmem:[%s1143 + $0x1a] sm:$0xff]
        %v2795 = vld [vmem:[%s1143 + $0x22] sm:$0xff]
        %v2796 = vld [vmem:[%s1143 + $0x32] sm:$0xff]
        %v2797 = vld [vmem:[%s1143 + $0x3a] sm:$0xff]
        %v2798 = vld [vmem:[%s1143 + $0x4a] sm:$0xff]
        %v2799 = vld [vmem:[%s1143 + $0x52] sm:$0xff]
        %v2800 = vld [vmem:[%s1143 + $0x62] sm:$0xff]
        %v2801 = vld [vmem:[%s1143 + $0x6a] sm:$0xff]
        %v2802 = vld [vmem:[%s1143 + $0x7a] sm:$0xff]
        %v2803 = vld [vmem:[%s1143 + $0x82] sm:$0xff]
        %v2804 = vld [vmem:[%s1143 + $0x92] sm:$0xff]
        %v2805 = vld [vmem:[%s1143 + $0x9a] sm:$0xff]
        %v2806 = vld [vmem:[%s1143 + $0xaa] sm:$0xff]
        %v2807 = vld [vmem:[%s1143 + $0xb2] sm:$0xff]
        %v2808 = vld [vmem:[%s1143 + $0xc2] sm:$0xff]
        %v2809 = vld [vmem:[%s1143 + $0xca] sm:$0xff]
        %v2810 = vld [vmem:[%s1143 + $0xda] sm:$0xff]
        %v2811 = vld [vmem:[%s1143 + $0xe2] sm:$0xff]
        %v2812 = vld [vmem:[%s1143 + $0xf2] sm:$0xff]
        %v2813 = vld [vmem:[%s1143 + $0xfa] sm:$0xff]
        %v2814 = vld [vmem:[%s1143 + $0x10a] sm:$0xff]
        %v2815 = vld [vmem:[%s1143 + $0x112] sm:$0xff]
        %v2816 = vld [vmem:[%s1143 + $0x122] sm:$0xff]
        %v2817 = vld [vmem:[%s1143 + $0x12a] sm:$0xff]
        %v2818 = vld [vmem:[%s1143 + $0x13a] sm:$0xff]
        %v2819 = vld [vmem:[%s1143 + $0x142] sm:$0xff]
        %v2820 = vld [vmem:[%s1143 + $0x152] sm:$0xff]
        %v2821 = vld [vmem:[%s1143 + $0x15a] sm:$0xff]
        %v2822 = vld [vmem:[%s1143 + $0x16a] sm:$0xff]
        %v2823 = vld [vmem:[%s1143 + $0x172] sm:$0xff]
        %v2824 = vpack.c.bf16 %v2793, %v2792
        %v2825 = vpack.c.bf16 %v2795, %v2794
        %v2826 = vpack.c.bf16 %v2797, %v2796
        %v2827 = vpack.c.bf16 %v2799, %v2798
        %v2828 = vpack.c.bf16 %v2801, %v2800
        %v2829 = vpack.c.bf16 %v2803, %v2802
        %v2830 = vpack.c.bf16 %v2805, %v2804
        %v2831 = vpack.c.bf16 %v2807, %v2806
        %v2832 = vpack.c.bf16 %v2809, %v2808
        %v2833 = vpack.c.bf16 %v2811, %v2810
        %v2834 = vpack.c.bf16 %v2813, %v2812
        %v2835 = vpack.c.bf16 %v2815, %v2814
        %v2836 = vpack.c.bf16 %v2817, %v2816
        %v2837 = vpack.c.bf16 %v2819, %v2818
        %v2838 = vpack.c.bf16 %v2821, %v2820
        %v2839 = vpack.c.bf16 %v2823, %v2822
        %s2840 = scalar_lea.vmem [#allocation8], 160
        %v2841 = vld [vmem:[%s2840] sm:$0xf]
        %v2842 = vld [vmem:[%s2840 + $0x4] sm:$0xf]
        %v2843 = vld [vmem:[%s2840 + $0x8] sm:$0xf]
        %v2844 = vld [vmem:[%s2840 + $0xc] sm:$0xf]
        %v2845 = vld [vmem:[%s2840 + $0x10] sm:$0xf]
        %v2846 = vld [vmem:[%s2840 + $0x14] sm:$0xf]
        %v2847 = vld [vmem:[%s2840 + $0x18] sm:$0xf]
        %v2848 = vld [vmem:[%s2840 + $0x1c] sm:$0xf]
        %v2857 = vunpack.c.l.b16 %v2841
        %v2858 = vunpack.c.l.b16 %v2842
        %v2859 = vunpack.c.l.b16 %v2843
        %v2860 = vunpack.c.l.b16 %v2844
        %v2861 = vunpack.c.l.b16 %v2845
        %v2862 = vunpack.c.l.b16 %v2846
        %v2863 = vunpack.c.l.b16 %v2847
        %v2864 = vunpack.c.l.b16 %v2848
        %v2865 = vpack.c.b16 %v2858, %v2857
        %v2866 = vpack.c.b16 %v2860, %v2859
        %v2867 = vpack.c.b16 %v2862, %v2861
        %v2868 = vpack.c.b16 %v2864, %v2863
        %v2874 = vsel %vm766, %v2824, 0
        %v2877 = vsel %vm766, %v2825, 0
        %v2880 = vsel %vm766, %v2826, 0
        %v2883 = vsel %vm766, %v2827, 0
        %v2886 = vsel %vm766, %v2828, 0
        %v2889 = vsel %vm766, %v2829, 0
        %v2892 = vsel %vm766, %v2830, 0
        %v2895 = vsel %vm766, %v2831, 0
        %v2898 = vsel %vm766, %v2832, 0
        %v2901 = vsel %vm766, %v2833, 0
        %v2904 = vsel %vm766, %v2834, 0
        %v2907 = vsel %vm766, %v2835, 0
        %v2910 = vsel %vm766, %v2836, 0
        %v2913 = vsel %vm766, %v2837, 0
        %v2916 = vsel %vm766, %v2838, 0
        %v2919 = vsel %vm766, %v2839, 0
        %2921 = vmatprep.subr.bf16.mxu0 0
        %2922 = vmatpush1.bf16.msra.mxu0 %v2865
        %2923 = vmatprep.subr.bf16.mxu0 0
        %2924 = vmatpush1.bf16.msra.mxu0 %v2866
        %2925 = vmatprep.subr.bf16.mxu0 0
        %2926 = vmatpush1.bf16.msra.mxu0 %v2867
        %2927 = vmatprep.subr.bf16.mxu0 0
        %2928 = vmatpush1.bf16.msra.mxu0 %v2868
        %2929 = vmatprep.subr.bf16.mxu0 0
        %2930 = vmatpush1.bf16.msra.mxu0 0
        %2931 = vmatprep.subr.bf16.mxu0 0
        %2932 = vmatpush1.bf16.msra.mxu0 0
        %2933 = vmatprep.subr.bf16.mxu0 0
        %2934 = vmatpush1.bf16.msra.mxu0 0
        %2935 = vmatprep.subr.bf16.mxu0 0
        %2936 = vmatpush1.bf16.msra.mxu0 0
        %2937 = vmatprep.subr.bf16.mxu0 0
        %2938 = vmatpush1.bf16.msra.mxu0 0
        %2939 = vmatprep.subr.bf16.mxu0 0
        %2940 = vmatpush1.bf16.msra.mxu0 0
        %2941 = vmatprep.subr.bf16.mxu0 0
        %2942 = vmatpush1.bf16.msra.mxu0 0
        %2943 = vmatprep.subr.bf16.mxu0 0
        %2944 = vmatpush1.bf16.msra.mxu0 0
        %2945 = vmatprep.subr.bf16.mxu0 0
        %2946 = vmatpush1.bf16.msra.mxu0 0
        %2947 = vmatprep.subr.bf16.mxu0 0
        %2948 = vmatpush1.bf16.msra.mxu0 0
        %2949 = vmatprep.subr.bf16.mxu0 0
        %2950 = vmatpush1.bf16.msra.mxu0 0
        %2951 = vmatprep.subr.bf16.mxu0 0
        %2952 = vmatpush1.bf16.msra.mxu0 0
        %2953 = vmatprep.mubr.bf16.mxu0 0
        %2954 = vmatmul.mubr.bf16.gmra.mrb[0].mxu0 %v2874
        %v2955 = vpop.f32.mrb[0].mxu0
        %v2956 = vadd.f32 0.0, %v2955
        %v2957 = vpop.f32.mrb[0].mxu0
        %v2958 = vpop.f32.mrb[0].mxu0
        %v2959 = vadd.f32 0.0, %v2958
        %v2960 = vpop.f32.mrb[0].mxu0
        %2961 = vmatprep.mubr.bf16.mxu0 0
        %2962 = vmatmul.mubr.bf16.gmra.mrb[0].mxu0 %v2877
        %v2963 = vpop.f32.mrb[0].mxu0
        %v2964 = vadd.f32 0.0, %v2963
        %v2965 = vpop.f32.mrb[0].mxu0
        %v2966 = vpop.f32.mrb[0].mxu0
        %v2967 = vadd.f32 0.0, %v2966
        %v2968 = vpop.f32.mrb[0].mxu0
        %2969 = vmatprep.mubr.bf16.mxu0 0
        %2970 = vmatmul.mubr.bf16.gmra.mrb[0].mxu0 %v2880
        %v2971 = vpop.f32.mrb[0].mxu0
        %v2972 = vadd.f32 0.0, %v2971
        %v2973 = vpop.f32.mrb[0].mxu0
        %v2974 = vpop.f32.mrb[0].mxu0
        %v2975 = vadd.f32 0.0, %v2974
        %v2976 = vpop.f32.mrb[0].mxu0
        %2977 = vmatprep.mubr.bf16.mxu0 0
        %2978 = vmatmul.mubr.bf16.gmra.mrb[0].mxu0 %v2883
        %v2979 = vpop.f32.mrb[0].mxu0
        %v2980 = vadd.f32 0.0, %v2979
        %v2981 = vpop.f32.mrb[0].mxu0
        %v2982 = vpop.f32.mrb[0].mxu0
        %v2983 = vadd.f32 0.0, %v2982
        %v2984 = vpop.f32.mrb[0].mxu0
        %2985 = vmatprep.mubr.bf16.mxu0 0
        %2986 = vmatmul.mubr.bf16.gmra.mrb[0].mxu0 %v2886
        %v2987 = vpop.f32.mrb[0].mxu0
        %v2988 = vadd.f32 0.0, %v2987
        %v2989 = vpop.f32.mrb[0].mxu0
        %v2990 = vpop.f32.mrb[0].mxu0
        %v2991 = vadd.f32 0.0, %v2990
        %v2992 = vpop.f32.mrb[0].mxu0
        %2993 = vmatprep.mubr.bf16.mxu0 0
        %2994 = vmatmul.mubr.bf16.gmra.mrb[0].mxu0 %v2889
        %v2995 = vpop.f32.mrb[0].mxu0
        %v2996 = vadd.f32 0.0, %v2995
        %v2997 = vpop.f32.mrb[0].mxu0
        %v2998 = vpop.f32.mrb[0].mxu0
        %v2999 = vadd.f32 0.0, %v2998
        %v3000 = vpop.f32.mrb[0].mxu0
        %3001 = vmatprep.mubr.bf16.mxu0 0
        %3002 = vmatmul.mubr.bf16.gmra.mrb[0].mxu0 %v2892
        %v3003 = vpop.f32.mrb[0].mxu0
        %v3004 = vadd.f32 0.0, %v3003
        %v3005 = vpop.f32.mrb[0].mxu0
        %v3006 = vpop.f32.mrb[0].mxu0
        %v3007 = vadd.f32 0.0, %v3006
        %v3008 = vpop.f32.mrb[0].mxu0
        %3009 = vmatprep.mubr.bf16.mxu0 0
        %3010 = vmatmul.mubr.bf16.gmra.mrb[0].mxu0 %v2895
        %v3011 = vpop.f32.mrb[0].mxu0
        %v3012 = vadd.f32 0.0, %v3011
        %v3013 = vpop.f32.mrb[0].mxu0
        %v3014 = vpop.f32.mrb[0].mxu0
        %v3015 = vadd.f32 0.0, %v3014
        %v3016 = vpop.f32.mrb[0].mxu0
        %3017 = vmatprep.mubr.bf16.mxu0 0
        %3018 = vmatmul.mubr.bf16.gmra.mrb[0].mxu0 %v2898
        %v3019 = vpop.f32.mrb[0].mxu0
        %v3020 = vadd.f32 0.0, %v3019
        %v3021 = vpop.f32.mrb[0].mxu0
        %v3022 = vpop.f32.mrb[0].mxu0
        %v3023 = vadd.f32 0.0, %v3022
        %v3024 = vpop.f32.mrb[0].mxu0
        %3025 = vmatprep.mubr.bf16.mxu0 0
        %3026 = vmatmul.mubr.bf16.gmra.mrb[0].mxu0 %v2901
        %v3027 = vpop.f32.mrb[0].mxu0
        %v3028 = vadd.f32 0.0, %v3027
        %v3029 = vpop.f32.mrb[0].mxu0
        %v3030 = vpop.f32.mrb[0].mxu0
        %v3031 = vadd.f32 0.0, %v3030
        %v3032 = vpop.f32.mrb[0].mxu0
        %3033 = vmatprep.mubr.bf16.mxu0 0
        %3034 = vmatmul.mubr.bf16.gmra.mrb[0].mxu0 %v2904
        %v3035 = vpop.f32.mrb[0].mxu0
        %v3036 = vadd.f32 0.0, %v3035
        %v3037 = vpop.f32.mrb[0].mxu0
        %v3038 = vpop.f32.mrb[0].mxu0
        %v3039 = vadd.f32 0.0, %v3038
        %v3040 = vpop.f32.mrb[0].mxu0
        %3041 = vmatprep.mubr.bf16.mxu0 0
        %3042 = vmatmul.mubr.bf16.gmra.mrb[0].mxu0 %v2907
        %v3043 = vpop.f32.mrb[0].mxu0
        %v3044 = vadd.f32 0.0, %v3043
        %v3045 = vpop.f32.mrb[0].mxu0
        %v3046 = vpop.f32.mrb[0].mxu0
        %v3047 = vadd.f32 0.0, %v3046
        %v3048 = vpop.f32.mrb[0].mxu0
        %3049 = vmatprep.mubr.bf16.mxu0 0
        %3050 = vmatmul.mubr.bf16.gmra.mrb[0].mxu0 %v2910
        %v3051 = vpop.f32.mrb[0].mxu0
        %v3052 = vadd.f32 0.0, %v3051
        %v3053 = vpop.f32.mrb[0].mxu0
        %v3054 = vpop.f32.mrb[0].mxu0
        %v3055 = vadd.f32 0.0, %v3054
        %v3056 = vpop.f32.mrb[0].mxu0
        %3057 = vmatprep.mubr.bf16.mxu0 0
        %3058 = vmatmul.mubr.bf16.gmra.mrb[0].mxu0 %v2913
        %v3059 = vpop.f32.mrb[0].mxu0
        %v3060 = vadd.f32 0.0, %v3059
        %v3061 = vpop.f32.mrb[0].mxu0
        %v3062 = vpop.f32.mrb[0].mxu0
        %v3063 = vadd.f32 0.0, %v3062
        %v3064 = vpop.f32.mrb[0].mxu0
        %3065 = vmatprep.mubr.bf16.mxu0 0
        %3066 = vmatmul.mubr.bf16.gmra.mrb[0].mxu0 %v2916
        %v3067 = vpop.f32.mrb[0].mxu0
        %v3068 = vadd.f32 0.0, %v3067
        %v3069 = vpop.f32.mrb[0].mxu0
        %v3070 = vpop.f32.mrb[0].mxu0
        %v3071 = vadd.f32 0.0, %v3070
        %v3072 = vpop.f32.mrb[0].mxu0
        %3073 = vmatprep.mubr.bf16.mxu0 0
        %3074 = vmatmul.mubr.bf16.gmra.mrb[0].mxu0 %v2919
        %v3075 = vpop.f32.mrb[0].mxu0
        %v3076 = vadd.f32 0.0, %v3075
        %v3077 = vpop.f32.mrb[0].mxu0
        %v3078 = vpop.f32.mrb[0].mxu0
        %v3079 = vadd.f32 0.0, %v3078
        %v3080 = vpop.f32.mrb[0].mxu0
        %3081 = vdwg.mxu0
        %v3082 = vadd.f32 %v2760, %v2956
        %v3083 = vadd.f32 %v2761, %v2959
        %v3084 = vadd.f32 %v2762, %v2964
        %v3085 = vadd.f32 %v2763, %v2967
        %v3086 = vadd.f32 %v2764, %v2972
        %v3087 = vadd.f32 %v2765, %v2975
        %v3088 = vadd.f32 %v2766, %v2980
        %v3089 = vadd.f32 %v2767, %v2983
        %v3090 = vadd.f32 %v2768, %v2988
        %v3091 = vadd.f32 %v2769, %v2991
        %v3092 = vadd.f32 %v2770, %v2996
        %v3093 = vadd.f32 %v2771, %v2999
        %v3094 = vadd.f32 %v2772, %v3004
        %v3095 = vadd.f32 %v2773, %v3007
        %v3096 = vadd.f32 %v2774, %v3012
        %v3097 = vadd.f32 %v2775, %v3015
        %v3098 = vadd.f32 %v2776, %v3020
        %v3099 = vadd.f32 %v2777, %v3023
        %v3100 = vadd.f32 %v2778, %v3028
        %v3101 = vadd.f32 %v2779, %v3031
        %v3102 = vadd.f32 %v2780, %v3036
        %v3103 = vadd.f32 %v2781, %v3039
        %v3104 = vadd.f32 %v2782, %v3044
        %v3105 = vadd.f32 %v2783, %v3047
        %v3106 = vadd.f32 %v2784, %v3052
        %v3107 = vadd.f32 %v2785, %v3055
        %v3108 = vadd.f32 %v2786, %v3060
        %v3109 = vadd.f32 %v2787, %v3063
        %v3110 = vadd.f32 %v2788, %v3068
        %v3111 = vadd.f32 %v2789, %v3071
        %v3112 = vadd.f32 %v2790, %v3076
        %v3113 = vadd.f32 %v2791, %v3079
        %s3114 = scalar_lea.vmem [#allocation2], 48
        %v3115 = vld [vmem:[%s3114] sm:$0xff]
        %v3116 = vld [vmem:[%s3114 + $0x8] sm:$0xff]
        %v3117 = vld [vmem:[%s3114 + $0x18] sm:$0xff]
        %v3118 = vld [vmem:[%s3114 + $0x20] sm:$0xff]
        %v3119 = vld [vmem:[%s3114 + $0x30] sm:$0xff]
        %v3120 = vld [vmem:[%s3114 + $0x38] sm:$0xff]
        %v3121 = vld [vmem:[%s3114 + $0x48] sm:$0xff]
        %v3122 = vld [vmem:[%s3114 + $0x50] sm:$0xff]
        %v3123 = vld [vmem:[%s3114 + $0x60] sm:$0xff]
        %v3124 = vld [vmem:[%s3114 + $0x68] sm:$0xff]
        %v3125 = vld [vmem:[%s3114 + $0x78] sm:$0xff]
        %v3126 = vld [vmem:[%s3114 + $0x80] sm:$0xff]
        %v3127 = vld [vmem:[%s3114 + $0x90] sm:$0xff]
        %v3128 = vld [vmem:[%s3114 + $0x98] sm:$0xff]
        %v3129 = vld [vmem:[%s3114 + $0xa8] sm:$0xff]
        %v3130 = vld [vmem:[%s3114 + $0xb0] sm:$0xff]
        %v3131 = vld [vmem:[%s3114 + $0xc0] sm:$0xff]
        %v3132 = vld [vmem:[%s3114 + $0xc8] sm:$0xff]
        %v3133 = vld [vmem:[%s3114 + $0xd8] sm:$0xff]
        %v3134 = vld [vmem:[%s3114 + $0xe0] sm:$0xff]
        %v3135 = vld [vmem:[%s3114 + $0xf0] sm:$0xff]
        %v3136 = vld [vmem:[%s3114 + $0xf8] sm:$0xff]
        %v3137 = vld [vmem:[%s3114 + $0x108] sm:$0xff]
        %v3138 = vld [vmem:[%s3114 + $0x110] sm:$0xff]
        %v3139 = vld [vmem:[%s3114 + $0x120] sm:$0xff]
        %v3140 = vld [vmem:[%s3114 + $0x128] sm:$0xff]
        %v3141 = vld [vmem:[%s3114 + $0x138] sm:$0xff]
        %v3142 = vld [vmem:[%s3114 + $0x140] sm:$0xff]
        %v3143 = vld [vmem:[%s3114 + $0x150] sm:$0xff]
        %v3144 = vld [vmem:[%s3114 + $0x158] sm:$0xff]
        %v3145 = vld [vmem:[%s3114 + $0x168] sm:$0xff]
        %v3146 = vld [vmem:[%s3114 + $0x170] sm:$0xff]
        %v3147 = vpack.c.bf16 %v3116, %v3115
        %v3148 = vpack.c.bf16 %v3118, %v3117
        %v3149 = vpack.c.bf16 %v3120, %v3119
        %v3150 = vpack.c.bf16 %v3122, %v3121
        %v3151 = vpack.c.bf16 %v3124, %v3123
        %v3152 = vpack.c.bf16 %v3126, %v3125
        %v3153 = vpack.c.bf16 %v3128, %v3127
        %v3154 = vpack.c.bf16 %v3130, %v3129
        %v3155 = vpack.c.bf16 %v3132, %v3131
        %v3156 = vpack.c.bf16 %v3134, %v3133
        %v3157 = vpack.c.bf16 %v3136, %v3135
        %v3158 = vpack.c.bf16 %v3138, %v3137
        %v3159 = vpack.c.bf16 %v3140, %v3139
        %v3160 = vpack.c.bf16 %v3142, %v3141
        %v3161 = vpack.c.bf16 %v3144, %v3143
        %v3162 = vpack.c.bf16 %v3146, %v3145
        %s3163 = scalar_lea.vmem [#allocation8], 192
        %v3164 = vld [vmem:[%s3163] sm:$0xf]
        %v3165 = vld [vmem:[%s3163 + $0x4] sm:$0xf]
        %v3166 = vld [vmem:[%s3163 + $0x8] sm:$0xf]
        %v3167 = vld [vmem:[%s3163 + $0xc] sm:$0xf]
        %v3168 = vld [vmem:[%s3163 + $0x10] sm:$0xf]
        %v3169 = vld [vmem:[%s3163 + $0x14] sm:$0xf]
        %v3170 = vld [vmem:[%s3163 + $0x18] sm:$0xf]
        %v3171 = vld [vmem:[%s3163 + $0x1c] sm:$0xf]
        %v3180 = vunpack.c.l.b16 %v3164
        %v3181 = vunpack.c.l.b16 %v3165
        %v3182 = vunpack.c.l.b16 %v3166
        %v3183 = vunpack.c.l.b16 %v3167
        %v3184 = vunpack.c.l.b16 %v3168
        %v3185 = vunpack.c.l.b16 %v3169
        %v3186 = vunpack.c.l.b16 %v3170
        %v3187 = vunpack.c.l.b16 %v3171
        %v3188 = vpack.c.b16 %v3181, %v3180
        %v3189 = vpack.c.b16 %v3183, %v3182
        %v3190 = vpack.c.b16 %v3185, %v3184
        %v3191 = vpack.c.b16 %v3187, %v3186
        %v3197 = vsel %vm766, %v3147, 0
        %v3200 = vsel %vm766, %v3148, 0
        %v3203 = vsel %vm766, %v3149, 0
        %v3206 = vsel %vm766, %v3150, 0
        %v3209 = vsel %vm766, %v3151, 0
        %v3212 = vsel %vm766, %v3152, 0
        %v3215 = vsel %vm766, %v3153, 0
        %v3218 = vsel %vm766, %v3154, 0
        %v3221 = vsel %vm766, %v3155, 0
        %v3224 = vsel %vm766, %v3156, 0
        %v3227 = vsel %vm766, %v3157, 0
        %v3230 = vsel %vm766, %v3158, 0
        %v3233 = vsel %vm766, %v3159, 0
        %v3236 = vsel %vm766, %v3160, 0
        %v3239 = vsel %vm766, %v3161, 0
        %v3242 = vsel %vm766, %v3162, 0
        %3244 = vmatprep.subr.bf16.mxu0 0
        %3245 = vmatpush1.bf16.msra.mxu0 %v3188
        %3246 = vmatprep.subr.bf16.mxu0 0
        %3247 = vmatpush1.bf16.msra.mxu0 %v3189
        %3248 = vmatprep.subr.bf16.mxu0 0
        %3249 = vmatpush1.bf16.msra.mxu0 %v3190
        %3250 = vmatprep.subr.bf16.mxu0 0
        %3251 = vmatpush1.bf16.msra.mxu0 %v3191
        %3252 = vmatprep.subr.bf16.mxu0 0
        %3253 = vmatpush1.bf16.msra.mxu0 0
        %3254 = vmatprep.subr.bf16.mxu0 0
        %3255 = vmatpush1.bf16.msra.mxu0 0
        %3256 = vmatprep.subr.bf16.mxu0 0
        %3257 = vmatpush1.bf16.msra.mxu0 0
        %3258 = vmatprep.subr.bf16.mxu0 0
        %3259 = vmatpush1.bf16.msra.mxu0 0
        %3260 = vmatprep.subr.bf16.mxu0 0
        %3261 = vmatpush1.bf16.msra.mxu0 0
        %3262 = vmatprep.subr.bf16.mxu0 0
        %3263 = vmatpush1.bf16.msra.mxu0 0
        %3264 = vmatprep.subr.bf16.mxu0 0
        %3265 = vmatpush1.bf16.msra.mxu0 0
        %3266 = vmatprep.subr.bf16.mxu0 0
        %3267 = vmatpush1.bf16.msra.mxu0 0
        %3268 = vmatprep.subr.bf16.mxu0 0
        %3269 = vmatpush1.bf16.msra.mxu0 0
        %3270 = vmatprep.subr.bf16.mxu0 0
        %3271 = vmatpush1.bf16.msra.mxu0 0
        %3272 = vmatprep.subr.bf16.mxu0 0
        %3273 = vmatpush1.bf16.msra.mxu0 0
        %3274 = vmatprep.subr.bf16.mxu0 0
        %3275 = vmatpush1.bf16.msra.mxu0 0
        %3276 = vmatprep.mubr.bf16.mxu0 0
        %3277 = vmatmul.mubr.bf16.gmra.mrb[0].mxu0 %v3197
        %v3278 = vpop.f32.mrb[0].mxu0
        %v3279 = vadd.f32 0.0, %v3278
        %v3280 = vpop.f32.mrb[0].mxu0
        %v3281 = vpop.f32.mrb[0].mxu0
        %v3282 = vadd.f32 0.0, %v3281
        %v3283 = vpop.f32.mrb[0].mxu0
        %3284 = vmatprep.mubr.bf16.mxu0 0
        %3285 = vmatmul.mubr.bf16.gmra.mrb[0].mxu0 %v3200
        %v3286 = vpop.f32.mrb[0].mxu0
        %v3287 = vadd.f32 0.0, %v3286
        %v3288 = vpop.f32.mrb[0].mxu0
        %v3289 = vpop.f32.mrb[0].mxu0
        %v3290 = vadd.f32 0.0, %v3289
        %v3291 = vpop.f32.mrb[0].mxu0
        %3292 = vmatprep.mubr.bf16.mxu0 0
        %3293 = vmatmul.mubr.bf16.gmra.mrb[0].mxu0 %v3203
        %v3294 = vpop.f32.mrb[0].mxu0
        %v3295 = vadd.f32 0.0, %v3294
        %v3296 = vpop.f32.mrb[0].mxu0
        %v3297 = vpop.f32.mrb[0].mxu0
        %v3298 = vadd.f32 0.0, %v3297
        %v3299 = vpop.f32.mrb[0].mxu0
        %3300 = vmatprep.mubr.bf16.mxu0 0
        %3301 = vmatmul.mubr.bf16.gmra.mrb[0].mxu0 %v3206
        %v3302 = vpop.f32.mrb[0].mxu0
        %v3303 = vadd.f32 0.0, %v3302
        %v3304 = vpop.f32.mrb[0].mxu0
        %v3305 = vpop.f32.mrb[0].mxu0
        %v3306 = vadd.f32 0.0, %v3305
        %v3307 = vpop.f32.mrb[0].mxu0
        %3308 = vmatprep.mubr.bf16.mxu0 0
        %3309 = vmatmul.mubr.bf16.gmra.mrb[0].mxu0 %v3209
        %v3310 = vpop.f32.mrb[0].mxu0
        %v3311 = vadd.f32 0.0, %v3310
        %v3312 = vpop.f32.mrb[0].mxu0
        %v3313 = vpop.f32.mrb[0].mxu0
        %v3314 = vadd.f32 0.0, %v3313
        %v3315 = vpop.f32.mrb[0].mxu0
        %3316 = vmatprep.mubr.bf16.mxu0 0
        %3317 = vmatmul.mubr.bf16.gmra.mrb[0].mxu0 %v3212
        %v3318 = vpop.f32.mrb[0].mxu0
        %v3319 = vadd.f32 0.0, %v3318
        %v3320 = vpop.f32.mrb[0].mxu0
        %v3321 = vpop.f32.mrb[0].mxu0
        %v3322 = vadd.f32 0.0, %v3321
        %v3323 = vpop.f32.mrb[0].mxu0
        %3324 = vmatprep.mubr.bf16.mxu0 0
        %3325 = vmatmul.mubr.bf16.gmra.mrb[0].mxu0 %v3215
        %v3326 = vpop.f32.mrb[0].mxu0
        %v3327 = vadd.f32 0.0, %v3326
        %v3328 = vpop.f32.mrb[0].mxu0
        %v3329 = vpop.f32.mrb[0].mxu0
        %v3330 = vadd.f32 0.0, %v3329
        %v3331 = vpop.f32.mrb[0].mxu0
        %3332 = vmatprep.mubr.bf16.mxu0 0
        %3333 = vmatmul.mubr.bf16.gmra.mrb[0].mxu0 %v3218
        %v3334 = vpop.f32.mrb[0].mxu0
        %v3335 = vadd.f32 0.0, %v3334
        %v3336 = vpop.f32.mrb[0].mxu0
        %v3337 = vpop.f32.mrb[0].mxu0
        %v3338 = vadd.f32 0.0, %v3337
        %v3339 = vpop.f32.mrb[0].mxu0
        %3340 = vmatprep.mubr.bf16.mxu0 0
        %3341 = vmatmul.mubr.bf16.gmra.mrb[0].mxu0 %v3221
        %v3342 = vpop.f32.mrb[0].mxu0
        %v3343 = vadd.f32 0.0, %v3342
        %v3344 = vpop.f32.mrb[0].mxu0
        %v3345 = vpop.f32.mrb[0].mxu0
        %v3346 = vadd.f32 0.0, %v3345
        %v3347 = vpop.f32.mrb[0].mxu0
        %3348 = vmatprep.mubr.bf16.mxu0 0
        %3349 = vmatmul.mubr.bf16.gmra.mrb[0].mxu0 %v3224
        %v3350 = vpop.f32.mrb[0].mxu0
        %v3351 = vadd.f32 0.0, %v3350
        %v3352 = vpop.f32.mrb[0].mxu0
        %v3353 = vpop.f32.mrb[0].mxu0
        %v3354 = vadd.f32 0.0, %v3353
        %v3355 = vpop.f32.mrb[0].mxu0
        %3356 = vmatprep.mubr.bf16.mxu0 0
        %3357 = vmatmul.mubr.bf16.gmra.mrb[0].mxu0 %v3227
        %v3358 = vpop.f32.mrb[0].mxu0
        %v3359 = vadd.f32 0.0, %v3358
        %v3360 = vpop.f32.mrb[0].mxu0
        %v3361 = vpop.f32.mrb[0].mxu0
        %v3362 = vadd.f32 0.0, %v3361
        %v3363 = vpop.f32.mrb[0].mxu0
        %3364 = vmatprep.mubr.bf16.mxu0 0
        %3365 = vmatmul.mubr.bf16.gmra.mrb[0].mxu0 %v3230
        %v3366 = vpop.f32.mrb[0].mxu0
        %v3367 = vadd.f32 0.0, %v3366
        %v3368 = vpop.f32.mrb[0].mxu0
        %v3369 = vpop.f32.mrb[0].mxu0
        %v3370 = vadd.f32 0.0, %v3369
        %v3371 = vpop.f32.mrb[0].mxu0
        %3372 = vmatprep.mubr.bf16.mxu0 0
        %3373 = vmatmul.mubr.bf16.gmra.mrb[0].mxu0 %v3233
        %v3374 = vpop.f32.mrb[0].mxu0
        %v3375 = vadd.f32 0.0, %v3374
        %v3376 = vpop.f32.mrb[0].mxu0
        %v3377 = vpop.f32.mrb[0].mxu0
        %v3378 = vadd.f32 0.0, %v3377
        %v3379 = vpop.f32.mrb[0].mxu0
        %3380 = vmatprep.mubr.bf16.mxu0 0
        %3381 = vmatmul.mubr.bf16.gmra.mrb[0].mxu0 %v3236
        %v3382 = vpop.f32.mrb[0].mxu0
        %v3383 = vadd.f32 0.0, %v3382
        %v3384 = vpop.f32.mrb[0].mxu0
        %v3385 = vpop.f32.mrb[0].mxu0
        %v3386 = vadd.f32 0.0, %v3385
        %v3387 = vpop.f32.mrb[0].mxu0
        %3388 = vmatprep.mubr.bf16.mxu0 0
        %3389 = vmatmul.mubr.bf16.gmra.mrb[0].mxu0 %v3239
        %v3390 = vpop.f32.mrb[0].mxu0
        %v3391 = vadd.f32 0.0, %v3390
        %v3392 = vpop.f32.mrb[0].mxu0
        %v3393 = vpop.f32.mrb[0].mxu0
        %v3394 = vadd.f32 0.0, %v3393
        %v3395 = vpop.f32.mrb[0].mxu0
        %3396 = vmatprep.mubr.bf16.mxu0 0
        %3397 = vmatmul.mubr.bf16.gmra.mrb[0].mxu0 %v3242
        %v3398 = vpop.f32.mrb[0].mxu0
        %v3399 = vadd.f32 0.0, %v3398
        %v3400 = vpop.f32.mrb[0].mxu0
        %v3401 = vpop.f32.mrb[0].mxu0
        %v3402 = vadd.f32 0.0, %v3401
        %v3403 = vpop.f32.mrb[0].mxu0
        %3404 = vdwg.mxu0
        %v3405 = vadd.f32 %v3082, %v3279
        %v3406 = vadd.f32 %v3083, %v3282
        %v3407 = vadd.f32 %v3084, %v3287
        %v3408 = vadd.f32 %v3085, %v3290
        %v3409 = vadd.f32 %v3086, %v3295
        %v3410 = vadd.f32 %v3087, %v3298
        %v3411 = vadd.f32 %v3088, %v3303
        %v3412 = vadd.f32 %v3089, %v3306
        %v3413 = vadd.f32 %v3090, %v3311
        %v3414 = vadd.f32 %v3091, %v3314
        %v3415 = vadd.f32 %v3092, %v3319
        %v3416 = vadd.f32 %v3093, %v3322
        %v3417 = vadd.f32 %v3094, %v3327
        %v3418 = vadd.f32 %v3095, %v3330
        %v3419 = vadd.f32 %v3096, %v3335
        %v3420 = vadd.f32 %v3097, %v3338
        %v3421 = vadd.f32 %v3098, %v3343
        %v3422 = vadd.f32 %v3099, %v3346
        %v3423 = vadd.f32 %v3100, %v3351
        %v3424 = vadd.f32 %v3101, %v3354
        %v3425 = vadd.f32 %v3102, %v3359
        %v3426 = vadd.f32 %v3103, %v3362
        %v3427 = vadd.f32 %v3104, %v3367
        %v3428 = vadd.f32 %v3105, %v3370
        %v3429 = vadd.f32 %v3106, %v3375
        %v3430 = vadd.f32 %v3107, %v3378
        %v3431 = vadd.f32 %v3108, %v3383
        %v3432 = vadd.f32 %v3109, %v3386
        %v3433 = vadd.f32 %v3110, %v3391
        %v3434 = vadd.f32 %v3111, %v3394
        %v3435 = vadd.f32 %v3112, %v3399
        %v3436 = vadd.f32 %v3113, %v3402
        %v3437 = vld [vmem:[%s3114 + $0x1] sm:$0xff]
        %v3438 = vld [vmem:[%s3114 + $0x9] sm:$0xff]
        %v3439 = vld [vmem:[%s3114 + $0x19] sm:$0xff]
        %v3440 = vld [vmem:[%s3114 + $0x21] sm:$0xff]
        %v3441 = vld [vmem:[%s3114 + $0x31] sm:$0xff]
        %v3442 = vld [vmem:[%s3114 + $0x39] sm:$0xff]
        %v3443 = vld [vmem:[%s3114 + $0x49] sm:$0xff]
        %v3444 = vld [vmem:[%s3114 + $0x51] sm:$0xff]
        %v3445 = vld [vmem:[%s3114 + $0x61] sm:$0xff]
        %v3446 = vld [vmem:[%s3114 + $0x69] sm:$0xff]
        %v3447 = vld [vmem:[%s3114 + $0x79] sm:$0xff]
        %v3448 = vld [vmem:[%s3114 + $0x81] sm:$0xff]
        %v3449 = vld [vmem:[%s3114 + $0x91] sm:$0xff]
        %v3450 = vld [vmem:[%s3114 + $0x99] sm:$0xff]
        %v3451 = vld [vmem:[%s3114 + $0xa9] sm:$0xff]
        %v3452 = vld [vmem:[%s3114 + $0xb1] sm:$0xff]
        %v3453 = vld [vmem:[%s3114 + $0xc1] sm:$0xff]
        %v3454 = vld [vmem:[%s3114 + $0xc9] sm:$0xff]
        %v3455 = vld [vmem:[%s3114 + $0xd9] sm:$0xff]
        %v3456 = vld [vmem:[%s3114 + $0xe1] sm:$0xff]
        %v3457 = vld [vmem:[%s3114 + $0xf1] sm:$0xff]
        %v3458 = vld [vmem:[%s3114 + $0xf9] sm:$0xff]
        %v3459 = vld [vmem:[%s3114 + $0x109] sm:$0xff]
        %v3460 = vld [vmem:[%s3114 + $0x111] sm:$0xff]
        %v3461 = vld [vmem:[%s3114 + $0x121] sm:$0xff]
        %v3462 = vld [vmem:[%s3114 + $0x129] sm:$0xff]
        %v3463 = vld [vmem:[%s3114 + $0x139] sm:$0xff]
        %v3464 = vld [vmem:[%s3114 + $0x141] sm:$0xff]
        %v3465 = vld [vmem:[%s3114 + $0x151] sm:$0xff]
        %v3466 = vld [vmem:[%s3114 + $0x159] sm:$0xff]
        %v3467 = vld [vmem:[%s3114 + $0x169] sm:$0xff]
        %v3468 = vld [vmem:[%s3114 + $0x171] sm:$0xff]
        %v3469 = vpack.c.bf16 %v3438, %v3437
        %v3470 = vpack.c.bf16 %v3440, %v3439
        %v3471 = vpack.c.bf16 %v3442, %v3441
        %v3472 = vpack.c.bf16 %v3444, %v3443
        %v3473 = vpack.c.bf16 %v3446, %v3445
        %v3474 = vpack.c.bf16 %v3448, %v3447
        %v3475 = vpack.c.bf16 %v3450, %v3449
        %v3476 = vpack.c.bf16 %v3452, %v3451
        %v3477 = vpack.c.bf16 %v3454, %v3453
        %v3478 = vpack.c.bf16 %v3456, %v3455
        %v3479 = vpack.c.bf16 %v3458, %v3457
        %v3480 = vpack.c.bf16 %v3460, %v3459
        %v3481 = vpack.c.bf16 %v3462, %v3461
        %v3482 = vpack.c.bf16 %v3464, %v3463
        %v3483 = vpack.c.bf16 %v3466, %v3465
        %v3484 = vpack.c.bf16 %v3468, %v3467
        %s3485 = scalar_lea.vmem [#allocation8], 224
        %v3486 = vld [vmem:[%s3485] sm:$0xf]
        %v3487 = vld [vmem:[%s3485 + $0x4] sm:$0xf]
        %v3488 = vld [vmem:[%s3485 + $0x8] sm:$0xf]
        %v3489 = vld [vmem:[%s3485 + $0xc] sm:$0xf]
        %v3490 = vld [vmem:[%s3485 + $0x10] sm:$0xf]
        %v3491 = vld [vmem:[%s3485 + $0x14] sm:$0xf]
        %v3492 = vld [vmem:[%s3485 + $0x18] sm:$0xf]
        %v3493 = vld [vmem:[%s3485 + $0x1c] sm:$0xf]
        %v3502 = vunpack.c.l.b16 %v3486
        %v3503 = vunpack.c.l.b16 %v3487
        %v3504 = vunpack.c.l.b16 %v3488
        %v3505 = vunpack.c.l.b16 %v3489
        %v3506 = vunpack.c.l.b16 %v3490
        %v3507 = vunpack.c.l.b16 %v3491
        %v3508 = vunpack.c.l.b16 %v3492
        %v3509 = vunpack.c.l.b16 %v3493
        %v3510 = vpack.c.b16 %v3503, %v3502
        %v3511 = vpack.c.b16 %v3505, %v3504
        %v3512 = vpack.c.b16 %v3507, %v3506
        %v3513 = vpack.c.b16 %v3509, %v3508
        %v3519 = vsel %vm766, %v3469, 0
        %v3522 = vsel %vm766, %v3470, 0
        %v3525 = vsel %vm766, %v3471, 0
        %v3528 = vsel %vm766, %v3472, 0
        %v3531 = vsel %vm766, %v3473, 0
        %v3534 = vsel %vm766, %v3474, 0
        %v3537 = vsel %vm766, %v3475, 0
        %v3540 = vsel %vm766, %v3476, 0
        %v3543 = vsel %vm766, %v3477, 0
        %v3546 = vsel %vm766, %v3478, 0
        %v3549 = vsel %vm766, %v3479, 0
        %v3552 = vsel %vm766, %v3480, 0
        %v3555 = vsel %vm766, %v3481, 0
        %v3558 = vsel %vm766, %v3482, 0
        %v3561 = vsel %vm766, %v3483, 0
        %v3564 = vsel %vm766, %v3484, 0
        %3566 = vmatprep.subr.bf16.mxu0 0
        %3567 = vmatpush1.bf16.msra.mxu0 %v3510
        %3568 = vmatprep.subr.bf16.mxu0 0
        %3569 = vmatpush1.bf16.msra.mxu0 %v3511
        %3570 = vmatprep.subr.bf16.mxu0 0
        %3571 = vmatpush1.bf16.msra.mxu0 %v3512
        %3572 = vmatprep.subr.bf16.mxu0 0
        %3573 = vmatpush1.bf16.msra.mxu0 %v3513
        %3574 = vmatprep.subr.bf16.mxu0 0
        %3575 = vmatpush1.bf16.msra.mxu0 0
        %3576 = vmatprep.subr.bf16.mxu0 0
        %3577 = vmatpush1.bf16.msra.mxu0 0
        %3578 = vmatprep.subr.bf16.mxu0 0
        %3579 = vmatpush1.bf16.msra.mxu0 0
        %3580 = vmatprep.subr.bf16.mxu0 0
        %3581 = vmatpush1.bf16.msra.mxu0 0
        %3582 = vmatprep.subr.bf16.mxu0 0
        %3583 = vmatpush1.bf16.msra.mxu0 0
        %3584 = vmatprep.subr.bf16.mxu0 0
        %3585 = vmatpush1.bf16.msra.mxu0 0
        %3586 = vmatprep.subr.bf16.mxu0 0
        %3587 = vmatpush1.bf16.msra.mxu0 0
        %3588 = vmatprep.subr.bf16.mxu0 0
        %3589 = vmatpush1.bf16.msra.mxu0 0
        %3590 = vmatprep.subr.bf16.mxu0 0
        %3591 = vmatpush1.bf16.msra.mxu0 0
        %3592 = vmatprep.subr.bf16.mxu0 0
        %3593 = vmatpush1.bf16.msra.mxu0 0
        %3594 = vmatprep.subr.bf16.mxu0 0
        %3595 = vmatpush1.bf16.msra.mxu0 0
        %3596 = vmatprep.subr.bf16.mxu0 0
        %3597 = vmatpush1.bf16.msra.mxu0 0
        %3598 = vmatprep.mubr.bf16.mxu0 0
        %3599 = vmatmul.mubr.bf16.gmra.mrb[0].mxu0 %v3519
        %v3600 = vpop.f32.mrb[0].mxu0
        %v3601 = vadd.f32 0.0, %v3600
        %v3602 = vpop.f32.mrb[0].mxu0
        %v3603 = vpop.f32.mrb[0].mxu0
        %v3604 = vadd.f32 0.0, %v3603
        %v3605 = vpop.f32.mrb[0].mxu0
        %3606 = vmatprep.mubr.bf16.mxu0 0
        %3607 = vmatmul.mubr.bf16.gmra.mrb[0].mxu0 %v3522
        %v3608 = vpop.f32.mrb[0].mxu0
        %v3609 = vadd.f32 0.0, %v3608
        %v3610 = vpop.f32.mrb[0].mxu0
        %v3611 = vpop.f32.mrb[0].mxu0
        %v3612 = vadd.f32 0.0, %v3611
        %v3613 = vpop.f32.mrb[0].mxu0
        %3614 = vmatprep.mubr.bf16.mxu0 0
        %3615 = vmatmul.mubr.bf16.gmra.mrb[0].mxu0 %v3525
        %v3616 = vpop.f32.mrb[0].mxu0
        %v3617 = vadd.f32 0.0, %v3616
        %v3618 = vpop.f32.mrb[0].mxu0
        %v3619 = vpop.f32.mrb[0].mxu0
        %v3620 = vadd.f32 0.0, %v3619
        %v3621 = vpop.f32.mrb[0].mxu0
        %3622 = vmatprep.mubr.bf16.mxu0 0
        %3623 = vmatmul.mubr.bf16.gmra.mrb[0].mxu0 %v3528
        %v3624 = vpop.f32.mrb[0].mxu0
        %v3625 = vadd.f32 0.0, %v3624
        %v3626 = vpop.f32.mrb[0].mxu0
        %v3627 = vpop.f32.mrb[0].mxu0
        %v3628 = vadd.f32 0.0, %v3627
        %v3629 = vpop.f32.mrb[0].mxu0
        %3630 = vmatprep.mubr.bf16.mxu0 0
        %3631 = vmatmul.mubr.bf16.gmra.mrb[0].mxu0 %v3531
        %v3632 = vpop.f32.mrb[0].mxu0
        %v3633 = vadd.f32 0.0, %v3632
        %v3634 = vpop.f32.mrb[0].mxu0
        %v3635 = vpop.f32.mrb[0].mxu0
        %v3636 = vadd.f32 0.0, %v3635
        %v3637 = vpop.f32.mrb[0].mxu0
        %3638 = vmatprep.mubr.bf16.mxu0 0
        %3639 = vmatmul.mubr.bf16.gmra.mrb[0].mxu0 %v3534
        %v3640 = vpop.f32.mrb[0].mxu0
        %v3641 = vadd.f32 0.0, %v3640
        %v3642 = vpop.f32.mrb[0].mxu0
        %v3643 = vpop.f32.mrb[0].mxu0
        %v3644 = vadd.f32 0.0, %v3643
        %v3645 = vpop.f32.mrb[0].mxu0
        %3646 = vmatprep.mubr.bf16.mxu0 0
        %3647 = vmatmul.mubr.bf16.gmra.mrb[0].mxu0 %v3537
        %v3648 = vpop.f32.mrb[0].mxu0
        %v3649 = vadd.f32 0.0, %v3648
        %v3650 = vpop.f32.mrb[0].mxu0
        %v3651 = vpop.f32.mrb[0].mxu0
        %v3652 = vadd.f32 0.0, %v3651
        %v3653 = vpop.f32.mrb[0].mxu0
        %3654 = vmatprep.mubr.bf16.mxu0 0
        %3655 = vmatmul.mubr.bf16.gmra.mrb[0].mxu0 %v3540
        %v3656 = vpop.f32.mrb[0].mxu0
        %v3657 = vadd.f32 0.0, %v3656
        %v3658 = vpop.f32.mrb[0].mxu0
        %v3659 = vpop.f32.mrb[0].mxu0
        %v3660 = vadd.f32 0.0, %v3659
        %v3661 = vpop.f32.mrb[0].mxu0
        %3662 = vmatprep.mubr.bf16.mxu0 0
        %3663 = vmatmul.mubr.bf16.gmra.mrb[0].mxu0 %v3543
        %v3664 = vpop.f32.mrb[0].mxu0
        %v3665 = vadd.f32 0.0, %v3664
        %v3666 = vpop.f32.mrb[0].mxu0
        %v3667 = vpop.f32.mrb[0].mxu0
        %v3668 = vadd.f32 0.0, %v3667
        %v3669 = vpop.f32.mrb[0].mxu0
        %3670 = vmatprep.mubr.bf16.mxu0 0
        %3671 = vmatmul.mubr.bf16.gmra.mrb[0].mxu0 %v3546
        %v3672 = vpop.f32.mrb[0].mxu0
        %v3673 = vadd.f32 0.0, %v3672
        %v3674 = vpop.f32.mrb[0].mxu0
        %v3675 = vpop.f32.mrb[0].mxu0
        %v3676 = vadd.f32 0.0, %v3675
        %v3677 = vpop.f32.mrb[0].mxu0
        %3678 = vmatprep.mubr.bf16.mxu0 0
        %3679 = vmatmul.mubr.bf16.gmra.mrb[0].mxu0 %v3549
        %v3680 = vpop.f32.mrb[0].mxu0
        %v3681 = vadd.f32 0.0, %v3680
        %v3682 = vpop.f32.mrb[0].mxu0
        %v3683 = vpop.f32.mrb[0].mxu0
        %v3684 = vadd.f32 0.0, %v3683
        %v3685 = vpop.f32.mrb[0].mxu0
        %3686 = vmatprep.mubr.bf16.mxu0 0
        %3687 = vmatmul.mubr.bf16.gmra.mrb[0].mxu0 %v3552
        %v3688 = vpop.f32.mrb[0].mxu0
        %v3689 = vadd.f32 0.0, %v3688
        %v3690 = vpop.f32.mrb[0].mxu0
        %v3691 = vpop.f32.mrb[0].mxu0
        %v3692 = vadd.f32 0.0, %v3691
        %v3693 = vpop.f32.mrb[0].mxu0
        %3694 = vmatprep.mubr.bf16.mxu0 0
        %3695 = vmatmul.mubr.bf16.gmra.mrb[0].mxu0 %v3555
        %v3696 = vpop.f32.mrb[0].mxu0
        %v3697 = vadd.f32 0.0, %v3696
        %v3698 = vpop.f32.mrb[0].mxu0
        %v3699 = vpop.f32.mrb[0].mxu0
        %v3700 = vadd.f32 0.0, %v3699
        %v3701 = vpop.f32.mrb[0].mxu0
        %3702 = vmatprep.mubr.bf16.mxu0 0
        %3703 = vmatmul.mubr.bf16.gmra.mrb[0].mxu0 %v3558
        %v3704 = vpop.f32.mrb[0].mxu0
        %v3705 = vadd.f32 0.0, %v3704
        %v3706 = vpop.f32.mrb[0].mxu0
        %v3707 = vpop.f32.mrb[0].mxu0
        %v3708 = vadd.f32 0.0, %v3707
        %v3709 = vpop.f32.mrb[0].mxu0
        %3710 = vmatprep.mubr.bf16.mxu0 0
        %3711 = vmatmul.mubr.bf16.gmra.mrb[0].mxu0 %v3561
        %v3712 = vpop.f32.mrb[0].mxu0
        %v3713 = vadd.f32 0.0, %v3712
        %v3714 = vpop.f32.mrb[0].mxu0
        %v3715 = vpop.f32.mrb[0].mxu0
        %v3716 = vadd.f32 0.0, %v3715
        %v3717 = vpop.f32.mrb[0].mxu0
        %3718 = vmatprep.mubr.bf16.mxu0 0
        %3719 = vmatmul.mubr.bf16.gmra.mrb[0].mxu0 %v3564
        %v3720 = vpop.f32.mrb[0].mxu0
        %v3721 = vadd.f32 0.0, %v3720
        %v3722 = vpop.f32.mrb[0].mxu0
        %v3723 = vpop.f32.mrb[0].mxu0
        %v3724 = vadd.f32 0.0, %v3723
        %v3725 = vpop.f32.mrb[0].mxu0
        %3726 = vdwg.mxu0
        %v3727 = vadd.f32 %v3405, %v3601
        %v3728 = vadd.f32 %v3406, %v3604
        %v3729 = vadd.f32 %v3407, %v3609
        %v3730 = vadd.f32 %v3408, %v3612
        %v3731 = vadd.f32 %v3409, %v3617
        %v3732 = vadd.f32 %v3410, %v3620
        %v3733 = vadd.f32 %v3411, %v3625
        %v3734 = vadd.f32 %v3412, %v3628
        %v3735 = vadd.f32 %v3413, %v3633
        %v3736 = vadd.f32 %v3414, %v3636
        %v3737 = vadd.f32 %v3415, %v3641
        %v3738 = vadd.f32 %v3416, %v3644
        %v3739 = vadd.f32 %v3417, %v3649
        %v3740 = vadd.f32 %v3418, %v3652
        %v3741 = vadd.f32 %v3419, %v3657
        %v3742 = vadd.f32 %v3420, %v3660
        %v3743 = vadd.f32 %v3421, %v3665
        %v3744 = vadd.f32 %v3422, %v3668
        %v3745 = vadd.f32 %v3423, %v3673
        %v3746 = vadd.f32 %v3424, %v3676
        %v3747 = vadd.f32 %v3425, %v3681
        %v3748 = vadd.f32 %v3426, %v3684
        %v3749 = vadd.f32 %v3427, %v3689
        %v3750 = vadd.f32 %v3428, %v3692
        %v3751 = vadd.f32 %v3429, %v3697
        %v3752 = vadd.f32 %v3430, %v3700
        %v3753 = vadd.f32 %v3431, %v3705
        %v3754 = vadd.f32 %v3432, %v3708
        %v3755 = vadd.f32 %v3433, %v3713
        %v3756 = vadd.f32 %v3434, %v3716
        %v3757 = vadd.f32 %v3435, %v3721
        %v3758 = vadd.f32 %v3436, %v3724
        %v3759 = vld [vmem:[%s3114 + $0x2] sm:$0xff]
        %v3760 = vld [vmem:[%s3114 + $0xa] sm:$0xff]
        %v3761 = vld [vmem:[%s3114 + $0x1a] sm:$0xff]
        %v3762 = vld [vmem:[%s3114 + $0x22] sm:$0xff]
        %v3763 = vld [vmem:[%s3114 + $0x32] sm:$0xff]
        %v3764 = vld [vmem:[%s3114 + $0x3a] sm:$0xff]
        %v3765 = vld [vmem:[%s3114 + $0x4a] sm:$0xff]
        %v3766 = vld [vmem:[%s3114 + $0x52] sm:$0xff]
        %v3767 = vld [vmem:[%s3114 + $0x62] sm:$0xff]
        %v3768 = vld [vmem:[%s3114 + $0x6a] sm:$0xff]
        %v3769 = vld [vmem:[%s3114 + $0x7a] sm:$0xff]
        %v3770 = vld [vmem:[%s3114 + $0x82] sm:$0xff]
        %v3771 = vld [vmem:[%s3114 + $0x92] sm:$0xff]
        %v3772 = vld [vmem:[%s3114 + $0x9a] sm:$0xff]
        %v3773 = vld [vmem:[%s3114 + $0xaa] sm:$0xff]
        %v3774 = vld [vmem:[%s3114 + $0xb2] sm:$0xff]
        %v3775 = vld [vmem:[%s3114 + $0xc2] sm:$0xff]
        %v3776 = vld [vmem:[%s3114 + $0xca] sm:$0xff]
        %v3777 = vld [vmem:[%s3114 + $0xda] sm:$0xff]
        %v3778 = vld [vmem:[%s3114 + $0xe2] sm:$0xff]
        %v3779 = vld [vmem:[%s3114 + $0xf2] sm:$0xff]
        %v3780 = vld [vmem:[%s3114 + $0xfa] sm:$0xff]
        %v3781 = vld [vmem:[%s3114 + $0x10a] sm:$0xff]
        %v3782 = vld [vmem:[%s3114 + $0x112] sm:$0xff]
        %v3783 = vld [vmem:[%s3114 + $0x122] sm:$0xff]
        %v3784 = vld [vmem:[%s3114 + $0x12a] sm:$0xff]
        %v3785 = vld [vmem:[%s3114 + $0x13a] sm:$0xff]
        %v3786 = vld [vmem:[%s3114 + $0x142] sm:$0xff]
        %v3787 = vld [vmem:[%s3114 + $0x152] sm:$0xff]
        %v3788 = vld [vmem:[%s3114 + $0x15a] sm:$0xff]
        %v3789 = vld [vmem:[%s3114 + $0x16a] sm:$0xff]
        %v3790 = vld [vmem:[%s3114 + $0x172] sm:$0xff]
        %v3791 = vpack.c.bf16 %v3760, %v3759
        %v3792 = vpack.c.bf16 %v3762, %v3761
        %v3793 = vpack.c.bf16 %v3764, %v3763
        %v3794 = vpack.c.bf16 %v3766, %v3765
        %v3795 = vpack.c.bf16 %v3768, %v3767
        %v3796 = vpack.c.bf16 %v3770, %v3769
        %v3797 = vpack.c.bf16 %v3772, %v3771
        %v3798 = vpack.c.bf16 %v3774, %v3773
        %v3799 = vpack.c.bf16 %v3776, %v3775
        %v3800 = vpack.c.bf16 %v3778, %v3777
        %v3801 = vpack.c.bf16 %v3780, %v3779
        %v3802 = vpack.c.bf16 %v3782, %v3781
        %v3803 = vpack.c.bf16 %v3784, %v3783
        %v3804 = vpack.c.bf16 %v3786, %v3785
        %v3805 = vpack.c.bf16 %v3788, %v3787
        %v3806 = vpack.c.bf16 %v3790, %v3789
        %s3807 = scalar_lea.vmem [#allocation8], 256
        %v3808 = vld [vmem:[%s3807] sm:$0xf]
        %v3809 = vld [vmem:[%s3807 + $0x4] sm:$0xf]
        %v3810 = vld [vmem:[%s3807 + $0x8] sm:$0xf]
        %v3811 = vld [vmem:[%s3807 + $0xc] sm:$0xf]
        %v3812 = vld [vmem:[%s3807 + $0x10] sm:$0xf]
        %v3813 = vld [vmem:[%s3807 + $0x14] sm:$0xf]
        %v3814 = vld [vmem:[%s3807 + $0x18] sm:$0xf]
        %v3815 = vld [vmem:[%s3807 + $0x1c] sm:$0xf]
        %v3824 = vunpack.c.l.b16 %v3808
        %v3825 = vunpack.c.l.b16 %v3809
        %v3826 = vunpack.c.l.b16 %v3810
        %v3827 = vunpack.c.l.b16 %v3811
        %v3828 = vunpack.c.l.b16 %v3812
        %v3829 = vunpack.c.l.b16 %v3813
        %v3830 = vunpack.c.l.b16 %v3814
        %v3831 = vunpack.c.l.b16 %v3815
        %v3832 = vpack.c.b16 %v3825, %v3824
        %v3833 = vpack.c.b16 %v3827, %v3826
        %v3834 = vpack.c.b16 %v3829, %v3828
        %v3835 = vpack.c.b16 %v3831, %v3830
        %v3841 = vsel %vm766, %v3791, 0
        %v3844 = vsel %vm766, %v3792, 0
        %v3847 = vsel %vm766, %v3793, 0
        %v3850 = vsel %vm766, %v3794, 0
        %v3853 = vsel %vm766, %v3795, 0
        %v3856 = vsel %vm766, %v3796, 0
        %v3859 = vsel %vm766, %v3797, 0
        %v3862 = vsel %vm766, %v3798, 0
        %v3865 = vsel %vm766, %v3799, 0
        %v3868 = vsel %vm766, %v3800, 0
        %v3871 = vsel %vm766, %v3801, 0
        %v3874 = vsel %vm766, %v3802, 0
        %v3877 = vsel %vm766, %v3803, 0
        %v3880 = vsel %vm766, %v3804, 0
        %v3883 = vsel %vm766, %v3805, 0
        %v3886 = vsel %vm766, %v3806, 0
        %3888 = vmatprep.subr.bf16.mxu0 0
        %3889 = vmatpush1.bf16.msra.mxu0 %v3832
        %3890 = vmatprep.subr.bf16.mxu0 0
        %3891 = vmatpush1.bf16.msra.mxu0 %v3833
        %3892 = vmatprep.subr.bf16.mxu0 0
        %3893 = vmatpush1.bf16.msra.mxu0 %v3834
        %3894 = vmatprep.subr.bf16.mxu0 0
        %3895 = vmatpush1.bf16.msra.mxu0 %v3835
        %3896 = vmatprep.subr.bf16.mxu0 0
        %3897 = vmatpush1.bf16.msra.mxu0 0
        %3898 = vmatprep.subr.bf16.mxu0 0
        %3899 = vmatpush1.bf16.msra.mxu0 0
        %3900 = vmatprep.subr.bf16.mxu0 0
        %3901 = vmatpush1.bf16.msra.mxu0 0
        %3902 = vmatprep.subr.bf16.mxu0 0
        %3903 = vmatpush1.bf16.msra.mxu0 0
        %3904 = vmatprep.subr.bf16.mxu0 0
        %3905 = vmatpush1.bf16.msra.mxu0 0
        %3906 = vmatprep.subr.bf16.mxu0 0
        %3907 = vmatpush1.bf16.msra.mxu0 0
        %3908 = vmatprep.subr.bf16.mxu0 0
        %3909 = vmatpush1.bf16.msra.mxu0 0
        %3910 = vmatprep.subr.bf16.mxu0 0
        %3911 = vmatpush1.bf16.msra.mxu0 0
        %3912 = vmatprep.subr.bf16.mxu0 0
        %3913 = vmatpush1.bf16.msra.mxu0 0
        %3914 = vmatprep.subr.bf16.mxu0 0
        %3915 = vmatpush1.bf16.msra.mxu0 0
        %3916 = vmatprep.subr.bf16.mxu0 0
        %3917 = vmatpush1.bf16.msra.mxu0 0
        %3918 = vmatprep.subr.bf16.mxu0 0
        %3919 = vmatpush1.bf16.msra.mxu0 0
        %3920 = vmatprep.mubr.bf16.mxu0 0
        %3921 = vmatmul.mubr.bf16.gmra.mrb[0].mxu0 %v3841
        %v3922 = vpop.f32.mrb[0].mxu0
        %v3923 = vadd.f32 0.0, %v3922
        %v3924 = vpop.f32.mrb[0].mxu0
        %v3925 = vpop.f32.mrb[0].mxu0
        %v3926 = vadd.f32 0.0, %v3925
        %v3927 = vpop.f32.mrb[0].mxu0
        %3928 = vmatprep.mubr.bf16.mxu0 0
        %3929 = vmatmul.mubr.bf16.gmra.mrb[0].mxu0 %v3844
        %v3930 = vpop.f32.mrb[0].mxu0
        %v3931 = vadd.f32 0.0, %v3930
        %v3932 = vpop.f32.mrb[0].mxu0
        %v3933 = vpop.f32.mrb[0].mxu0
        %v3934 = vadd.f32 0.0, %v3933
        %v3935 = vpop.f32.mrb[0].mxu0
        %3936 = vmatprep.mubr.bf16.mxu0 0
        %3937 = vmatmul.mubr.bf16.gmra.mrb[0].mxu0 %v3847
        %v3938 = vpop.f32.mrb[0].mxu0
        %v3939 = vadd.f32 0.0, %v3938
        %v3940 = vpop.f32.mrb[0].mxu0
        %v3941 = vpop.f32.mrb[0].mxu0
        %v3942 = vadd.f32 0.0, %v3941
        %v3943 = vpop.f32.mrb[0].mxu0
        %3944 = vmatprep.mubr.bf16.mxu0 0
        %3945 = vmatmul.mubr.bf16.gmra.mrb[0].mxu0 %v3850
        %v3946 = vpop.f32.mrb[0].mxu0
        %v3947 = vadd.f32 0.0, %v3946
        %v3948 = vpop.f32.mrb[0].mxu0
        %v3949 = vpop.f32.mrb[0].mxu0
        %v3950 = vadd.f32 0.0, %v3949
        %v3951 = vpop.f32.mrb[0].mxu0
        %3952 = vmatprep.mubr.bf16.mxu0 0
        %3953 = vmatmul.mubr.bf16.gmra.mrb[0].mxu0 %v3853
        %v3954 = vpop.f32.mrb[0].mxu0
        %v3955 = vadd.f32 0.0, %v3954
        %v3956 = vpop.f32.mrb[0].mxu0
        %v3957 = vpop.f32.mrb[0].mxu0
        %v3958 = vadd.f32 0.0, %v3957
        %v3959 = vpop.f32.mrb[0].mxu0
        %3960 = vmatprep.mubr.bf16.mxu0 0
        %3961 = vmatmul.mubr.bf16.gmra.mrb[0].mxu0 %v3856
        %v3962 = vpop.f32.mrb[0].mxu0
        %v3963 = vadd.f32 0.0, %v3962
        %v3964 = vpop.f32.mrb[0].mxu0
        %v3965 = vpop.f32.mrb[0].mxu0
        %v3966 = vadd.f32 0.0, %v3965
        %v3967 = vpop.f32.mrb[0].mxu0
        %3968 = vmatprep.mubr.bf16.mxu0 0
        %3969 = vmatmul.mubr.bf16.gmra.mrb[0].mxu0 %v3859
        %v3970 = vpop.f32.mrb[0].mxu0
        %v3971 = vadd.f32 0.0, %v3970
        %v3972 = vpop.f32.mrb[0].mxu0
        %v3973 = vpop.f32.mrb[0].mxu0
        %v3974 = vadd.f32 0.0, %v3973
        %v3975 = vpop.f32.mrb[0].mxu0
        %3976 = vmatprep.mubr.bf16.mxu0 0
        %3977 = vmatmul.mubr.bf16.gmra.mrb[0].mxu0 %v3862
        %v3978 = vpop.f32.mrb[0].mxu0
        %v3979 = vadd.f32 0.0, %v3978
        %v3980 = vpop.f32.mrb[0].mxu0
        %v3981 = vpop.f32.mrb[0].mxu0
        %v3982 = vadd.f32 0.0, %v3981
        %v3983 = vpop.f32.mrb[0].mxu0
        %3984 = vmatprep.mubr.bf16.mxu0 0
        %3985 = vmatmul.mubr.bf16.gmra.mrb[0].mxu0 %v3865
        %v3986 = vpop.f32.mrb[0].mxu0
        %v3987 = vadd.f32 0.0, %v3986
        %v3988 = vpop.f32.mrb[0].mxu0
        %v3989 = vpop.f32.mrb[0].mxu0
        %v3990 = vadd.f32 0.0, %v3989
        %v3991 = vpop.f32.mrb[0].mxu0
        %3992 = vmatprep.mubr.bf16.mxu0 0
        %3993 = vmatmul.mubr.bf16.gmra.mrb[0].mxu0 %v3868
        %v3994 = vpop.f32.mrb[0].mxu0
        %v3995 = vadd.f32 0.0, %v3994
        %v3996 = vpop.f32.mrb[0].mxu0
        %v3997 = vpop.f32.mrb[0].mxu0
        %v3998 = vadd.f32 0.0, %v3997
        %v3999 = vpop.f32.mrb[0].mxu0
        %4000 = vmatprep.mubr.bf16.mxu0 0
        %4001 = vmatmul.mubr.bf16.gmra.mrb[0].mxu0 %v3871
        %v4002 = vpop.f32.mrb[0].mxu0
        %v4003 = vadd.f32 0.0, %v4002
        %v4004 = vpop.f32.mrb[0].mxu0
        %v4005 = vpop.f32.mrb[0].mxu0
        %v4006 = vadd.f32 0.0, %v4005
        %v4007 = vpop.f32.mrb[0].mxu0
        %4008 = vmatprep.mubr.bf16.mxu0 0
        %4009 = vmatmul.mubr.bf16.gmra.mrb[0].mxu0 %v3874
        %v4010 = vpop.f32.mrb[0].mxu0
        %v4011 = vadd.f32 0.0, %v4010
        %v4012 = vpop.f32.mrb[0].mxu0
        %v4013 = vpop.f32.mrb[0].mxu0
        %v4014 = vadd.f32 0.0, %v4013
        %v4015 = vpop.f32.mrb[0].mxu0
        %4016 = vmatprep.mubr.bf16.mxu0 0
        %4017 = vmatmul.mubr.bf16.gmra.mrb[0].mxu0 %v3877
        %v4018 = vpop.f32.mrb[0].mxu0
        %v4019 = vadd.f32 0.0, %v4018
        %v4020 = vpop.f32.mrb[0].mxu0
        %v4021 = vpop.f32.mrb[0].mxu0
        %v4022 = vadd.f32 0.0, %v4021
        %v4023 = vpop.f32.mrb[0].mxu0
        %4024 = vmatprep.mubr.bf16.mxu0 0
        %4025 = vmatmul.mubr.bf16.gmra.mrb[0].mxu0 %v3880
        %v4026 = vpop.f32.mrb[0].mxu0
        %v4027 = vadd.f32 0.0, %v4026
        %v4028 = vpop.f32.mrb[0].mxu0
        %v4029 = vpop.f32.mrb[0].mxu0
        %v4030 = vadd.f32 0.0, %v4029
        %v4031 = vpop.f32.mrb[0].mxu0
        %4032 = vmatprep.mubr.bf16.mxu0 0
        %4033 = vmatmul.mubr.bf16.gmra.mrb[0].mxu0 %v3883
        %v4034 = vpop.f32.mrb[0].mxu0
        %v4035 = vadd.f32 0.0, %v4034
        %v4036 = vpop.f32.mrb[0].mxu0
        %v4037 = vpop.f32.mrb[0].mxu0
        %v4038 = vadd.f32 0.0, %v4037
        %v4039 = vpop.f32.mrb[0].mxu0
        %4040 = vmatprep.mubr.bf16.mxu0 0
        %4041 = vmatmul.mubr.bf16.gmra.mrb[0].mxu0 %v3886
        %v4042 = vpop.f32.mrb[0].mxu0
        %v4043 = vadd.f32 0.0, %v4042
        %v4044 = vpop.f32.mrb[0].mxu0
        %v4045 = vpop.f32.mrb[0].mxu0
        %v4046 = vadd.f32 0.0, %v4045
        %v4047 = vpop.f32.mrb[0].mxu0
        %4048 = vdwg.mxu0
        %v4049 = vadd.f32 %v3727, %v3923
        %v4050 = vadd.f32 %v3728, %v3926
        %v4051 = vadd.f32 %v3729, %v3931
        %v4052 = vadd.f32 %v3730, %v3934
        %v4053 = vadd.f32 %v3731, %v3939
        %v4054 = vadd.f32 %v3732, %v3942
        %v4055 = vadd.f32 %v3733, %v3947
        %v4056 = vadd.f32 %v3734, %v3950
        %v4057 = vadd.f32 %v3735, %v3955
        %v4058 = vadd.f32 %v3736, %v3958
        %v4059 = vadd.f32 %v3737, %v3963
        %v4060 = vadd.f32 %v3738, %v3966
        %v4061 = vadd.f32 %v3739, %v3971
        %v4062 = vadd.f32 %v3740, %v3974
        %v4063 = vadd.f32 %v3741, %v3979
        %v4064 = vadd.f32 %v3742, %v3982
        %v4065 = vadd.f32 %v3743, %v3987
        %v4066 = vadd.f32 %v3744, %v3990
        %v4067 = vadd.f32 %v3745, %v3995
        %v4068 = vadd.f32 %v3746, %v3998
        %v4069 = vadd.f32 %v3747, %v4003
        %v4070 = vadd.f32 %v3748, %v4006
        %v4071 = vadd.f32 %v3749, %v4011
        %v4072 = vadd.f32 %v3750, %v4014
        %v4073 = vadd.f32 %v3751, %v4019
        %v4074 = vadd.f32 %v3752, %v4022
        %v4075 = vadd.f32 %v3753, %v4027
        %v4076 = vadd.f32 %v3754, %v4030
        %v4077 = vadd.f32 %v3755, %v4035
        %v4078 = vadd.f32 %v3756, %v4038
        %v4079 = vadd.f32 %v3757, %v4043
        %v4080 = vadd.f32 %v3758, %v4046
        %v4081 = vmul.f32 %v4049, %v4049
        %v4082 = vmul.f32 %v4050, %v4050
        %v4083 = vmul.f32 %v4051, %v4051
        %v4084 = vmul.f32 %v4052, %v4052
        %v4085 = vmul.f32 %v4053, %v4053
        %v4086 = vmul.f32 %v4054, %v4054
        %v4087 = vmul.f32 %v4055, %v4055
        %v4088 = vmul.f32 %v4056, %v4056
        %v4089 = vmul.f32 %v4057, %v4057
        %v4090 = vmul.f32 %v4058, %v4058
        %v4091 = vmul.f32 %v4059, %v4059
        %v4092 = vmul.f32 %v4060, %v4060
        %v4093 = vmul.f32 %v4061, %v4061
        %v4094 = vmul.f32 %v4062, %v4062
        %v4095 = vmul.f32 %v4063, %v4063
        %v4096 = vmul.f32 %v4064, %v4064
        %v4097 = vmul.f32 %v4065, %v4065
        %v4098 = vmul.f32 %v4066, %v4066
        %v4099 = vmul.f32 %v4067, %v4067
        %v4100 = vmul.f32 %v4068, %v4068
        %v4101 = vmul.f32 %v4069, %v4069
        %v4102 = vmul.f32 %v4070, %v4070
        %v4103 = vmul.f32 %v4071, %v4071
        %v4104 = vmul.f32 %v4072, %v4072
        %v4105 = vmul.f32 %v4073, %v4073
        %v4106 = vmul.f32 %v4074, %v4074
        %v4107 = vmul.f32 %v4075, %v4075
        %v4108 = vmul.f32 %v4076, %v4076
        %v4109 = vmul.f32 %v4077, %v4077
        %v4110 = vmul.f32 %v4078, %v4078
        %v4111 = vmul.f32 %v4079, %v4079
        %v4112 = vmul.f32 %v4080, %v4080
        %4113 = vadd.xlane.f32.xlu0 %v4081
        %v4114 = vpop.xlane.xlu0 %4113
        %4115 = vadd.xlane.f32.xlu0 %v4082
        %v4116 = vpop.xlane.xlu0 %4115
        %4117 = vadd.xlane.f32.xlu0 %v4083
        %v4118 = vpop.xlane.xlu0 %4117
        %4119 = vadd.xlane.f32.xlu0 %v4084
        %v4120 = vpop.xlane.xlu0 %4119
        %4121 = vadd.xlane.f32.xlu0 %v4085
        %v4122 = vpop.xlane.xlu0 %4121
        %4123 = vadd.xlane.f32.xlu0 %v4086
        %v4124 = vpop.xlane.xlu0 %4123
        %4125 = vadd.xlane.f32.xlu0 %v4087
        %v4126 = vpop.xlane.xlu0 %4125
        %4127 = vadd.xlane.f32.xlu0 %v4088
        %v4128 = vpop.xlane.xlu0 %4127
        %4129 = vadd.xlane.f32.xlu0 %v4089
        %v4130 = vpop.xlane.xlu0 %4129
        %4131 = vadd.xlane.f32.xlu0 %v4090
        %v4132 = vpop.xlane.xlu0 %4131
        %4133 = vadd.xlane.f32.xlu0 %v4091
        %v4134 = vpop.xlane.xlu0 %4133
        %4135 = vadd.xlane.f32.xlu0 %v4092
        %v4136 = vpop.xlane.xlu0 %4135
        %4137 = vadd.xlane.f32.xlu0 %v4093
        %v4138 = vpop.xlane.xlu0 %4137
        %4139 = vadd.xlane.f32.xlu0 %v4094
        %v4140 = vpop.xlane.xlu0 %4139
        %4141 = vadd.xlane.f32.xlu0 %v4095
        %v4142 = vpop.xlane.xlu0 %4141
        %4143 = vadd.xlane.f32.xlu0 %v4096
        %v4144 = vpop.xlane.xlu0 %4143
        %4145 = vadd.xlane.f32.xlu0 %v4097
        %v4146 = vpop.xlane.xlu0 %4145
        %4147 = vadd.xlane.f32.xlu0 %v4098
        %v4148 = vpop.xlane.xlu0 %4147
        %4149 = vadd.xlane.f32.xlu0 %v4099
        %v4150 = vpop.xlane.xlu0 %4149
        %4151 = vadd.xlane.f32.xlu0 %v4100
        %v4152 = vpop.xlane.xlu0 %4151
        %4153 = vadd.xlane.f32.xlu0 %v4101
        %v4154 = vpop.xlane.xlu0 %4153
        %4155 = vadd.xlane.f32.xlu0 %v4102
        %v4156 = vpop.xlane.xlu0 %4155
        %4157 = vadd.xlane.f32.xlu0 %v4103
        %v4158 = vpop.xlane.xlu0 %4157
        %4159 = vadd.xlane.f32.xlu0 %v4104
        %v4160 = vpop.xlane.xlu0 %4159
        %4161 = vadd.xlane.f32.xlu0 %v4105
        %v4162 = vpop.xlane.xlu0 %4161
        %4163 = vadd.xlane.f32.xlu0 %v4106
        %v4164 = vpop.xlane.xlu0 %4163
        %4165 = vadd.xlane.f32.xlu0 %v4107
        %v4166 = vpop.xlane.xlu0 %4165
        %4167 = vadd.xlane.f32.xlu0 %v4108
        %v4168 = vpop.xlane.xlu0 %4167
        %4169 = vadd.xlane.f32.xlu0 %v4109
        %v4170 = vpop.xlane.xlu0 %4169
        %4171 = vadd.xlane.f32.xlu0 %v4110
        %v4172 = vpop.xlane.xlu0 %4171
        %4173 = vadd.xlane.f32.xlu0 %v4111
        %v4174 = vpop.xlane.xlu0 %4173
        %4175 = vadd.xlane.f32.xlu0 %v4112
        %v4176 = vpop.xlane.xlu0 %4175
        %v4177 = vrcp.pop 128.0
        %v4178 = vmul.f32 %v4114, %v4177
        %v4179 = vmul.f32 %v4116, %v4177
        %v4180 = vmul.f32 %v4118, %v4177
        %v4181 = vmul.f32 %v4120, %v4177
        %v4182 = vmul.f32 %v4122, %v4177
        %v4183 = vmul.f32 %v4124, %v4177
        %v4184 = vmul.f32 %v4126, %v4177
        %v4185 = vmul.f32 %v4128, %v4177
        %v4186 = vmul.f32 %v4130, %v4177
        %v4187 = vmul.f32 %v4132, %v4177
        %v4188 = vmul.f32 %v4134, %v4177
        %v4189 = vmul.f32 %v4136, %v4177
        %v4190 = vmul.f32 %v4138, %v4177
        %v4191 = vmul.f32 %v4140, %v4177
        %v4192 = vmul.f32 %v4142, %v4177
        %v4193 = vmul.f32 %v4144, %v4177
        %v4194 = vmul.f32 %v4146, %v4177
        %v4195 = vmul.f32 %v4148, %v4177
        %v4196 = vmul.f32 %v4150, %v4177
        %v4197 = vmul.f32 %v4152, %v4177
        %v4198 = vmul.f32 %v4154, %v4177
        %v4199 = vmul.f32 %v4156, %v4177
        %v4200 = vmul.f32 %v4158, %v4177
        %v4201 = vmul.f32 %v4160, %v4177
        %v4202 = vmul.f32 %v4162, %v4177
        %v4203 = vmul.f32 %v4164, %v4177
        %v4204 = vmul.f32 %v4166, %v4177
        %v4205 = vmul.f32 %v4168, %v4177
        %v4206 = vmul.f32 %v4170, %v4177
        %v4207 = vmul.f32 %v4172, %v4177
        %v4208 = vmul.f32 %v4174, %v4177
        %v4209 = vmul.f32 %v4176, %v4177
        %v4210 = vadd.f32 %v4178, 1e-08
        %v4211 = vadd.f32 %v4179, 1e-08
        %v4212 = vadd.f32 %v4180, 1e-08
        %v4213 = vadd.f32 %v4181, 1e-08
        %v4214 = vadd.f32 %v4182, 1e-08
        %v4215 = vadd.f32 %v4183, 1e-08
        %v4216 = vadd.f32 %v4184, 1e-08
        %v4217 = vadd.f32 %v4185, 1e-08
        %v4218 = vadd.f32 %v4186, 1e-08
        %v4219 = vadd.f32 %v4187, 1e-08
        %v4220 = vadd.f32 %v4188, 1e-08
        %v4221 = vadd.f32 %v4189, 1e-08
        %v4222 = vadd.f32 %v4190, 1e-08
        %v4223 = vadd.f32 %v4191, 1e-08
        %v4224 = vadd.f32 %v4192, 1e-08
        %v4225 = vadd.f32 %v4193, 1e-08
        %v4226 = vadd.f32 %v4194, 1e-08
        %v4227 = vadd.f32 %v4195, 1e-08
        %v4228 = vadd.f32 %v4196, 1e-08
        %v4229 = vadd.f32 %v4197, 1e-08
        %v4230 = vadd.f32 %v4198, 1e-08
        %v4231 = vadd.f32 %v4199, 1e-08
        %v4232 = vadd.f32 %v4200, 1e-08
        %v4233 = vadd.f32 %v4201, 1e-08
        %v4234 = vadd.f32 %v4202, 1e-08
        %v4235 = vadd.f32 %v4203, 1e-08
        %v4236 = vadd.f32 %v4204, 1e-08
        %v4237 = vadd.f32 %v4205, 1e-08
        %v4238 = vadd.f32 %v4206, 1e-08
        %v4239 = vadd.f32 %v4207, 1e-08
        %v4240 = vadd.f32 %v4208, 1e-08
        %v4241 = vadd.f32 %v4209, 1e-08
        %v4242 = vrsqrt.pop %v4210
        %v4243 = vrsqrt.pop %v4211
        %v4244 = vrsqrt.pop %v4212
        %v4245 = vrsqrt.pop %v4213
        %v4246 = vrsqrt.pop %v4214
        %v4247 = vrsqrt.pop %v4215
        %v4248 = vrsqrt.pop %v4216
        %v4249 = vrsqrt.pop %v4217
        %v4250 = vrsqrt.pop %v4218
        %v4251 = vrsqrt.pop %v4219
        %v4252 = vrsqrt.pop %v4220
        %v4253 = vrsqrt.pop %v4221
        %v4254 = vrsqrt.pop %v4222
        %v4255 = vrsqrt.pop %v4223
        %v4256 = vrsqrt.pop %v4224
        %v4257 = vrsqrt.pop %v4225
        %v4258 = vrsqrt.pop %v4226
        %v4259 = vrsqrt.pop %v4227
        %v4260 = vrsqrt.pop %v4228
        %v4261 = vrsqrt.pop %v4229
        %v4262 = vrsqrt.pop %v4230
        %v4263 = vrsqrt.pop %v4231
        %v4264 = vrsqrt.pop %v4232
        %v4265 = vrsqrt.pop %v4233
        %v4266 = vrsqrt.pop %v4234
        %v4267 = vrsqrt.pop %v4235
        %v4268 = vrsqrt.pop %v4236
        %v4269 = vrsqrt.pop %v4237
        %v4270 = vrsqrt.pop %v4238
        %v4271 = vrsqrt.pop %v4239
        %v4272 = vrsqrt.pop %v4240
        %v4273 = vrsqrt.pop %v4241
        %v4274 = vmul.f32 %v4049, %v4242
        %v4275 = vmul.f32 %v4050, %v4243
        %v4276 = vmul.f32 %v4051, %v4244
        %v4277 = vmul.f32 %v4052, %v4245
        %v4278 = vmul.f32 %v4053, %v4246
        %v4279 = vmul.f32 %v4054, %v4247
        %v4280 = vmul.f32 %v4055, %v4248
        %v4281 = vmul.f32 %v4056, %v4249
        %v4282 = vmul.f32 %v4057, %v4250
        %v4283 = vmul.f32 %v4058, %v4251
        %v4284 = vmul.f32 %v4059, %v4252
        %v4285 = vmul.f32 %v4060, %v4253
        %v4286 = vmul.f32 %v4061, %v4254
        %v4287 = vmul.f32 %v4062, %v4255
        %v4288 = vmul.f32 %v4063, %v4256
        %v4289 = vmul.f32 %v4064, %v4257
        %v4290 = vmul.f32 %v4065, %v4258
        %v4291 = vmul.f32 %v4066, %v4259
        %v4292 = vmul.f32 %v4067, %v4260
        %v4293 = vmul.f32 %v4068, %v4261
        %v4294 = vmul.f32 %v4069, %v4262
        %v4295 = vmul.f32 %v4070, %v4263
        %v4296 = vmul.f32 %v4071, %v4264
        %v4297 = vmul.f32 %v4072, %v4265
        %v4298 = vmul.f32 %v4073, %v4266
        %v4299 = vmul.f32 %v4074, %v4267
        %v4300 = vmul.f32 %v4075, %v4268
        %v4301 = vmul.f32 %v4076, %v4269
        %v4302 = vmul.f32 %v4077, %v4270
        %v4303 = vmul.f32 %v4078, %v4271
        %v4304 = vmul.f32 %v4079, %v4272
        %v4305 = vmul.f32 %v4080, %v4273
        %vm4306 = vcmp.gt.f32.partialorder %v4274, 0.0
        %vm4307 = vcmp.gt.f32.partialorder %v4275, 0.0
        %vm4308 = vcmp.gt.f32.partialorder %v4276, 0.0
        %vm4309 = vcmp.gt.f32.partialorder %v4277, 0.0
        %vm4310 = vcmp.gt.f32.partialorder %v4278, 0.0
        %vm4311 = vcmp.gt.f32.partialorder %v4279, 0.0
        %vm4312 = vcmp.gt.f32.partialorder %v4280, 0.0
        %vm4313 = vcmp.gt.f32.partialorder %v4281, 0.0
        %vm4314 = vcmp.gt.f32.partialorder %v4282, 0.0
        %vm4315 = vcmp.gt.f32.partialorder %v4283, 0.0
        %vm4316 = vcmp.gt.f32.partialorder %v4284, 0.0
        %vm4317 = vcmp.gt.f32.partialorder %v4285, 0.0
        %vm4318 = vcmp.gt.f32.partialorder %v4286, 0.0
        %vm4319 = vcmp.gt.f32.partialorder %v4287, 0.0
        %vm4320 = vcmp.gt.f32.partialorder %v4288, 0.0
        %vm4321 = vcmp.gt.f32.partialorder %v4289, 0.0
        %vm4322 = vcmp.gt.f32.partialorder %v4290, 0.0
        %vm4323 = vcmp.gt.f32.partialorder %v4291, 0.0
        %vm4324 = vcmp.gt.f32.partialorder %v4292, 0.0
        %vm4325 = vcmp.gt.f32.partialorder %v4293, 0.0
        %vm4326 = vcmp.gt.f32.partialorder %v4294, 0.0
        %vm4327 = vcmp.gt.f32.partialorder %v4295, 0.0
        %vm4328 = vcmp.gt.f32.partialorder %v4296, 0.0
        %vm4329 = vcmp.gt.f32.partialorder %v4297, 0.0
        %vm4330 = vcmp.gt.f32.partialorder %v4298, 0.0
        %vm4331 = vcmp.gt.f32.partialorder %v4299, 0.0
        %vm4332 = vcmp.gt.f32.partialorder %v4300, 0.0
        %vm4333 = vcmp.gt.f32.partialorder %v4301, 0.0
        %vm4334 = vcmp.gt.f32.partialorder %v4302, 0.0
        %vm4335 = vcmp.gt.f32.partialorder %v4303, 0.0
        %vm4336 = vcmp.gt.f32.partialorder %v4304, 0.0
        %vm4337 = vcmp.gt.f32.partialorder %v4305, 0.0
        %v4338 = vmul.f32 %v4274, 0.2
        %v4339 = vmul.f32 %v4275, 0.2
        %v4340 = vmul.f32 %v4276, 0.2
        %v4341 = vmul.f32 %v4277, 0.2
        %v4342 = vmul.f32 %v4278, 0.2
        %v4343 = vmul.f32 %v4279, 0.2
        %v4344 = vmul.f32 %v4280, 0.2
        %v4345 = vmul.f32 %v4281, 0.2
        %v4346 = vmul.f32 %v4282, 0.2
        %v4347 = vmul.f32 %v4283, 0.2
        %v4348 = vmul.f32 %v4284, 0.2
        %v4349 = vmul.f32 %v4285, 0.2
        %v4350 = vmul.f32 %v4286, 0.2
        %v4351 = vmul.f32 %v4287, 0.2
        %v4352 = vmul.f32 %v4288, 0.2
        %v4353 = vmul.f32 %v4289, 0.2
        %v4354 = vmul.f32 %v4290, 0.2
        %v4355 = vmul.f32 %v4291, 0.2
        %v4356 = vmul.f32 %v4292, 0.2
        %v4357 = vmul.f32 %v4293, 0.2
        %v4358 = vmul.f32 %v4294, 0.2
        %v4359 = vmul.f32 %v4295, 0.2
        %v4360 = vmul.f32 %v4296, 0.2
        %v4361 = vmul.f32 %v4297, 0.2
        %v4362 = vmul.f32 %v4298, 0.2
        %v4363 = vmul.f32 %v4299, 0.2
        %v4364 = vmul.f32 %v4300, 0.2
        %v4365 = vmul.f32 %v4301, 0.2
        %v4366 = vmul.f32 %v4302, 0.2
        %v4367 = vmul.f32 %v4303, 0.2
        %v4368 = vmul.f32 %v4304, 0.2
        %v4369 = vmul.f32 %v4305, 0.2
        %v4370 = vsel %vm4306, %v4274, %v4338
        %v4371 = vsel %vm4307, %v4275, %v4339
        %v4372 = vsel %vm4308, %v4276, %v4340
        %v4373 = vsel %vm4309, %v4277, %v4341
        %v4374 = vsel %vm4310, %v4278, %v4342
        %v4375 = vsel %vm4311, %v4279, %v4343
        %v4376 = vsel %vm4312, %v4280, %v4344
        %v4377 = vsel %vm4313, %v4281, %v4345
        %v4378 = vsel %vm4314, %v4282, %v4346
        %v4379 = vsel %vm4315, %v4283, %v4347
        %v4380 = vsel %vm4316, %v4284, %v4348
        %v4381 = vsel %vm4317, %v4285, %v4349
        %v4382 = vsel %vm4318, %v4286, %v4350
        %v4383 = vsel %vm4319, %v4287, %v4351
        %v4384 = vsel %vm4320, %v4288, %v4352
        %v4385 = vsel %vm4321, %v4289, %v4353
        %v4386 = vsel %vm4322, %v4290, %v4354
        %v4387 = vsel %vm4323, %v4291, %v4355
        %v4388 = vsel %vm4324, %v4292, %v4356
        %v4389 = vsel %vm4325, %v4293, %v4357
        %v4390 = vsel %vm4326, %v4294, %v4358
        %v4391 = vsel %vm4327, %v4295, %v4359
        %v4392 = vsel %vm4328, %v4296, %v4360
        %v4393 = vsel %vm4329, %v4297, %v4361
        %v4394 = vsel %vm4330, %v4298, %v4362
        %v4395 = vsel %vm4331, %v4299, %v4363
        %v4396 = vsel %vm4332, %v4300, %v4364
        %v4397 = vsel %vm4333, %v4301, %v4365
        %v4398 = vsel %vm4334, %v4302, %v4366
        %v4399 = vsel %vm4335, %v4303, %v4367
        %v4400 = vsel %vm4336, %v4304, %v4368
        %v4401 = vsel %vm4337, %v4305, %v4369
        %4402 = vst [vmem:[#allocation3] sm:$0xff] 0.0
        %4403 = vst [vmem:[#allocation3 + $0x8] sm:$0xff] 0.0
        %4404 = vst [vmem:[#allocation3 + $0x10] sm:$0x3] 0.0
        %4405 = vst [vmem:[#allocation3 + $0x18] sm:$0xff] 0.0
        %4406 = vst [vmem:[#allocation3 + $0x20] sm:$0xff] 0.0
        %4407 = vst [vmem:[#allocation3 + $0x28] sm:$0x3] 0.0
        %4408 = vst [vmem:[#allocation3 + $0x30] sm:$0xff] 0.0
        %4409 = vst [vmem:[#allocation3 + $0x38] sm:$0xff] 0.0
        %4410 = vst [vmem:[#allocation3 + $0x40] sm:$0x3] 0.0
        %4411 = vst [vmem:[#allocation3 + $0x48] sm:$0xff] 0.0
        %4412 = vst [vmem:[#allocation3 + $0x50] sm:$0xff] 0.0
        %4413 = vst [vmem:[#allocation3 + $0x58] sm:$0x3] 0.0
        %4414 = vst [vmem:[#allocation3 + $0x60] sm:$0xff] 0.0
        %4415 = vst [vmem:[#allocation3 + $0x68] sm:$0xff] 0.0
        %4416 = vst [vmem:[#allocation3 + $0x70] sm:$0x3] 0.0
        %4417 = vst [vmem:[#allocation3 + $0x78] sm:$0xff] 0.0
        %4418 = vst [vmem:[#allocation3 + $0x80] sm:$0xff] 0.0
        %4419 = vst [vmem:[#allocation3 + $0x88] sm:$0x3] 0.0
        %4420 = vst [vmem:[#allocation3 + $0x90] sm:$0xff] 0.0
        %4421 = vst [vmem:[#allocation3 + $0x98] sm:$0xff] 0.0
        %4422 = vst [vmem:[#allocation3 + $0xa0] sm:$0x3] 0.0
        %4423 = vst [vmem:[#allocation3 + $0xa8] sm:$0xff] 0.0
        %4424 = vst [vmem:[#allocation3 + $0xb0] sm:$0xff] 0.0
        %4425 = vst [vmem:[#allocation3 + $0xb8] sm:$0x3] 0.0
        %4426 = vst [vmem:[#allocation3 + $0xc0] sm:$0xff] 0.0
        %4427 = vst [vmem:[#allocation3 + $0xc8] sm:$0xff] 0.0
        %4428 = vst [vmem:[#allocation3 + $0xd0] sm:$0x3] 0.0
        %4429 = vst [vmem:[#allocation3 + $0xd8] sm:$0xff] 0.0
        %4430 = vst [vmem:[#allocation3 + $0xe0] sm:$0xff] 0.0
        %4431 = vst [vmem:[#allocation3 + $0xe8] sm:$0x3] 0.0
        %4432 = vst [vmem:[#allocation3 + $0xf0] sm:$0xff] 0.0
        %4433 = vst [vmem:[#allocation3 + $0xf8] sm:$0xff] 0.0
        %4434 = vst [vmem:[#allocation3 + $0x100] sm:$0x3] 0.0
        %4435 = vst [vmem:[#allocation3 + $0x108] sm:$0xff] 0.0
        %4436 = vst [vmem:[#allocation3 + $0x110] sm:$0xff] 0.0
        %4437 = vst [vmem:[#allocation3 + $0x118] sm:$0x3] 0.0
        %4438 = vst [vmem:[#allocation3 + $0x120] sm:$0xff] 0.0
        %4439 = vst [vmem:[#allocation3 + $0x128] sm:$0xff] 0.0
        %4440 = vst [vmem:[#allocation3 + $0x130] sm:$0x3] 0.0
        %4441 = vst [vmem:[#allocation3 + $0x138] sm:$0xff] 0.0
        %4442 = vst [vmem:[#allocation3 + $0x140] sm:$0xff] 0.0
        %4443 = vst [vmem:[#allocation3 + $0x148] sm:$0x3] 0.0
        %4444 = vst [vmem:[#allocation3 + $0x150] sm:$0xff] 0.0
        %4445 = vst [vmem:[#allocation3 + $0x158] sm:$0xff] 0.0
        %4446 = vst [vmem:[#allocation3 + $0x160] sm:$0x3] 0.0
        %4447 = vst [vmem:[#allocation3 + $0x168] sm:$0xff] 0.0
        %4448 = vst [vmem:[#allocation3 + $0x170] sm:$0xff] 0.0
        %4449 = vst [vmem:[#allocation3 + $0x178] sm:$0x3] 0.0
        %4450 = vst [vmem:[#allocation3 + $0x180] sm:$0xff] 0.0
        %4451 = vst [vmem:[#allocation3 + $0x188] sm:$0xff] 0.0
        %4452 = vst [vmem:[#allocation3 + $0x190] sm:$0x3] 0.0
        %4453 = vst [vmem:[#allocation3 + $0x198] sm:$0xff] 0.0
        %4454 = vst [vmem:[#allocation3 + $0x1a0] sm:$0xff] 0.0
        %4455 = vst [vmem:[#allocation3 + $0x1a8] sm:$0x3] 0.0
        %s4456 = scalar_lea.vmem [#allocation3], 24
        %4457 = vst [vmem:[%s4456 + $0x1] sm:$0xff] %v4370
        %4458 = vst [vmem:[%s4456 + $0x9] sm:$0xff] %v4371
        %4459 = vst [vmem:[%s4456 + $0x19] sm:$0xff] %v4372
        %4460 = vst [vmem:[%s4456 + $0x21] sm:$0xff] %v4373
        %4461 = vst [vmem:[%s4456 + $0x31] sm:$0xff] %v4374
        %4462 = vst [vmem:[%s4456 + $0x39] sm:$0xff] %v4375
        %4463 = vst [vmem:[%s4456 + $0x49] sm:$0xff] %v4376
        %4464 = vst [vmem:[%s4456 + $0x51] sm:$0xff] %v4377
        %4465 = vst [vmem:[%s4456 + $0x61] sm:$0xff] %v4378
        %4466 = vst [vmem:[%s4456 + $0x69] sm:$0xff] %v4379
        %4467 = vst [vmem:[%s4456 + $0x79] sm:$0xff] %v4380
        %4468 = vst [vmem:[%s4456 + $0x81] sm:$0xff] %v4381
        %4469 = vst [vmem:[%s4456 + $0x91] sm:$0xff] %v4382
        %4470 = vst [vmem:[%s4456 + $0x99] sm:$0xff] %v4383
        %4471 = vst [vmem:[%s4456 + $0xa9] sm:$0xff] %v4384
        %4472 = vst [vmem:[%s4456 + $0xb1] sm:$0xff] %v4385
        %4473 = vst [vmem:[%s4456 + $0xc1] sm:$0xff] %v4386
        %4474 = vst [vmem:[%s4456 + $0xc9] sm:$0xff] %v4387
        %4475 = vst [vmem:[%s4456 + $0xd9] sm:$0xff] %v4388
        %4476 = vst [vmem:[%s4456 + $0xe1] sm:$0xff] %v4389
        %4477 = vst [vmem:[%s4456 + $0xf1] sm:$0xff] %v4390
        %4478 = vst [vmem:[%s4456 + $0xf9] sm:$0xff] %v4391
        %4479 = vst [vmem:[%s4456 + $0x109] sm:$0xff] %v4392
        %4480 = vst [vmem:[%s4456 + $0x111] sm:$0xff] %v4393
        %4481 = vst [vmem:[%s4456 + $0x121] sm:$0xff] %v4394
        %4482 = vst [vmem:[%s4456 + $0x129] sm:$0xff] %v4395
        %4483 = vst [vmem:[%s4456 + $0x139] sm:$0xff] %v4396
        %4484 = vst [vmem:[%s4456 + $0x141] sm:$0xff] %v4397
        %4485 = vst [vmem:[%s4456 + $0x151] sm:$0xff] %v4398
        %4486 = vst [vmem:[%s4456 + $0x159] sm:$0xff] %v4399
        %4487 = vst [vmem:[%s4456 + $0x169] sm:$0xff] %v4400
        %4488 = vst [vmem:[%s4456 + $0x171] sm:$0xff] %v4401
        %v4489 = vld [vmem:[#allocation11] sm:$0x1]
        %v4491 = vlaneseq
        %v4492 = vshrl.u32 %v4491, 7
        %v4493 = vsub.s32 0, %v4492
        %v4494 = vrot.slane %v4489, %v4493
        %v4496 = vld [vmem:[#allocation3] sm:$0xff]
        %v4497 = vld [vmem:[#allocation3 + $0x8] sm:$0xff]
        %v4498 = vld [vmem:[#allocation3 + $0x18] sm:$0xff]
        %v4499 = vld [vmem:[#allocation3 + $0x20] sm:$0xff]
        %v4500 = vld [vmem:[#allocation3 + $0x30] sm:$0xff]
        %v4501 = vld [vmem:[#allocation3 + $0x38] sm:$0xff]
        %v4502 = vld [vmem:[#allocation3 + $0x48] sm:$0xff]
        %v4503 = vld [vmem:[#allocation3 + $0x50] sm:$0xff]
        %v4504 = vld [vmem:[#allocation3 + $0x60] sm:$0xff]
        %v4505 = vld [vmem:[#allocation3 + $0x68] sm:$0xff]
        %v4506 = vld [vmem:[#allocation3 + $0x78] sm:$0xff]
        %v4507 = vld [vmem:[#allocation3 + $0x80] sm:$0xff]
        %v4508 = vld [vmem:[#allocation3 + $0x90] sm:$0xff]
        %v4509 = vld [vmem:[#allocation3 + $0x98] sm:$0xff]
        %v4510 = vld [vmem:[#allocation3 + $0xa8] sm:$0xff]
        %v4511 = vld [vmem:[#allocation3 + $0xb0] sm:$0xff]
        %v4512 = vld [vmem:[#allocation3 + $0xc0] sm:$0xff]
        %v4513 = vld [vmem:[#allocation3 + $0xc8] sm:$0xff]
        %v4514 = vld [vmem:[#allocation3 + $0xd8] sm:$0xff]
        %v4515 = vld [vmem:[#allocation3 + $0xe0] sm:$0xff]
        %v4516 = vld [vmem:[#allocation3 + $0xf0] sm:$0xff]
        %v4517 = vld [vmem:[#allocation3 + $0xf8] sm:$0xff]
        %v4518 = vld [vmem:[#allocation3 + $0x108] sm:$0xff]
        %v4519 = vld [vmem:[#allocation3 + $0x110] sm:$0xff]
        %v4520 = vld [vmem:[#allocation3 + $0x120] sm:$0xff]
        %v4521 = vld [vmem:[#allocation3 + $0x128] sm:$0xff]
        %v4522 = vld [vmem:[#allocation3 + $0x138] sm:$0xff]
        %v4523 = vld [vmem:[#allocation3 + $0x140] sm:$0xff]
        %v4524 = vld [vmem:[#allocation3 + $0x150] sm:$0xff]
        %v4525 = vld [vmem:[#allocation3 + $0x158] sm:$0xff]
        %v4526 = vld [vmem:[#allocation3 + $0x168] sm:$0xff]
        %v4527 = vld [vmem:[#allocation3 + $0x170] sm:$0xff]
        %v4528 = vpack.c.bf16 %v4497, %v4496
        %v4529 = vpack.c.bf16 %v4499, %v4498
        %v4530 = vpack.c.bf16 %v4501, %v4500
        %v4531 = vpack.c.bf16 %v4503, %v4502
        %v4532 = vpack.c.bf16 %v4505, %v4504
        %v4533 = vpack.c.bf16 %v4507, %v4506
        %v4534 = vpack.c.bf16 %v4509, %v4508
        %v4535 = vpack.c.bf16 %v4511, %v4510
        %v4536 = vpack.c.bf16 %v4513, %v4512
        %v4537 = vpack.c.bf16 %v4515, %v4514
        %v4538 = vpack.c.bf16 %v4517, %v4516
        %v4539 = vpack.c.bf16 %v4519, %v4518
        %v4540 = vpack.c.bf16 %v4521, %v4520
        %v4541 = vpack.c.bf16 %v4523, %v4522
        %v4542 = vpack.c.bf16 %v4525, %v4524
        %v4543 = vpack.c.bf16 %v4527, %v4526
        %v4544 = vld [vmem:[%s5] sm:$0xf]
        %v4545 = vld [vmem:[%s5 + $0x4] sm:$0xf]
        %v4546 = vld [vmem:[%s5 + $0x8] sm:$0xf]
        %v4547 = vld [vmem:[%s5 + $0xc] sm:$0xf]
        %v4548 = vld [vmem:[%s5 + $0x10] sm:$0xf]
        %v4549 = vld [vmem:[%s5 + $0x14] sm:$0xf]
        %v4550 = vld [vmem:[%s5 + $0x18] sm:$0xf]
        %v4551 = vld [vmem:[%s5 + $0x1c] sm:$0xf]
        %v4552 = vld [vmem:[%s5 + $0x20] sm:$0xf]
        %v4553 = vld [vmem:[%s5 + $0x24] sm:$0xf]
        %v4554 = vld [vmem:[%s5 + $0x28] sm:$0xf]
        %v4555 = vld [vmem:[%s5 + $0x2c] sm:$0xf]
        %v4556 = vld [vmem:[%s5 + $0x30] sm:$0xf]
        %v4557 = vld [vmem:[%s5 + $0x34] sm:$0xf]
        %v4558 = vld [vmem:[%s5 + $0x38] sm:$0xf]
        %v4559 = vld [vmem:[%s5 + $0x3c] sm:$0xf]
        %v4576 = vunpack.c.l.b16 %v4544
        %v4577 = vunpack.c.l.b16 %v4545
        %v4578 = vunpack.c.l.b16 %v4546
        %v4579 = vunpack.c.l.b16 %v4547
        %v4580 = vunpack.c.l.b16 %v4548
        %v4581 = vunpack.c.l.b16 %v4549
        %v4582 = vunpack.c.l.b16 %v4550
        %v4583 = vunpack.c.l.b16 %v4551
        %v4584 = vunpack.c.l.b16 %v4552
        %v4585 = vunpack.c.l.b16 %v4553
        %v4586 = vunpack.c.l.b16 %v4554
        %v4587 = vunpack.c.l.b16 %v4555
        %v4588 = vunpack.c.l.b16 %v4556
        %v4589 = vunpack.c.l.b16 %v4557
        %v4590 = vunpack.c.l.b16 %v4558
        %v4591 = vunpack.c.l.b16 %v4559
        %v4592 = vpack.c.b16 %v4577, %v4576
        %v4593 = vpack.c.b16 %v4579, %v4578
        %v4594 = vpack.c.b16 %v4581, %v4580
        %v4595 = vpack.c.b16 %v4583, %v4582
        %v4596 = vpack.c.b16 %v4585, %v4584
        %v4597 = vpack.c.b16 %v4587, %v4586
        %v4598 = vpack.c.b16 %v4589, %v4588
        %v4599 = vpack.c.b16 %v4591, %v4590
        %4608 = vmatprep.subr.bf16.mxu0 0
        %4609 = vmatpush1.bf16.msra.mxu0 %v4592
        %4610 = vmatprep.subr.bf16.mxu0 0
        %4611 = vmatpush1.bf16.msra.mxu0 %v4593
        %4612 = vmatprep.subr.bf16.mxu0 0
        %4613 = vmatpush1.bf16.msra.mxu0 %v4594
        %4614 = vmatprep.subr.bf16.mxu0 0
        %4615 = vmatpush1.bf16.msra.mxu0 %v4595
        %4616 = vmatprep.subr.bf16.mxu0 0
        %4617 = vmatpush1.bf16.msra.mxu0 %v4596
        %4618 = vmatprep.subr.bf16.mxu0 0
        %4619 = vmatpush1.bf16.msra.mxu0 %v4597
        %4620 = vmatprep.subr.bf16.mxu0 0
        %4621 = vmatpush1.bf16.msra.mxu0 %v4598
        %4622 = vmatprep.subr.bf16.mxu0 0
        %4623 = vmatpush1.bf16.msra.mxu0 %v4599
        %4624 = vmatprep.subr.bf16.mxu0 0
        %4625 = vmatpush1.bf16.msra.mxu0 0
        %4626 = vmatprep.subr.bf16.mxu0 0
        %4627 = vmatpush1.bf16.msra.mxu0 0
        %4628 = vmatprep.subr.bf16.mxu0 0
        %4629 = vmatpush1.bf16.msra.mxu0 0
        %4630 = vmatprep.subr.bf16.mxu0 0
        %4631 = vmatpush1.bf16.msra.mxu0 0
        %4632 = vmatprep.subr.bf16.mxu0 0
        %4633 = vmatpush1.bf16.msra.mxu0 0
        %4634 = vmatprep.subr.bf16.mxu0 0
        %4635 = vmatpush1.bf16.msra.mxu0 0
        %4636 = vmatprep.subr.bf16.mxu0 0
        %4637 = vmatpush1.bf16.msra.mxu0 0
        %4638 = vmatprep.subr.bf16.mxu0 0
        %4639 = vmatpush1.bf16.msra.mxu0 0
        %4640 = vmatprep.mubr.bf16.mxu0 0
        %4641 = vmatmul.mubr.bf16.gmra.mrb[0].mxu0 %v4528
        %v4642 = vpop.f32.mrb[0].mxu0
        %v4643 = vadd.f32 0.0, %v4642
        %v4644 = vpop.f32.mrb[0].mxu0
        %v4645 = vpop.f32.mrb[0].mxu0
        %v4646 = vadd.f32 0.0, %v4645
        %v4647 = vpop.f32.mrb[0].mxu0
        %4648 = vmatprep.mubr.bf16.mxu0 0
        %4649 = vmatmul.mubr.bf16.gmra.mrb[0].mxu0 %v4529
        %v4650 = vpop.f32.mrb[0].mxu0
        %v4651 = vadd.f32 0.0, %v4650
        %v4652 = vpop.f32.mrb[0].mxu0
        %v4653 = vpop.f32.mrb[0].mxu0
        %v4654 = vadd.f32 0.0, %v4653
        %v4655 = vpop.f32.mrb[0].mxu0
        %4656 = vmatprep.mubr.bf16.mxu0 0
        %4657 = vmatmul.mubr.bf16.gmra.mrb[0].mxu0 %v4530
        %v4658 = vpop.f32.mrb[0].mxu0
        %v4659 = vadd.f32 0.0, %v4658
        %v4660 = vpop.f32.mrb[0].mxu0
        %v4661 = vpop.f32.mrb[0].mxu0
        %v4662 = vadd.f32 0.0, %v4661
        %v4663 = vpop.f32.mrb[0].mxu0
        %4664 = vmatprep.mubr.bf16.mxu0 0
        %4665 = vmatmul.mubr.bf16.gmra.mrb[0].mxu0 %v4531
        %v4666 = vpop.f32.mrb[0].mxu0
        %v4667 = vadd.f32 0.0, %v4666
        %v4668 = vpop.f32.mrb[0].mxu0
        %v4669 = vpop.f32.mrb[0].mxu0
        %v4670 = vadd.f32 0.0, %v4669
        %v4671 = vpop.f32.mrb[0].mxu0
        %4672 = vmatprep.mubr.bf16.mxu0 0
        %4673 = vmatmul.mubr.bf16.gmra.mrb[0].mxu0 %v4532
        %v4674 = vpop.f32.mrb[0].mxu0
        %v4675 = vadd.f32 0.0, %v4674
        %v4676 = vpop.f32.mrb[0].mxu0
        %v4677 = vpop.f32.mrb[0].mxu0
        %v4678 = vadd.f32 0.0, %v4677
        %v4679 = vpop.f32.mrb[0].mxu0
        %4680 = vmatprep.mubr.bf16.mxu0 0
        %4681 = vmatmul.mubr.bf16.gmra.mrb[0].mxu0 %v4533
        %v4682 = vpop.f32.mrb[0].mxu0
        %v4683 = vadd.f32 0.0, %v4682
        %v4684 = vpop.f32.mrb[0].mxu0
        %v4685 = vpop.f32.mrb[0].mxu0
        %v4686 = vadd.f32 0.0, %v4685
        %v4687 = vpop.f32.mrb[0].mxu0
        %4688 = vmatprep.mubr.bf16.mxu0 0
        %4689 = vmatmul.mubr.bf16.gmra.mrb[0].mxu0 %v4534
        %v4690 = vpop.f32.mrb[0].mxu0
        %v4691 = vadd.f32 0.0, %v4690
        %v4692 = vpop.f32.mrb[0].mxu0
        %v4693 = vpop.f32.mrb[0].mxu0
        %v4694 = vadd.f32 0.0, %v4693
        %v4695 = vpop.f32.mrb[0].mxu0
        %4696 = vmatprep.mubr.bf16.mxu0 0
        %4697 = vmatmul.mubr.bf16.gmra.mrb[0].mxu0 %v4535
        %v4698 = vpop.f32.mrb[0].mxu0
        %v4699 = vadd.f32 0.0, %v4698
        %v4700 = vpop.f32.mrb[0].mxu0
        %v4701 = vpop.f32.mrb[0].mxu0
        %v4702 = vadd.f32 0.0, %v4701
        %v4703 = vpop.f32.mrb[0].mxu0
        %4704 = vmatprep.mubr.bf16.mxu0 0
        %4705 = vmatmul.mubr.bf16.gmra.mrb[0].mxu0 %v4536
        %v4706 = vpop.f32.mrb[0].mxu0
        %v4707 = vadd.f32 0.0, %v4706
        %v4708 = vpop.f32.mrb[0].mxu0
        %v4709 = vpop.f32.mrb[0].mxu0
        %v4710 = vadd.f32 0.0, %v4709
        %v4711 = vpop.f32.mrb[0].mxu0
        %4712 = vmatprep.mubr.bf16.mxu0 0
        %4713 = vmatmul.mubr.bf16.gmra.mrb[0].mxu0 %v4537
        %v4714 = vpop.f32.mrb[0].mxu0
        %v4715 = vadd.f32 0.0, %v4714
        %v4716 = vpop.f32.mrb[0].mxu0
        %v4717 = vpop.f32.mrb[0].mxu0
        %v4718 = vadd.f32 0.0, %v4717
        %v4719 = vpop.f32.mrb[0].mxu0
        %4720 = vmatprep.mubr.bf16.mxu0 0
        %4721 = vmatmul.mubr.bf16.gmra.mrb[0].mxu0 %v4538
        %v4722 = vpop.f32.mrb[0].mxu0
        %v4723 = vadd.f32 0.0, %v4722
        %v4724 = vpop.f32.mrb[0].mxu0
        %v4725 = vpop.f32.mrb[0].mxu0
        %v4726 = vadd.f32 0.0, %v4725
        %v4727 = vpop.f32.mrb[0].mxu0
        %4728 = vmatprep.mubr.bf16.mxu0 0
        %4729 = vmatmul.mubr.bf16.gmra.mrb[0].mxu0 %v4539
        %v4730 = vpop.f32.mrb[0].mxu0
        %v4731 = vadd.f32 0.0, %v4730
        %v4732 = vpop.f32.mrb[0].mxu0
        %v4733 = vpop.f32.mrb[0].mxu0
        %v4734 = vadd.f32 0.0, %v4733
        %v4735 = vpop.f32.mrb[0].mxu0
        %4736 = vmatprep.mubr.bf16.mxu0 0
        %4737 = vmatmul.mubr.bf16.gmra.mrb[0].mxu0 %v4540
        %v4738 = vpop.f32.mrb[0].mxu0
        %v4739 = vadd.f32 0.0, %v4738
        %v4740 = vpop.f32.mrb[0].mxu0
        %v4741 = vpop.f32.mrb[0].mxu0
        %v4742 = vadd.f32 0.0, %v4741
        %v4743 = vpop.f32.mrb[0].mxu0
        %4744 = vmatprep.mubr.bf16.mxu0 0
        %4745 = vmatmul.mubr.bf16.gmra.mrb[0].mxu0 %v4541
        %v4746 = vpop.f32.mrb[0].mxu0
        %v4747 = vadd.f32 0.0, %v4746
        %v4748 = vpop.f32.mrb[0].mxu0
        %v4749 = vpop.f32.mrb[0].mxu0
        %v4750 = vadd.f32 0.0, %v4749
        %v4751 = vpop.f32.mrb[0].mxu0
        %4752 = vmatprep.mubr.bf16.mxu0 0
        %4753 = vmatmul.mubr.bf16.gmra.mrb[0].mxu0 %v4542
        %v4754 = vpop.f32.mrb[0].mxu0
        %v4755 = vadd.f32 0.0, %v4754
        %v4756 = vpop.f32.mrb[0].mxu0
        %v4757 = vpop.f32.mrb[0].mxu0
        %v4758 = vadd.f32 0.0, %v4757
        %v4759 = vpop.f32.mrb[0].mxu0
        %4760 = vmatprep.mubr.bf16.mxu0 0
        %4761 = vmatmul.mubr.bf16.gmra.mrb[0].mxu0 %v4543
        %v4762 = vpop.f32.mrb[0].mxu0
        %v4763 = vadd.f32 0.0, %v4762
        %v4764 = vpop.f32.mrb[0].mxu0
        %v4765 = vpop.f32.mrb[0].mxu0
        %v4766 = vadd.f32 0.0, %v4765
        %v4767 = vpop.f32.mrb[0].mxu0
        %4768 = vdwg.mxu0
        %v4769 = vadd.f32 %v4494, %v4643
        %v4770 = vadd.f32 %v4494, %v4646
        %v4771 = vadd.f32 %v4494, %v4651
        %v4772 = vadd.f32 %v4494, %v4654
        %v4773 = vadd.f32 %v4494, %v4659
        %v4774 = vadd.f32 %v4494, %v4662
        %v4775 = vadd.f32 %v4494, %v4667
        %v4776 = vadd.f32 %v4494, %v4670
        %v4777 = vadd.f32 %v4494, %v4675
        %v4778 = vadd.f32 %v4494, %v4678
        %v4779 = vadd.f32 %v4494, %v4683
        %v4780 = vadd.f32 %v4494, %v4686
        %v4781 = vadd.f32 %v4494, %v4691
        %v4782 = vadd.f32 %v4494, %v4694
        %v4783 = vadd.f32 %v4494, %v4699
        %v4784 = vadd.f32 %v4494, %v4702
        %v4785 = vadd.f32 %v4494, %v4707
        %v4786 = vadd.f32 %v4494, %v4710
        %v4787 = vadd.f32 %v4494, %v4715
        %v4788 = vadd.f32 %v4494, %v4718
        %v4789 = vadd.f32 %v4494, %v4723
        %v4790 = vadd.f32 %v4494, %v4726
        %v4791 = vadd.f32 %v4494, %v4731
        %v4792 = vadd.f32 %v4494, %v4734
        %v4793 = vadd.f32 %v4494, %v4739
        %v4794 = vadd.f32 %v4494, %v4742
        %v4795 = vadd.f32 %v4494, %v4747
        %v4796 = vadd.f32 %v4494, %v4750
        %v4797 = vadd.f32 %v4494, %v4755
        %v4798 = vadd.f32 %v4494, %v4758
        %v4799 = vadd.f32 %v4494, %v4763
        %v4800 = vadd.f32 %v4494, %v4766
        %v4801 = vld [vmem:[#allocation3 + $0x1] sm:$0xff]
        %v4802 = vld [vmem:[#allocation3 + $0x9] sm:$0xff]
        %v4803 = vld [vmem:[#allocation3 + $0x19] sm:$0xff]
        %v4804 = vld [vmem:[#allocation3 + $0x21] sm:$0xff]
        %v4805 = vld [vmem:[#allocation3 + $0x31] sm:$0xff]
        %v4806 = vld [vmem:[#allocation3 + $0x39] sm:$0xff]
        %v4807 = vld [vmem:[#allocation3 + $0x49] sm:$0xff]
        %v4808 = vld [vmem:[#allocation3 + $0x51] sm:$0xff]
        %v4809 = vld [vmem:[#allocation3 + $0x61] sm:$0xff]
        %v4810 = vld [vmem:[#allocation3 + $0x69] sm:$0xff]
        %v4811 = vld [vmem:[#allocation3 + $0x79] sm:$0xff]
        %v4812 = vld [vmem:[#allocation3 + $0x81] sm:$0xff]
        %v4813 = vld [vmem:[#allocation3 + $0x91] sm:$0xff]
        %v4814 = vld [vmem:[#allocation3 + $0x99] sm:$0xff]
        %v4815 = vld [vmem:[#allocation3 + $0xa9] sm:$0xff]
        %v4816 = vld [vmem:[#allocation3 + $0xb1] sm:$0xff]
        %v4817 = vld [vmem:[#allocation3 + $0xc1] sm:$0xff]
        %v4818 = vld [vmem:[#allocation3 + $0xc9] sm:$0xff]
        %v4819 = vld [vmem:[#allocation3 + $0xd9] sm:$0xff]
        %v4820 = vld [vmem:[#allocation3 + $0xe1] sm:$0xff]
        %v4821 = vld [vmem:[#allocation3 + $0xf1] sm:$0xff]
        %v4822 = vld [vmem:[#allocation3 + $0xf9] sm:$0xff]
        %v4823 = vld [vmem:[#allocation3 + $0x109] sm:$0xff]
        %v4824 = vld [vmem:[#allocation3 + $0x111] sm:$0xff]
        %v4825 = vld [vmem:[#allocation3 + $0x121] sm:$0xff]
        %v4826 = vld [vmem:[#allocation3 + $0x129] sm:$0xff]
        %v4827 = vld [vmem:[#allocation3 + $0x139] sm:$0xff]
        %v4828 = vld [vmem:[#allocation3 + $0x141] sm:$0xff]
        %v4829 = vld [vmem:[#allocation3 + $0x151] sm:$0xff]
        %v4830 = vld [vmem:[#allocation3 + $0x159] sm:$0xff]
        %v4831 = vld [vmem:[#allocation3 + $0x169] sm:$0xff]
        %v4832 = vld [vmem:[#allocation3 + $0x171] sm:$0xff]
        %v4833 = vpack.c.bf16 %v4802, %v4801
        %v4834 = vpack.c.bf16 %v4804, %v4803
        %v4835 = vpack.c.bf16 %v4806, %v4805
        %v4836 = vpack.c.bf16 %v4808, %v4807
        %v4837 = vpack.c.bf16 %v4810, %v4809
        %v4838 = vpack.c.bf16 %v4812, %v4811
        %v4839 = vpack.c.bf16 %v4814, %v4813
        %v4840 = vpack.c.bf16 %v4816, %v4815
        %v4841 = vpack.c.bf16 %v4818, %v4817
        %v4842 = vpack.c.bf16 %v4820, %v4819
        %v4843 = vpack.c.bf16 %v4822, %v4821
        %v4844 = vpack.c.bf16 %v4824, %v4823
        %v4845 = vpack.c.bf16 %v4826, %v4825
        %v4846 = vpack.c.bf16 %v4828, %v4827
        %v4847 = vpack.c.bf16 %v4830, %v4829
        %v4848 = vpack.c.bf16 %v4832, %v4831
        %s4849 = scalar_lea.vmem %s5, 64
        %v4850 = vld [vmem:[%s4849] sm:$0xf]
        %v4851 = vld [vmem:[%s4849 + $0x4] sm:$0xf]
        %v4852 = vld [vmem:[%s4849 + $0x8] sm:$0xf]
        %v4853 = vld [vmem:[%s4849 + $0xc] sm:$0xf]
        %v4854 = vld [vmem:[%s4849 + $0x10] sm:$0xf]
        %v4855 = vld [vmem:[%s4849 + $0x14] sm:$0xf]
        %v4856 = vld [vmem:[%s4849 + $0x18] sm:$0xf]
        %v4857 = vld [vmem:[%s4849 + $0x1c] sm:$0xf]
        %v4858 = vld [vmem:[%s4849 + $0x20] sm:$0xf]
        %v4859 = vld [vmem:[%s4849 + $0x24] sm:$0xf]
        %v4860 = vld [vmem:[%s4849 + $0x28] sm:$0xf]
        %v4861 = vld [vmem:[%s4849 + $0x2c] sm:$0xf]
        %v4862 = vld [vmem:[%s4849 + $0x30] sm:$0xf]
        %v4863 = vld [vmem:[%s4849 + $0x34] sm:$0xf]
        %v4864 = vld [vmem:[%s4849 + $0x38] sm:$0xf]
        %v4865 = vld [vmem:[%s4849 + $0x3c] sm:$0xf]
        %v4882 = vunpack.c.l.b16 %v4850
        %v4883 = vunpack.c.l.b16 %v4851
        %v4884 = vunpack.c.l.b16 %v4852
        %v4885 = vunpack.c.l.b16 %v4853
        %v4886 = vunpack.c.l.b16 %v4854
        %v4887 = vunpack.c.l.b16 %v4855
        %v4888 = vunpack.c.l.b16 %v4856
        %v4889 = vunpack.c.l.b16 %v4857
        %v4890 = vunpack.c.l.b16 %v4858
        %v4891 = vunpack.c.l.b16 %v4859
        %v4892 = vunpack.c.l.b16 %v4860
        %v4893 = vunpack.c.l.b16 %v4861
        %v4894 = vunpack.c.l.b16 %v4862
        %v4895 = vunpack.c.l.b16 %v4863
        %v4896 = vunpack.c.l.b16 %v4864
        %v4897 = vunpack.c.l.b16 %v4865
        %v4898 = vpack.c.b16 %v4883, %v4882
        %v4899 = vpack.c.b16 %v4885, %v4884
        %v4900 = vpack.c.b16 %v4887, %v4886
        %v4901 = vpack.c.b16 %v4889, %v4888
        %v4902 = vpack.c.b16 %v4891, %v4890
        %v4903 = vpack.c.b16 %v4893, %v4892
        %v4904 = vpack.c.b16 %v4895, %v4894
        %v4905 = vpack.c.b16 %v4897, %v4896
        %4914 = vmatprep.subr.bf16.mxu0 0
        %4915 = vmatpush1.bf16.msra.mxu0 %v4898
        %4916 = vmatprep.subr.bf16.mxu0 0
        %4917 = vmatpush1.bf16.msra.mxu0 %v4899
        %4918 = vmatprep.subr.bf16.mxu0 0
        %4919 = vmatpush1.bf16.msra.mxu0 %v4900
        %4920 = vmatprep.subr.bf16.mxu0 0
        %4921 = vmatpush1.bf16.msra.mxu0 %v4901
        %4922 = vmatprep.subr.bf16.mxu0 0
        %4923 = vmatpush1.bf16.msra.mxu0 %v4902
        %4924 = vmatprep.subr.bf16.mxu0 0
        %4925 = vmatpush1.bf16.msra.mxu0 %v4903
        %4926 = vmatprep.subr.bf16.mxu0 0
        %4927 = vmatpush1.bf16.msra.mxu0 %v4904
        %4928 = vmatprep.subr.bf16.mxu0 0
        %4929 = vmatpush1.bf16.msra.mxu0 %v4905
        %4930 = vmatprep.subr.bf16.mxu0 0
        %4931 = vmatpush1.bf16.msra.mxu0 0
        %4932 = vmatprep.subr.bf16.mxu0 0
        %4933 = vmatpush1.bf16.msra.mxu0 0
        %4934 = vmatprep.subr.bf16.mxu0 0
        %4935 = vmatpush1.bf16.msra.mxu0 0
        %4936 = vmatprep.subr.bf16.mxu0 0
        %4937 = vmatpush1.bf16.msra.mxu0 0
        %4938 = vmatprep.subr.bf16.mxu0 0
        %4939 = vmatpush1.bf16.msra.mxu0 0
        %4940 = vmatprep.subr.bf16.mxu0 0
        %4941 = vmatpush1.bf16.msra.mxu0 0
        %4942 = vmatprep.subr.bf16.mxu0 0
        %4943 = vmatpush1.bf16.msra.mxu0 0
        %4944 = vmatprep.subr.bf16.mxu0 0
        %4945 = vmatpush1.bf16.msra.mxu0 0
        %4946 = vmatprep.mubr.bf16.mxu0 0
        %4947 = vmatmul.mubr.bf16.gmra.mrb[0].mxu0 %v4833
        %v4948 = vpop.f32.mrb[0].mxu0
        %v4949 = vadd.f32 0.0, %v4948
        %v4950 = vpop.f32.mrb[0].mxu0
        %v4951 = vpop.f32.mrb[0].mxu0
        %v4952 = vadd.f32 0.0, %v4951
        %v4953 = vpop.f32.mrb[0].mxu0
        %4954 = vmatprep.mubr.bf16.mxu0 0
        %4955 = vmatmul.mubr.bf16.gmra.mrb[0].mxu0 %v4834
        %v4956 = vpop.f32.mrb[0].mxu0
        %v4957 = vadd.f32 0.0, %v4956
        %v4958 = vpop.f32.mrb[0].mxu0
        %v4959 = vpop.f32.mrb[0].mxu0
        %v4960 = vadd.f32 0.0, %v4959
        %v4961 = vpop.f32.mrb[0].mxu0
        %4962 = vmatprep.mubr.bf16.mxu0 0
        %4963 = vmatmul.mubr.bf16.gmra.mrb[0].mxu0 %v4835
        %v4964 = vpop.f32.mrb[0].mxu0
        %v4965 = vadd.f32 0.0, %v4964
        %v4966 = vpop.f32.mrb[0].mxu0
        %v4967 = vpop.f32.mrb[0].mxu0
        %v4968 = vadd.f32 0.0, %v4967
        %v4969 = vpop.f32.mrb[0].mxu0
        %4970 = vmatprep.mubr.bf16.mxu0 0
        %4971 = vmatmul.mubr.bf16.gmra.mrb[0].mxu0 %v4836
        %v4972 = vpop.f32.mrb[0].mxu0
        %v4973 = vadd.f32 0.0, %v4972
        %v4974 = vpop.f32.mrb[0].mxu0
        %v4975 = vpop.f32.mrb[0].mxu0
        %v4976 = vadd.f32 0.0, %v4975
        %v4977 = vpop.f32.mrb[0].mxu0
        %4978 = vmatprep.mubr.bf16.mxu0 0
        %4979 = vmatmul.mubr.bf16.gmra.mrb[0].mxu0 %v4837
        %v4980 = vpop.f32.mrb[0].mxu0
        %v4981 = vadd.f32 0.0, %v4980
        %v4982 = vpop.f32.mrb[0].mxu0
        %v4983 = vpop.f32.mrb[0].mxu0
        %v4984 = vadd.f32 0.0, %v4983
        %v4985 = vpop.f32.mrb[0].mxu0
        %4986 = vmatprep.mubr.bf16.mxu0 0
        %4987 = vmatmul.mubr.bf16.gmra.mrb[0].mxu0 %v4838
        %v4988 = vpop.f32.mrb[0].mxu0
        %v4989 = vadd.f32 0.0, %v4988
        %v4990 = vpop.f32.mrb[0].mxu0
        %v4991 = vpop.f32.mrb[0].mxu0
        %v4992 = vadd.f32 0.0, %v4991
        %v4993 = vpop.f32.mrb[0].mxu0
        %4994 = vmatprep.mubr.bf16.mxu0 0
        %4995 = vmatmul.mubr.bf16.gmra.mrb[0].mxu0 %v4839
        %v4996 = vpop.f32.mrb[0].mxu0
        %v4997 = vadd.f32 0.0, %v4996
        %v4998 = vpop.f32.mrb[0].mxu0
        %v4999 = vpop.f32.mrb[0].mxu0
        %v5000 = vadd.f32 0.0, %v4999
        %v5001 = vpop.f32.mrb[0].mxu0
        %5002 = vmatprep.mubr.bf16.mxu0 0
        %5003 = vmatmul.mubr.bf16.gmra.mrb[0].mxu0 %v4840
        %v5004 = vpop.f32.mrb[0].mxu0
        %v5005 = vadd.f32 0.0, %v5004
        %v5006 = vpop.f32.mrb[0].mxu0
        %v5007 = vpop.f32.mrb[0].mxu0
        %v5008 = vadd.f32 0.0, %v5007
        %v5009 = vpop.f32.mrb[0].mxu0
        %5010 = vmatprep.mubr.bf16.mxu0 0
        %5011 = vmatmul.mubr.bf16.gmra.mrb[0].mxu0 %v4841
        %v5012 = vpop.f32.mrb[0].mxu0
        %v5013 = vadd.f32 0.0, %v5012
        %v5014 = vpop.f32.mrb[0].mxu0
        %v5015 = vpop.f32.mrb[0].mxu0
        %v5016 = vadd.f32 0.0, %v5015
        %v5017 = vpop.f32.mrb[0].mxu0
        %5018 = vmatprep.mubr.bf16.mxu0 0
        %5019 = vmatmul.mubr.bf16.gmra.mrb[0].mxu0 %v4842
        %v5020 = vpop.f32.mrb[0].mxu0
        %v5021 = vadd.f32 0.0, %v5020
        %v5022 = vpop.f32.mrb[0].mxu0
        %v5023 = vpop.f32.mrb[0].mxu0
        %v5024 = vadd.f32 0.0, %v5023
        %v5025 = vpop.f32.mrb[0].mxu0
        %5026 = vmatprep.mubr.bf16.mxu0 0
        %5027 = vmatmul.mubr.bf16.gmra.mrb[0].mxu0 %v4843
        %v5028 = vpop.f32.mrb[0].mxu0
        %v5029 = vadd.f32 0.0, %v5028
        %v5030 = vpop.f32.mrb[0].mxu0
        %v5031 = vpop.f32.mrb[0].mxu0
        %v5032 = vadd.f32 0.0, %v5031
        %v5033 = vpop.f32.mrb[0].mxu0
        %5034 = vmatprep.mubr.bf16.mxu0 0
        %5035 = vmatmul.mubr.bf16.gmra.mrb[0].mxu0 %v4844
        %v5036 = vpop.f32.mrb[0].mxu0
        %v5037 = vadd.f32 0.0, %v5036
        %v5038 = vpop.f32.mrb[0].mxu0
        %v5039 = vpop.f32.mrb[0].mxu0
        %v5040 = vadd.f32 0.0, %v5039
        %v5041 = vpop.f32.mrb[0].mxu0
        %5042 = vmatprep.mubr.bf16.mxu0 0
        %5043 = vmatmul.mubr.bf16.gmra.mrb[0].mxu0 %v4845
        %v5044 = vpop.f32.mrb[0].mxu0
        %v5045 = vadd.f32 0.0, %v5044
        %v5046 = vpop.f32.mrb[0].mxu0
        %v5047 = vpop.f32.mrb[0].mxu0
        %v5048 = vadd.f32 0.0, %v5047
        %v5049 = vpop.f32.mrb[0].mxu0
        %5050 = vmatprep.mubr.bf16.mxu0 0
        %5051 = vmatmul.mubr.bf16.gmra.mrb[0].mxu0 %v4846
        %v5052 = vpop.f32.mrb[0].mxu0
        %v5053 = vadd.f32 0.0, %v5052
        %v5054 = vpop.f32.mrb[0].mxu0
        %v5055 = vpop.f32.mrb[0].mxu0
        %v5056 = vadd.f32 0.0, %v5055
        %v5057 = vpop.f32.mrb[0].mxu0
        %5058 = vmatprep.mubr.bf16.mxu0 0
        %5059 = vmatmul.mubr.bf16.gmra.mrb[0].mxu0 %v4847
        %v5060 = vpop.f32.mrb[0].mxu0
        %v5061 = vadd.f32 0.0, %v5060
        %v5062 = vpop.f32.mrb[0].mxu0
        %v5063 = vpop.f32.mrb[0].mxu0
        %v5064 = vadd.f32 0.0, %v5063
        %v5065 = vpop.f32.mrb[0].mxu0
        %5066 = vmatprep.mubr.bf16.mxu0 0
        %5067 = vmatmul.mubr.bf16.gmra.mrb[0].mxu0 %v4848
        %v5068 = vpop.f32.mrb[0].mxu0
        %v5069 = vadd.f32 0.0, %v5068
        %v5070 = vpop.f32.mrb[0].mxu0
        %v5071 = vpop.f32.mrb[0].mxu0
        %v5072 = vadd.f32 0.0, %v5071
        %v5073 = vpop.f32.mrb[0].mxu0
        %5074 = vdwg.mxu0
        %v5075 = vadd.f32 %v4769, %v4949
        %v5076 = vadd.f32 %v4770, %v4952
        %v5077 = vadd.f32 %v4771, %v4957
        %v5078 = vadd.f32 %v4772, %v4960
        %v5079 = vadd.f32 %v4773, %v4965
        %v5080 = vadd.f32 %v4774, %v4968
        %v5081 = vadd.f32 %v4775, %v4973
        %v5082 = vadd.f32 %v4776, %v4976
        %v5083 = vadd.f32 %v4777, %v4981
        %v5084 = vadd.f32 %v4778, %v4984
        %v5085 = vadd.f32 %v4779, %v4989
        %v5086 = vadd.f32 %v4780, %v4992
        %v5087 = vadd.f32 %v4781, %v4997
        %v5088 = vadd.f32 %v4782, %v5000
        %v5089 = vadd.f32 %v4783, %v5005
        %v5090 = vadd.f32 %v4784, %v5008
        %v5091 = vadd.f32 %v4785, %v5013
        %v5092 = vadd.f32 %v4786, %v5016
        %v5093 = vadd.f32 %v4787, %v5021
        %v5094 = vadd.f32 %v4788, %v5024
        %v5095 = vadd.f32 %v4789, %v5029
        %v5096 = vadd.f32 %v4790, %v5032
        %v5097 = vadd.f32 %v4791, %v5037
        %v5098 = vadd.f32 %v4792, %v5040
        %v5099 = vadd.f32 %v4793, %v5045
        %v5100 = vadd.f32 %v4794, %v5048
        %v5101 = vadd.f32 %v4795, %v5053
        %v5102 = vadd.f32 %v4796, %v5056
        %v5103 = vadd.f32 %v4797, %v5061
        %v5104 = vadd.f32 %v4798, %v5064
        %v5105 = vadd.f32 %v4799, %v5069
        %v5106 = vadd.f32 %v4800, %v5072
        %v5107 = vld [vmem:[#allocation3 + $0x2] sm:$0xff]
        %v5108 = vld [vmem:[#allocation3 + $0xa] sm:$0xff]
        %v5109 = vld [vmem:[#allocation3 + $0x1a] sm:$0xff]
        %v5110 = vld [vmem:[#allocation3 + $0x22] sm:$0xff]
        %v5111 = vld [vmem:[#allocation3 + $0x32] sm:$0xff]
        %v5112 = vld [vmem:[#allocation3 + $0x3a] sm:$0xff]
        %v5113 = vld [vmem:[#allocation3 + $0x4a] sm:$0xff]
        %v5114 = vld [vmem:[#allocation3 + $0x52] sm:$0xff]
        %v5115 = vld [vmem:[#allocation3 + $0x62] sm:$0xff]
        %v5116 = vld [vmem:[#allocation3 + $0x6a] sm:$0xff]
        %v5117 = vld [vmem:[#allocation3 + $0x7a] sm:$0xff]
        %v5118 = vld [vmem:[#allocation3 + $0x82] sm:$0xff]
        %v5119 = vld [vmem:[#allocation3 + $0x92] sm:$0xff]
        %v5120 = vld [vmem:[#allocation3 + $0x9a] sm:$0xff]
        %v5121 = vld [vmem:[#allocation3 + $0xaa] sm:$0xff]
        %v5122 = vld [vmem:[#allocation3 + $0xb2] sm:$0xff]
        %v5123 = vld [vmem:[#allocation3 + $0xc2] sm:$0xff]
        %v5124 = vld [vmem:[#allocation3 + $0xca] sm:$0xff]
        %v5125 = vld [vmem:[#allocation3 + $0xda] sm:$0xff]
        %v5126 = vld [vmem:[#allocation3 + $0xe2] sm:$0xff]
        %v5127 = vld [vmem:[#allocation3 + $0xf2] sm:$0xff]
        %v5128 = vld [vmem:[#allocation3 + $0xfa] sm:$0xff]
        %v5129 = vld [vmem:[#allocation3 + $0x10a] sm:$0xff]
        %v5130 = vld [vmem:[#allocation3 + $0x112] sm:$0xff]
        %v5131 = vld [vmem:[#allocation3 + $0x122] sm:$0xff]
        %v5132 = vld [vmem:[#allocation3 + $0x12a] sm:$0xff]
        %v5133 = vld [vmem:[#allocation3 + $0x13a] sm:$0xff]
        %v5134 = vld [vmem:[#allocation3 + $0x142] sm:$0xff]
        %v5135 = vld [vmem:[#allocation3 + $0x152] sm:$0xff]
        %v5136 = vld [vmem:[#allocation3 + $0x15a] sm:$0xff]
        %v5137 = vld [vmem:[#allocation3 + $0x16a] sm:$0xff]
        %v5138 = vld [vmem:[#allocation3 + $0x172] sm:$0xff]
        %v5139 = vpack.c.bf16 %v5108, %v5107
        %v5140 = vpack.c.bf16 %v5110, %v5109
        %v5141 = vpack.c.bf16 %v5112, %v5111
        %v5142 = vpack.c.bf16 %v5114, %v5113
        %v5143 = vpack.c.bf16 %v5116, %v5115
        %v5144 = vpack.c.bf16 %v5118, %v5117
        %v5145 = vpack.c.bf16 %v5120, %v5119
        %v5146 = vpack.c.bf16 %v5122, %v5121
        %v5147 = vpack.c.bf16 %v5124, %v5123
        %v5148 = vpack.c.bf16 %v5126, %v5125
        %v5149 = vpack.c.bf16 %v5128, %v5127
        %v5150 = vpack.c.bf16 %v5130, %v5129
        %v5151 = vpack.c.bf16 %v5132, %v5131
        %v5152 = vpack.c.bf16 %v5134, %v5133
        %v5153 = vpack.c.bf16 %v5136, %v5135
        %v5154 = vpack.c.bf16 %v5138, %v5137
        %s5155 = scalar_lea.vmem %s5, 128
        %v5156 = vld [vmem:[%s5155] sm:$0xf]
        %v5157 = vld [vmem:[%s5155 + $0x4] sm:$0xf]
        %v5158 = vld [vmem:[%s5155 + $0x8] sm:$0xf]
        %v5159 = vld [vmem:[%s5155 + $0xc] sm:$0xf]
        %v5160 = vld [vmem:[%s5155 + $0x10] sm:$0xf]
        %v5161 = vld [vmem:[%s5155 + $0x14] sm:$0xf]
        %v5162 = vld [vmem:[%s5155 + $0x18] sm:$0xf]
        %v5163 = vld [vmem:[%s5155 + $0x1c] sm:$0xf]
        %v5164 = vld [vmem:[%s5155 + $0x20] sm:$0xf]
        %v5165 = vld [vmem:[%s5155 + $0x24] sm:$0xf]
        %v5166 = vld [vmem:[%s5155 + $0x28] sm:$0xf]
        %v5167 = vld [vmem:[%s5155 + $0x2c] sm:$0xf]
        %v5168 = vld [vmem:[%s5155 + $0x30] sm:$0xf]
        %v5169 = vld [vmem:[%s5155 + $0x34] sm:$0xf]
        %v5170 = vld [vmem:[%s5155 + $0x38] sm:$0xf]
        %v5171 = vld [vmem:[%s5155 + $0x3c] sm:$0xf]
        %v5188 = vunpack.c.l.b16 %v5156
        %v5189 = vunpack.c.l.b16 %v5157
        %v5190 = vunpack.c.l.b16 %v5158
        %v5191 = vunpack.c.l.b16 %v5159
        %v5192 = vunpack.c.l.b16 %v5160
        %v5193 = vunpack.c.l.b16 %v5161
        %v5194 = vunpack.c.l.b16 %v5162
        %v5195 = vunpack.c.l.b16 %v5163
        %v5196 = vunpack.c.l.b16 %v5164
        %v5197 = vunpack.c.l.b16 %v5165
        %v5198 = vunpack.c.l.b16 %v5166
        %v5199 = vunpack.c.l.b16 %v5167
        %v5200 = vunpack.c.l.b16 %v5168
        %v5201 = vunpack.c.l.b16 %v5169
        %v5202 = vunpack.c.l.b16 %v5170
        %v5203 = vunpack.c.l.b16 %v5171
        %v5204 = vpack.c.b16 %v5189, %v5188
        %v5205 = vpack.c.b16 %v5191, %v5190
        %v5206 = vpack.c.b16 %v5193, %v5192
        %v5207 = vpack.c.b16 %v5195, %v5194
        %v5208 = vpack.c.b16 %v5197, %v5196
        %v5209 = vpack.c.b16 %v5199, %v5198
        %v5210 = vpack.c.b16 %v5201, %v5200
        %v5211 = vpack.c.b16 %v5203, %v5202
        %5220 = vmatprep.subr.bf16.mxu0 0
        %5221 = vmatpush1.bf16.msra.mxu0 %v5204
        %5222 = vmatprep.subr.bf16.mxu0 0
        %5223 = vmatpush1.bf16.msra.mxu0 %v5205
        %5224 = vmatprep.subr.bf16.mxu0 0
        %5225 = vmatpush1.bf16.msra.mxu0 %v5206
        %5226 = vmatprep.subr.bf16.mxu0 0
        %5227 = vmatpush1.bf16.msra.mxu0 %v5207
        %5228 = vmatprep.subr.bf16.mxu0 0
        %5229 = vmatpush1.bf16.msra.mxu0 %v5208
        %5230 = vmatprep.subr.bf16.mxu0 0
        %5231 = vmatpush1.bf16.msra.mxu0 %v5209
        %5232 = vmatprep.subr.bf16.mxu0 0
        %5233 = vmatpush1.bf16.msra.mxu0 %v5210
        %5234 = vmatprep.subr.bf16.mxu0 0
        %5235 = vmatpush1.bf16.msra.mxu0 %v5211
        %5236 = vmatprep.subr.bf16.mxu0 0
        %5237 = vmatpush1.bf16.msra.mxu0 0
        %5238 = vmatprep.subr.bf16.mxu0 0
        %5239 = vmatpush1.bf16.msra.mxu0 0
        %5240 = vmatprep.subr.bf16.mxu0 0
        %5241 = vmatpush1.bf16.msra.mxu0 0
        %5242 = vmatprep.subr.bf16.mxu0 0
        %5243 = vmatpush1.bf16.msra.mxu0 0
        %5244 = vmatprep.subr.bf16.mxu0 0
        %5245 = vmatpush1.bf16.msra.mxu0 0
        %5246 = vmatprep.subr.bf16.mxu0 0
        %5247 = vmatpush1.bf16.msra.mxu0 0
        %5248 = vmatprep.subr.bf16.mxu0 0
        %5249 = vmatpush1.bf16.msra.mxu0 0
        %5250 = vmatprep.subr.bf16.mxu0 0
        %5251 = vmatpush1.bf16.msra.mxu0 0
        %5252 = vmatprep.mubr.bf16.mxu0 0
        %5253 = vmatmul.mubr.bf16.gmra.mrb[0].mxu0 %v5139
        %v5254 = vpop.f32.mrb[0].mxu0
        %v5255 = vadd.f32 0.0, %v5254
        %v5256 = vpop.f32.mrb[0].mxu0
        %v5257 = vpop.f32.mrb[0].mxu0
        %v5258 = vadd.f32 0.0, %v5257
        %v5259 = vpop.f32.mrb[0].mxu0
        %5260 = vmatprep.mubr.bf16.mxu0 0
        %5261 = vmatmul.mubr.bf16.gmra.mrb[0].mxu0 %v5140
        %v5262 = vpop.f32.mrb[0].mxu0
        %v5263 = vadd.f32 0.0, %v5262
        %v5264 = vpop.f32.mrb[0].mxu0
        %v5265 = vpop.f32.mrb[0].mxu0
        %v5266 = vadd.f32 0.0, %v5265
        %v5267 = vpop.f32.mrb[0].mxu0
        %5268 = vmatprep.mubr.bf16.mxu0 0
        %5269 = vmatmul.mubr.bf16.gmra.mrb[0].mxu0 %v5141
        %v5270 = vpop.f32.mrb[0].mxu0
        %v5271 = vadd.f32 0.0, %v5270
        %v5272 = vpop.f32.mrb[0].mxu0
        %v5273 = vpop.f32.mrb[0].mxu0
        %v5274 = vadd.f32 0.0, %v5273
        %v5275 = vpop.f32.mrb[0].mxu0
        %5276 = vmatprep.mubr.bf16.mxu0 0
        %5277 = vmatmul.mubr.bf16.gmra.mrb[0].mxu0 %v5142
        %v5278 = vpop.f32.mrb[0].mxu0
        %v5279 = vadd.f32 0.0, %v5278
        %v5280 = vpop.f32.mrb[0].mxu0
        %v5281 = vpop.f32.mrb[0].mxu0
        %v5282 = vadd.f32 0.0, %v5281
        %v5283 = vpop.f32.mrb[0].mxu0
        %5284 = vmatprep.mubr.bf16.mxu0 0
        %5285 = vmatmul.mubr.bf16.gmra.mrb[0].mxu0 %v5143
        %v5286 = vpop.f32.mrb[0].mxu0
        %v5287 = vadd.f32 0.0, %v5286
        %v5288 = vpop.f32.mrb[0].mxu0
        %v5289 = vpop.f32.mrb[0].mxu0
        %v5290 = vadd.f32 0.0, %v5289
        %v5291 = vpop.f32.mrb[0].mxu0
        %5292 = vmatprep.mubr.bf16.mxu0 0
        %5293 = vmatmul.mubr.bf16.gmra.mrb[0].mxu0 %v5144
        %v5294 = vpop.f32.mrb[0].mxu0
        %v5295 = vadd.f32 0.0, %v5294
        %v5296 = vpop.f32.mrb[0].mxu0
        %v5297 = vpop.f32.mrb[0].mxu0
        %v5298 = vadd.f32 0.0, %v5297
        %v5299 = vpop.f32.mrb[0].mxu0
        %5300 = vmatprep.mubr.bf16.mxu0 0
        %5301 = vmatmul.mubr.bf16.gmra.mrb[0].mxu0 %v5145
        %v5302 = vpop.f32.mrb[0].mxu0
        %v5303 = vadd.f32 0.0, %v5302
        %v5304 = vpop.f32.mrb[0].mxu0
        %v5305 = vpop.f32.mrb[0].mxu0
        %v5306 = vadd.f32 0.0, %v5305
        %v5307 = vpop.f32.mrb[0].mxu0
        %5308 = vmatprep.mubr.bf16.mxu0 0
        %5309 = vmatmul.mubr.bf16.gmra.mrb[0].mxu0 %v5146
        %v5310 = vpop.f32.mrb[0].mxu0
        %v5311 = vadd.f32 0.0, %v5310
        %v5312 = vpop.f32.mrb[0].mxu0
        %v5313 = vpop.f32.mrb[0].mxu0
        %v5314 = vadd.f32 0.0, %v5313
        %v5315 = vpop.f32.mrb[0].mxu0
        %5316 = vmatprep.mubr.bf16.mxu0 0
        %5317 = vmatmul.mubr.bf16.gmra.mrb[0].mxu0 %v5147
        %v5318 = vpop.f32.mrb[0].mxu0
        %v5319 = vadd.f32 0.0, %v5318
        %v5320 = vpop.f32.mrb[0].mxu0
        %v5321 = vpop.f32.mrb[0].mxu0
        %v5322 = vadd.f32 0.0, %v5321
        %v5323 = vpop.f32.mrb[0].mxu0
        %5324 = vmatprep.mubr.bf16.mxu0 0
        %5325 = vmatmul.mubr.bf16.gmra.mrb[0].mxu0 %v5148
        %v5326 = vpop.f32.mrb[0].mxu0
        %v5327 = vadd.f32 0.0, %v5326
        %v5328 = vpop.f32.mrb[0].mxu0
        %v5329 = vpop.f32.mrb[0].mxu0
        %v5330 = vadd.f32 0.0, %v5329
        %v5331 = vpop.f32.mrb[0].mxu0
        %5332 = vmatprep.mubr.bf16.mxu0 0
        %5333 = vmatmul.mubr.bf16.gmra.mrb[0].mxu0 %v5149
        %v5334 = vpop.f32.mrb[0].mxu0
        %v5335 = vadd.f32 0.0, %v5334
        %v5336 = vpop.f32.mrb[0].mxu0
        %v5337 = vpop.f32.mrb[0].mxu0
        %v5338 = vadd.f32 0.0, %v5337
        %v5339 = vpop.f32.mrb[0].mxu0
        %5340 = vmatprep.mubr.bf16.mxu0 0
        %5341 = vmatmul.mubr.bf16.gmra.mrb[0].mxu0 %v5150
        %v5342 = vpop.f32.mrb[0].mxu0
        %v5343 = vadd.f32 0.0, %v5342
        %v5344 = vpop.f32.mrb[0].mxu0
        %v5345 = vpop.f32.mrb[0].mxu0
        %v5346 = vadd.f32 0.0, %v5345
        %v5347 = vpop.f32.mrb[0].mxu0
        %5348 = vmatprep.mubr.bf16.mxu0 0
        %5349 = vmatmul.mubr.bf16.gmra.mrb[0].mxu0 %v5151
        %v5350 = vpop.f32.mrb[0].mxu0
        %v5351 = vadd.f32 0.0, %v5350
        %v5352 = vpop.f32.mrb[0].mxu0
        %v5353 = vpop.f32.mrb[0].mxu0
        %v5354 = vadd.f32 0.0, %v5353
        %v5355 = vpop.f32.mrb[0].mxu0
        %5356 = vmatprep.mubr.bf16.mxu0 0
        %5357 = vmatmul.mubr.bf16.gmra.mrb[0].mxu0 %v5152
        %v5358 = vpop.f32.mrb[0].mxu0
        %v5359 = vadd.f32 0.0, %v5358
        %v5360 = vpop.f32.mrb[0].mxu0
        %v5361 = vpop.f32.mrb[0].mxu0
        %v5362 = vadd.f32 0.0, %v5361
        %v5363 = vpop.f32.mrb[0].mxu0
        %5364 = vmatprep.mubr.bf16.mxu0 0
        %5365 = vmatmul.mubr.bf16.gmra.mrb[0].mxu0 %v5153
        %v5366 = vpop.f32.mrb[0].mxu0
        %v5367 = vadd.f32 0.0, %v5366
        %v5368 = vpop.f32.mrb[0].mxu0
        %v5369 = vpop.f32.mrb[0].mxu0
        %v5370 = vadd.f32 0.0, %v5369
        %v5371 = vpop.f32.mrb[0].mxu0
        %5372 = vmatprep.mubr.bf16.mxu0 0
        %5373 = vmatmul.mubr.bf16.gmra.mrb[0].mxu0 %v5154
        %v5374 = vpop.f32.mrb[0].mxu0
        %v5375 = vadd.f32 0.0, %v5374
        %v5376 = vpop.f32.mrb[0].mxu0
        %v5377 = vpop.f32.mrb[0].mxu0
        %v5378 = vadd.f32 0.0, %v5377
        %v5379 = vpop.f32.mrb[0].mxu0
        %5380 = vdwg.mxu0
        %v5381 = vadd.f32 %v5075, %v5255
        %v5382 = vadd.f32 %v5076, %v5258
        %v5383 = vadd.f32 %v5077, %v5263
        %v5384 = vadd.f32 %v5078, %v5266
        %v5385 = vadd.f32 %v5079, %v5271
        %v5386 = vadd.f32 %v5080, %v5274
        %v5387 = vadd.f32 %v5081, %v5279
        %v5388 = vadd.f32 %v5082, %v5282
        %v5389 = vadd.f32 %v5083, %v5287
        %v5390 = vadd.f32 %v5084, %v5290
        %v5391 = vadd.f32 %v5085, %v5295
        %v5392 = vadd.f32 %v5086, %v5298
        %v5393 = vadd.f32 %v5087, %v5303
        %v5394 = vadd.f32 %v5088, %v5306
        %v5395 = vadd.f32 %v5089, %v5311
        %v5396 = vadd.f32 %v5090, %v5314
        %v5397 = vadd.f32 %v5091, %v5319
        %v5398 = vadd.f32 %v5092, %v5322
        %v5399 = vadd.f32 %v5093, %v5327
        %v5400 = vadd.f32 %v5094, %v5330
        %v5401 = vadd.f32 %v5095, %v5335
        %v5402 = vadd.f32 %v5096, %v5338
        %v5403 = vadd.f32 %v5097, %v5343
        %v5404 = vadd.f32 %v5098, %v5346
        %v5405 = vadd.f32 %v5099, %v5351
        %v5406 = vadd.f32 %v5100, %v5354
        %v5407 = vadd.f32 %v5101, %v5359
        %v5408 = vadd.f32 %v5102, %v5362
        %v5409 = vadd.f32 %v5103, %v5367
        %v5410 = vadd.f32 %v5104, %v5370
        %v5411 = vadd.f32 %v5105, %v5375
        %v5412 = vadd.f32 %v5106, %v5378
        %v5413 = vld [vmem:[%s4456] sm:$0xff]
        %v5414 = vld [vmem:[%s4456 + $0x8] sm:$0xff]
        %v5415 = vld [vmem:[%s4456 + $0x18] sm:$0xff]
        %v5416 = vld [vmem:[%s4456 + $0x20] sm:$0xff]
        %v5417 = vld [vmem:[%s4456 + $0x30] sm:$0xff]
        %v5418 = vld [vmem:[%s4456 + $0x38] sm:$0xff]
        %v5419 = vld [vmem:[%s4456 + $0x48] sm:$0xff]
        %v5420 = vld [vmem:[%s4456 + $0x50] sm:$0xff]
        %v5421 = vld [vmem:[%s4456 + $0x60] sm:$0xff]
        %v5422 = vld [vmem:[%s4456 + $0x68] sm:$0xff]
        %v5423 = vld [vmem:[%s4456 + $0x78] sm:$0xff]
        %v5424 = vld [vmem:[%s4456 + $0x80] sm:$0xff]
        %v5425 = vld [vmem:[%s4456 + $0x90] sm:$0xff]
        %v5426 = vld [vmem:[%s4456 + $0x98] sm:$0xff]
        %v5427 = vld [vmem:[%s4456 + $0xa8] sm:$0xff]
        %v5428 = vld [vmem:[%s4456 + $0xb0] sm:$0xff]
        %v5429 = vld [vmem:[%s4456 + $0xc0] sm:$0xff]
        %v5430 = vld [vmem:[%s4456 + $0xc8] sm:$0xff]
        %v5431 = vld [vmem:[%s4456 + $0xd8] sm:$0xff]
        %v5432 = vld [vmem:[%s4456 + $0xe0] sm:$0xff]
        %v5433 = vld [vmem:[%s4456 + $0xf0] sm:$0xff]
        %v5434 = vld [vmem:[%s4456 + $0xf8] sm:$0xff]
        %v5435 = vld [vmem:[%s4456 + $0x108] sm:$0xff]
        %v5436 = vld [vmem:[%s4456 + $0x110] sm:$0xff]
        %v5437 = vld [vmem:[%s4456 + $0x120] sm:$0xff]
        %v5438 = vld [vmem:[%s4456 + $0x128] sm:$0xff]
        %v5439 = vld [vmem:[%s4456 + $0x138] sm:$0xff]
        %v5440 = vld [vmem:[%s4456 + $0x140] sm:$0xff]
        %v5441 = vld [vmem:[%s4456 + $0x150] sm:$0xff]
        %v5442 = vld [vmem:[%s4456 + $0x158] sm:$0xff]
        %v5443 = vld [vmem:[%s4456 + $0x168] sm:$0xff]
        %v5444 = vld [vmem:[%s4456 + $0x170] sm:$0xff]
        %v5445 = vpack.c.bf16 %v5414, %v5413
        %v5446 = vpack.c.bf16 %v5416, %v5415
        %v5447 = vpack.c.bf16 %v5418, %v5417
        %v5448 = vpack.c.bf16 %v5420, %v5419
        %v5449 = vpack.c.bf16 %v5422, %v5421
        %v5450 = vpack.c.bf16 %v5424, %v5423
        %v5451 = vpack.c.bf16 %v5426, %v5425
        %v5452 = vpack.c.bf16 %v5428, %v5427
        %v5453 = vpack.c.bf16 %v5430, %v5429
        %v5454 = vpack.c.bf16 %v5432, %v5431
        %v5455 = vpack.c.bf16 %v5434, %v5433
        %v5456 = vpack.c.bf16 %v5436, %v5435
        %v5457 = vpack.c.bf16 %v5438, %v5437
        %v5458 = vpack.c.bf16 %v5440, %v5439
        %v5459 = vpack.c.bf16 %v5442, %v5441
        %v5460 = vpack.c.bf16 %v5444, %v5443
        %s5461 = scalar_lea.vmem %s5, 192
        %v5462 = vld [vmem:[%s5461] sm:$0xf]
        %v5463 = vld [vmem:[%s5461 + $0x4] sm:$0xf]
        %v5464 = vld [vmem:[%s5461 + $0x8] sm:$0xf]
        %v5465 = vld [vmem:[%s5461 + $0xc] sm:$0xf]
        %v5466 = vld [vmem:[%s5461 + $0x10] sm:$0xf]
        %v5467 = vld [vmem:[%s5461 + $0x14] sm:$0xf]
        %v5468 = vld [vmem:[%s5461 + $0x18] sm:$0xf]
        %v5469 = vld [vmem:[%s5461 + $0x1c] sm:$0xf]
        %v5470 = vld [vmem:[%s5461 + $0x20] sm:$0xf]
        %v5471 = vld [vmem:[%s5461 + $0x24] sm:$0xf]
        %v5472 = vld [vmem:[%s5461 + $0x28] sm:$0xf]
        %v5473 = vld [vmem:[%s5461 + $0x2c] sm:$0xf]
        %v5474 = vld [vmem:[%s5461 + $0x30] sm:$0xf]
        %v5475 = vld [vmem:[%s5461 + $0x34] sm:$0xf]
        %v5476 = vld [vmem:[%s5461 + $0x38] sm:$0xf]
        %v5477 = vld [vmem:[%s5461 + $0x3c] sm:$0xf]
        %v5494 = vunpack.c.l.b16 %v5462
        %v5495 = vunpack.c.l.b16 %v5463
        %v5496 = vunpack.c.l.b16 %v5464
        %v5497 = vunpack.c.l.b16 %v5465
        %v5498 = vunpack.c.l.b16 %v5466
        %v5499 = vunpack.c.l.b16 %v5467
        %v5500 = vunpack.c.l.b16 %v5468
        %v5501 = vunpack.c.l.b16 %v5469
        %v5502 = vunpack.c.l.b16 %v5470
        %v5503 = vunpack.c.l.b16 %v5471
        %v5504 = vunpack.c.l.b16 %v5472
        %v5505 = vunpack.c.l.b16 %v5473
        %v5506 = vunpack.c.l.b16 %v5474
        %v5507 = vunpack.c.l.b16 %v5475
        %v5508 = vunpack.c.l.b16 %v5476
        %v5509 = vunpack.c.l.b16 %v5477
        %v5510 = vpack.c.b16 %v5495, %v5494
        %v5511 = vpack.c.b16 %v5497, %v5496
        %v5512 = vpack.c.b16 %v5499, %v5498
        %v5513 = vpack.c.b16 %v5501, %v5500
        %v5514 = vpack.c.b16 %v5503, %v5502
        %v5515 = vpack.c.b16 %v5505, %v5504
        %v5516 = vpack.c.b16 %v5507, %v5506
        %v5517 = vpack.c.b16 %v5509, %v5508
        %5526 = vmatprep.subr.bf16.mxu0 0
        %5527 = vmatpush1.bf16.msra.mxu0 %v5510
        %5528 = vmatprep.subr.bf16.mxu0 0
        %5529 = vmatpush1.bf16.msra.mxu0 %v5511
        %5530 = vmatprep.subr.bf16.mxu0 0
        %5531 = vmatpush1.bf16.msra.mxu0 %v5512
        %5532 = vmatprep.subr.bf16.mxu0 0
        %5533 = vmatpush1.bf16.msra.mxu0 %v5513
        %5534 = vmatprep.subr.bf16.mxu0 0
        %5535 = vmatpush1.bf16.msra.mxu0 %v5514
        %5536 = vmatprep.subr.bf16.mxu0 0
        %5537 = vmatpush1.bf16.msra.mxu0 %v5515
        %5538 = vmatprep.subr.bf16.mxu0 0
        %5539 = vmatpush1.bf16.msra.mxu0 %v5516
        %5540 = vmatprep.subr.bf16.mxu0 0
        %5541 = vmatpush1.bf16.msra.mxu0 %v5517
        %5542 = vmatprep.subr.bf16.mxu0 0
        %5543 = vmatpush1.bf16.msra.mxu0 0
        %5544 = vmatprep.subr.bf16.mxu0 0
        %5545 = vmatpush1.bf16.msra.mxu0 0
        %5546 = vmatprep.subr.bf16.mxu0 0
        %5547 = vmatpush1.bf16.msra.mxu0 0
        %5548 = vmatprep.subr.bf16.mxu0 0
        %5549 = vmatpush1.bf16.msra.mxu0 0
        %5550 = vmatprep.subr.bf16.mxu0 0
        %5551 = vmatpush1.bf16.msra.mxu0 0
        %5552 = vmatprep.subr.bf16.mxu0 0
        %5553 = vmatpush1.bf16.msra.mxu0 0
        %5554 = vmatprep.subr.bf16.mxu0 0
        %5555 = vmatpush1.bf16.msra.mxu0 0
        %5556 = vmatprep.subr.bf16.mxu0 0
        %5557 = vmatpush1.bf16.msra.mxu0 0
        %5558 = vmatprep.mubr.bf16.mxu0 0
        %5559 = vmatmul.mubr.bf16.gmra.mrb[0].mxu0 %v5445
        %v5560 = vpop.f32.mrb[0].mxu0
        %v5561 = vadd.f32 0.0, %v5560
        %v5562 = vpop.f32.mrb[0].mxu0
        %v5563 = vpop.f32.mrb[0].mxu0
        %v5564 = vadd.f32 0.0, %v5563
        %v5565 = vpop.f32.mrb[0].mxu0
        %5566 = vmatprep.mubr.bf16.mxu0 0
        %5567 = vmatmul.mubr.bf16.gmra.mrb[0].mxu0 %v5446
        %v5568 = vpop.f32.mrb[0].mxu0
        %v5569 = vadd.f32 0.0, %v5568
        %v5570 = vpop.f32.mrb[0].mxu0
        %v5571 = vpop.f32.mrb[0].mxu0
        %v5572 = vadd.f32 0.0, %v5571
        %v5573 = vpop.f32.mrb[0].mxu0
        %5574 = vmatprep.mubr.bf16.mxu0 0
        %5575 = vmatmul.mubr.bf16.gmra.mrb[0].mxu0 %v5447
        %v5576 = vpop.f32.mrb[0].mxu0
        %v5577 = vadd.f32 0.0, %v5576
        %v5578 = vpop.f32.mrb[0].mxu0
        %v5579 = vpop.f32.mrb[0].mxu0
        %v5580 = vadd.f32 0.0, %v5579
        %v5581 = vpop.f32.mrb[0].mxu0
        %5582 = vmatprep.mubr.bf16.mxu0 0
        %5583 = vmatmul.mubr.bf16.gmra.mrb[0].mxu0 %v5448
        %v5584 = vpop.f32.mrb[0].mxu0
        %v5585 = vadd.f32 0.0, %v5584
        %v5586 = vpop.f32.mrb[0].mxu0
        %v5587 = vpop.f32.mrb[0].mxu0
        %v5588 = vadd.f32 0.0, %v5587
        %v5589 = vpop.f32.mrb[0].mxu0
        %5590 = vmatprep.mubr.bf16.mxu0 0
        %5591 = vmatmul.mubr.bf16.gmra.mrb[0].mxu0 %v5449
        %v5592 = vpop.f32.mrb[0].mxu0
        %v5593 = vadd.f32 0.0, %v5592
        %v5594 = vpop.f32.mrb[0].mxu0
        %v5595 = vpop.f32.mrb[0].mxu0
        %v5596 = vadd.f32 0.0, %v5595
        %v5597 = vpop.f32.mrb[0].mxu0
        %5598 = vmatprep.mubr.bf16.mxu0 0
        %5599 = vmatmul.mubr.bf16.gmra.mrb[0].mxu0 %v5450
        %v5600 = vpop.f32.mrb[0].mxu0
        %v5601 = vadd.f32 0.0, %v5600
        %v5602 = vpop.f32.mrb[0].mxu0
        %v5603 = vpop.f32.mrb[0].mxu0
        %v5604 = vadd.f32 0.0, %v5603
        %v5605 = vpop.f32.mrb[0].mxu0
        %5606 = vmatprep.mubr.bf16.mxu0 0
        %5607 = vmatmul.mubr.bf16.gmra.mrb[0].mxu0 %v5451
        %v5608 = vpop.f32.mrb[0].mxu0
        %v5609 = vadd.f32 0.0, %v5608
        %v5610 = vpop.f32.mrb[0].mxu0
        %v5611 = vpop.f32.mrb[0].mxu0
        %v5612 = vadd.f32 0.0, %v5611
        %v5613 = vpop.f32.mrb[0].mxu0
        %5614 = vmatprep.mubr.bf16.mxu0 0
        %5615 = vmatmul.mubr.bf16.gmra.mrb[0].mxu0 %v5452
        %v5616 = vpop.f32.mrb[0].mxu0
        %v5617 = vadd.f32 0.0, %v5616
        %v5618 = vpop.f32.mrb[0].mxu0
        %v5619 = vpop.f32.mrb[0].mxu0
        %v5620 = vadd.f32 0.0, %v5619
        %v5621 = vpop.f32.mrb[0].mxu0
        %5622 = vmatprep.mubr.bf16.mxu0 0
        %5623 = vmatmul.mubr.bf16.gmra.mrb[0].mxu0 %v5453
        %v5624 = vpop.f32.mrb[0].mxu0
        %v5625 = vadd.f32 0.0, %v5624
        %v5626 = vpop.f32.mrb[0].mxu0
        %v5627 = vpop.f32.mrb[0].mxu0
        %v5628 = vadd.f32 0.0, %v5627
        %v5629 = vpop.f32.mrb[0].mxu0
        %5630 = vmatprep.mubr.bf16.mxu0 0
        %5631 = vmatmul.mubr.bf16.gmra.mrb[0].mxu0 %v5454
        %v5632 = vpop.f32.mrb[0].mxu0
        %v5633 = vadd.f32 0.0, %v5632
        %v5634 = vpop.f32.mrb[0].mxu0
        %v5635 = vpop.f32.mrb[0].mxu0
        %v5636 = vadd.f32 0.0, %v5635
        %v5637 = vpop.f32.mrb[0].mxu0
        %5638 = vmatprep.mubr.bf16.mxu0 0
        %5639 = vmatmul.mubr.bf16.gmra.mrb[0].mxu0 %v5455
        %v5640 = vpop.f32.mrb[0].mxu0
        %v5641 = vadd.f32 0.0, %v5640
        %v5642 = vpop.f32.mrb[0].mxu0
        %v5643 = vpop.f32.mrb[0].mxu0
        %v5644 = vadd.f32 0.0, %v5643
        %v5645 = vpop.f32.mrb[0].mxu0
        %5646 = vmatprep.mubr.bf16.mxu0 0
        %5647 = vmatmul.mubr.bf16.gmra.mrb[0].mxu0 %v5456
        %v5648 = vpop.f32.mrb[0].mxu0
        %v5649 = vadd.f32 0.0, %v5648
        %v5650 = vpop.f32.mrb[0].mxu0
        %v5651 = vpop.f32.mrb[0].mxu0
        %v5652 = vadd.f32 0.0, %v5651
        %v5653 = vpop.f32.mrb[0].mxu0
        %5654 = vmatprep.mubr.bf16.mxu0 0
        %5655 = vmatmul.mubr.bf16.gmra.mrb[0].mxu0 %v5457
        %v5656 = vpop.f32.mrb[0].mxu0
        %v5657 = vadd.f32 0.0, %v5656
        %v5658 = vpop.f32.mrb[0].mxu0
        %v5659 = vpop.f32.mrb[0].mxu0
        %v5660 = vadd.f32 0.0, %v5659
        %v5661 = vpop.f32.mrb[0].mxu0
        %5662 = vmatprep.mubr.bf16.mxu0 0
        %5663 = vmatmul.mubr.bf16.gmra.mrb[0].mxu0 %v5458
        %v5664 = vpop.f32.mrb[0].mxu0
        %v5665 = vadd.f32 0.0, %v5664
        %v5666 = vpop.f32.mrb[0].mxu0
        %v5667 = vpop.f32.mrb[0].mxu0
        %v5668 = vadd.f32 0.0, %v5667
        %v5669 = vpop.f32.mrb[0].mxu0
        %5670 = vmatprep.mubr.bf16.mxu0 0
        %5671 = vmatmul.mubr.bf16.gmra.mrb[0].mxu0 %v5459
        %v5672 = vpop.f32.mrb[0].mxu0
        %v5673 = vadd.f32 0.0, %v5672
        %v5674 = vpop.f32.mrb[0].mxu0
        %v5675 = vpop.f32.mrb[0].mxu0
        %v5676 = vadd.f32 0.0, %v5675
        %v5677 = vpop.f32.mrb[0].mxu0
        %5678 = vmatprep.mubr.bf16.mxu0 0
        %5679 = vmatmul.mubr.bf16.gmra.mrb[0].mxu0 %v5460
        %v5680 = vpop.f32.mrb[0].mxu0
        %v5681 = vadd.f32 0.0, %v5680
        %v5682 = vpop.f32.mrb[0].mxu0
        %v5683 = vpop.f32.mrb[0].mxu0
        %v5684 = vadd.f32 0.0, %v5683
        %v5685 = vpop.f32.mrb[0].mxu0
        %5686 = vdwg.mxu0
        %v5687 = vadd.f32 %v5381, %v5561
        %v5688 = vadd.f32 %v5382, %v5564
        %v5689 = vadd.f32 %v5383, %v5569
        %v5690 = vadd.f32 %v5384, %v5572
        %v5691 = vadd.f32 %v5385, %v5577
        %v5692 = vadd.f32 %v5386, %v5580
        %v5693 = vadd.f32 %v5387, %v5585
        %v5694 = vadd.f32 %v5388, %v5588
        %v5695 = vadd.f32 %v5389, %v5593
        %v5696 = vadd.f32 %v5390, %v5596
        %v5697 = vadd.f32 %v5391, %v5601
        %v5698 = vadd.f32 %v5392, %v5604
        %v5699 = vadd.f32 %v5393, %v5609
        %v5700 = vadd.f32 %v5394, %v5612
        %v5701 = vadd.f32 %v5395, %v5617
        %v5702 = vadd.f32 %v5396, %v5620
        %v5703 = vadd.f32 %v5397, %v5625
        %v5704 = vadd.f32 %v5398, %v5628
        %v5705 = vadd.f32 %v5399, %v5633
        %v5706 = vadd.f32 %v5400, %v5636
        %v5707 = vadd.f32 %v5401, %v5641
        %v5708 = vadd.f32 %v5402, %v5644
        %v5709 = vadd.f32 %v5403, %v5649
        %v5710 = vadd.f32 %v5404, %v5652
        %v5711 = vadd.f32 %v5405, %v5657
        %v5712 = vadd.f32 %v5406, %v5660
        %v5713 = vadd.f32 %v5407, %v5665
        %v5714 = vadd.f32 %v5408, %v5668
        %v5715 = vadd.f32 %v5409, %v5673
        %v5716 = vadd.f32 %v5410, %v5676
        %v5717 = vadd.f32 %v5411, %v5681
        %v5718 = vadd.f32 %v5412, %v5684
        %v5719 = vld [vmem:[%s4456 + $0x1] sm:$0xff]
        %v5720 = vld [vmem:[%s4456 + $0x9] sm:$0xff]
        %v5721 = vld [vmem:[%s4456 + $0x19] sm:$0xff]
        %v5722 = vld [vmem:[%s4456 + $0x21] sm:$0xff]
        %v5723 = vld [vmem:[%s4456 + $0x31] sm:$0xff]
        %v5724 = vld [vmem:[%s4456 + $0x39] sm:$0xff]
        %v5725 = vld [vmem:[%s4456 + $0x49] sm:$0xff]
        %v5726 = vld [vmem:[%s4456 + $0x51] sm:$0xff]
        %v5727 = vld [vmem:[%s4456 + $0x61] sm:$0xff]
        %v5728 = vld [vmem:[%s4456 + $0x69] sm:$0xff]
        %v5729 = vld [vmem:[%s4456 + $0x79] sm:$0xff]
        %v5730 = vld [vmem:[%s4456 + $0x81] sm:$0xff]
        %v5731 = vld [vmem:[%s4456 + $0x91] sm:$0xff]
        %v5732 = vld [vmem:[%s4456 + $0x99] sm:$0xff]
        %v5733 = vld [vmem:[%s4456 + $0xa9] sm:$0xff]
        %v5734 = vld [vmem:[%s4456 + $0xb1] sm:$0xff]
        %v5735 = vld [vmem:[%s4456 + $0xc1] sm:$0xff]
        %v5736 = vld [vmem:[%s4456 + $0xc9] sm:$0xff]
        %v5737 = vld [vmem:[%s4456 + $0xd9] sm:$0xff]
        %v5738 = vld [vmem:[%s4456 + $0xe1] sm:$0xff]
        %v5739 = vld [vmem:[%s4456 + $0xf1] sm:$0xff]
        %v5740 = vld [vmem:[%s4456 + $0xf9] sm:$0xff]
        %v5741 = vld [vmem:[%s4456 + $0x109] sm:$0xff]
        %v5742 = vld [vmem:[%s4456 + $0x111] sm:$0xff]
        %v5743 = vld [vmem:[%s4456 + $0x121] sm:$0xff]
        %v5744 = vld [vmem:[%s4456 + $0x129] sm:$0xff]
        %v5745 = vld [vmem:[%s4456 + $0x139] sm:$0xff]
        %v5746 = vld [vmem:[%s4456 + $0x141] sm:$0xff]
        %v5747 = vld [vmem:[%s4456 + $0x151] sm:$0xff]
        %v5748 = vld [vmem:[%s4456 + $0x159] sm:$0xff]
        %v5749 = vld [vmem:[%s4456 + $0x169] sm:$0xff]
        %v5750 = vld [vmem:[%s4456 + $0x171] sm:$0xff]
        %v5751 = vpack.c.bf16 %v5720, %v5719
        %v5752 = vpack.c.bf16 %v5722, %v5721
        %v5753 = vpack.c.bf16 %v5724, %v5723
        %v5754 = vpack.c.bf16 %v5726, %v5725
        %v5755 = vpack.c.bf16 %v5728, %v5727
        %v5756 = vpack.c.bf16 %v5730, %v5729
        %v5757 = vpack.c.bf16 %v5732, %v5731
        %v5758 = vpack.c.bf16 %v5734, %v5733
        %v5759 = vpack.c.bf16 %v5736, %v5735
        %v5760 = vpack.c.bf16 %v5738, %v5737
        %v5761 = vpack.c.bf16 %v5740, %v5739
        %v5762 = vpack.c.bf16 %v5742, %v5741
        %v5763 = vpack.c.bf16 %v5744, %v5743
        %v5764 = vpack.c.bf16 %v5746, %v5745
        %v5765 = vpack.c.bf16 %v5748, %v5747
        %v5766 = vpack.c.bf16 %v5750, %v5749
        %s5767 = scalar_lea.vmem %s5, 256
        %v5768 = vld [vmem:[%s5767] sm:$0xf]
        %v5769 = vld [vmem:[%s5767 + $0x4] sm:$0xf]
        %v5770 = vld [vmem:[%s5767 + $0x8] sm:$0xf]
        %v5771 = vld [vmem:[%s5767 + $0xc] sm:$0xf]
        %v5772 = vld [vmem:[%s5767 + $0x10] sm:$0xf]
        %v5773 = vld [vmem:[%s5767 + $0x14] sm:$0xf]
        %v5774 = vld [vmem:[%s5767 + $0x18] sm:$0xf]
        %v5775 = vld [vmem:[%s5767 + $0x1c] sm:$0xf]
        %v5776 = vld [vmem:[%s5767 + $0x20] sm:$0xf]
        %v5777 = vld [vmem:[%s5767 + $0x24] sm:$0xf]
        %v5778 = vld [vmem:[%s5767 + $0x28] sm:$0xf]
        %v5779 = vld [vmem:[%s5767 + $0x2c] sm:$0xf]
        %v5780 = vld [vmem:[%s5767 + $0x30] sm:$0xf]
        %v5781 = vld [vmem:[%s5767 + $0x34] sm:$0xf]
        %v5782 = vld [vmem:[%s5767 + $0x38] sm:$0xf]
        %v5783 = vld [vmem:[%s5767 + $0x3c] sm:$0xf]
        %v5800 = vunpack.c.l.b16 %v5768
        %v5801 = vunpack.c.l.b16 %v5769
        %v5802 = vunpack.c.l.b16 %v5770
        %v5803 = vunpack.c.l.b16 %v5771
        %v5804 = vunpack.c.l.b16 %v5772
        %v5805 = vunpack.c.l.b16 %v5773
        %v5806 = vunpack.c.l.b16 %v5774
        %v5807 = vunpack.c.l.b16 %v5775
        %v5808 = vunpack.c.l.b16 %v5776
        %v5809 = vunpack.c.l.b16 %v5777
        %v5810 = vunpack.c.l.b16 %v5778
        %v5811 = vunpack.c.l.b16 %v5779
        %v5812 = vunpack.c.l.b16 %v5780
        %v5813 = vunpack.c.l.b16 %v5781
        %v5814 = vunpack.c.l.b16 %v5782
        %v5815 = vunpack.c.l.b16 %v5783
        %v5816 = vpack.c.b16 %v5801, %v5800
        %v5817 = vpack.c.b16 %v5803, %v5802
        %v5818 = vpack.c.b16 %v5805, %v5804
        %v5819 = vpack.c.b16 %v5807, %v5806
        %v5820 = vpack.c.b16 %v5809, %v5808
        %v5821 = vpack.c.b16 %v5811, %v5810
        %v5822 = vpack.c.b16 %v5813, %v5812
        %v5823 = vpack.c.b16 %v5815, %v5814
        %5832 = vmatprep.subr.bf16.mxu0 0
        %5833 = vmatpush1.bf16.msra.mxu0 %v5816
        %5834 = vmatprep.subr.bf16.mxu0 0
        %5835 = vmatpush1.bf16.msra.mxu0 %v5817
        %5836 = vmatprep.subr.bf16.mxu0 0
        %5837 = vmatpush1.bf16.msra.mxu0 %v5818
        %5838 = vmatprep.subr.bf16.mxu0 0
        %5839 = vmatpush1.bf16.msra.mxu0 %v5819
        %5840 = vmatprep.subr.bf16.mxu0 0
        %5841 = vmatpush1.bf16.msra.mxu0 %v5820
        %5842 = vmatprep.subr.bf16.mxu0 0
        %5843 = vmatpush1.bf16.msra.mxu0 %v5821
        %5844 = vmatprep.subr.bf16.mxu0 0
        %5845 = vmatpush1.bf16.msra.mxu0 %v5822
        %5846 = vmatprep.subr.bf16.mxu0 0
        %5847 = vmatpush1.bf16.msra.mxu0 %v5823
        %5848 = vmatprep.subr.bf16.mxu0 0
        %5849 = vmatpush1.bf16.msra.mxu0 0
        %5850 = vmatprep.subr.bf16.mxu0 0
        %5851 = vmatpush1.bf16.msra.mxu0 0
        %5852 = vmatprep.subr.bf16.mxu0 0
        %5853 = vmatpush1.bf16.msra.mxu0 0
        %5854 = vmatprep.subr.bf16.mxu0 0
        %5855 = vmatpush1.bf16.msra.mxu0 0
        %5856 = vmatprep.subr.bf16.mxu0 0
        %5857 = vmatpush1.bf16.msra.mxu0 0
        %5858 = vmatprep.subr.bf16.mxu0 0
        %5859 = vmatpush1.bf16.msra.mxu0 0
        %5860 = vmatprep.subr.bf16.mxu0 0
        %5861 = vmatpush1.bf16.msra.mxu0 0
        %5862 = vmatprep.subr.bf16.mxu0 0
        %5863 = vmatpush1.bf16.msra.mxu0 0
        %5864 = vmatprep.mubr.bf16.mxu0 0
        %5865 = vmatmul.mubr.bf16.gmra.mrb[0].mxu0 %v5751
        %v5866 = vpop.f32.mrb[0].mxu0
        %v5867 = vadd.f32 0.0, %v5866
        %v5868 = vpop.f32.mrb[0].mxu0
        %v5869 = vpop.f32.mrb[0].mxu0
        %v5870 = vadd.f32 0.0, %v5869
        %v5871 = vpop.f32.mrb[0].mxu0
        %5872 = vmatprep.mubr.bf16.mxu0 0
        %5873 = vmatmul.mubr.bf16.gmra.mrb[0].mxu0 %v5752
        %v5874 = vpop.f32.mrb[0].mxu0
        %v5875 = vadd.f32 0.0, %v5874
        %v5876 = vpop.f32.mrb[0].mxu0
        %v5877 = vpop.f32.mrb[0].mxu0
        %v5878 = vadd.f32 0.0, %v5877
        %v5879 = vpop.f32.mrb[0].mxu0
        %5880 = vmatprep.mubr.bf16.mxu0 0
        %5881 = vmatmul.mubr.bf16.gmra.mrb[0].mxu0 %v5753
        %v5882 = vpop.f32.mrb[0].mxu0
        %v5883 = vadd.f32 0.0, %v5882
        %v5884 = vpop.f32.mrb[0].mxu0
        %v5885 = vpop.f32.mrb[0].mxu0
        %v5886 = vadd.f32 0.0, %v5885
        %v5887 = vpop.f32.mrb[0].mxu0
        %5888 = vmatprep.mubr.bf16.mxu0 0
        %5889 = vmatmul.mubr.bf16.gmra.mrb[0].mxu0 %v5754
        %v5890 = vpop.f32.mrb[0].mxu0
        %v5891 = vadd.f32 0.0, %v5890
        %v5892 = vpop.f32.mrb[0].mxu0
        %v5893 = vpop.f32.mrb[0].mxu0
        %v5894 = vadd.f32 0.0, %v5893
        %v5895 = vpop.f32.mrb[0].mxu0
        %5896 = vmatprep.mubr.bf16.mxu0 0
        %5897 = vmatmul.mubr.bf16.gmra.mrb[0].mxu0 %v5755
        %v5898 = vpop.f32.mrb[0].mxu0
        %v5899 = vadd.f32 0.0, %v5898
        %v5900 = vpop.f32.mrb[0].mxu0
        %v5901 = vpop.f32.mrb[0].mxu0
        %v5902 = vadd.f32 0.0, %v5901
        %v5903 = vpop.f32.mrb[0].mxu0
        %5904 = vmatprep.mubr.bf16.mxu0 0
        %5905 = vmatmul.mubr.bf16.gmra.mrb[0].mxu0 %v5756
        %v5906 = vpop.f32.mrb[0].mxu0
        %v5907 = vadd.f32 0.0, %v5906
        %v5908 = vpop.f32.mrb[0].mxu0
        %v5909 = vpop.f32.mrb[0].mxu0
        %v5910 = vadd.f32 0.0, %v5909
        %v5911 = vpop.f32.mrb[0].mxu0
        %5912 = vmatprep.mubr.bf16.mxu0 0
        %5913 = vmatmul.mubr.bf16.gmra.mrb[0].mxu0 %v5757
        %v5914 = vpop.f32.mrb[0].mxu0
        %v5915 = vadd.f32 0.0, %v5914
        %v5916 = vpop.f32.mrb[0].mxu0
        %v5917 = vpop.f32.mrb[0].mxu0
        %v5918 = vadd.f32 0.0, %v5917
        %v5919 = vpop.f32.mrb[0].mxu0
        %5920 = vmatprep.mubr.bf16.mxu0 0
        %5921 = vmatmul.mubr.bf16.gmra.mrb[0].mxu0 %v5758
        %v5922 = vpop.f32.mrb[0].mxu0
        %v5923 = vadd.f32 0.0, %v5922
        %v5924 = vpop.f32.mrb[0].mxu0
        %v5925 = vpop.f32.mrb[0].mxu0
        %v5926 = vadd.f32 0.0, %v5925
        %v5927 = vpop.f32.mrb[0].mxu0
        %5928 = vmatprep.mubr.bf16.mxu0 0
        %5929 = vmatmul.mubr.bf16.gmra.mrb[0].mxu0 %v5759
        %v5930 = vpop.f32.mrb[0].mxu0
        %v5931 = vadd.f32 0.0, %v5930
        %v5932 = vpop.f32.mrb[0].mxu0
        %v5933 = vpop.f32.mrb[0].mxu0
        %v5934 = vadd.f32 0.0, %v5933
        %v5935 = vpop.f32.mrb[0].mxu0
        %5936 = vmatprep.mubr.bf16.mxu0 0
        %5937 = vmatmul.mubr.bf16.gmra.mrb[0].mxu0 %v5760
        %v5938 = vpop.f32.mrb[0].mxu0
        %v5939 = vadd.f32 0.0, %v5938
        %v5940 = vpop.f32.mrb[0].mxu0
        %v5941 = vpop.f32.mrb[0].mxu0
        %v5942 = vadd.f32 0.0, %v5941
        %v5943 = vpop.f32.mrb[0].mxu0
        %5944 = vmatprep.mubr.bf16.mxu0 0
        %5945 = vmatmul.mubr.bf16.gmra.mrb[0].mxu0 %v5761
        %v5946 = vpop.f32.mrb[0].mxu0
        %v5947 = vadd.f32 0.0, %v5946
        %v5948 = vpop.f32.mrb[0].mxu0
        %v5949 = vpop.f32.mrb[0].mxu0
        %v5950 = vadd.f32 0.0, %v5949
        %v5951 = vpop.f32.mrb[0].mxu0
        %5952 = vmatprep.mubr.bf16.mxu0 0
        %5953 = vmatmul.mubr.bf16.gmra.mrb[0].mxu0 %v5762
        %v5954 = vpop.f32.mrb[0].mxu0
        %v5955 = vadd.f32 0.0, %v5954
        %v5956 = vpop.f32.mrb[0].mxu0
        %v5957 = vpop.f32.mrb[0].mxu0
        %v5958 = vadd.f32 0.0, %v5957
        %v5959 = vpop.f32.mrb[0].mxu0
        %5960 = vmatprep.mubr.bf16.mxu0 0
        %5961 = vmatmul.mubr.bf16.gmra.mrb[0].mxu0 %v5763
        %v5962 = vpop.f32.mrb[0].mxu0
        %v5963 = vadd.f32 0.0, %v5962
        %v5964 = vpop.f32.mrb[0].mxu0
        %v5965 = vpop.f32.mrb[0].mxu0
        %v5966 = vadd.f32 0.0, %v5965
        %v5967 = vpop.f32.mrb[0].mxu0
        %5968 = vmatprep.mubr.bf16.mxu0 0
        %5969 = vmatmul.mubr.bf16.gmra.mrb[0].mxu0 %v5764
        %v5970 = vpop.f32.mrb[0].mxu0
        %v5971 = vadd.f32 0.0, %v5970
        %v5972 = vpop.f32.mrb[0].mxu0
        %v5973 = vpop.f32.mrb[0].mxu0
        %v5974 = vadd.f32 0.0, %v5973
        %v5975 = vpop.f32.mrb[0].mxu0
        %5976 = vmatprep.mubr.bf16.mxu0 0
        %5977 = vmatmul.mubr.bf16.gmra.mrb[0].mxu0 %v5765
        %v5978 = vpop.f32.mrb[0].mxu0
        %v5979 = vadd.f32 0.0, %v5978
        %v5980 = vpop.f32.mrb[0].mxu0
        %v5981 = vpop.f32.mrb[0].mxu0
        %v5982 = vadd.f32 0.0, %v5981
        %v5983 = vpop.f32.mrb[0].mxu0
        %5984 = vmatprep.mubr.bf16.mxu0 0
        %5985 = vmatmul.mubr.bf16.gmra.mrb[0].mxu0 %v5766
        %v5986 = vpop.f32.mrb[0].mxu0
        %v5987 = vadd.f32 0.0, %v5986
        %v5988 = vpop.f32.mrb[0].mxu0
        %v5989 = vpop.f32.mrb[0].mxu0
        %v5990 = vadd.f32 0.0, %v5989
        %v5991 = vpop.f32.mrb[0].mxu0
        %5992 = vdwg.mxu0
        %v5993 = vadd.f32 %v5687, %v5867
        %v5994 = vadd.f32 %v5688, %v5870
        %v5995 = vadd.f32 %v5689, %v5875
        %v5996 = vadd.f32 %v5690, %v5878
        %v5997 = vadd.f32 %v5691, %v5883
        %v5998 = vadd.f32 %v5692, %v5886
        %v5999 = vadd.f32 %v5693, %v5891
        %v6000 = vadd.f32 %v5694, %v5894
        %v6001 = vadd.f32 %v5695, %v5899
        %v6002 = vadd.f32 %v5696, %v5902
        %v6003 = vadd.f32 %v5697, %v5907
        %v6004 = vadd.f32 %v5698, %v5910
        %v6005 = vadd.f32 %v5699, %v5915
        %v6006 = vadd.f32 %v5700, %v5918
        %v6007 = vadd.f32 %v5701, %v5923
        %v6008 = vadd.f32 %v5702, %v5926
        %v6009 = vadd.f32 %v5703, %v5931
        %v6010 = vadd.f32 %v5704, %v5934
        %v6011 = vadd.f32 %v5705, %v5939
        %v6012 = vadd.f32 %v5706, %v5942
        %v6013 = vadd.f32 %v5707, %v5947
        %v6014 = vadd.f32 %v5708, %v5950
        %v6015 = vadd.f32 %v5709, %v5955
        %v6016 = vadd.f32 %v5710, %v5958
        %v6017 = vadd.f32 %v5711, %v5963
        %v6018 = vadd.f32 %v5712, %v5966
        %v6019 = vadd.f32 %v5713, %v5971
        %v6020 = vadd.f32 %v5714, %v5974
        %v6021 = vadd.f32 %v5715, %v5979
        %v6022 = vadd.f32 %v5716, %v5982
        %v6023 = vadd.f32 %v5717, %v5987
        %v6024 = vadd.f32 %v5718, %v5990
        %v6025 = vld [vmem:[%s4456 + $0x2] sm:$0xff]
        %v6026 = vld [vmem:[%s4456 + $0xa] sm:$0xff]
        %v6027 = vld [vmem:[%s4456 + $0x1a] sm:$0xff]
        %v6028 = vld [vmem:[%s4456 + $0x22] sm:$0xff]
        %v6029 = vld [vmem:[%s4456 + $0x32] sm:$0xff]
        %v6030 = vld [vmem:[%s4456 + $0x3a] sm:$0xff]
        %v6031 = vld [vmem:[%s4456 + $0x4a] sm:$0xff]
        %v6032 = vld [vmem:[%s4456 + $0x52] sm:$0xff]
        %v6033 = vld [vmem:[%s4456 + $0x62] sm:$0xff]
        %v6034 = vld [vmem:[%s4456 + $0x6a] sm:$0xff]
        %v6035 = vld [vmem:[%s4456 + $0x7a] sm:$0xff]
        %v6036 = vld [vmem:[%s4456 + $0x82] sm:$0xff]
        %v6037 = vld [vmem:[%s4456 + $0x92] sm:$0xff]
        %v6038 = vld [vmem:[%s4456 + $0x9a] sm:$0xff]
        %v6039 = vld [vmem:[%s4456 + $0xaa] sm:$0xff]
        %v6040 = vld [vmem:[%s4456 + $0xb2] sm:$0xff]
        %v6041 = vld [vmem:[%s4456 + $0xc2] sm:$0xff]
        %v6042 = vld [vmem:[%s4456 + $0xca] sm:$0xff]
        %v6043 = vld [vmem:[%s4456 + $0xda] sm:$0xff]
        %v6044 = vld [vmem:[%s4456 + $0xe2] sm:$0xff]
        %v6045 = vld [vmem:[%s4456 + $0xf2] sm:$0xff]
        %v6046 = vld [vmem:[%s4456 + $0xfa] sm:$0xff]
        %v6047 = vld [vmem:[%s4456 + $0x10a] sm:$0xff]
        %v6048 = vld [vmem:[%s4456 + $0x112] sm:$0xff]
        %v6049 = vld [vmem:[%s4456 + $0x122] sm:$0xff]
        %v6050 = vld [vmem:[%s4456 + $0x12a] sm:$0xff]
        %v6051 = vld [vmem:[%s4456 + $0x13a] sm:$0xff]
        %v6052 = vld [vmem:[%s4456 + $0x142] sm:$0xff]
        %v6053 = vld [vmem:[%s4456 + $0x152] sm:$0xff]
        %v6054 = vld [vmem:[%s4456 + $0x15a] sm:$0xff]
        %v6055 = vld [vmem:[%s4456 + $0x16a] sm:$0xff]
        %v6056 = vld [vmem:[%s4456 + $0x172] sm:$0xff]
        %v6057 = vpack.c.bf16 %v6026, %v6025
        %v6058 = vpack.c.bf16 %v6028, %v6027
        %v6059 = vpack.c.bf16 %v6030, %v6029
        %v6060 = vpack.c.bf16 %v6032, %v6031
        %v6061 = vpack.c.bf16 %v6034, %v6033
        %v6062 = vpack.c.bf16 %v6036, %v6035
        %v6063 = vpack.c.bf16 %v6038, %v6037
        %v6064 = vpack.c.bf16 %v6040, %v6039
        %v6065 = vpack.c.bf16 %v6042, %v6041
        %v6066 = vpack.c.bf16 %v6044, %v6043
        %v6067 = vpack.c.bf16 %v6046, %v6045
        %v6068 = vpack.c.bf16 %v6048, %v6047
        %v6069 = vpack.c.bf16 %v6050, %v6049
        %v6070 = vpack.c.bf16 %v6052, %v6051
        %v6071 = vpack.c.bf16 %v6054, %v6053
        %v6072 = vpack.c.bf16 %v6056, %v6055
        %s6073 = scalar_lea.vmem %s5, 320
        %v6074 = vld [vmem:[%s6073] sm:$0xf]
        %v6075 = vld [vmem:[%s6073 + $0x4] sm:$0xf]
        %v6076 = vld [vmem:[%s6073 + $0x8] sm:$0xf]
        %v6077 = vld [vmem:[%s6073 + $0xc] sm:$0xf]
        %v6078 = vld [vmem:[%s6073 + $0x10] sm:$0xf]
        %v6079 = vld [vmem:[%s6073 + $0x14] sm:$0xf]
        %v6080 = vld [vmem:[%s6073 + $0x18] sm:$0xf]
        %v6081 = vld [vmem:[%s6073 + $0x1c] sm:$0xf]
        %v6082 = vld [vmem:[%s6073 + $0x20] sm:$0xf]
        %v6083 = vld [vmem:[%s6073 + $0x24] sm:$0xf]
        %v6084 = vld [vmem:[%s6073 + $0x28] sm:$0xf]
        %v6085 = vld [vmem:[%s6073 + $0x2c] sm:$0xf]
        %v6086 = vld [vmem:[%s6073 + $0x30] sm:$0xf]
        %v6087 = vld [vmem:[%s6073 + $0x34] sm:$0xf]
        %v6088 = vld [vmem:[%s6073 + $0x38] sm:$0xf]
        %v6089 = vld [vmem:[%s6073 + $0x3c] sm:$0xf]
        %v6106 = vunpack.c.l.b16 %v6074
        %v6107 = vunpack.c.l.b16 %v6075
        %v6108 = vunpack.c.l.b16 %v6076
        %v6109 = vunpack.c.l.b16 %v6077
        %v6110 = vunpack.c.l.b16 %v6078
        %v6111 = vunpack.c.l.b16 %v6079
        %v6112 = vunpack.c.l.b16 %v6080
        %v6113 = vunpack.c.l.b16 %v6081
        %v6114 = vunpack.c.l.b16 %v6082
        %v6115 = vunpack.c.l.b16 %v6083
        %v6116 = vunpack.c.l.b16 %v6084
        %v6117 = vunpack.c.l.b16 %v6085
        %v6118 = vunpack.c.l.b16 %v6086
        %v6119 = vunpack.c.l.b16 %v6087
        %v6120 = vunpack.c.l.b16 %v6088
        %v6121 = vunpack.c.l.b16 %v6089
        %v6122 = vpack.c.b16 %v6107, %v6106
        %v6123 = vpack.c.b16 %v6109, %v6108
        %v6124 = vpack.c.b16 %v6111, %v6110
        %v6125 = vpack.c.b16 %v6113, %v6112
        %v6126 = vpack.c.b16 %v6115, %v6114
        %v6127 = vpack.c.b16 %v6117, %v6116
        %v6128 = vpack.c.b16 %v6119, %v6118
        %v6129 = vpack.c.b16 %v6121, %v6120
        %6138 = vmatprep.subr.bf16.mxu0 0
        %6139 = vmatpush1.bf16.msra.mxu0 %v6122
        %6140 = vmatprep.subr.bf16.mxu0 0
        %6141 = vmatpush1.bf16.msra.mxu0 %v6123
        %6142 = vmatprep.subr.bf16.mxu0 0
        %6143 = vmatpush1.bf16.msra.mxu0 %v6124
        %6144 = vmatprep.subr.bf16.mxu0 0
        %6145 = vmatpush1.bf16.msra.mxu0 %v6125
        %6146 = vmatprep.subr.bf16.mxu0 0
        %6147 = vmatpush1.bf16.msra.mxu0 %v6126
        %6148 = vmatprep.subr.bf16.mxu0 0
        %6149 = vmatpush1.bf16.msra.mxu0 %v6127
        %6150 = vmatprep.subr.bf16.mxu0 0
        %6151 = vmatpush1.bf16.msra.mxu0 %v6128
        %6152 = vmatprep.subr.bf16.mxu0 0
        %6153 = vmatpush1.bf16.msra.mxu0 %v6129
        %6154 = vmatprep.subr.bf16.mxu0 0
        %6155 = vmatpush1.bf16.msra.mxu0 0
        %6156 = vmatprep.subr.bf16.mxu0 0
        %6157 = vmatpush1.bf16.msra.mxu0 0
        %6158 = vmatprep.subr.bf16.mxu0 0
        %6159 = vmatpush1.bf16.msra.mxu0 0
        %6160 = vmatprep.subr.bf16.mxu0 0
        %6161 = vmatpush1.bf16.msra.mxu0 0
        %6162 = vmatprep.subr.bf16.mxu0 0
        %6163 = vmatpush1.bf16.msra.mxu0 0
        %6164 = vmatprep.subr.bf16.mxu0 0
        %6165 = vmatpush1.bf16.msra.mxu0 0
        %6166 = vmatprep.subr.bf16.mxu0 0
        %6167 = vmatpush1.bf16.msra.mxu0 0
        %6168 = vmatprep.subr.bf16.mxu0 0
        %6169 = vmatpush1.bf16.msra.mxu0 0
        %6170 = vmatprep.mubr.bf16.mxu0 0
        %6171 = vmatmul.mubr.bf16.gmra.mrb[0].mxu0 %v6057
        %v6172 = vpop.f32.mrb[0].mxu0
        %v6173 = vadd.f32 0.0, %v6172
        %v6174 = vpop.f32.mrb[0].mxu0
        %v6175 = vpop.f32.mrb[0].mxu0
        %v6176 = vadd.f32 0.0, %v6175
        %v6177 = vpop.f32.mrb[0].mxu0
        %6178 = vmatprep.mubr.bf16.mxu0 0
        %6179 = vmatmul.mubr.bf16.gmra.mrb[0].mxu0 %v6058
        %v6180 = vpop.f32.mrb[0].mxu0
        %v6181 = vadd.f32 0.0, %v6180
        %v6182 = vpop.f32.mrb[0].mxu0
        %v6183 = vpop.f32.mrb[0].mxu0
        %v6184 = vadd.f32 0.0, %v6183
        %v6185 = vpop.f32.mrb[0].mxu0
        %6186 = vmatprep.mubr.bf16.mxu0 0
        %6187 = vmatmul.mubr.bf16.gmra.mrb[0].mxu0 %v6059
        %v6188 = vpop.f32.mrb[0].mxu0
        %v6189 = vadd.f32 0.0, %v6188
        %v6190 = vpop.f32.mrb[0].mxu0
        %v6191 = vpop.f32.mrb[0].mxu0
        %v6192 = vadd.f32 0.0, %v6191
        %v6193 = vpop.f32.mrb[0].mxu0
        %6194 = vmatprep.mubr.bf16.mxu0 0
        %6195 = vmatmul.mubr.bf16.gmra.mrb[0].mxu0 %v6060
        %v6196 = vpop.f32.mrb[0].mxu0
        %v6197 = vadd.f32 0.0, %v6196
        %v6198 = vpop.f32.mrb[0].mxu0
        %v6199 = vpop.f32.mrb[0].mxu0
        %v6200 = vadd.f32 0.0, %v6199
        %v6201 = vpop.f32.mrb[0].mxu0
        %6202 = vmatprep.mubr.bf16.mxu0 0
        %6203 = vmatmul.mubr.bf16.gmra.mrb[0].mxu0 %v6061
        %v6204 = vpop.f32.mrb[0].mxu0
        %v6205 = vadd.f32 0.0, %v6204
        %v6206 = vpop.f32.mrb[0].mxu0
        %v6207 = vpop.f32.mrb[0].mxu0
        %v6208 = vadd.f32 0.0, %v6207
        %v6209 = vpop.f32.mrb[0].mxu0
        %6210 = vmatprep.mubr.bf16.mxu0 0
        %6211 = vmatmul.mubr.bf16.gmra.mrb[0].mxu0 %v6062
        %v6212 = vpop.f32.mrb[0].mxu0
        %v6213 = vadd.f32 0.0, %v6212
        %v6214 = vpop.f32.mrb[0].mxu0
        %v6215 = vpop.f32.mrb[0].mxu0
        %v6216 = vadd.f32 0.0, %v6215
        %v6217 = vpop.f32.mrb[0].mxu0
        %6218 = vmatprep.mubr.bf16.mxu0 0
        %6219 = vmatmul.mubr.bf16.gmra.mrb[0].mxu0 %v6063
        %v6220 = vpop.f32.mrb[0].mxu0
        %v6221 = vadd.f32 0.0, %v6220
        %v6222 = vpop.f32.mrb[0].mxu0
        %v6223 = vpop.f32.mrb[0].mxu0
        %v6224 = vadd.f32 0.0, %v6223
        %v6225 = vpop.f32.mrb[0].mxu0
        %6226 = vmatprep.mubr.bf16.mxu0 0
        %6227 = vmatmul.mubr.bf16.gmra.mrb[0].mxu0 %v6064
        %v6228 = vpop.f32.mrb[0].mxu0
        %v6229 = vadd.f32 0.0, %v6228
        %v6230 = vpop.f32.mrb[0].mxu0
        %v6231 = vpop.f32.mrb[0].mxu0
        %v6232 = vadd.f32 0.0, %v6231
        %v6233 = vpop.f32.mrb[0].mxu0
        %6234 = vmatprep.mubr.bf16.mxu0 0
        %6235 = vmatmul.mubr.bf16.gmra.mrb[0].mxu0 %v6065
        %v6236 = vpop.f32.mrb[0].mxu0
        %v6237 = vadd.f32 0.0, %v6236
        %v6238 = vpop.f32.mrb[0].mxu0
        %v6239 = vpop.f32.mrb[0].mxu0
        %v6240 = vadd.f32 0.0, %v6239
        %v6241 = vpop.f32.mrb[0].mxu0
        %6242 = vmatprep.mubr.bf16.mxu0 0
        %6243 = vmatmul.mubr.bf16.gmra.mrb[0].mxu0 %v6066
        %v6244 = vpop.f32.mrb[0].mxu0
        %v6245 = vadd.f32 0.0, %v6244
        %v6246 = vpop.f32.mrb[0].mxu0
        %v6247 = vpop.f32.mrb[0].mxu0
        %v6248 = vadd.f32 0.0, %v6247
        %v6249 = vpop.f32.mrb[0].mxu0
        %6250 = vmatprep.mubr.bf16.mxu0 0
        %6251 = vmatmul.mubr.bf16.gmra.mrb[0].mxu0 %v6067
        %v6252 = vpop.f32.mrb[0].mxu0
        %v6253 = vadd.f32 0.0, %v6252
        %v6254 = vpop.f32.mrb[0].mxu0
        %v6255 = vpop.f32.mrb[0].mxu0
        %v6256 = vadd.f32 0.0, %v6255
        %v6257 = vpop.f32.mrb[0].mxu0
        %6258 = vmatprep.mubr.bf16.mxu0 0
        %6259 = vmatmul.mubr.bf16.gmra.mrb[0].mxu0 %v6068
        %v6260 = vpop.f32.mrb[0].mxu0
        %v6261 = vadd.f32 0.0, %v6260
        %v6262 = vpop.f32.mrb[0].mxu0
        %v6263 = vpop.f32.mrb[0].mxu0
        %v6264 = vadd.f32 0.0, %v6263
        %v6265 = vpop.f32.mrb[0].mxu0
        %6266 = vmatprep.mubr.bf16.mxu0 0
        %6267 = vmatmul.mubr.bf16.gmra.mrb[0].mxu0 %v6069
        %v6268 = vpop.f32.mrb[0].mxu0
        %v6269 = vadd.f32 0.0, %v6268
        %v6270 = vpop.f32.mrb[0].mxu0
        %v6271 = vpop.f32.mrb[0].mxu0
        %v6272 = vadd.f32 0.0, %v6271
        %v6273 = vpop.f32.mrb[0].mxu0
        %6274 = vmatprep.mubr.bf16.mxu0 0
        %6275 = vmatmul.mubr.bf16.gmra.mrb[0].mxu0 %v6070
        %v6276 = vpop.f32.mrb[0].mxu0
        %v6277 = vadd.f32 0.0, %v6276
        %v6278 = vpop.f32.mrb[0].mxu0
        %v6279 = vpop.f32.mrb[0].mxu0
        %v6280 = vadd.f32 0.0, %v6279
        %v6281 = vpop.f32.mrb[0].mxu0
        %6282 = vmatprep.mubr.bf16.mxu0 0
        %6283 = vmatmul.mubr.bf16.gmra.mrb[0].mxu0 %v6071
        %v6284 = vpop.f32.mrb[0].mxu0
        %v6285 = vadd.f32 0.0, %v6284
        %v6286 = vpop.f32.mrb[0].mxu0
        %v6287 = vpop.f32.mrb[0].mxu0
        %v6288 = vadd.f32 0.0, %v6287
        %v6289 = vpop.f32.mrb[0].mxu0
        %6290 = vmatprep.mubr.bf16.mxu0 0
        %6291 = vmatmul.mubr.bf16.gmra.mrb[0].mxu0 %v6072
        %v6292 = vpop.f32.mrb[0].mxu0
        %v6293 = vadd.f32 0.0, %v6292
        %v6294 = vpop.f32.mrb[0].mxu0
        %v6295 = vpop.f32.mrb[0].mxu0
        %v6296 = vadd.f32 0.0, %v6295
        %v6297 = vpop.f32.mrb[0].mxu0
        %6298 = vdwg.mxu0
        %v6299 = vadd.f32 %v5993, %v6173
        %v6300 = vadd.f32 %v5994, %v6176
        %v6301 = vadd.f32 %v5995, %v6181
        %v6302 = vadd.f32 %v5996, %v6184
        %v6303 = vadd.f32 %v5997, %v6189
        %v6304 = vadd.f32 %v5998, %v6192
        %v6305 = vadd.f32 %v5999, %v6197
        %v6306 = vadd.f32 %v6000, %v6200
        %v6307 = vadd.f32 %v6001, %v6205
        %v6308 = vadd.f32 %v6002, %v6208
        %v6309 = vadd.f32 %v6003, %v6213
        %v6310 = vadd.f32 %v6004, %v6216
        %v6311 = vadd.f32 %v6005, %v6221
        %v6312 = vadd.f32 %v6006, %v6224
        %v6313 = vadd.f32 %v6007, %v6229
        %v6314 = vadd.f32 %v6008, %v6232
        %v6315 = vadd.f32 %v6009, %v6237
        %v6316 = vadd.f32 %v6010, %v6240
        %v6317 = vadd.f32 %v6011, %v6245
        %v6318 = vadd.f32 %v6012, %v6248
        %v6319 = vadd.f32 %v6013, %v6253
        %v6320 = vadd.f32 %v6014, %v6256
        %v6321 = vadd.f32 %v6015, %v6261
        %v6322 = vadd.f32 %v6016, %v6264
        %v6323 = vadd.f32 %v6017, %v6269
        %v6324 = vadd.f32 %v6018, %v6272
        %v6325 = vadd.f32 %v6019, %v6277
        %v6326 = vadd.f32 %v6020, %v6280
        %v6327 = vadd.f32 %v6021, %v6285
        %v6328 = vadd.f32 %v6022, %v6288
        %v6329 = vadd.f32 %v6023, %v6293
        %v6330 = vadd.f32 %v6024, %v6296
        %s6331 = scalar_lea.vmem [#allocation3], 48
        %v6332 = vld [vmem:[%s6331] sm:$0xff]
        %v6333 = vld [vmem:[%s6331 + $0x8] sm:$0xff]
        %v6334 = vld [vmem:[%s6331 + $0x18] sm:$0xff]
        %v6335 = vld [vmem:[%s6331 + $0x20] sm:$0xff]
        %v6336 = vld [vmem:[%s6331 + $0x30] sm:$0xff]
        %v6337 = vld [vmem:[%s6331 + $0x38] sm:$0xff]
        %v6338 = vld [vmem:[%s6331 + $0x48] sm:$0xff]
        %v6339 = vld [vmem:[%s6331 + $0x50] sm:$0xff]
        %v6340 = vld [vmem:[%s6331 + $0x60] sm:$0xff]
        %v6341 = vld [vmem:[%s6331 + $0x68] sm:$0xff]
        %v6342 = vld [vmem:[%s6331 + $0x78] sm:$0xff]
        %v6343 = vld [vmem:[%s6331 + $0x80] sm:$0xff]
        %v6344 = vld [vmem:[%s6331 + $0x90] sm:$0xff]
        %v6345 = vld [vmem:[%s6331 + $0x98] sm:$0xff]
        %v6346 = vld [vmem:[%s6331 + $0xa8] sm:$0xff]
        %v6347 = vld [vmem:[%s6331 + $0xb0] sm:$0xff]
        %v6348 = vld [vmem:[%s6331 + $0xc0] sm:$0xff]
        %v6349 = vld [vmem:[%s6331 + $0xc8] sm:$0xff]
        %v6350 = vld [vmem:[%s6331 + $0xd8] sm:$0xff]
        %v6351 = vld [vmem:[%s6331 + $0xe0] sm:$0xff]
        %v6352 = vld [vmem:[%s6331 + $0xf0] sm:$0xff]
        %v6353 = vld [vmem:[%s6331 + $0xf8] sm:$0xff]
        %v6354 = vld [vmem:[%s6331 + $0x108] sm:$0xff]
        %v6355 = vld [vmem:[%s6331 + $0x110] sm:$0xff]
        %v6356 = vld [vmem:[%s6331 + $0x120] sm:$0xff]
        %v6357 = vld [vmem:[%s6331 + $0x128] sm:$0xff]
        %v6358 = vld [vmem:[%s6331 + $0x138] sm:$0xff]
        %v6359 = vld [vmem:[%s6331 + $0x140] sm:$0xff]
        %v6360 = vld [vmem:[%s6331 + $0x150] sm:$0xff]
        %v6361 = vld [vmem:[%s6331 + $0x158] sm:$0xff]
        %v6362 = vld [vmem:[%s6331 + $0x168] sm:$0xff]
        %v6363 = vld [vmem:[%s6331 + $0x170] sm:$0xff]
        %v6364 = vpack.c.bf16 %v6333, %v6332
        %v6365 = vpack.c.bf16 %v6335, %v6334
        %v6366 = vpack.c.bf16 %v6337, %v6336
        %v6367 = vpack.c.bf16 %v6339, %v6338
        %v6368 = vpack.c.bf16 %v6341, %v6340
        %v6369 = vpack.c.bf16 %v6343, %v6342
        %v6370 = vpack.c.bf16 %v6345, %v6344
        %v6371 = vpack.c.bf16 %v6347, %v6346
        %v6372 = vpack.c.bf16 %v6349, %v6348
        %v6373 = vpack.c.bf16 %v6351, %v6350
        %v6374 = vpack.c.bf16 %v6353, %v6352
        %v6375 = vpack.c.bf16 %v6355, %v6354
        %v6376 = vpack.c.bf16 %v6357, %v6356
        %v6377 = vpack.c.bf16 %v6359, %v6358
        %v6378 = vpack.c.bf16 %v6361, %v6360
        %v6379 = vpack.c.bf16 %v6363, %v6362
        %s6380 = scalar_lea.vmem %s5, 384
        %v6381 = vld [vmem:[%s6380] sm:$0xf]
        %v6382 = vld [vmem:[%s6380 + $0x4] sm:$0xf]
        %v6383 = vld [vmem:[%s6380 + $0x8] sm:$0xf]
        %v6384 = vld [vmem:[%s6380 + $0xc] sm:$0xf]
        %v6385 = vld [vmem:[%s6380 + $0x10] sm:$0xf]
        %v6386 = vld [vmem:[%s6380 + $0x14] sm:$0xf]
        %v6387 = vld [vmem:[%s6380 + $0x18] sm:$0xf]
        %v6388 = vld [vmem:[%s6380 + $0x1c] sm:$0xf]
        %v6389 = vld [vmem:[%s6380 + $0x20] sm:$0xf]
        %v6390 = vld [vmem:[%s6380 + $0x24] sm:$0xf]
        %v6391 = vld [vmem:[%s6380 + $0x28] sm:$0xf]
        %v6392 = vld [vmem:[%s6380 + $0x2c] sm:$0xf]
        %v6393 = vld [vmem:[%s6380 + $0x30] sm:$0xf]
        %v6394 = vld [vmem:[%s6380 + $0x34] sm:$0xf]
        %v6395 = vld [vmem:[%s6380 + $0x38] sm:$0xf]
        %v6396 = vld [vmem:[%s6380 + $0x3c] sm:$0xf]
        %v6413 = vunpack.c.l.b16 %v6381
        %v6414 = vunpack.c.l.b16 %v6382
        %v6415 = vunpack.c.l.b16 %v6383
        %v6416 = vunpack.c.l.b16 %v6384
        %v6417 = vunpack.c.l.b16 %v6385
        %v6418 = vunpack.c.l.b16 %v6386
        %v6419 = vunpack.c.l.b16 %v6387
        %v6420 = vunpack.c.l.b16 %v6388
        %v6421 = vunpack.c.l.b16 %v6389
        %v6422 = vunpack.c.l.b16 %v6390
        %v6423 = vunpack.c.l.b16 %v6391
        %v6424 = vunpack.c.l.b16 %v6392
        %v6425 = vunpack.c.l.b16 %v6393
        %v6426 = vunpack.c.l.b16 %v6394
        %v6427 = vunpack.c.l.b16 %v6395
        %v6428 = vunpack.c.l.b16 %v6396
        %v6429 = vpack.c.b16 %v6414, %v6413
        %v6430 = vpack.c.b16 %v6416, %v6415
        %v6431 = vpack.c.b16 %v6418, %v6417
        %v6432 = vpack.c.b16 %v6420, %v6419
        %v6433 = vpack.c.b16 %v6422, %v6421
        %v6434 = vpack.c.b16 %v6424, %v6423
        %v6435 = vpack.c.b16 %v6426, %v6425
        %v6436 = vpack.c.b16 %v6428, %v6427
        %6445 = vmatprep.subr.bf16.mxu0 0
        %6446 = vmatpush1.bf16.msra.mxu0 %v6429
        %6447 = vmatprep.subr.bf16.mxu0 0
        %6448 = vmatpush1.bf16.msra.mxu0 %v6430
        %6449 = vmatprep.subr.bf16.mxu0 0
        %6450 = vmatpush1.bf16.msra.mxu0 %v6431
        %6451 = vmatprep.subr.bf16.mxu0 0
        %6452 = vmatpush1.bf16.msra.mxu0 %v6432
        %6453 = vmatprep.subr.bf16.mxu0 0
        %6454 = vmatpush1.bf16.msra.mxu0 %v6433
        %6455 = vmatprep.subr.bf16.mxu0 0
        %6456 = vmatpush1.bf16.msra.mxu0 %v6434
        %6457 = vmatprep.subr.bf16.mxu0 0
        %6458 = vmatpush1.bf16.msra.mxu0 %v6435
        %6459 = vmatprep.subr.bf16.mxu0 0
        %6460 = vmatpush1.bf16.msra.mxu0 %v6436
        %6461 = vmatprep.subr.bf16.mxu0 0
        %6462 = vmatpush1.bf16.msra.mxu0 0
        %6463 = vmatprep.subr.bf16.mxu0 0
        %6464 = vmatpush1.bf16.msra.mxu0 0
        %6465 = vmatprep.subr.bf16.mxu0 0
        %6466 = vmatpush1.bf16.msra.mxu0 0
        %6467 = vmatprep.subr.bf16.mxu0 0
        %6468 = vmatpush1.bf16.msra.mxu0 0
        %6469 = vmatprep.subr.bf16.mxu0 0
        %6470 = vmatpush1.bf16.msra.mxu0 0
        %6471 = vmatprep.subr.bf16.mxu0 0
        %6472 = vmatpush1.bf16.msra.mxu0 0
        %6473 = vmatprep.subr.bf16.mxu0 0
        %6474 = vmatpush1.bf16.msra.mxu0 0
        %6475 = vmatprep.subr.bf16.mxu0 0
        %6476 = vmatpush1.bf16.msra.mxu0 0
        %6477 = vmatprep.mubr.bf16.mxu0 0
        %6478 = vmatmul.mubr.bf16.gmra.mrb[0].mxu0 %v6364
        %v6479 = vpop.f32.mrb[0].mxu0
        %v6480 = vadd.f32 0.0, %v6479
        %v6481 = vpop.f32.mrb[0].mxu0
        %v6482 = vpop.f32.mrb[0].mxu0
        %v6483 = vadd.f32 0.0, %v6482
        %v6484 = vpop.f32.mrb[0].mxu0
        %6485 = vmatprep.mubr.bf16.mxu0 0
        %6486 = vmatmul.mubr.bf16.gmra.mrb[0].mxu0 %v6365
        %v6487 = vpop.f32.mrb[0].mxu0
        %v6488 = vadd.f32 0.0, %v6487
        %v6489 = vpop.f32.mrb[0].mxu0
        %v6490 = vpop.f32.mrb[0].mxu0
        %v6491 = vadd.f32 0.0, %v6490
        %v6492 = vpop.f32.mrb[0].mxu0
        %6493 = vmatprep.mubr.bf16.mxu0 0
        %6494 = vmatmul.mubr.bf16.gmra.mrb[0].mxu0 %v6366
        %v6495 = vpop.f32.mrb[0].mxu0
        %v6496 = vadd.f32 0.0, %v6495
        %v6497 = vpop.f32.mrb[0].mxu0
        %v6498 = vpop.f32.mrb[0].mxu0
        %v6499 = vadd.f32 0.0, %v6498
        %v6500 = vpop.f32.mrb[0].mxu0
        %6501 = vmatprep.mubr.bf16.mxu0 0
        %6502 = vmatmul.mubr.bf16.gmra.mrb[0].mxu0 %v6367
        %v6503 = vpop.f32.mrb[0].mxu0
        %v6504 = vadd.f32 0.0, %v6503
        %v6505 = vpop.f32.mrb[0].mxu0
        %v6506 = vpop.f32.mrb[0].mxu0
        %v6507 = vadd.f32 0.0, %v6506
        %v6508 = vpop.f32.mrb[0].mxu0
        %6509 = vmatprep.mubr.bf16.mxu0 0
        %6510 = vmatmul.mubr.bf16.gmra.mrb[0].mxu0 %v6368
        %v6511 = vpop.f32.mrb[0].mxu0
        %v6512 = vadd.f32 0.0, %v6511
        %v6513 = vpop.f32.mrb[0].mxu0
        %v6514 = vpop.f32.mrb[0].mxu0
        %v6515 = vadd.f32 0.0, %v6514
        %v6516 = vpop.f32.mrb[0].mxu0
        %6517 = vmatprep.mubr.bf16.mxu0 0
        %6518 = vmatmul.mubr.bf16.gmra.mrb[0].mxu0 %v6369
        %v6519 = vpop.f32.mrb[0].mxu0
        %v6520 = vadd.f32 0.0, %v6519
        %v6521 = vpop.f32.mrb[0].mxu0
        %v6522 = vpop.f32.mrb[0].mxu0
        %v6523 = vadd.f32 0.0, %v6522
        %v6524 = vpop.f32.mrb[0].mxu0
        %6525 = vmatprep.mubr.bf16.mxu0 0
        %6526 = vmatmul.mubr.bf16.gmra.mrb[0].mxu0 %v6370
        %v6527 = vpop.f32.mrb[0].mxu0
        %v6528 = vadd.f32 0.0, %v6527
        %v6529 = vpop.f32.mrb[0].mxu0
        %v6530 = vpop.f32.mrb[0].mxu0
        %v6531 = vadd.f32 0.0, %v6530
        %v6532 = vpop.f32.mrb[0].mxu0
        %6533 = vmatprep.mubr.bf16.mxu0 0
        %6534 = vmatmul.mubr.bf16.gmra.mrb[0].mxu0 %v6371
        %v6535 = vpop.f32.mrb[0].mxu0
        %v6536 = vadd.f32 0.0, %v6535
        %v6537 = vpop.f32.mrb[0].mxu0
        %v6538 = vpop.f32.mrb[0].mxu0
        %v6539 = vadd.f32 0.0, %v6538
        %v6540 = vpop.f32.mrb[0].mxu0
        %6541 = vmatprep.mubr.bf16.mxu0 0
        %6542 = vmatmul.mubr.bf16.gmra.mrb[0].mxu0 %v6372
        %v6543 = vpop.f32.mrb[0].mxu0
        %v6544 = vadd.f32 0.0, %v6543
        %v6545 = vpop.f32.mrb[0].mxu0
        %v6546 = vpop.f32.mrb[0].mxu0
        %v6547 = vadd.f32 0.0, %v6546
        %v6548 = vpop.f32.mrb[0].mxu0
        %6549 = vmatprep.mubr.bf16.mxu0 0
        %6550 = vmatmul.mubr.bf16.gmra.mrb[0].mxu0 %v6373
        %v6551 = vpop.f32.mrb[0].mxu0
        %v6552 = vadd.f32 0.0, %v6551
        %v6553 = vpop.f32.mrb[0].mxu0
        %v6554 = vpop.f32.mrb[0].mxu0
        %v6555 = vadd.f32 0.0, %v6554
        %v6556 = vpop.f32.mrb[0].mxu0
        %6557 = vmatprep.mubr.bf16.mxu0 0
        %6558 = vmatmul.mubr.bf16.gmra.mrb[0].mxu0 %v6374
        %v6559 = vpop.f32.mrb[0].mxu0
        %v6560 = vadd.f32 0.0, %v6559
        %v6561 = vpop.f32.mrb[0].mxu0
        %v6562 = vpop.f32.mrb[0].mxu0
        %v6563 = vadd.f32 0.0, %v6562
        %v6564 = vpop.f32.mrb[0].mxu0
        %6565 = vmatprep.mubr.bf16.mxu0 0
        %6566 = vmatmul.mubr.bf16.gmra.mrb[0].mxu0 %v6375
        %v6567 = vpop.f32.mrb[0].mxu0
        %v6568 = vadd.f32 0.0, %v6567
        %v6569 = vpop.f32.mrb[0].mxu0
        %v6570 = vpop.f32.mrb[0].mxu0
        %v6571 = vadd.f32 0.0, %v6570
        %v6572 = vpop.f32.mrb[0].mxu0
        %6573 = vmatprep.mubr.bf16.mxu0 0
        %6574 = vmatmul.mubr.bf16.gmra.mrb[0].mxu0 %v6376
        %v6575 = vpop.f32.mrb[0].mxu0
        %v6576 = vadd.f32 0.0, %v6575
        %v6577 = vpop.f32.mrb[0].mxu0
        %v6578 = vpop.f32.mrb[0].mxu0
        %v6579 = vadd.f32 0.0, %v6578
        %v6580 = vpop.f32.mrb[0].mxu0
        %6581 = vmatprep.mubr.bf16.mxu0 0
        %6582 = vmatmul.mubr.bf16.gmra.mrb[0].mxu0 %v6377
        %v6583 = vpop.f32.mrb[0].mxu0
        %v6584 = vadd.f32 0.0, %v6583
        %v6585 = vpop.f32.mrb[0].mxu0
        %v6586 = vpop.f32.mrb[0].mxu0
        %v6587 = vadd.f32 0.0, %v6586
        %v6588 = vpop.f32.mrb[0].mxu0
        %6589 = vmatprep.mubr.bf16.mxu0 0
        %6590 = vmatmul.mubr.bf16.gmra.mrb[0].mxu0 %v6378
        %v6591 = vpop.f32.mrb[0].mxu0
        %v6592 = vadd.f32 0.0, %v6591
        %v6593 = vpop.f32.mrb[0].mxu0
        %v6594 = vpop.f32.mrb[0].mxu0
        %v6595 = vadd.f32 0.0, %v6594
        %v6596 = vpop.f32.mrb[0].mxu0
        %6597 = vmatprep.mubr.bf16.mxu0 0
        %6598 = vmatmul.mubr.bf16.gmra.mrb[0].mxu0 %v6379
        %v6599 = vpop.f32.mrb[0].mxu0
        %v6600 = vadd.f32 0.0, %v6599
        %v6601 = vpop.f32.mrb[0].mxu0
        %v6602 = vpop.f32.mrb[0].mxu0
        %v6603 = vadd.f32 0.0, %v6602
        %v6604 = vpop.f32.mrb[0].mxu0
        %6605 = vdwg.mxu0
        %v6606 = vadd.f32 %v6299, %v6480
        %v6607 = vadd.f32 %v6300, %v6483
        %v6608 = vadd.f32 %v6301, %v6488
        %v6609 = vadd.f32 %v6302, %v6491
        %v6610 = vadd.f32 %v6303, %v6496
        %v6611 = vadd.f32 %v6304, %v6499
        %v6612 = vadd.f32 %v6305, %v6504
        %v6613 = vadd.f32 %v6306, %v6507
        %v6614 = vadd.f32 %v6307, %v6512
        %v6615 = vadd.f32 %v6308, %v6515
        %v6616 = vadd.f32 %v6309, %v6520
        %v6617 = vadd.f32 %v6310, %v6523
        %v6618 = vadd.f32 %v6311, %v6528
        %v6619 = vadd.f32 %v6312, %v6531
        %v6620 = vadd.f32 %v6313, %v6536
        %v6621 = vadd.f32 %v6314, %v6539
        %v6622 = vadd.f32 %v6315, %v6544
        %v6623 = vadd.f32 %v6316, %v6547
        %v6624 = vadd.f32 %v6317, %v6552
        %v6625 = vadd.f32 %v6318, %v6555
        %v6626 = vadd.f32 %v6319, %v6560
        %v6627 = vadd.f32 %v6320, %v6563
        %v6628 = vadd.f32 %v6321, %v6568
        %v6629 = vadd.f32 %v6322, %v6571
        %v6630 = vadd.f32 %v6323, %v6576
        %v6631 = vadd.f32 %v6324, %v6579
        %v6632 = vadd.f32 %v6325, %v6584
        %v6633 = vadd.f32 %v6326, %v6587
        %v6634 = vadd.f32 %v6327, %v6592
        %v6635 = vadd.f32 %v6328, %v6595
        %v6636 = vadd.f32 %v6329, %v6600
        %v6637 = vadd.f32 %v6330, %v6603
        %v6638 = vld [vmem:[%s6331 + $0x1] sm:$0xff]
        %v6639 = vld [vmem:[%s6331 + $0x9] sm:$0xff]
        %v6640 = vld [vmem:[%s6331 + $0x19] sm:$0xff]
        %v6641 = vld [vmem:[%s6331 + $0x21] sm:$0xff]
        %v6642 = vld [vmem:[%s6331 + $0x31] sm:$0xff]
        %v6643 = vld [vmem:[%s6331 + $0x39] sm:$0xff]
        %v6644 = vld [vmem:[%s6331 + $0x49] sm:$0xff]
        %v6645 = vld [vmem:[%s6331 + $0x51] sm:$0xff]
        %v6646 = vld [vmem:[%s6331 + $0x61] sm:$0xff]
        %v6647 = vld [vmem:[%s6331 + $0x69] sm:$0xff]
        %v6648 = vld [vmem:[%s6331 + $0x79] sm:$0xff]
        %v6649 = vld [vmem:[%s6331 + $0x81] sm:$0xff]
        %v6650 = vld [vmem:[%s6331 + $0x91] sm:$0xff]
        %v6651 = vld [vmem:[%s6331 + $0x99] sm:$0xff]
        %v6652 = vld [vmem:[%s6331 + $0xa9] sm:$0xff]
        %v6653 = vld [vmem:[%s6331 + $0xb1] sm:$0xff]
        %v6654 = vld [vmem:[%s6331 + $0xc1] sm:$0xff]
        %v6655 = vld [vmem:[%s6331 + $0xc9] sm:$0xff]
        %v6656 = vld [vmem:[%s6331 + $0xd9] sm:$0xff]
        %v6657 = vld [vmem:[%s6331 + $0xe1] sm:$0xff]
        %v6658 = vld [vmem:[%s6331 + $0xf1] sm:$0xff]
        %v6659 = vld [vmem:[%s6331 + $0xf9] sm:$0xff]
        %v6660 = vld [vmem:[%s6331 + $0x109] sm:$0xff]
        %v6661 = vld [vmem:[%s6331 + $0x111] sm:$0xff]
        %v6662 = vld [vmem:[%s6331 + $0x121] sm:$0xff]
        %v6663 = vld [vmem:[%s6331 + $0x129] sm:$0xff]
        %v6664 = vld [vmem:[%s6331 + $0x139] sm:$0xff]
        %v6665 = vld [vmem:[%s6331 + $0x141] sm:$0xff]
        %v6666 = vld [vmem:[%s6331 + $0x151] sm:$0xff]
        %v6667 = vld [vmem:[%s6331 + $0x159] sm:$0xff]
        %v6668 = vld [vmem:[%s6331 + $0x169] sm:$0xff]
        %v6669 = vld [vmem:[%s6331 + $0x171] sm:$0xff]
        %v6670 = vpack.c.bf16 %v6639, %v6638
        %v6671 = vpack.c.bf16 %v6641, %v6640
        %v6672 = vpack.c.bf16 %v6643, %v6642
        %v6673 = vpack.c.bf16 %v6645, %v6644
        %v6674 = vpack.c.bf16 %v6647, %v6646
        %v6675 = vpack.c.bf16 %v6649, %v6648
        %v6676 = vpack.c.bf16 %v6651, %v6650
        %v6677 = vpack.c.bf16 %v6653, %v6652
        %v6678 = vpack.c.bf16 %v6655, %v6654
        %v6679 = vpack.c.bf16 %v6657, %v6656
        %v6680 = vpack.c.bf16 %v6659, %v6658
        %v6681 = vpack.c.bf16 %v6661, %v6660
        %v6682 = vpack.c.bf16 %v6663, %v6662
        %v6683 = vpack.c.bf16 %v6665, %v6664
        %v6684 = vpack.c.bf16 %v6667, %v6666
        %v6685 = vpack.c.bf16 %v6669, %v6668
        %s6686 = scalar_lea.vmem %s5, 448
        %v6687 = vld [vmem:[%s6686] sm:$0xf]
        %v6688 = vld [vmem:[%s6686 + $0x4] sm:$0xf]
        %v6689 = vld [vmem:[%s6686 + $0x8] sm:$0xf]
        %v6690 = vld [vmem:[%s6686 + $0xc] sm:$0xf]
        %v6691 = vld [vmem:[%s6686 + $0x10] sm:$0xf]
        %v6692 = vld [vmem:[%s6686 + $0x14] sm:$0xf]
        %v6693 = vld [vmem:[%s6686 + $0x18] sm:$0xf]
        %v6694 = vld [vmem:[%s6686 + $0x1c] sm:$0xf]
        %v6695 = vld [vmem:[%s6686 + $0x20] sm:$0xf]
        %v6696 = vld [vmem:[%s6686 + $0x24] sm:$0xf]
        %v6697 = vld [vmem:[%s6686 + $0x28] sm:$0xf]
        %v6698 = vld [vmem:[%s6686 + $0x2c] sm:$0xf]
        %v6699 = vld [vmem:[%s6686 + $0x30] sm:$0xf]
        %v6700 = vld [vmem:[%s6686 + $0x34] sm:$0xf]
        %v6701 = vld [vmem:[%s6686 + $0x38] sm:$0xf]
        %v6702 = vld [vmem:[%s6686 + $0x3c] sm:$0xf]
        %v6719 = vunpack.c.l.b16 %v6687
        %v6720 = vunpack.c.l.b16 %v6688
        %v6721 = vunpack.c.l.b16 %v6689
        %v6722 = vunpack.c.l.b16 %v6690
        %v6723 = vunpack.c.l.b16 %v6691
        %v6724 = vunpack.c.l.b16 %v6692
        %v6725 = vunpack.c.l.b16 %v6693
        %v6726 = vunpack.c.l.b16 %v6694
        %v6727 = vunpack.c.l.b16 %v6695
        %v6728 = vunpack.c.l.b16 %v6696
        %v6729 = vunpack.c.l.b16 %v6697
        %v6730 = vunpack.c.l.b16 %v6698
        %v6731 = vunpack.c.l.b16 %v6699
        %v6732 = vunpack.c.l.b16 %v6700
        %v6733 = vunpack.c.l.b16 %v6701
        %v6734 = vunpack.c.l.b16 %v6702
        %v6735 = vpack.c.b16 %v6720, %v6719
        %v6736 = vpack.c.b16 %v6722, %v6721
        %v6737 = vpack.c.b16 %v6724, %v6723
        %v6738 = vpack.c.b16 %v6726, %v6725
        %v6739 = vpack.c.b16 %v6728, %v6727
        %v6740 = vpack.c.b16 %v6730, %v6729
        %v6741 = vpack.c.b16 %v6732, %v6731
        %v6742 = vpack.c.b16 %v6734, %v6733
        %6751 = vmatprep.subr.bf16.mxu0 0
        %6752 = vmatpush1.bf16.msra.mxu0 %v6735
        %6753 = vmatprep.subr.bf16.mxu0 0
        %6754 = vmatpush1.bf16.msra.mxu0 %v6736
        %6755 = vmatprep.subr.bf16.mxu0 0
        %6756 = vmatpush1.bf16.msra.mxu0 %v6737
        %6757 = vmatprep.subr.bf16.mxu0 0
        %6758 = vmatpush1.bf16.msra.mxu0 %v6738
        %6759 = vmatprep.subr.bf16.mxu0 0
        %6760 = vmatpush1.bf16.msra.mxu0 %v6739
        %6761 = vmatprep.subr.bf16.mxu0 0
        %6762 = vmatpush1.bf16.msra.mxu0 %v6740
        %6763 = vmatprep.subr.bf16.mxu0 0
        %6764 = vmatpush1.bf16.msra.mxu0 %v6741
        %6765 = vmatprep.subr.bf16.mxu0 0
        %6766 = vmatpush1.bf16.msra.mxu0 %v6742
        %6767 = vmatprep.subr.bf16.mxu0 0
        %6768 = vmatpush1.bf16.msra.mxu0 0
        %6769 = vmatprep.subr.bf16.mxu0 0
        %6770 = vmatpush1.bf16.msra.mxu0 0
        %6771 = vmatprep.subr.bf16.mxu0 0
        %6772 = vmatpush1.bf16.msra.mxu0 0
        %6773 = vmatprep.subr.bf16.mxu0 0
        %6774 = vmatpush1.bf16.msra.mxu0 0
        %6775 = vmatprep.subr.bf16.mxu0 0
        %6776 = vmatpush1.bf16.msra.mxu0 0
        %6777 = vmatprep.subr.bf16.mxu0 0
        %6778 = vmatpush1.bf16.msra.mxu0 0
        %6779 = vmatprep.subr.bf16.mxu0 0
        %6780 = vmatpush1.bf16.msra.mxu0 0
        %6781 = vmatprep.subr.bf16.mxu0 0
        %6782 = vmatpush1.bf16.msra.mxu0 0
        %6783 = vmatprep.mubr.bf16.mxu0 0
        %6784 = vmatmul.mubr.bf16.gmra.mrb[0].mxu0 %v6670
        %v6785 = vpop.f32.mrb[0].mxu0
        %v6786 = vadd.f32 0.0, %v6785
        %v6787 = vpop.f32.mrb[0].mxu0
        %v6788 = vpop.f32.mrb[0].mxu0
        %v6789 = vadd.f32 0.0, %v6788
        %v6790 = vpop.f32.mrb[0].mxu0
        %6791 = vmatprep.mubr.bf16.mxu0 0
        %6792 = vmatmul.mubr.bf16.gmra.mrb[0].mxu0 %v6671
        %v6793 = vpop.f32.mrb[0].mxu0
        %v6794 = vadd.f32 0.0, %v6793
        %v6795 = vpop.f32.mrb[0].mxu0
        %v6796 = vpop.f32.mrb[0].mxu0
        %v6797 = vadd.f32 0.0, %v6796
        %v6798 = vpop.f32.mrb[0].mxu0
        %6799 = vmatprep.mubr.bf16.mxu0 0
        %6800 = vmatmul.mubr.bf16.gmra.mrb[0].mxu0 %v6672
        %v6801 = vpop.f32.mrb[0].mxu0
        %v6802 = vadd.f32 0.0, %v6801
        %v6803 = vpop.f32.mrb[0].mxu0
        %v6804 = vpop.f32.mrb[0].mxu0
        %v6805 = vadd.f32 0.0, %v6804
        %v6806 = vpop.f32.mrb[0].mxu0
        %6807 = vmatprep.mubr.bf16.mxu0 0
        %6808 = vmatmul.mubr.bf16.gmra.mrb[0].mxu0 %v6673
        %v6809 = vpop.f32.mrb[0].mxu0
        %v6810 = vadd.f32 0.0, %v6809
        %v6811 = vpop.f32.mrb[0].mxu0
        %v6812 = vpop.f32.mrb[0].mxu0
        %v6813 = vadd.f32 0.0, %v6812
        %v6814 = vpop.f32.mrb[0].mxu0
        %6815 = vmatprep.mubr.bf16.mxu0 0
        %6816 = vmatmul.mubr.bf16.gmra.mrb[0].mxu0 %v6674
        %v6817 = vpop.f32.mrb[0].mxu0
        %v6818 = vadd.f32 0.0, %v6817
        %v6819 = vpop.f32.mrb[0].mxu0
        %v6820 = vpop.f32.mrb[0].mxu0
        %v6821 = vadd.f32 0.0, %v6820
        %v6822 = vpop.f32.mrb[0].mxu0
        %6823 = vmatprep.mubr.bf16.mxu0 0
        %6824 = vmatmul.mubr.bf16.gmra.mrb[0].mxu0 %v6675
        %v6825 = vpop.f32.mrb[0].mxu0
        %v6826 = vadd.f32 0.0, %v6825
        %v6827 = vpop.f32.mrb[0].mxu0
        %v6828 = vpop.f32.mrb[0].mxu0
        %v6829 = vadd.f32 0.0, %v6828
        %v6830 = vpop.f32.mrb[0].mxu0
        %6831 = vmatprep.mubr.bf16.mxu0 0
        %6832 = vmatmul.mubr.bf16.gmra.mrb[0].mxu0 %v6676
        %v6833 = vpop.f32.mrb[0].mxu0
        %v6834 = vadd.f32 0.0, %v6833
        %v6835 = vpop.f32.mrb[0].mxu0
        %v6836 = vpop.f32.mrb[0].mxu0
        %v6837 = vadd.f32 0.0, %v6836
        %v6838 = vpop.f32.mrb[0].mxu0
        %6839 = vmatprep.mubr.bf16.mxu0 0
        %6840 = vmatmul.mubr.bf16.gmra.mrb[0].mxu0 %v6677
        %v6841 = vpop.f32.mrb[0].mxu0
        %v6842 = vadd.f32 0.0, %v6841
        %v6843 = vpop.f32.mrb[0].mxu0
        %v6844 = vpop.f32.mrb[0].mxu0
        %v6845 = vadd.f32 0.0, %v6844
        %v6846 = vpop.f32.mrb[0].mxu0
        %6847 = vmatprep.mubr.bf16.mxu0 0
        %6848 = vmatmul.mubr.bf16.gmra.mrb[0].mxu0 %v6678
        %v6849 = vpop.f32.mrb[0].mxu0
        %v6850 = vadd.f32 0.0, %v6849
        %v6851 = vpop.f32.mrb[0].mxu0
        %v6852 = vpop.f32.mrb[0].mxu0
        %v6853 = vadd.f32 0.0, %v6852
        %v6854 = vpop.f32.mrb[0].mxu0
        %6855 = vmatprep.mubr.bf16.mxu0 0
        %6856 = vmatmul.mubr.bf16.gmra.mrb[0].mxu0 %v6679
        %v6857 = vpop.f32.mrb[0].mxu0
        %v6858 = vadd.f32 0.0, %v6857
        %v6859 = vpop.f32.mrb[0].mxu0
        %v6860 = vpop.f32.mrb[0].mxu0
        %v6861 = vadd.f32 0.0, %v6860
        %v6862 = vpop.f32.mrb[0].mxu0
        %6863 = vmatprep.mubr.bf16.mxu0 0
        %6864 = vmatmul.mubr.bf16.gmra.mrb[0].mxu0 %v6680
        %v6865 = vpop.f32.mrb[0].mxu0
        %v6866 = vadd.f32 0.0, %v6865
        %v6867 = vpop.f32.mrb[0].mxu0
        %v6868 = vpop.f32.mrb[0].mxu0
        %v6869 = vadd.f32 0.0, %v6868
        %v6870 = vpop.f32.mrb[0].mxu0
        %6871 = vmatprep.mubr.bf16.mxu0 0
        %6872 = vmatmul.mubr.bf16.gmra.mrb[0].mxu0 %v6681
        %v6873 = vpop.f32.mrb[0].mxu0
        %v6874 = vadd.f32 0.0, %v6873
        %v6875 = vpop.f32.mrb[0].mxu0
        %v6876 = vpop.f32.mrb[0].mxu0
        %v6877 = vadd.f32 0.0, %v6876
        %v6878 = vpop.f32.mrb[0].mxu0
        %6879 = vmatprep.mubr.bf16.mxu0 0
        %6880 = vmatmul.mubr.bf16.gmra.mrb[0].mxu0 %v6682
        %v6881 = vpop.f32.mrb[0].mxu0
        %v6882 = vadd.f32 0.0, %v6881
        %v6883 = vpop.f32.mrb[0].mxu0
        %v6884 = vpop.f32.mrb[0].mxu0
        %v6885 = vadd.f32 0.0, %v6884
        %v6886 = vpop.f32.mrb[0].mxu0
        %6887 = vmatprep.mubr.bf16.mxu0 0
        %6888 = vmatmul.mubr.bf16.gmra.mrb[0].mxu0 %v6683
        %v6889 = vpop.f32.mrb[0].mxu0
        %v6890 = vadd.f32 0.0, %v6889
        %v6891 = vpop.f32.mrb[0].mxu0
        %v6892 = vpop.f32.mrb[0].mxu0
        %v6893 = vadd.f32 0.0, %v6892
        %v6894 = vpop.f32.mrb[0].mxu0
        %6895 = vmatprep.mubr.bf16.mxu0 0
        %6896 = vmatmul.mubr.bf16.gmra.mrb[0].mxu0 %v6684
        %v6897 = vpop.f32.mrb[0].mxu0
        %v6898 = vadd.f32 0.0, %v6897
        %v6899 = vpop.f32.mrb[0].mxu0
        %v6900 = vpop.f32.mrb[0].mxu0
        %v6901 = vadd.f32 0.0, %v6900
        %v6902 = vpop.f32.mrb[0].mxu0
        %6903 = vmatprep.mubr.bf16.mxu0 0
        %6904 = vmatmul.mubr.bf16.gmra.mrb[0].mxu0 %v6685
        %v6905 = vpop.f32.mrb[0].mxu0
        %v6906 = vadd.f32 0.0, %v6905
        %v6907 = vpop.f32.mrb[0].mxu0
        %v6908 = vpop.f32.mrb[0].mxu0
        %v6909 = vadd.f32 0.0, %v6908
        %v6910 = vpop.f32.mrb[0].mxu0
        %6911 = vdwg.mxu0
        %v6912 = vadd.f32 %v6606, %v6786
        %v6913 = vadd.f32 %v6607, %v6789
        %v6914 = vadd.f32 %v6608, %v6794
        %v6915 = vadd.f32 %v6609, %v6797
        %v6916 = vadd.f32 %v6610, %v6802
        %v6917 = vadd.f32 %v6611, %v6805
        %v6918 = vadd.f32 %v6612, %v6810
        %v6919 = vadd.f32 %v6613, %v6813
        %v6920 = vadd.f32 %v6614, %v6818
        %v6921 = vadd.f32 %v6615, %v6821
        %v6922 = vadd.f32 %v6616, %v6826
        %v6923 = vadd.f32 %v6617, %v6829
        %v6924 = vadd.f32 %v6618, %v6834
        %v6925 = vadd.f32 %v6619, %v6837
        %v6926 = vadd.f32 %v6620, %v6842
        %v6927 = vadd.f32 %v6621, %v6845
        %v6928 = vadd.f32 %v6622, %v6850
        %v6929 = vadd.f32 %v6623, %v6853
        %v6930 = vadd.f32 %v6624, %v6858
        %v6931 = vadd.f32 %v6625, %v6861
        %v6932 = vadd.f32 %v6626, %v6866
        %v6933 = vadd.f32 %v6627, %v6869
        %v6934 = vadd.f32 %v6628, %v6874
        %v6935 = vadd.f32 %v6629, %v6877
        %v6936 = vadd.f32 %v6630, %v6882
        %v6937 = vadd.f32 %v6631, %v6885
        %v6938 = vadd.f32 %v6632, %v6890
        %v6939 = vadd.f32 %v6633, %v6893
        %v6940 = vadd.f32 %v6634, %v6898
        %v6941 = vadd.f32 %v6635, %v6901
        %v6942 = vadd.f32 %v6636, %v6906
        %v6943 = vadd.f32 %v6637, %v6909
        %v6944 = vld [vmem:[%s6331 + $0x2] sm:$0xff]
        %v6945 = vld [vmem:[%s6331 + $0xa] sm:$0xff]
        %v6946 = vld [vmem:[%s6331 + $0x1a] sm:$0xff]
        %v6947 = vld [vmem:[%s6331 + $0x22] sm:$0xff]
        %v6948 = vld [vmem:[%s6331 + $0x32] sm:$0xff]
        %v6949 = vld [vmem:[%s6331 + $0x3a] sm:$0xff]
        %v6950 = vld [vmem:[%s6331 + $0x4a] sm:$0xff]
        %v6951 = vld [vmem:[%s6331 + $0x52] sm:$0xff]
        %v6952 = vld [vmem:[%s6331 + $0x62] sm:$0xff]
        %v6953 = vld [vmem:[%s6331 + $0x6a] sm:$0xff]
        %v6954 = vld [vmem:[%s6331 + $0x7a] sm:$0xff]
        %v6955 = vld [vmem:[%s6331 + $0x82] sm:$0xff]
        %v6956 = vld [vmem:[%s6331 + $0x92] sm:$0xff]
        %v6957 = vld [vmem:[%s6331 + $0x9a] sm:$0xff]
        %v6958 = vld [vmem:[%s6331 + $0xaa] sm:$0xff]
        %v6959 = vld [vmem:[%s6331 + $0xb2] sm:$0xff]
        %v6960 = vld [vmem:[%s6331 + $0xc2] sm:$0xff]
        %v6961 = vld [vmem:[%s6331 + $0xca] sm:$0xff]
        %v6962 = vld [vmem:[%s6331 + $0xda] sm:$0xff]
        %v6963 = vld [vmem:[%s6331 + $0xe2] sm:$0xff]
        %v6964 = vld [vmem:[%s6331 + $0xf2] sm:$0xff]
        %v6965 = vld [vmem:[%s6331 + $0xfa] sm:$0xff]
        %v6966 = vld [vmem:[%s6331 + $0x10a] sm:$0xff]
        %v6967 = vld [vmem:[%s6331 + $0x112] sm:$0xff]
        %v6968 = vld [vmem:[%s6331 + $0x122] sm:$0xff]
        %v6969 = vld [vmem:[%s6331 + $0x12a] sm:$0xff]
        %v6970 = vld [vmem:[%s6331 + $0x13a] sm:$0xff]
        %v6971 = vld [vmem:[%s6331 + $0x142] sm:$0xff]
        %v6972 = vld [vmem:[%s6331 + $0x152] sm:$0xff]
        %v6973 = vld [vmem:[%s6331 + $0x15a] sm:$0xff]
        %v6974 = vld [vmem:[%s6331 + $0x16a] sm:$0xff]
        %v6975 = vld [vmem:[%s6331 + $0x172] sm:$0xff]
        %v6976 = vpack.c.bf16 %v6945, %v6944
        %v6977 = vpack.c.bf16 %v6947, %v6946
        %v6978 = vpack.c.bf16 %v6949, %v6948
        %v6979 = vpack.c.bf16 %v6951, %v6950
        %v6980 = vpack.c.bf16 %v6953, %v6952
        %v6981 = vpack.c.bf16 %v6955, %v6954
        %v6982 = vpack.c.bf16 %v6957, %v6956
        %v6983 = vpack.c.bf16 %v6959, %v6958
        %v6984 = vpack.c.bf16 %v6961, %v6960
        %v6985 = vpack.c.bf16 %v6963, %v6962
        %v6986 = vpack.c.bf16 %v6965, %v6964
        %v6987 = vpack.c.bf16 %v6967, %v6966
        %v6988 = vpack.c.bf16 %v6969, %v6968
        %v6989 = vpack.c.bf16 %v6971, %v6970
        %v6990 = vpack.c.bf16 %v6973, %v6972
        %v6991 = vpack.c.bf16 %v6975, %v6974
        %s6992 = scalar_lea.vmem %s5, 512
        %v6993 = vld [vmem:[%s6992] sm:$0xf]
        %v6994 = vld [vmem:[%s6992 + $0x4] sm:$0xf]
        %v6995 = vld [vmem:[%s6992 + $0x8] sm:$0xf]
        %v6996 = vld [vmem:[%s6992 + $0xc] sm:$0xf]
        %v6997 = vld [vmem:[%s6992 + $0x10] sm:$0xf]
        %v6998 = vld [vmem:[%s6992 + $0x14] sm:$0xf]
        %v6999 = vld [vmem:[%s6992 + $0x18] sm:$0xf]
        %v7000 = vld [vmem:[%s6992 + $0x1c] sm:$0xf]
        %v7001 = vld [vmem:[%s6992 + $0x20] sm:$0xf]
        %v7002 = vld [vmem:[%s6992 + $0x24] sm:$0xf]
        %v7003 = vld [vmem:[%s6992 + $0x28] sm:$0xf]
        %v7004 = vld [vmem:[%s6992 + $0x2c] sm:$0xf]
        %v7005 = vld [vmem:[%s6992 + $0x30] sm:$0xf]
        %v7006 = vld [vmem:[%s6992 + $0x34] sm:$0xf]
        %v7007 = vld [vmem:[%s6992 + $0x38] sm:$0xf]
        %v7008 = vld [vmem:[%s6992 + $0x3c] sm:$0xf]
        %v7025 = vunpack.c.l.b16 %v6993
        %v7026 = vunpack.c.l.b16 %v6994
        %v7027 = vunpack.c.l.b16 %v6995
        %v7028 = vunpack.c.l.b16 %v6996
        %v7029 = vunpack.c.l.b16 %v6997
        %v7030 = vunpack.c.l.b16 %v6998
        %v7031 = vunpack.c.l.b16 %v6999
        %v7032 = vunpack.c.l.b16 %v7000
        %v7033 = vunpack.c.l.b16 %v7001
        %v7034 = vunpack.c.l.b16 %v7002
        %v7035 = vunpack.c.l.b16 %v7003
        %v7036 = vunpack.c.l.b16 %v7004
        %v7037 = vunpack.c.l.b16 %v7005
        %v7038 = vunpack.c.l.b16 %v7006
        %v7039 = vunpack.c.l.b16 %v7007
        %v7040 = vunpack.c.l.b16 %v7008
        %v7041 = vpack.c.b16 %v7026, %v7025
        %v7042 = vpack.c.b16 %v7028, %v7027
        %v7043 = vpack.c.b16 %v7030, %v7029
        %v7044 = vpack.c.b16 %v7032, %v7031
        %v7045 = vpack.c.b16 %v7034, %v7033
        %v7046 = vpack.c.b16 %v7036, %v7035
        %v7047 = vpack.c.b16 %v7038, %v7037
        %v7048 = vpack.c.b16 %v7040, %v7039
        %7057 = vmatprep.subr.bf16.mxu0 0
        %7058 = vmatpush1.bf16.msra.mxu0 %v7041
        %7059 = vmatprep.subr.bf16.mxu0 0
        %7060 = vmatpush1.bf16.msra.mxu0 %v7042
        %7061 = vmatprep.subr.bf16.mxu0 0
        %7062 = vmatpush1.bf16.msra.mxu0 %v7043
        %7063 = vmatprep.subr.bf16.mxu0 0
        %7064 = vmatpush1.bf16.msra.mxu0 %v7044
        %7065 = vmatprep.subr.bf16.mxu0 0
        %7066 = vmatpush1.bf16.msra.mxu0 %v7045
        %7067 = vmatprep.subr.bf16.mxu0 0
        %7068 = vmatpush1.bf16.msra.mxu0 %v7046
        %7069 = vmatprep.subr.bf16.mxu0 0
        %7070 = vmatpush1.bf16.msra.mxu0 %v7047
        %7071 = vmatprep.subr.bf16.mxu0 0
        %7072 = vmatpush1.bf16.msra.mxu0 %v7048
        %7073 = vmatprep.subr.bf16.mxu0 0
        %7074 = vmatpush1.bf16.msra.mxu0 0
        %7075 = vmatprep.subr.bf16.mxu0 0
        %7076 = vmatpush1.bf16.msra.mxu0 0
        %7077 = vmatprep.subr.bf16.mxu0 0
        %7078 = vmatpush1.bf16.msra.mxu0 0
        %7079 = vmatprep.subr.bf16.mxu0 0
        %7080 = vmatpush1.bf16.msra.mxu0 0
        %7081 = vmatprep.subr.bf16.mxu0 0
        %7082 = vmatpush1.bf16.msra.mxu0 0
        %7083 = vmatprep.subr.bf16.mxu0 0
        %7084 = vmatpush1.bf16.msra.mxu0 0
        %7085 = vmatprep.subr.bf16.mxu0 0
        %7086 = vmatpush1.bf16.msra.mxu0 0
        %7087 = vmatprep.subr.bf16.mxu0 0
        %7088 = vmatpush1.bf16.msra.mxu0 0
        %7089 = vmatprep.mubr.bf16.mxu0 0
        %7090 = vmatmul.mubr.bf16.gmra.mrb[0].mxu0 %v6976
        %v7091 = vpop.f32.mrb[0].mxu0
        %v7092 = vadd.f32 0.0, %v7091
        %v7093 = vpop.f32.mrb[0].mxu0
        %v7094 = vpop.f32.mrb[0].mxu0
        %v7095 = vadd.f32 0.0, %v7094
        %v7096 = vpop.f32.mrb[0].mxu0
        %7097 = vmatprep.mubr.bf16.mxu0 0
        %7098 = vmatmul.mubr.bf16.gmra.mrb[0].mxu0 %v6977
        %v7099 = vpop.f32.mrb[0].mxu0
        %v7100 = vadd.f32 0.0, %v7099
        %v7101 = vpop.f32.mrb[0].mxu0
        %v7102 = vpop.f32.mrb[0].mxu0
        %v7103 = vadd.f32 0.0, %v7102
        %v7104 = vpop.f32.mrb[0].mxu0
        %7105 = vmatprep.mubr.bf16.mxu0 0
        %7106 = vmatmul.mubr.bf16.gmra.mrb[0].mxu0 %v6978
        %v7107 = vpop.f32.mrb[0].mxu0
        %v7108 = vadd.f32 0.0, %v7107
        %v7109 = vpop.f32.mrb[0].mxu0
        %v7110 = vpop.f32.mrb[0].mxu0
        %v7111 = vadd.f32 0.0, %v7110
        %v7112 = vpop.f32.mrb[0].mxu0
        %7113 = vmatprep.mubr.bf16.mxu0 0
        %7114 = vmatmul.mubr.bf16.gmra.mrb[0].mxu0 %v6979
        %v7115 = vpop.f32.mrb[0].mxu0
        %v7116 = vadd.f32 0.0, %v7115
        %v7117 = vpop.f32.mrb[0].mxu0
        %v7118 = vpop.f32.mrb[0].mxu0
        %v7119 = vadd.f32 0.0, %v7118
        %v7120 = vpop.f32.mrb[0].mxu0
        %7121 = vmatprep.mubr.bf16.mxu0 0
        %7122 = vmatmul.mubr.bf16.gmra.mrb[0].mxu0 %v6980
        %v7123 = vpop.f32.mrb[0].mxu0
        %v7124 = vadd.f32 0.0, %v7123
        %v7125 = vpop.f32.mrb[0].mxu0
        %v7126 = vpop.f32.mrb[0].mxu0
        %v7127 = vadd.f32 0.0, %v7126
        %v7128 = vpop.f32.mrb[0].mxu0
        %7129 = vmatprep.mubr.bf16.mxu0 0
        %7130 = vmatmul.mubr.bf16.gmra.mrb[0].mxu0 %v6981
        %v7131 = vpop.f32.mrb[0].mxu0
        %v7132 = vadd.f32 0.0, %v7131
        %v7133 = vpop.f32.mrb[0].mxu0
        %v7134 = vpop.f32.mrb[0].mxu0
        %v7135 = vadd.f32 0.0, %v7134
        %v7136 = vpop.f32.mrb[0].mxu0
        %7137 = vmatprep.mubr.bf16.mxu0 0
        %7138 = vmatmul.mubr.bf16.gmra.mrb[0].mxu0 %v6982
        %v7139 = vpop.f32.mrb[0].mxu0
        %v7140 = vadd.f32 0.0, %v7139
        %v7141 = vpop.f32.mrb[0].mxu0
        %v7142 = vpop.f32.mrb[0].mxu0
        %v7143 = vadd.f32 0.0, %v7142
        %v7144 = vpop.f32.mrb[0].mxu0
        %7145 = vmatprep.mubr.bf16.mxu0 0
        %7146 = vmatmul.mubr.bf16.gmra.mrb[0].mxu0 %v6983
        %v7147 = vpop.f32.mrb[0].mxu0
        %v7148 = vadd.f32 0.0, %v7147
        %v7149 = vpop.f32.mrb[0].mxu0
        %v7150 = vpop.f32.mrb[0].mxu0
        %v7151 = vadd.f32 0.0, %v7150
        %v7152 = vpop.f32.mrb[0].mxu0
        %7153 = vmatprep.mubr.bf16.mxu0 0
        %7154 = vmatmul.mubr.bf16.gmra.mrb[0].mxu0 %v6984
        %v7155 = vpop.f32.mrb[0].mxu0
        %v7156 = vadd.f32 0.0, %v7155
        %v7157 = vpop.f32.mrb[0].mxu0
        %v7158 = vpop.f32.mrb[0].mxu0
        %v7159 = vadd.f32 0.0, %v7158
        %v7160 = vpop.f32.mrb[0].mxu0
        %7161 = vmatprep.mubr.bf16.mxu0 0
        %7162 = vmatmul.mubr.bf16.gmra.mrb[0].mxu0 %v6985
        %v7163 = vpop.f32.mrb[0].mxu0
        %v7164 = vadd.f32 0.0, %v7163
        %v7165 = vpop.f32.mrb[0].mxu0
        %v7166 = vpop.f32.mrb[0].mxu0
        %v7167 = vadd.f32 0.0, %v7166
        %v7168 = vpop.f32.mrb[0].mxu0
        %7169 = vmatprep.mubr.bf16.mxu0 0
        %7170 = vmatmul.mubr.bf16.gmra.mrb[0].mxu0 %v6986
        %v7171 = vpop.f32.mrb[0].mxu0
        %v7172 = vadd.f32 0.0, %v7171
        %v7173 = vpop.f32.mrb[0].mxu0
        %v7174 = vpop.f32.mrb[0].mxu0
        %v7175 = vadd.f32 0.0, %v7174
        %v7176 = vpop.f32.mrb[0].mxu0
        %7177 = vmatprep.mubr.bf16.mxu0 0
        %7178 = vmatmul.mubr.bf16.gmra.mrb[0].mxu0 %v6987
        %v7179 = vpop.f32.mrb[0].mxu0
        %v7180 = vadd.f32 0.0, %v7179
        %v7181 = vpop.f32.mrb[0].mxu0
        %v7182 = vpop.f32.mrb[0].mxu0
        %v7183 = vadd.f32 0.0, %v7182
        %v7184 = vpop.f32.mrb[0].mxu0
        %7185 = vmatprep.mubr.bf16.mxu0 0
        %7186 = vmatmul.mubr.bf16.gmra.mrb[0].mxu0 %v6988
        %v7187 = vpop.f32.mrb[0].mxu0
        %v7188 = vadd.f32 0.0, %v7187
        %v7189 = vpop.f32.mrb[0].mxu0
        %v7190 = vpop.f32.mrb[0].mxu0
        %v7191 = vadd.f32 0.0, %v7190
        %v7192 = vpop.f32.mrb[0].mxu0
        %7193 = vmatprep.mubr.bf16.mxu0 0
        %7194 = vmatmul.mubr.bf16.gmra.mrb[0].mxu0 %v6989
        %v7195 = vpop.f32.mrb[0].mxu0
        %v7196 = vadd.f32 0.0, %v7195
        %v7197 = vpop.f32.mrb[0].mxu0
        %v7198 = vpop.f32.mrb[0].mxu0
        %v7199 = vadd.f32 0.0, %v7198
        %v7200 = vpop.f32.mrb[0].mxu0
        %7201 = vmatprep.mubr.bf16.mxu0 0
        %7202 = vmatmul.mubr.bf16.gmra.mrb[0].mxu0 %v6990
        %v7203 = vpop.f32.mrb[0].mxu0
        %v7204 = vadd.f32 0.0, %v7203
        %v7205 = vpop.f32.mrb[0].mxu0
        %v7206 = vpop.f32.mrb[0].mxu0
        %v7207 = vadd.f32 0.0, %v7206
        %v7208 = vpop.f32.mrb[0].mxu0
        %7209 = vmatprep.mubr.bf16.mxu0 0
        %7210 = vmatmul.mubr.bf16.gmra.mrb[0].mxu0 %v6991
        %v7211 = vpop.f32.mrb[0].mxu0
        %v7212 = vadd.f32 0.0, %v7211
        %v7213 = vpop.f32.mrb[0].mxu0
        %v7214 = vpop.f32.mrb[0].mxu0
        %v7215 = vadd.f32 0.0, %v7214
        %v7216 = vpop.f32.mrb[0].mxu0
        %7217 = vdwg.mxu0
        %v7218 = vadd.f32 %v6912, %v7092
        %v7219 = vadd.f32 %v6913, %v7095
        %v7220 = vadd.f32 %v6914, %v7100
        %v7221 = vadd.f32 %v6915, %v7103
        %v7222 = vadd.f32 %v6916, %v7108
        %v7223 = vadd.f32 %v6917, %v7111
        %v7224 = vadd.f32 %v6918, %v7116
        %v7225 = vadd.f32 %v6919, %v7119
        %v7226 = vadd.f32 %v6920, %v7124
        %v7227 = vadd.f32 %v6921, %v7127
        %v7228 = vadd.f32 %v6922, %v7132
        %v7229 = vadd.f32 %v6923, %v7135
        %v7230 = vadd.f32 %v6924, %v7140
        %v7231 = vadd.f32 %v6925, %v7143
        %v7232 = vadd.f32 %v6926, %v7148
        %v7233 = vadd.f32 %v6927, %v7151
        %v7234 = vadd.f32 %v6928, %v7156
        %v7235 = vadd.f32 %v6929, %v7159
        %v7236 = vadd.f32 %v6930, %v7164
        %v7237 = vadd.f32 %v6931, %v7167
        %v7238 = vadd.f32 %v6932, %v7172
        %v7239 = vadd.f32 %v6933, %v7175
        %v7240 = vadd.f32 %v6934, %v7180
        %v7241 = vadd.f32 %v6935, %v7183
        %v7242 = vadd.f32 %v6936, %v7188
        %v7243 = vadd.f32 %v6937, %v7191
        %v7244 = vadd.f32 %v6938, %v7196
        %v7245 = vadd.f32 %v6939, %v7199
        %v7246 = vadd.f32 %v6940, %v7204
        %v7247 = vadd.f32 %v6941, %v7207
        %v7248 = vadd.f32 %v6942, %v7212
        %v7249 = vadd.f32 %v6943, %v7215
        %v7250 = vmul.f32 %v7218, %v7218
        %v7251 = vmul.f32 %v7219, %v7219
        %v7252 = vmul.f32 %v7220, %v7220
        %v7253 = vmul.f32 %v7221, %v7221
        %v7254 = vmul.f32 %v7222, %v7222
        %v7255 = vmul.f32 %v7223, %v7223
        %v7256 = vmul.f32 %v7224, %v7224
        %v7257 = vmul.f32 %v7225, %v7225
        %v7258 = vmul.f32 %v7226, %v7226
        %v7259 = vmul.f32 %v7227, %v7227
        %v7260 = vmul.f32 %v7228, %v7228
        %v7261 = vmul.f32 %v7229, %v7229
        %v7262 = vmul.f32 %v7230, %v7230
        %v7263 = vmul.f32 %v7231, %v7231
        %v7264 = vmul.f32 %v7232, %v7232
        %v7265 = vmul.f32 %v7233, %v7233
        %v7266 = vmul.f32 %v7234, %v7234
        %v7267 = vmul.f32 %v7235, %v7235
        %v7268 = vmul.f32 %v7236, %v7236
        %v7269 = vmul.f32 %v7237, %v7237
        %v7270 = vmul.f32 %v7238, %v7238
        %v7271 = vmul.f32 %v7239, %v7239
        %v7272 = vmul.f32 %v7240, %v7240
        %v7273 = vmul.f32 %v7241, %v7241
        %v7274 = vmul.f32 %v7242, %v7242
        %v7275 = vmul.f32 %v7243, %v7243
        %v7276 = vmul.f32 %v7244, %v7244
        %v7277 = vmul.f32 %v7245, %v7245
        %v7278 = vmul.f32 %v7246, %v7246
        %v7279 = vmul.f32 %v7247, %v7247
        %v7280 = vmul.f32 %v7248, %v7248
        %v7281 = vmul.f32 %v7249, %v7249
        %v7282 = vpack.c.bf16 %v7251, %v7250
        %v7283 = vpack.c.bf16 %v7253, %v7252
        %v7284 = vpack.c.bf16 %v7255, %v7254
        %v7285 = vpack.c.bf16 %v7257, %v7256
        %v7286 = vpack.c.bf16 %v7259, %v7258
        %v7287 = vpack.c.bf16 %v7261, %v7260
        %v7288 = vpack.c.bf16 %v7263, %v7262
        %v7289 = vpack.c.bf16 %v7265, %v7264
        %v7290 = vpack.c.bf16 %v7267, %v7266
        %v7291 = vpack.c.bf16 %v7269, %v7268
        %v7292 = vpack.c.bf16 %v7271, %v7270
        %v7293 = vpack.c.bf16 %v7273, %v7272
        %v7294 = vpack.c.bf16 %v7275, %v7274
        %v7295 = vpack.c.bf16 %v7277, %v7276
        %v7296 = vpack.c.bf16 %v7279, %v7278
        %v7297 = vpack.c.bf16 %v7281, %v7280
        %v7298 = vld [vmem:[#allocation12] sm:$0xf]
        %v7299 = vld [vmem:[#allocation12 + $0x4] sm:$0xf]
        %v7300 = vld [vmem:[#allocation12 + $0x8] sm:$0xf]
        %v7301 = vld [vmem:[#allocation12 + $0xc] sm:$0xf]
        %v7302 = vld [vmem:[#allocation12 + $0x10] sm:$0xf]
        %v7303 = vld [vmem:[#allocation12 + $0x14] sm:$0xf]
        %v7310 = vunpack.c.l.b16 %v7298
        %v7311 = vunpack.c.l.b16 %v7299
        %v7312 = vunpack.c.l.b16 %v7300
        %v7313 = vunpack.c.l.b16 %v7301
        %v7314 = vunpack.c.l.b16 %v7302
        %v7315 = vunpack.c.l.b16 %v7303
        %v7316 = vpack.c.b16 %v7311, %v7310
        %v7317 = vpack.c.b16 %v7313, %v7312
        %v7318 = vpack.c.b16 %v7315, %v7314
        %vm7322 = vcmask 392192
        %v7324 = vsel %vm7322, %v7282, 0
        %v7327 = vsel %vm7322, %v7283, 0
        %v7330 = vsel %vm7322, %v7284, 0
        %v7333 = vsel %vm7322, %v7285, 0
        %v7336 = vsel %vm7322, %v7286, 0
        %v7339 = vsel %vm7322, %v7287, 0
        %v7342 = vsel %vm7322, %v7288, 0
        %v7345 = vsel %vm7322, %v7289, 0
        %v7348 = vsel %vm7322, %v7290, 0
        %v7351 = vsel %vm7322, %v7291, 0
        %v7354 = vsel %vm7322, %v7292, 0
        %v7357 = vsel %vm7322, %v7293, 0
        %v7360 = vsel %vm7322, %v7294, 0
        %v7363 = vsel %vm7322, %v7295, 0
        %v7366 = vsel %vm7322, %v7296, 0
        %v7369 = vsel %vm7322, %v7297, 0
        %7371 = vmatprep.subr.bf16.mxu0 0
        %7372 = vmatpush1.bf16.msra.mxu0 %v7316
        %7373 = vmatprep.subr.bf16.mxu0 0
        %7374 = vmatpush1.bf16.msra.mxu0 %v7317
        %7375 = vmatprep.subr.bf16.mxu0 0
        %7376 = vmatpush1.bf16.msra.mxu0 %v7318
        %7377 = vmatprep.subr.bf16.mxu0 0
        %7378 = vmatpush1.bf16.msra.mxu0 0
        %7379 = vmatprep.subr.bf16.mxu0 0
        %7380 = vmatpush1.bf16.msra.mxu0 0
        %7381 = vmatprep.subr.bf16.mxu0 0
        %7382 = vmatpush1.bf16.msra.mxu0 0
        %7383 = vmatprep.subr.bf16.mxu0 0
        %7384 = vmatpush1.bf16.msra.mxu0 0
        %7385 = vmatprep.subr.bf16.mxu0 0
        %7386 = vmatpush1.bf16.msra.mxu0 0
        %7387 = vmatprep.subr.bf16.mxu0 0
        %7388 = vmatpush1.bf16.msra.mxu0 0
        %7389 = vmatprep.subr.bf16.mxu0 0
        %7390 = vmatpush1.bf16.msra.mxu0 0
        %7391 = vmatprep.subr.bf16.mxu0 0
        %7392 = vmatpush1.bf16.msra.mxu0 0
        %7393 = vmatprep.subr.bf16.mxu0 0
        %7394 = vmatpush1.bf16.msra.mxu0 0
        %7395 = vmatprep.subr.bf16.mxu0 0
        %7396 = vmatpush1.bf16.msra.mxu0 0
        %7397 = vmatprep.subr.bf16.mxu0 0
        %7398 = vmatpush1.bf16.msra.mxu0 0
        %7399 = vmatprep.subr.bf16.mxu0 0
        %7400 = vmatpush1.bf16.msra.mxu0 0
        %7401 = vmatprep.subr.bf16.mxu0 0
        %7402 = vmatpush1.bf16.msra.mxu0 0
        %7403 = vmatprep.mubr.bf16.mxu0 0
        %7404 = vmatmul.mubr.bf16.gmra.mrb[0].mxu0 %v7324
        %v7405 = vpop.f32.mrb[0].mxu0
        %v7406 = vadd.f32 1e-08, %v7405
        %v7407 = vpop.f32.mrb[0].mxu0
        %v7408 = vpop.f32.mrb[0].mxu0
        %v7409 = vadd.f32 1e-08, %v7408
        %v7410 = vpop.f32.mrb[0].mxu0
        %7411 = vmatprep.mubr.bf16.mxu0 0
        %7412 = vmatmul.mubr.bf16.gmra.mrb[0].mxu0 %v7327
        %v7413 = vpop.f32.mrb[0].mxu0
        %v7414 = vadd.f32 1e-08, %v7413
        %v7415 = vpop.f32.mrb[0].mxu0
        %v7416 = vpop.f32.mrb[0].mxu0
        %v7417 = vadd.f32 1e-08, %v7416
        %v7418 = vpop.f32.mrb[0].mxu0
        %7419 = vmatprep.mubr.bf16.mxu0 0
        %7420 = vmatmul.mubr.bf16.gmra.mrb[0].mxu0 %v7330
        %v7421 = vpop.f32.mrb[0].mxu0
        %v7422 = vadd.f32 1e-08, %v7421
        %v7423 = vpop.f32.mrb[0].mxu0
        %v7424 = vpop.f32.mrb[0].mxu0
        %v7425 = vadd.f32 1e-08, %v7424
        %v7426 = vpop.f32.mrb[0].mxu0
        %7427 = vmatprep.mubr.bf16.mxu0 0
        %7428 = vmatmul.mubr.bf16.gmra.mrb[0].mxu0 %v7333
        %v7429 = vpop.f32.mrb[0].mxu0
        %v7430 = vadd.f32 1e-08, %v7429
        %v7431 = vpop.f32.mrb[0].mxu0
        %v7432 = vpop.f32.mrb[0].mxu0
        %v7433 = vadd.f32 1e-08, %v7432
        %v7434 = vpop.f32.mrb[0].mxu0
        %7435 = vmatprep.mubr.bf16.mxu0 0
        %7436 = vmatmul.mubr.bf16.gmra.mrb[0].mxu0 %v7336
        %v7437 = vpop.f32.mrb[0].mxu0
        %v7438 = vadd.f32 1e-08, %v7437
        %v7439 = vpop.f32.mrb[0].mxu0
        %v7440 = vpop.f32.mrb[0].mxu0
        %v7441 = vadd.f32 1e-08, %v7440
        %v7442 = vpop.f32.mrb[0].mxu0
        %7443 = vmatprep.mubr.bf16.mxu0 0
        %7444 = vmatmul.mubr.bf16.gmra.mrb[0].mxu0 %v7339
        %v7445 = vpop.f32.mrb[0].mxu0
        %v7446 = vadd.f32 1e-08, %v7445
        %v7447 = vpop.f32.mrb[0].mxu0
        %v7448 = vpop.f32.mrb[0].mxu0
        %v7449 = vadd.f32 1e-08, %v7448
        %v7450 = vpop.f32.mrb[0].mxu0
        %7451 = vmatprep.mubr.bf16.mxu0 0
        %7452 = vmatmul.mubr.bf16.gmra.mrb[0].mxu0 %v7342
        %v7453 = vpop.f32.mrb[0].mxu0
        %v7454 = vadd.f32 1e-08, %v7453
        %v7455 = vpop.f32.mrb[0].mxu0
        %v7456 = vpop.f32.mrb[0].mxu0
        %v7457 = vadd.f32 1e-08, %v7456
        %v7458 = vpop.f32.mrb[0].mxu0
        %7459 = vmatprep.mubr.bf16.mxu0 0
        %7460 = vmatmul.mubr.bf16.gmra.mrb[0].mxu0 %v7345
        %v7461 = vpop.f32.mrb[0].mxu0
        %v7462 = vadd.f32 1e-08, %v7461
        %v7463 = vpop.f32.mrb[0].mxu0
        %v7464 = vpop.f32.mrb[0].mxu0
        %v7465 = vadd.f32 1e-08, %v7464
        %v7466 = vpop.f32.mrb[0].mxu0
        %7467 = vmatprep.mubr.bf16.mxu0 0
        %7468 = vmatmul.mubr.bf16.gmra.mrb[0].mxu0 %v7348
        %v7469 = vpop.f32.mrb[0].mxu0
        %v7470 = vadd.f32 1e-08, %v7469
        %v7471 = vpop.f32.mrb[0].mxu0
        %v7472 = vpop.f32.mrb[0].mxu0
        %v7473 = vadd.f32 1e-08, %v7472
        %v7474 = vpop.f32.mrb[0].mxu0
        %7475 = vmatprep.mubr.bf16.mxu0 0
        %7476 = vmatmul.mubr.bf16.gmra.mrb[0].mxu0 %v7351
        %v7477 = vpop.f32.mrb[0].mxu0
        %v7478 = vadd.f32 1e-08, %v7477
        %v7479 = vpop.f32.mrb[0].mxu0
        %v7480 = vpop.f32.mrb[0].mxu0
        %v7481 = vadd.f32 1e-08, %v7480
        %v7482 = vpop.f32.mrb[0].mxu0
        %7483 = vmatprep.mubr.bf16.mxu0 0
        %7484 = vmatmul.mubr.bf16.gmra.mrb[0].mxu0 %v7354
        %v7485 = vpop.f32.mrb[0].mxu0
        %v7486 = vadd.f32 1e-08, %v7485
        %v7487 = vpop.f32.mrb[0].mxu0
        %v7488 = vpop.f32.mrb[0].mxu0
        %v7489 = vadd.f32 1e-08, %v7488
        %v7490 = vpop.f32.mrb[0].mxu0
        %7491 = vmatprep.mubr.bf16.mxu0 0
        %7492 = vmatmul.mubr.bf16.gmra.mrb[0].mxu0 %v7357
        %v7493 = vpop.f32.mrb[0].mxu0
        %v7494 = vadd.f32 1e-08, %v7493
        %v7495 = vpop.f32.mrb[0].mxu0
        %v7496 = vpop.f32.mrb[0].mxu0
        %v7497 = vadd.f32 1e-08, %v7496
        %v7498 = vpop.f32.mrb[0].mxu0
        %7499 = vmatprep.mubr.bf16.mxu0 0
        %7500 = vmatmul.mubr.bf16.gmra.mrb[0].mxu0 %v7360
        %v7501 = vpop.f32.mrb[0].mxu0
        %v7502 = vadd.f32 1e-08, %v7501
        %v7503 = vpop.f32.mrb[0].mxu0
        %v7504 = vpop.f32.mrb[0].mxu0
        %v7505 = vadd.f32 1e-08, %v7504
        %v7506 = vpop.f32.mrb[0].mxu0
        %7507 = vmatprep.mubr.bf16.mxu0 0
        %7508 = vmatmul.mubr.bf16.gmra.mrb[0].mxu0 %v7363
        %v7509 = vpop.f32.mrb[0].mxu0
        %v7510 = vadd.f32 1e-08, %v7509
        %v7511 = vpop.f32.mrb[0].mxu0
        %v7512 = vpop.f32.mrb[0].mxu0
        %v7513 = vadd.f32 1e-08, %v7512
        %v7514 = vpop.f32.mrb[0].mxu0
        %7515 = vmatprep.mubr.bf16.mxu0 0
        %7516 = vmatmul.mubr.bf16.gmra.mrb[0].mxu0 %v7366
        %v7517 = vpop.f32.mrb[0].mxu0
        %v7518 = vadd.f32 1e-08, %v7517
        %v7519 = vpop.f32.mrb[0].mxu0
        %v7520 = vpop.f32.mrb[0].mxu0
        %v7521 = vadd.f32 1e-08, %v7520
        %v7522 = vpop.f32.mrb[0].mxu0
        %7523 = vmatprep.mubr.bf16.mxu0 0
        %7524 = vmatmul.mubr.bf16.gmra.mrb[0].mxu0 %v7369
        %v7525 = vpop.f32.mrb[0].mxu0
        %v7526 = vadd.f32 1e-08, %v7525
        %v7527 = vpop.f32.mrb[0].mxu0
        %v7528 = vpop.f32.mrb[0].mxu0
        %v7529 = vadd.f32 1e-08, %v7528
        %v7530 = vpop.f32.mrb[0].mxu0
        %7531 = vdwg.mxu0
        %v7532 = vrsqrt.pop %v7406
        %v7533 = vrsqrt.pop %v7409
        %v7534 = vrsqrt.pop %v7414
        %v7535 = vrsqrt.pop %v7417
        %v7536 = vrsqrt.pop %v7422
        %v7537 = vrsqrt.pop %v7425
        %v7538 = vrsqrt.pop %v7430
        %v7539 = vrsqrt.pop %v7433
        %v7540 = vrsqrt.pop %v7438
        %v7541 = vrsqrt.pop %v7441
        %v7542 = vrsqrt.pop %v7446
        %v7543 = vrsqrt.pop %v7449
        %v7544 = vrsqrt.pop %v7454
        %v7545 = vrsqrt.pop %v7457
        %v7546 = vrsqrt.pop %v7462
        %v7547 = vrsqrt.pop %v7465
        %v7548 = vrsqrt.pop %v7470
        %v7549 = vrsqrt.pop %v7473
        %v7550 = vrsqrt.pop %v7478
        %v7551 = vrsqrt.pop %v7481
        %v7552 = vrsqrt.pop %v7486
        %v7553 = vrsqrt.pop %v7489
        %v7554 = vrsqrt.pop %v7494
        %v7555 = vrsqrt.pop %v7497
        %v7556 = vrsqrt.pop %v7502
        %v7557 = vrsqrt.pop %v7505
        %v7558 = vrsqrt.pop %v7510
        %v7559 = vrsqrt.pop %v7513
        %v7560 = vrsqrt.pop %v7518
        %v7561 = vrsqrt.pop %v7521
        %v7562 = vrsqrt.pop %v7526
        %v7563 = vrsqrt.pop %v7529
        %v7564 = vmul.f32 %v7218, %v7532
        %v7565 = vmul.f32 %v7219, %v7533
        %v7566 = vmul.f32 %v7220, %v7534
        %v7567 = vmul.f32 %v7221, %v7535
        %v7568 = vmul.f32 %v7222, %v7536
        %v7569 = vmul.f32 %v7223, %v7537
        %v7570 = vmul.f32 %v7224, %v7538
        %v7571 = vmul.f32 %v7225, %v7539
        %v7572 = vmul.f32 %v7226, %v7540
        %v7573 = vmul.f32 %v7227, %v7541
        %v7574 = vmul.f32 %v7228, %v7542
        %v7575 = vmul.f32 %v7229, %v7543
        %v7576 = vmul.f32 %v7230, %v7544
        %v7577 = vmul.f32 %v7231, %v7545
        %v7578 = vmul.f32 %v7232, %v7546
        %v7579 = vmul.f32 %v7233, %v7547
        %v7580 = vmul.f32 %v7234, %v7548
        %v7581 = vmul.f32 %v7235, %v7549
        %v7582 = vmul.f32 %v7236, %v7550
        %v7583 = vmul.f32 %v7237, %v7551
        %v7584 = vmul.f32 %v7238, %v7552
        %v7585 = vmul.f32 %v7239, %v7553
        %v7586 = vmul.f32 %v7240, %v7554
        %v7587 = vmul.f32 %v7241, %v7555
        %v7588 = vmul.f32 %v7242, %v7556
        %v7589 = vmul.f32 %v7243, %v7557
        %v7590 = vmul.f32 %v7244, %v7558
        %v7591 = vmul.f32 %v7245, %v7559
        %v7592 = vmul.f32 %v7246, %v7560
        %v7593 = vmul.f32 %v7247, %v7561
        %v7594 = vmul.f32 %v7248, %v7562
        %v7595 = vmul.f32 %v7249, %v7563
        %v7596 = vtanh.pop %v7564
        %v7597 = vtanh.pop %v7565
        %v7598 = vtanh.pop %v7566
        %v7599 = vtanh.pop %v7567
        %v7600 = vtanh.pop %v7568
        %v7601 = vtanh.pop %v7569
        %v7602 = vtanh.pop %v7570
        %v7603 = vtanh.pop %v7571
        %v7604 = vtanh.pop %v7572
        %v7605 = vtanh.pop %v7573
        %v7606 = vtanh.pop %v7574
        %v7607 = vtanh.pop %v7575
        %v7608 = vtanh.pop %v7576
        %v7609 = vtanh.pop %v7577
        %v7610 = vtanh.pop %v7578
        %v7611 = vtanh.pop %v7579
        %v7612 = vtanh.pop %v7580
        %v7613 = vtanh.pop %v7581
        %v7614 = vtanh.pop %v7582
        %v7615 = vtanh.pop %v7583
        %v7616 = vtanh.pop %v7584
        %v7617 = vtanh.pop %v7585
        %v7618 = vtanh.pop %v7586
        %v7619 = vtanh.pop %v7587
        %v7620 = vtanh.pop %v7588
        %v7621 = vtanh.pop %v7589
        %v7622 = vtanh.pop %v7590
        %v7623 = vtanh.pop %v7591
        %v7624 = vtanh.pop %v7592
        %v7625 = vtanh.pop %v7593
        %v7626 = vtanh.pop %v7594
        %v7627 = vtanh.pop %v7595
        %7628 = vst.msk [vmem:[%s387] sm:$0xff] %vm7322, %v7596
        %7629 = vst.msk [vmem:[%s387 + $0x8] sm:$0xff] %vm7322, %v7597
        %7630 = vst.msk [vmem:[%s387 + $0x10] sm:$0xff] %vm7322, %v7598
        %7631 = vst.msk [vmem:[%s387 + $0x18] sm:$0xff] %vm7322, %v7599
        %7632 = vst.msk [vmem:[%s387 + $0x20] sm:$0xff] %vm7322, %v7600
        %7633 = vst.msk [vmem:[%s387 + $0x28] sm:$0xff] %vm7322, %v7601
        %7634 = vst.msk [vmem:[%s387 + $0x30] sm:$0xff] %vm7322, %v7602
        %7635 = vst.msk [vmem:[%s387 + $0x38] sm:$0xff] %vm7322, %v7603
        %7636 = vst.msk [vmem:[%s387 + $0x40] sm:$0xff] %vm7322, %v7604
        %7637 = vst.msk [vmem:[%s387 + $0x48] sm:$0xff] %vm7322, %v7605
        %7638 = vst.msk [vmem:[%s387 + $0x50] sm:$0xff] %vm7322, %v7606
        %7639 = vst.msk [vmem:[%s387 + $0x58] sm:$0xff] %vm7322, %v7607
        %7640 = vst.msk [vmem:[%s387 + $0x60] sm:$0xff] %vm7322, %v7608
        %7641 = vst.msk [vmem:[%s387 + $0x68] sm:$0xff] %vm7322, %v7609
        %7642 = vst.msk [vmem:[%s387 + $0x70] sm:$0xff] %vm7322, %v7610
        %7643 = vst.msk [vmem:[%s387 + $0x78] sm:$0xff] %vm7322, %v7611
        %7644 = vst.msk [vmem:[%s387 + $0x80] sm:$0xff] %vm7322, %v7612
        %7645 = vst.msk [vmem:[%s387 + $0x88] sm:$0xff] %vm7322, %v7613
        %7646 = vst.msk [vmem:[%s387 + $0x90] sm:$0xff] %vm7322, %v7614
        %7647 = vst.msk [vmem:[%s387 + $0x98] sm:$0xff] %vm7322, %v7615
        %7648 = vst.msk [vmem:[%s387 + $0xa0] sm:$0xff] %vm7322, %v7616
        %7649 = vst.msk [vmem:[%s387 + $0xa8] sm:$0xff] %vm7322, %v7617
        %7650 = vst.msk [vmem:[%s387 + $0xb0] sm:$0xff] %vm7322, %v7618
        %7651 = vst.msk [vmem:[%s387 + $0xb8] sm:$0xff] %vm7322, %v7619
        %7652 = vst.msk [vmem:[%s387 + $0xc0] sm:$0xff] %vm7322, %v7620
        %7653 = vst.msk [vmem:[%s387 + $0xc8] sm:$0xff] %vm7322, %v7621
        %7654 = vst.msk [vmem:[%s387 + $0xd0] sm:$0xff] %vm7322, %v7622
        %7655 = vst.msk [vmem:[%s387 + $0xd8] sm:$0xff] %vm7322, %v7623
        %7656 = vst.msk [vmem:[%s387 + $0xe0] sm:$0xff] %vm7322, %v7624
        %7657 = vst.msk [vmem:[%s387 + $0xe8] sm:$0xff] %vm7322, %v7625
        %7658 = vst.msk [vmem:[%s387 + $0xf0] sm:$0xff] %vm7322, %v7626
        %7659 = vst.msk [vmem:[%s387 + $0xf8] sm:$0xff] %vm7322, %v7627
        %p7660 = scmp.lt.s32.totalorder %s23, 1
        %s7661 = scalar_select %p7660, %s23, 1
        %s7662 = smul.addr %s7661, 32
        %s7663 = smul.addr %s7662, 8
        %s7664 = scalar_lea.vmem %s8, %s7663
        // Predicated region
        $region77: #{generator_forward.1} parent=51 // pred_check
          %p7665 = pneg %p214
        $region78: #{generator_forward.1} parent=51 // pred_check_branch
          %7667 = sbr.rel (%p7665) target = $region80
        $region79: #{generator_forward.1} parent=51 // pred_region
          _
        $region80: #{generator_forward.1} parent=51 // pred_fallthru
          _
      $region52: #{generator_forward.1} parent=5 // pred_fallthru
        _
      %p7668 = scmp.le.s32.totalorder 2, %s18
      // Predicated region
      $region81: #{generator_forward.1} parent=5 // pred_check
        %p7669 = pneg %p7668
      $region82: #{generator_forward.1} parent=5 // pred_check_branch
        %7671 = sbr.rel (%p7669) target = $region84
      $region83: #{generator_forward.1} parent=5 // pred_region
        %s7672 = ssub.s32 %s18, 2
        // Predicated region
        $region85: #{generator_forward.1} parent=83 // pred_check
          %p7673 = pneg %p220
        $region86: #{generator_forward.1} parent=83 // pred_check_branch
          %7675 = sbr.rel (%p7673) target = $region88
        $region87: #{generator_forward.1} parent=83 // pred_region
          %p7676 = scmp.lt.s32.totalorder %s24, 1
          %s7677 = scalar_select %p7676, %s24, 1
          %s7678 = smul.addr %s7677, 32
          %s7679 = smul.addr %s7678, 8
          %s7680 = scalar_lea.vmem %s8, %s7679
        $region88: #{generator_forward.1} parent=83 // pred_fallthru
          _
      $region84: #{generator_forward.1} parent=5 // pred_fallthru
        _
    $region6: #{generator_forward.1} parent=1 // loop_footer
      %s22 = sadd.s32 1, %s18
    $region7: #{generator_forward.1} parent=1 // loop_footer_branch
      %17 = sbr.rel target = $region3
    $region8: #{generator_forward.1} parent=1 // loop_exit
      _
    %7681 = vsyncpa [#allocation5], 1
    %s7682 = scalar_lea.sflag [#allocation5], 1
    %7683 = vsyncpa %s7682, 1
    %7684 = vsyncpa [#allocation7], 1
    %7685 = vsyncpa [#allocation10], 1
    %7686 = vsyncpa [#allocation13], 1

</llo_original>
